<compile_context>
chip_gen: v7x
topology: tpu7x:2x2x1
jax: 0.10.0
libtpu: 0.0.40
codegen_flags: <defaults>
</compile_context>

<pallas_src>
import functools

import numpy as np
import jax
import jax.numpy as jnp
from jax import lax
from jax.experimental import pallas as pl
from jax.experimental.pallas import tpu as pltpu  # noqa: F401  (TPU backend)


# ---------------- model configuration (small synthetic sizes) ----------------
D_MODEL = 32
D_STATE = 16
EXPAND = 2
D_INNER = EXPAND * D_MODEL          # 64
DT_RANK = 8
D_CONV = 4
BATCH = 2
SEQ = 8


# ------------------------------- Pallas kernel -------------------------------
def mamba_block_kernel(xcat_ref, w_ic_ref, b_ic_ref, w_proj_ref, b_dt_ref,
                       a_exp_ref, e_rep_ref, e_red_ref, d_ref, w_out_ref,
                       out_ref, *, nb, seq, d_inner, n, dt_pad):
    dn = d_inner * n

    # fused in_proj + depthwise causal conv1d (+ res projection): one MXU pass
    zr = jnp.dot(xcat_ref[...], w_ic_ref[...],
                 preferred_element_type=jnp.float32) + b_ic_ref[...]
    conv = zr[:, :d_inner]                                  # conv1d pre-activation
    res = zr[:, d_inner:2 * d_inner]                        # residual gate input
    xc = conv * jax.nn.sigmoid(conv)                        # SiLU

    # fused (x_proj dt-slice @ dt_proj | B-projection | C-projection): one MXU
    # pass, all column blocks 128-lane aligned.
    proj = jnp.dot(xc, w_proj_ref[...], preferred_element_type=jnp.float32)
    dt = proj[:, :d_inner] + b_dt_ref[...]
    delta = jnp.where(dt > 20.0, dt, jnp.log1p(jnp.exp(dt)))       # softplus
    b_tile = proj[:, dt_pad:dt_pad + dn]                           # (LB, dn)
    c_tile = proj[:, dt_pad + dn:dt_pad + 2 * dn]                  # (LB, dn)

    # discretization, flattened: dA[r, d*n+j] = exp(delta[r,d] * A[d,j])
    dA = jnp.exp(jnp.dot(delta, a_exp_ref[...],
                         preferred_element_type=jnp.float32))       # (LB, dn)
    dBu = jnp.dot(delta * xc, e_rep_ref[...],
                  preferred_element_type=jnp.float32) * b_tile       # (LB, dn)

    # selective scan: rows are (t, b)-ordered, each step is a contiguous block;
    # the loop body is a pure VPU multiply-add on lane-dense state.
    h = jnp.zeros((nb, dn), jnp.float32)
    hs = []
    for t in range(seq):                                    # static, small
        lo = t * nb
        h = dA[lo:lo + nb, :] * h + dBu[lo:lo + nb, :]
        hs.append(h)
    hist = jnp.concatenate(hs, axis=0)                      # (LB, dn)

    # y[r, d] = sum_j hist[r, d*n+j] * C[r, j]  -> one mul + one MXU reduce
    y = jnp.dot(hist * c_tile, e_red_ref[...],
                preferred_element_type=jnp.float32)          # (LB, d_inner)
    y = y + xc * d_ref[...]
    y = y * (res * jax.nn.sigmoid(res))                      # y * SiLU(res)
    out_ref[...] = jnp.dot(y, w_out_ref[...],
                           preferred_element_type=jnp.float32)  # lane-dense store


# --------------------------------- wrapper -----------------------------------
def mamba_block(x, params):
    B, L, d_model = x.shape
    d_inner = params["D"].shape[-1]
    n = params["A_log"].shape[-1]
    dt_rank = params["w_dt"].shape[0]
    K = params["w_conv"].shape[0]
    dn = d_inner * n
    dt_pad = ((d_inner + 127) // 128) * 128                 # lane-aligned dt block

    # ---- offline weight fusion / constant expansion (plain XLA ops) ----
    w_in_x = params["w_in"][:, :d_inner]                    # (d_model, d_inner)
    w_in_res = params["w_in"][:, d_inner:]                  # (d_model, d_inner)

    # depthwise conv folded into in_proj: row block s multiplies x[t-s]
    w_cat = jnp.concatenate(
        [w_in_x * params["w_conv"][K - 1 - s][None, :] for s in range(K)],
        axis=0)                                              # (K*d_model, d_inner)
    w_res_block = jnp.concatenate(
        [w_in_res, jnp.zeros(((K - 1) * d_model, d_inner), jnp.float32)],
        axis=0)                                              # (K*d_model, d_inner)
    w_inconv = jnp.concatenate([w_cat, w_res_block], axis=1)  # (K*d_model, 2*d_inner)
    b_inconv = jnp.concatenate(
        [params["b_conv"], jnp.zeros((1, d_inner), jnp.float32)], axis=1)

    # dt path: x_proj dt-slice folded with dt_proj; B/C projections pre-tiled
    # to the flattened (d_inner*n) layout; all three fused into one weight.
    w_delta = params["w_x"][:, :dt_rank] @ params["w_dt"]    # (d_inner, d_inner)
    w_delta_p = jnp.pad(w_delta, ((0, 0), (0, dt_pad - d_inner)))
    tile_n = jnp.tile(jnp.eye(n, dtype=jnp.float32), (1, d_inner))     # (n, dn)
    w_btile = params["w_x"][:, dt_rank:dt_rank + n] @ tile_n           # (d_inner, dn)
    w_ctile = params["w_x"][:, dt_rank + n:dt_rank + 2 * n] @ tile_n   # (d_inner, dn)
    w_proj = jnp.concatenate([w_delta_p, w_btile, w_ctile], axis=1)    # (d_inner, dt_pad+2dn)

    # A = -exp(A_log), expanded so (delta @ a_exp)[r, d*n+j] = delta[r,d]*A[d,j]
    e_red = jnp.repeat(jnp.eye(d_inner, dtype=jnp.float32), n, axis=0)  # (dn, d_inner)
    e_rep = e_red.T                                                      # (d_inner, dn)
    a_flat = (-jnp.exp(params["A_log"])).reshape(1, dn)
    a_exp = e_rep * a_flat                                               # (d_inner, dn)

    # pad out_proj columns so the output store is lane-dense (multiple of 128)
    out_pad = (-d_model) % 128
    w_out_p = jnp.pad(params["w_out"], ((0, 0), (0, out_pad)))

    # ---- input: (t, b)-major rows; conv lags concatenated along features ----
    shifted = [jnp.pad(x, ((0, 0), (s, 0), (0, 0)))[:, :L, :] for s in range(K)]
    x_cat = jnp.concatenate(shifted, axis=-1)                # (B, L, K*d_model)
    x_cat = jnp.transpose(x_cat, (1, 0, 2)).reshape(L * B, K * d_model)

    kernel = functools.partial(mamba_block_kernel,
                               nb=B, seq=L, d_inner=d_inner, n=n, dt_pad=dt_pad)

    out_flat = pl.pallas_call(
        kernel,
        out_shape=jax.ShapeDtypeStruct((L * B, d_model + out_pad), jnp.float32),
    )(x_cat, w_inconv, b_inconv, w_proj, params["b_dt"],
      a_exp, e_rep, e_red, params["D"], w_out_p)

    out = out_flat.reshape(L, B, d_model + out_pad)
    return jnp.transpose(out, (1, 0, 2))[:, :, :d_model]


# --------------------------- pure-JAX reference ------------------------------
def mamba_block_ref(x, params):
    d_inner = params["D"].shape[-1]
    n = params["A_log"].shape[-1]
    dt_rank = params["w_dt"].shape[0]
    K = params["w_conv"].shape[0]
    B, L, _ = x.shape

    x_and_res = jnp.einsum("bld,de->ble", x, params["w_in"])
    xin, res = x_and_res[..., :d_inner], x_and_res[..., d_inner:]

    xpad = jnp.pad(xin, ((0, 0), (K - 1, 0), (0, 0)))
    conv = params["b_conv"][None]
    for k in range(K):
        conv = conv + params["w_conv"][k][None, None, :] * xpad[:, k:k + L, :]
    xc = conv * jax.nn.sigmoid(conv)

    x_dbl = jnp.einsum("bld,de->ble", xc, params["w_x"])
    delta_low = x_dbl[..., :dt_rank]
    Bm = x_dbl[..., dt_rank:dt_rank + n]
    Cm = x_dbl[..., dt_rank + n:dt_rank + 2 * n]

    dt = jnp.einsum("blr,rd->bld", delta_low, params["w_dt"]) + params["b_dt"][None]
    delta = jnp.where(dt > 20.0, dt, jnp.log1p(jnp.exp(dt)))

    A = -jnp.exp(params["A_log"])
    deltaA = jnp.exp(jnp.einsum("bld,dn->bldn", delta, A))
    dBu = jnp.einsum("bld,bln,bld->bldn", delta, Bm, xc)

    def step(h, inp):
        dA_i, dBu_i, C_i = inp
        h = dA_i * h + dBu_i
        y = jnp.einsum("bdn,bn->bd", h, C_i)
        return h, y

    h0 = jnp.zeros((B, d_inner, n), jnp.float32)
    _, ys = lax.scan(step, h0,
                     (jnp.moveaxis(deltaA, 1, 0),
                      jnp.moveaxis(dBu, 1, 0),
                      jnp.moveaxis(Cm, 1, 0)))
    y = jnp.moveaxis(ys, 0, 1)                               # (B, L, d_inner)
    y = y + xc * params["D"][None]
    y = y * (res * jax.nn.sigmoid(res))
    return jnp.einsum("bld,de->ble", y, params["w_out"])


# ------------------------- deterministic parameters --------------------------
def init_params(key):
    ks = jax.random.split(key, 8)
    scale = 0.1
    p = {
        "w_in":  scale * jax.random.normal(ks[0], (D_MODEL, 2 * D_INNER), jnp.float32),
        "w_conv": scale * jax.random.normal(ks[1], (D_CONV, D_INNER), jnp.float32),
        "b_conv": scale * jax.random.normal(ks[2], (1, D_INNER), jnp.float32),
        "w_x":   scale * jax.random.normal(ks[3], (D_INNER, DT_RANK + 2 * D_STATE), jnp.float32),
        "w_dt":  scale * jax.random.normal(ks[4], (DT_RANK, D_INNER), jnp.float32),
        "b_dt":  scale * jax.random.normal(ks[5], (1, D_INNER), jnp.float32),
        "A_log": jnp.log(jnp.tile(jnp.arange(1, D_STATE + 1, dtype=jnp.float32)[None, :],
                                  (D_INNER, 1))),
        "D":     jnp.ones((1, D_INNER), jnp.float32),
        "w_out": scale * jax.random.normal(ks[6], (D_INNER, D_MODEL), jnp.float32),
    }
    return p


if __name__ == "__main__":
    key = jax.random.PRNGKey(0)
    k_x, k_p = jax.random.split(key)
    params = init_params(k_p)
    x = jax.random.normal(k_x, (BATCH, SEQ, D_MODEL), jnp.float32)

    out = jax.jit(mamba_block)(x, params)
    out = jax.block_until_ready(out)

    ref = jax.block_until_ready(mamba_block_ref(x, params))
    np.testing.assert_allclose(np.asarray(out), np.asarray(ref),
                               rtol=2e-3, atol=2e-3)
    print("KERNEL_OK")
</pallas_src>

<mosaic_0001>
module attributes {stable_mosaic.version = 11 : i64} {
  func.func @mamba_block_kernel(%arg0: memref<16x128xf32, #tpu.memory_space<vmem>>, %arg1: memref<128x128xf32, #tpu.memory_space<vmem>>, %arg2: memref<1x128xf32, #tpu.memory_space<vmem>>, %arg3: memref<64x2176xf32, #tpu.memory_space<vmem>>, %arg4: memref<1x64xf32, #tpu.memory_space<vmem>>, %arg5: memref<64x1024xf32, #tpu.memory_space<vmem>>, %arg6: memref<64x1024xf32, #tpu.memory_space<vmem>>, %arg7: memref<1024x64xf32, #tpu.memory_space<vmem>>, %arg8: memref<1x64xf32, #tpu.memory_space<vmem>>, %arg9: memref<64x128xf32, #tpu.memory_space<vmem>>, %arg10: memref<16x128xf32, #tpu.memory_space<vmem>>) attributes {dimension_semantics = [], scalar_prefetch = 0 : i64, scratch_operands = 0 : i64, tpu.core_type = #tpu.core_type<tc>} {
    %c0 = arith.constant 0 : index
    %c0_0 = arith.constant 0 : index
    %0 = vector.load %arg0[%c0, %c0_0] : memref<16x128xf32, #tpu.memory_space<vmem>>, vector<16x128xf32>
    %c0_1 = arith.constant 0 : index
    %c0_2 = arith.constant 0 : index
    %1 = vector.load %arg1[%c0_1, %c0_2] : memref<128x128xf32, #tpu.memory_space<vmem>>, vector<128x128xf32>
    %cst = arith.constant dense<0.000000e+00> : vector<16x128xf32>
    %2 = tpu.matmul %0, %1, %cst {dimension_numbers = #tpu.dot_dimension_numbers<[1], [0], [0], [1], [0, 0, 1, 1], [], []>} : vector<16x128xf32>, vector<128x128xf32>, vector<16x128xf32> -> vector<16x128xf32>
    %c0_3 = arith.constant 0 : index
    %c0_4 = arith.constant 0 : index
    %3 = vector.load %arg2[%c0_3, %c0_4] : memref<1x128xf32, #tpu.memory_space<vmem>>, vector<1x128xf32>
    %4 = vector.broadcast %3 : vector<1x128xf32> to vector<16x128xf32>
    %5 = arith.addf %2, %4 : vector<16x128xf32>
    %6 = vector.extract_strided_slice %5 {offsets = [0, 0], sizes = [16, 64], strides = [1, 1]} : vector<16x128xf32> to vector<16x64xf32>
    %7 = vector.extract_strided_slice %5 {offsets = [0, 64], sizes = [16, 64], strides = [1, 1]} : vector<16x128xf32> to vector<16x64xf32>
    %8 = arith.negf %6 : vector<16x64xf32>
    %9 = math.exp %8 : vector<16x64xf32>
    %cst_5 = arith.constant 1.000000e+00 : f32
    %10 = vector.broadcast %cst_5 : f32 to vector<16x64xf32>
    %11 = arith.addf %10, %9 : vector<16x64xf32>
    %12 = arith.divf %10, %11 : vector<16x64xf32>
    %13 = arith.mulf %6, %12 : vector<16x64xf32>
    %c0_6 = arith.constant 0 : index
    %c0_7 = arith.constant 0 : index
    %14 = vector.load %arg3[%c0_6, %c0_7] : memref<64x2176xf32, #tpu.memory_space<vmem>>, vector<64x2176xf32>
    %cst_8 = arith.constant dense<0.000000e+00> : vector<16x2176xf32>
    %15 = tpu.matmul %13, %14, %cst_8 {dimension_numbers = #tpu.dot_dimension_numbers<[1], [0], [0], [1], [0, 0, 1, 1], [], []>} : vector<16x64xf32>, vector<64x2176xf32>, vector<16x2176xf32> -> vector<16x2176xf32>
    %16 = vector.extract_strided_slice %15 {offsets = [0, 0], sizes = [16, 64], strides = [1, 1]} : vector<16x2176xf32> to vector<16x64xf32>
    %c0_9 = arith.constant 0 : index
    %c0_10 = arith.constant 0 : index
    %17 = vector.load %arg4[%c0_9, %c0_10] : memref<1x64xf32, #tpu.memory_space<vmem>>, vector<1x64xf32>
    %18 = vector.broadcast %17 : vector<1x64xf32> to vector<16x64xf32>
    %19 = arith.addf %16, %18 : vector<16x64xf32>
    %cst_11 = arith.constant 2.000000e+01 : f32
    %20 = vector.broadcast %cst_11 : f32 to vector<16x64xf32>
    %21 = arith.cmpf ogt, %19, %20 : vector<16x64xf32>
    %22 = math.exp %19 : vector<16x64xf32>
    %23 = math.log1p %22 : vector<16x64xf32>
    %24 = arith.select %21, %19, %23 : vector<16x64xi1>, vector<16x64xf32>
    %25 = vector.extract_strided_slice %15 {offsets = [0, 128], sizes = [16, 1024], strides = [1, 1]} : vector<16x2176xf32> to vector<16x1024xf32>
    %26 = vector.extract_strided_slice %15 {offsets = [0, 1152], sizes = [16, 1024], strides = [1, 1]} : vector<16x2176xf32> to vector<16x1024xf32>
    %c0_12 = arith.constant 0 : index
    %c0_13 = arith.constant 0 : index
    %27 = vector.load %arg5[%c0_12, %c0_13] : memref<64x1024xf32, #tpu.memory_space<vmem>>, vector<64x1024xf32>
    %cst_14 = arith.constant dense<0.000000e+00> : vector<16x1024xf32>
    %28 = tpu.matmul %24, %27, %cst_14 {dimension_numbers = #tpu.dot_dimension_numbers<[1], [0], [0], [1], [0, 0, 1, 1], [], []>} : vector<16x64xf32>, vector<64x1024xf32>, vector<16x1024xf32> -> vector<16x1024xf32>
    %29 = math.exp %28 : vector<16x1024xf32>
    %30 = arith.mulf %24, %13 : vector<16x64xf32>
    %c0_15 = arith.constant 0 : index
    %c0_16 = arith.constant 0 : index
    %31 = vector.load %arg6[%c0_15, %c0_16] : memref<64x1024xf32, #tpu.memory_space<vmem>>, vector<64x1024xf32>
    %cst_17 = arith.constant dense<0.000000e+00> : vector<16x1024xf32>
    %32 = tpu.matmul %30, %31, %cst_17 {dimension_numbers = #tpu.dot_dimension_numbers<[1], [0], [0], [1], [0, 0, 1, 1], [], []>} : vector<16x64xf32>, vector<64x1024xf32>, vector<16x1024xf32> -> vector<16x1024xf32>
    %33 = arith.mulf %32, %25 : vector<16x1024xf32>
    %cst_18 = arith.constant 0.000000e+00 : f32
    %34 = vector.broadcast %cst_18 : f32 to vector<2x1024xf32>
    %35 = vector.extract_strided_slice %29 {offsets = [0, 0], sizes = [2, 1024], strides = [1, 1]} : vector<16x1024xf32> to vector<2x1024xf32>
    %36 = arith.mulf %35, %34 : vector<2x1024xf32>
    %37 = vector.extract_strided_slice %33 {offsets = [0, 0], sizes = [2, 1024], strides = [1, 1]} : vector<16x1024xf32> to vector<2x1024xf32>
    %38 = arith.addf %36, %37 : vector<2x1024xf32>
    %39 = vector.extract_strided_slice %29 {offsets = [2, 0], sizes = [2, 1024], strides = [1, 1]} : vector<16x1024xf32> to vector<2x1024xf32>
    %40 = arith.mulf %39, %38 : vector<2x1024xf32>
    %41 = vector.extract_strided_slice %33 {offsets = [2, 0], sizes = [2, 1024], strides = [1, 1]} : vector<16x1024xf32> to vector<2x1024xf32>
    %42 = arith.addf %40, %41 : vector<2x1024xf32>
    %43 = vector.extract_strided_slice %29 {offsets = [4, 0], sizes = [2, 1024], strides = [1, 1]} : vector<16x1024xf32> to vector<2x1024xf32>
    %44 = arith.mulf %43, %42 : vector<2x1024xf32>
    %45 = vector.extract_strided_slice %33 {offsets = [4, 0], sizes = [2, 1024], strides = [1, 1]} : vector<16x1024xf32> to vector<2x1024xf32>
    %46 = arith.addf %44, %45 : vector<2x1024xf32>
    %47 = vector.extract_strided_slice %29 {offsets = [6, 0], sizes = [2, 1024], strides = [1, 1]} : vector<16x1024xf32> to vector<2x1024xf32>
    %48 = arith.mulf %47, %46 : vector<2x1024xf32>
    %49 = vector.extract_strided_slice %33 {offsets = [6, 0], sizes = [2, 1024], strides = [1, 1]} : vector<16x1024xf32> to vector<2x1024xf32>
    %50 = arith.addf %48, %49 : vector<2x1024xf32>
    %51 = vector.extract_strided_slice %29 {offsets = [8, 0], sizes = [2, 1024], strides = [1, 1]} : vector<16x1024xf32> to vector<2x1024xf32>
    %52 = arith.mulf %51, %50 : vector<2x1024xf32>
    %53 = vector.extract_strided_slice %33 {offsets = [8, 0], sizes = [2, 1024], strides = [1, 1]} : vector<16x1024xf32> to vector<2x1024xf32>
    %54 = arith.addf %52, %53 : vector<2x1024xf32>
    %55 = vector.extract_strided_slice %29 {offsets = [10, 0], sizes = [2, 1024], strides = [1, 1]} : vector<16x1024xf32> to vector<2x1024xf32>
    %56 = arith.mulf %55, %54 : vector<2x1024xf32>
    %57 = vector.extract_strided_slice %33 {offsets = [10, 0], sizes = [2, 1024], strides = [1, 1]} : vector<16x1024xf32> to vector<2x1024xf32>
    %58 = arith.addf %56, %57 : vector<2x1024xf32>
    %59 = vector.extract_strided_slice %29 {offsets = [12, 0], sizes = [2, 1024], strides = [1, 1]} : vector<16x1024xf32> to vector<2x1024xf32>
    %60 = arith.mulf %59, %58 : vector<2x1024xf32>
    %61 = vector.extract_strided_slice %33 {offsets = [12, 0], sizes = [2, 1024], strides = [1, 1]} : vector<16x1024xf32> to vector<2x1024xf32>
    %62 = arith.addf %60, %61 : vector<2x1024xf32>
    %63 = vector.extract_strided_slice %29 {offsets = [14, 0], sizes = [2, 1024], strides = [1, 1]} : vector<16x1024xf32> to vector<2x1024xf32>
    %64 = arith.mulf %63, %62 : vector<2x1024xf32>
    %65 = vector.extract_strided_slice %33 {offsets = [14, 0], sizes = [2, 1024], strides = [1, 1]} : vector<16x1024xf32> to vector<2x1024xf32>
    %66 = arith.addf %64, %65 : vector<2x1024xf32>
    %67 = tpu.concatenate %38, %42, %46, %50, %54, %58, %62, %66 in 0 : vector<2x1024xf32>, vector<2x1024xf32>, vector<2x1024xf32>, vector<2x1024xf32>, vector<2x1024xf32>, vector<2x1024xf32>, vector<2x1024xf32>, vector<2x1024xf32> -> vector<16x1024xf32>
    %68 = arith.mulf %67, %26 : vector<16x1024xf32>
    %c0_19 = arith.constant 0 : index
    %c0_20 = arith.constant 0 : index
    %69 = vector.load %arg7[%c0_19, %c0_20] : memref<1024x64xf32, #tpu.memory_space<vmem>>, vector<1024x64xf32>
    %cst_21 = arith.constant dense<0.000000e+00> : vector<16x64xf32>
    %70 = tpu.matmul %68, %69, %cst_21 {dimension_numbers = #tpu.dot_dimension_numbers<[1], [0], [0], [1], [0, 0, 1, 1], [], []>} : vector<16x1024xf32>, vector<1024x64xf32>, vector<16x64xf32> -> vector<16x64xf32>
    %c0_22 = arith.constant 0 : index
    %c0_23 = arith.constant 0 : index
    %71 = vector.load %arg8[%c0_22, %c0_23] : memref<1x64xf32, #tpu.memory_space<vmem>>, vector<1x64xf32>
    %72 = vector.broadcast %71 : vector<1x64xf32> to vector<16x64xf32>
    %73 = arith.mulf %13, %72 : vector<16x64xf32>
    %74 = arith.addf %70, %73 : vector<16x64xf32>
    %75 = arith.negf %7 : vector<16x64xf32>
    %76 = math.exp %75 : vector<16x64xf32>
    %cst_24 = arith.constant 1.000000e+00 : f32
    %77 = vector.broadcast %cst_24 : f32 to vector<16x64xf32>
    %78 = arith.addf %77, %76 : vector<16x64xf32>
    %79 = arith.divf %77, %78 : vector<16x64xf32>
    %80 = arith.mulf %7, %79 : vector<16x64xf32>
    %81 = arith.mulf %74, %80 : vector<16x64xf32>
    %c0_25 = arith.constant 0 : index
    %c0_26 = arith.constant 0 : index
    %82 = vector.load %arg9[%c0_25, %c0_26] : memref<64x128xf32, #tpu.memory_space<vmem>>, vector<64x128xf32>
    %cst_27 = arith.constant dense<0.000000e+00> : vector<16x128xf32>
    %83 = tpu.matmul %81, %82, %cst_27 {dimension_numbers = #tpu.dot_dimension_numbers<[1], [0], [0], [1], [0, 0, 1, 1], [], []>} : vector<16x64xf32>, vector<64x128xf32>, vector<16x128xf32> -> vector<16x128xf32>
    %c0_28 = arith.constant 0 : index
    %c0_29 = arith.constant 0 : index
    %84 = vector.load %arg10[%c0_28, %c0_29] : memref<16x128xf32, #tpu.memory_space<vmem>>, vector<16x128xf32>
    tpu.vector_store %arg10[%c0_28, %c0_29], %83 {strides = array<i32>} : memref<16x128xf32, #tpu.memory_space<vmem>>, vector<16x128xf32>,
    return
  }
}

</mosaic_0001>

<llo_original>
// kernel: tile.9
$region0: #{tile.9}
  %s0 = inlined_call_operand.vmem [shape: bf16[16,64,16], index: 0, kind: input, shape index: {}]
  %s1 = inlined_call_operand.vmem [shape: bf16[16,1024], index: 1, kind: output, shape index: {}]
  $region1: #{tile.9} parent=0
    #allocation0 [shape = 'u8[65536]{0}', space=vmem, size = 0x10000, scoped, tag = 'scoped mem for output reshape']
    #allocation1 [shape = 'u8[524288]{0}', space=vmem, size = 0x80000, scoped, tag = 'scoped mem for input reshape']
    %s3 = smul.u32 4, 2
    %s4 = sshllo.u32 0, %s3
    %s5 = smul.addr 4, 127
    %s6 = scalar_lea.vmem %s0, %s5
    %s7 = sshrl.u32 %s4, 1
    %s8 = sor.u32 %s4, %s7
    %s9 = sand.u32 %s8, 85
    %s10 = sshrl.u32 %s9, 1
    %s11 = sor.u32 %s9, %s10
    %s12 = sand.u32 51, %s11
    %s13 = sshrl.u32 %s12, 2
    %s14 = sor.u32 %s12, %s13
    %s15 = sand.u32 15, %s14
    %v16 = vld [vmem:[%s6] sm:%s15]
    %v17 = vunpack.c.l.bf16 %v16
    %v18 = vunpack.c.h.bf16 %v16
    %s19 = scalar_lea.vmem [#allocation1], 1016
    %20 = vst [vmem:[%s19] sm:%s4] %v17
    %s21 = smul.addr 4, 126
    %s22 = scalar_lea.vmem %s0, %s21
    %s23 = sshrl.u32 %s4, 1
    %s24 = sor.u32 %s4, %s23
    %s25 = sand.u32 %s24, 85
    %s26 = sshrl.u32 %s25, 1
    %s27 = sor.u32 %s25, %s26
    %s28 = sand.u32 51, %s27
    %s29 = sshrl.u32 %s28, 2
    %s30 = sor.u32 %s28, %s29
    %s31 = sand.u32 15, %s30
    %v32 = vld [vmem:[%s22] sm:%s31]
    %v33 = vunpack.c.l.bf16 %v32
    %v34 = vunpack.c.h.bf16 %v32
    %s35 = scalar_lea.vmem [#allocation1], 1008
    %36 = vst [vmem:[%s35] sm:%s4] %v33
    %s37 = smul.addr 4, 125
    %s38 = scalar_lea.vmem %s0, %s37
    %s39 = sshrl.u32 %s4, 1
    %s40 = sor.u32 %s4, %s39
    %s41 = sand.u32 %s40, 85
    %s42 = sshrl.u32 %s41, 1
    %s43 = sor.u32 %s41, %s42
    %s44 = sand.u32 51, %s43
    %s45 = sshrl.u32 %s44, 2
    %s46 = sor.u32 %s44, %s45
    %s47 = sand.u32 15, %s46
    %v48 = vld [vmem:[%s38] sm:%s47]
    %v49 = vunpack.c.l.bf16 %v48
    %v50 = vunpack.c.h.bf16 %v48
    %s51 = scalar_lea.vmem [#allocation1], 1000
    %52 = vst [vmem:[%s51] sm:%s4] %v49
    %s53 = smul.addr 4, 124
    %s54 = scalar_lea.vmem %s0, %s53
    %s55 = sshrl.u32 %s4, 1
    %s56 = sor.u32 %s4, %s55
    %s57 = sand.u32 %s56, 85
    %s58 = sshrl.u32 %s57, 1
    %s59 = sor.u32 %s57, %s58
    %s60 = sand.u32 51, %s59
    %s61 = sshrl.u32 %s60, 2
    %s62 = sor.u32 %s60, %s61
    %s63 = sand.u32 15, %s62
    %v64 = vld [vmem:[%s54] sm:%s63]
    %v65 = vunpack.c.l.bf16 %v64
    %v66 = vunpack.c.h.bf16 %v64
    %s67 = scalar_lea.vmem [#allocation1], 992
    %68 = vst [vmem:[%s67] sm:%s4] %v65
    %s69 = smul.addr 4, 123
    %s70 = scalar_lea.vmem %s0, %s69
    %s71 = sshrl.u32 %s4, 1
    %s72 = sor.u32 %s4, %s71
    %s73 = sand.u32 %s72, 85
    %s74 = sshrl.u32 %s73, 1
    %s75 = sor.u32 %s73, %s74
    %s76 = sand.u32 51, %s75
    %s77 = sshrl.u32 %s76, 2
    %s78 = sor.u32 %s76, %s77
    %s79 = sand.u32 15, %s78
    %v80 = vld [vmem:[%s70] sm:%s79]
    %v81 = vunpack.c.l.bf16 %v80
    %v82 = vunpack.c.h.bf16 %v80
    %s83 = scalar_lea.vmem [#allocation1], 984
    %84 = vst [vmem:[%s83] sm:%s4] %v81
    %s85 = smul.addr 4, 122
    %s86 = scalar_lea.vmem %s0, %s85
    %s87 = sshrl.u32 %s4, 1
    %s88 = sor.u32 %s4, %s87
    %s89 = sand.u32 %s88, 85
    %s90 = sshrl.u32 %s89, 1
    %s91 = sor.u32 %s89, %s90
    %s92 = sand.u32 51, %s91
    %s93 = sshrl.u32 %s92, 2
    %s94 = sor.u32 %s92, %s93
    %s95 = sand.u32 15, %s94
    %v96 = vld [vmem:[%s86] sm:%s95]
    %v97 = vunpack.c.l.bf16 %v96
    %v98 = vunpack.c.h.bf16 %v96
    %s99 = scalar_lea.vmem [#allocation1], 976
    %100 = vst [vmem:[%s99] sm:%s4] %v97
    %s101 = smul.addr 4, 121
    %s102 = scalar_lea.vmem %s0, %s101
    %s103 = sshrl.u32 %s4, 1
    %s104 = sor.u32 %s4, %s103
    %s105 = sand.u32 %s104, 85
    %s106 = sshrl.u32 %s105, 1
    %s107 = sor.u32 %s105, %s106
    %s108 = sand.u32 51, %s107
    %s109 = sshrl.u32 %s108, 2
    %s110 = sor.u32 %s108, %s109
    %s111 = sand.u32 15, %s110
    %v112 = vld [vmem:[%s102] sm:%s111]
    %v113 = vunpack.c.l.bf16 %v112
    %v114 = vunpack.c.h.bf16 %v112
    %s115 = scalar_lea.vmem [#allocation1], 968
    %116 = vst [vmem:[%s115] sm:%s4] %v113
    %s117 = smul.addr 4, 120
    %s118 = scalar_lea.vmem %s0, %s117
    %s119 = sshrl.u32 %s4, 1
    %s120 = sor.u32 %s4, %s119
    %s121 = sand.u32 %s120, 85
    %s122 = sshrl.u32 %s121, 1
    %s123 = sor.u32 %s121, %s122
    %s124 = sand.u32 51, %s123
    %s125 = sshrl.u32 %s124, 2
    %s126 = sor.u32 %s124, %s125
    %s127 = sand.u32 15, %s126
    %v128 = vld [vmem:[%s118] sm:%s127]
    %v129 = vunpack.c.l.bf16 %v128
    %v130 = vunpack.c.h.bf16 %v128
    %s131 = scalar_lea.vmem [#allocation1], 960
    %132 = vst [vmem:[%s131] sm:%s4] %v129
    %s133 = smul.addr 4, 119
    %s134 = scalar_lea.vmem %s0, %s133
    %s135 = sshrl.u32 %s4, 1
    %s136 = sor.u32 %s4, %s135
    %s137 = sand.u32 %s136, 85
    %s138 = sshrl.u32 %s137, 1
    %s139 = sor.u32 %s137, %s138
    %s140 = sand.u32 51, %s139
    %s141 = sshrl.u32 %s140, 2
    %s142 = sor.u32 %s140, %s141
    %s143 = sand.u32 15, %s142
    %v144 = vld [vmem:[%s134] sm:%s143]
    %v145 = vunpack.c.l.bf16 %v144
    %v146 = vunpack.c.h.bf16 %v144
    %s147 = scalar_lea.vmem [#allocation1], 952
    %148 = vst [vmem:[%s147] sm:%s4] %v145
    %s149 = smul.addr 4, 118
    %s150 = scalar_lea.vmem %s0, %s149
    %s151 = sshrl.u32 %s4, 1
    %s152 = sor.u32 %s4, %s151
    %s153 = sand.u32 %s152, 85
    %s154 = sshrl.u32 %s153, 1
    %s155 = sor.u32 %s153, %s154
    %s156 = sand.u32 51, %s155
    %s157 = sshrl.u32 %s156, 2
    %s158 = sor.u32 %s156, %s157
    %s159 = sand.u32 15, %s158
    %v160 = vld [vmem:[%s150] sm:%s159]
    %v161 = vunpack.c.l.bf16 %v160
    %v162 = vunpack.c.h.bf16 %v160
    %s163 = scalar_lea.vmem [#allocation1], 944
    %164 = vst [vmem:[%s163] sm:%s4] %v161
    %s165 = smul.addr 4, 117
    %s166 = scalar_lea.vmem %s0, %s165
    %s167 = sshrl.u32 %s4, 1
    %s168 = sor.u32 %s4, %s167
    %s169 = sand.u32 %s168, 85
    %s170 = sshrl.u32 %s169, 1
    %s171 = sor.u32 %s169, %s170
    %s172 = sand.u32 51, %s171
    %s173 = sshrl.u32 %s172, 2
    %s174 = sor.u32 %s172, %s173
    %s175 = sand.u32 15, %s174
    %v176 = vld [vmem:[%s166] sm:%s175]
    %v177 = vunpack.c.l.bf16 %v176
    %v178 = vunpack.c.h.bf16 %v176
    %s179 = scalar_lea.vmem [#allocation1], 936
    %180 = vst [vmem:[%s179] sm:%s4] %v177
    %s181 = smul.addr 4, 116
    %s182 = scalar_lea.vmem %s0, %s181
    %s183 = sshrl.u32 %s4, 1
    %s184 = sor.u32 %s4, %s183
    %s185 = sand.u32 %s184, 85
    %s186 = sshrl.u32 %s185, 1
    %s187 = sor.u32 %s185, %s186
    %s188 = sand.u32 51, %s187
    %s189 = sshrl.u32 %s188, 2
    %s190 = sor.u32 %s188, %s189
    %s191 = sand.u32 15, %s190
    %v192 = vld [vmem:[%s182] sm:%s191]
    %v193 = vunpack.c.l.bf16 %v192
    %v194 = vunpack.c.h.bf16 %v192
    %s195 = scalar_lea.vmem [#allocation1], 928
    %196 = vst [vmem:[%s195] sm:%s4] %v193
    %s197 = smul.addr 4, 115
    %s198 = scalar_lea.vmem %s0, %s197
    %s199 = sshrl.u32 %s4, 1
    %s200 = sor.u32 %s4, %s199
    %s201 = sand.u32 %s200, 85
    %s202 = sshrl.u32 %s201, 1
    %s203 = sor.u32 %s201, %s202
    %s204 = sand.u32 51, %s203
    %s205 = sshrl.u32 %s204, 2
    %s206 = sor.u32 %s204, %s205
    %s207 = sand.u32 15, %s206
    %v208 = vld [vmem:[%s198] sm:%s207]
    %v209 = vunpack.c.l.bf16 %v208
    %v210 = vunpack.c.h.bf16 %v208
    %s211 = scalar_lea.vmem [#allocation1], 920
    %212 = vst [vmem:[%s211] sm:%s4] %v209
    %s213 = smul.addr 4, 114
    %s214 = scalar_lea.vmem %s0, %s213
    %s215 = sshrl.u32 %s4, 1
    %s216 = sor.u32 %s4, %s215
    %s217 = sand.u32 %s216, 85
    %s218 = sshrl.u32 %s217, 1
    %s219 = sor.u32 %s217, %s218
    %s220 = sand.u32 51, %s219
    %s221 = sshrl.u32 %s220, 2
    %s222 = sor.u32 %s220, %s221
    %s223 = sand.u32 15, %s222
    %v224 = vld [vmem:[%s214] sm:%s223]
    %v225 = vunpack.c.l.bf16 %v224
    %v226 = vunpack.c.h.bf16 %v224
    %s227 = scalar_lea.vmem [#allocation1], 912
    %228 = vst [vmem:[%s227] sm:%s4] %v225
    %s229 = smul.addr 4, 113
    %s230 = scalar_lea.vmem %s0, %s229
    %s231 = sshrl.u32 %s4, 1
    %s232 = sor.u32 %s4, %s231
    %s233 = sand.u32 %s232, 85
    %s234 = sshrl.u32 %s233, 1
    %s235 = sor.u32 %s233, %s234
    %s236 = sand.u32 51, %s235
    %s237 = sshrl.u32 %s236, 2
    %s238 = sor.u32 %s236, %s237
    %s239 = sand.u32 15, %s238
    %v240 = vld [vmem:[%s230] sm:%s239]
    %v241 = vunpack.c.l.bf16 %v240
    %v242 = vunpack.c.h.bf16 %v240
    %s243 = scalar_lea.vmem [#allocation1], 904
    %244 = vst [vmem:[%s243] sm:%s4] %v241
    %s245 = smul.addr 4, 112
    %s246 = scalar_lea.vmem %s0, %s245
    %s247 = sshrl.u32 %s4, 1
    %s248 = sor.u32 %s4, %s247
    %s249 = sand.u32 %s248, 85
    %s250 = sshrl.u32 %s249, 1
    %s251 = sor.u32 %s249, %s250
    %s252 = sand.u32 51, %s251
    %s253 = sshrl.u32 %s252, 2
    %s254 = sor.u32 %s252, %s253
    %s255 = sand.u32 15, %s254
    %v256 = vld [vmem:[%s246] sm:%s255]
    %v257 = vunpack.c.l.bf16 %v256
    %v258 = vunpack.c.h.bf16 %v256
    %s259 = scalar_lea.vmem [#allocation1], 896
    %260 = vst [vmem:[%s259] sm:%s4] %v257
    %s261 = smul.addr 4, 111
    %s262 = scalar_lea.vmem %s0, %s261
    %s263 = sshrl.u32 %s4, 1
    %s264 = sor.u32 %s4, %s263
    %s265 = sand.u32 %s264, 85
    %s266 = sshrl.u32 %s265, 1
    %s267 = sor.u32 %s265, %s266
    %s268 = sand.u32 51, %s267
    %s269 = sshrl.u32 %s268, 2
    %s270 = sor.u32 %s268, %s269
    %s271 = sand.u32 15, %s270
    %v272 = vld [vmem:[%s262] sm:%s271]
    %v273 = vunpack.c.l.bf16 %v272
    %v274 = vunpack.c.h.bf16 %v272
    %s275 = scalar_lea.vmem [#allocation1], 888
    %276 = vst [vmem:[%s275] sm:%s4] %v273
    %s277 = smul.addr 4, 110
    %s278 = scalar_lea.vmem %s0, %s277
    %s279 = sshrl.u32 %s4, 1
    %s280 = sor.u32 %s4, %s279
    %s281 = sand.u32 %s280, 85
    %s282 = sshrl.u32 %s281, 1
    %s283 = sor.u32 %s281, %s282
    %s284 = sand.u32 51, %s283
    %s285 = sshrl.u32 %s284, 2
    %s286 = sor.u32 %s284, %s285
    %s287 = sand.u32 15, %s286
    %v288 = vld [vmem:[%s278] sm:%s287]
    %v289 = vunpack.c.l.bf16 %v288
    %v290 = vunpack.c.h.bf16 %v288
    %s291 = scalar_lea.vmem [#allocation1], 880
    %292 = vst [vmem:[%s291] sm:%s4] %v289
    %s293 = smul.addr 4, 109
    %s294 = scalar_lea.vmem %s0, %s293
    %s295 = sshrl.u32 %s4, 1
    %s296 = sor.u32 %s4, %s295
    %s297 = sand.u32 %s296, 85
    %s298 = sshrl.u32 %s297, 1
    %s299 = sor.u32 %s297, %s298
    %s300 = sand.u32 51, %s299
    %s301 = sshrl.u32 %s300, 2
    %s302 = sor.u32 %s300, %s301
    %s303 = sand.u32 15, %s302
    %v304 = vld [vmem:[%s294] sm:%s303]
    %v305 = vunpack.c.l.bf16 %v304
    %v306 = vunpack.c.h.bf16 %v304
    %s307 = scalar_lea.vmem [#allocation1], 872
    %308 = vst [vmem:[%s307] sm:%s4] %v305
    %s309 = smul.addr 4, 108
    %s310 = scalar_lea.vmem %s0, %s309
    %s311 = sshrl.u32 %s4, 1
    %s312 = sor.u32 %s4, %s311
    %s313 = sand.u32 %s312, 85
    %s314 = sshrl.u32 %s313, 1
    %s315 = sor.u32 %s313, %s314
    %s316 = sand.u32 51, %s315
    %s317 = sshrl.u32 %s316, 2
    %s318 = sor.u32 %s316, %s317
    %s319 = sand.u32 15, %s318
    %v320 = vld [vmem:[%s310] sm:%s319]
    %v321 = vunpack.c.l.bf16 %v320
    %v322 = vunpack.c.h.bf16 %v320
    %s323 = scalar_lea.vmem [#allocation1], 864
    %324 = vst [vmem:[%s323] sm:%s4] %v321
    %s325 = smul.addr 4, 107
    %s326 = scalar_lea.vmem %s0, %s325
    %s327 = sshrl.u32 %s4, 1
    %s328 = sor.u32 %s4, %s327
    %s329 = sand.u32 %s328, 85
    %s330 = sshrl.u32 %s329, 1
    %s331 = sor.u32 %s329, %s330
    %s332 = sand.u32 51, %s331
    %s333 = sshrl.u32 %s332, 2
    %s334 = sor.u32 %s332, %s333
    %s335 = sand.u32 15, %s334
    %v336 = vld [vmem:[%s326] sm:%s335]
    %v337 = vunpack.c.l.bf16 %v336
    %v338 = vunpack.c.h.bf16 %v336
    %s339 = scalar_lea.vmem [#allocation1], 856
    %340 = vst [vmem:[%s339] sm:%s4] %v337
    %s341 = smul.addr 4, 106
    %s342 = scalar_lea.vmem %s0, %s341
    %s343 = sshrl.u32 %s4, 1
    %s344 = sor.u32 %s4, %s343
    %s345 = sand.u32 %s344, 85
    %s346 = sshrl.u32 %s345, 1
    %s347 = sor.u32 %s345, %s346
    %s348 = sand.u32 51, %s347
    %s349 = sshrl.u32 %s348, 2
    %s350 = sor.u32 %s348, %s349
    %s351 = sand.u32 15, %s350
    %v352 = vld [vmem:[%s342] sm:%s351]
    %v353 = vunpack.c.l.bf16 %v352
    %v354 = vunpack.c.h.bf16 %v352
    %s355 = scalar_lea.vmem [#allocation1], 848
    %356 = vst [vmem:[%s355] sm:%s4] %v353
    %s357 = smul.addr 4, 105
    %s358 = scalar_lea.vmem %s0, %s357
    %s359 = sshrl.u32 %s4, 1
    %s360 = sor.u32 %s4, %s359
    %s361 = sand.u32 %s360, 85
    %s362 = sshrl.u32 %s361, 1
    %s363 = sor.u32 %s361, %s362
    %s364 = sand.u32 51, %s363
    %s365 = sshrl.u32 %s364, 2
    %s366 = sor.u32 %s364, %s365
    %s367 = sand.u32 15, %s366
    %v368 = vld [vmem:[%s358] sm:%s367]
    %v369 = vunpack.c.l.bf16 %v368
    %v370 = vunpack.c.h.bf16 %v368
    %s371 = scalar_lea.vmem [#allocation1], 840
    %372 = vst [vmem:[%s371] sm:%s4] %v369
    %s373 = smul.addr 4, 104
    %s374 = scalar_lea.vmem %s0, %s373
    %s375 = sshrl.u32 %s4, 1
    %s376 = sor.u32 %s4, %s375
    %s377 = sand.u32 %s376, 85
    %s378 = sshrl.u32 %s377, 1
    %s379 = sor.u32 %s377, %s378
    %s380 = sand.u32 51, %s379
    %s381 = sshrl.u32 %s380, 2
    %s382 = sor.u32 %s380, %s381
    %s383 = sand.u32 15, %s382
    %v384 = vld [vmem:[%s374] sm:%s383]
    %v385 = vunpack.c.l.bf16 %v384
    %v386 = vunpack.c.h.bf16 %v384
    %s387 = scalar_lea.vmem [#allocation1], 832
    %388 = vst [vmem:[%s387] sm:%s4] %v385
    %s389 = smul.addr 4, 103
    %s390 = scalar_lea.vmem %s0, %s389
    %s391 = sshrl.u32 %s4, 1
    %s392 = sor.u32 %s4, %s391
    %s393 = sand.u32 %s392, 85
    %s394 = sshrl.u32 %s393, 1
    %s395 = sor.u32 %s393, %s394
    %s396 = sand.u32 51, %s395
    %s397 = sshrl.u32 %s396, 2
    %s398 = sor.u32 %s396, %s397
    %s399 = sand.u32 15, %s398
    %v400 = vld [vmem:[%s390] sm:%s399]
    %v401 = vunpack.c.l.bf16 %v400
    %v402 = vunpack.c.h.bf16 %v400
    %s403 = scalar_lea.vmem [#allocation1], 824
    %404 = vst [vmem:[%s403] sm:%s4] %v401
    %s405 = smul.addr 4, 102
    %s406 = scalar_lea.vmem %s0, %s405
    %s407 = sshrl.u32 %s4, 1
    %s408 = sor.u32 %s4, %s407
    %s409 = sand.u32 %s408, 85
    %s410 = sshrl.u32 %s409, 1
    %s411 = sor.u32 %s409, %s410
    %s412 = sand.u32 51, %s411
    %s413 = sshrl.u32 %s412, 2
    %s414 = sor.u32 %s412, %s413
    %s415 = sand.u32 15, %s414
    %v416 = vld [vmem:[%s406] sm:%s415]
    %v417 = vunpack.c.l.bf16 %v416
    %v418 = vunpack.c.h.bf16 %v416
    %s419 = scalar_lea.vmem [#allocation1], 816
    %420 = vst [vmem:[%s419] sm:%s4] %v417
    %s421 = smul.addr 4, 101
    %s422 = scalar_lea.vmem %s0, %s421
    %s423 = sshrl.u32 %s4, 1
    %s424 = sor.u32 %s4, %s423
    %s425 = sand.u32 %s424, 85
    %s426 = sshrl.u32 %s425, 1
    %s427 = sor.u32 %s425, %s426
    %s428 = sand.u32 51, %s427
    %s429 = sshrl.u32 %s428, 2
    %s430 = sor.u32 %s428, %s429
    %s431 = sand.u32 15, %s430
    %v432 = vld [vmem:[%s422] sm:%s431]
    %v433 = vunpack.c.l.bf16 %v432
    %v434 = vunpack.c.h.bf16 %v432
    %s435 = scalar_lea.vmem [#allocation1], 808
    %436 = vst [vmem:[%s435] sm:%s4] %v433
    %s437 = smul.addr 4, 100
    %s438 = scalar_lea.vmem %s0, %s437
    %s439 = sshrl.u32 %s4, 1
    %s440 = sor.u32 %s4, %s439
    %s441 = sand.u32 %s440, 85
    %s442 = sshrl.u32 %s441, 1
    %s443 = sor.u32 %s441, %s442
    %s444 = sand.u32 51, %s443
    %s445 = sshrl.u32 %s444, 2
    %s446 = sor.u32 %s444, %s445
    %s447 = sand.u32 15, %s446
    %v448 = vld [vmem:[%s438] sm:%s447]
    %v449 = vunpack.c.l.bf16 %v448
    %v450 = vunpack.c.h.bf16 %v448
    %s451 = scalar_lea.vmem [#allocation1], 800
    %452 = vst [vmem:[%s451] sm:%s4] %v449
    %s453 = smul.addr 4, 99
    %s454 = scalar_lea.vmem %s0, %s453
    %s455 = sshrl.u32 %s4, 1
    %s456 = sor.u32 %s4, %s455
    %s457 = sand.u32 %s456, 85
    %s458 = sshrl.u32 %s457, 1
    %s459 = sor.u32 %s457, %s458
    %s460 = sand.u32 51, %s459
    %s461 = sshrl.u32 %s460, 2
    %s462 = sor.u32 %s460, %s461
    %s463 = sand.u32 15, %s462
    %v464 = vld [vmem:[%s454] sm:%s463]
    %v465 = vunpack.c.l.bf16 %v464
    %v466 = vunpack.c.h.bf16 %v464
    %s467 = scalar_lea.vmem [#allocation1], 792
    %468 = vst [vmem:[%s467] sm:%s4] %v465
    %s469 = smul.addr 4, 98
    %s470 = scalar_lea.vmem %s0, %s469
    %s471 = sshrl.u32 %s4, 1
    %s472 = sor.u32 %s4, %s471
    %s473 = sand.u32 %s472, 85
    %s474 = sshrl.u32 %s473, 1
    %s475 = sor.u32 %s473, %s474
    %s476 = sand.u32 51, %s475
    %s477 = sshrl.u32 %s476, 2
    %s478 = sor.u32 %s476, %s477
    %s479 = sand.u32 15, %s478
    %v480 = vld [vmem:[%s470] sm:%s479]
    %v481 = vunpack.c.l.bf16 %v480
    %v482 = vunpack.c.h.bf16 %v480
    %s483 = scalar_lea.vmem [#allocation1], 784
    %484 = vst [vmem:[%s483] sm:%s4] %v481
    %s485 = smul.addr 4, 97
    %s486 = scalar_lea.vmem %s0, %s485
    %s487 = sshrl.u32 %s4, 1
    %s488 = sor.u32 %s4, %s487
    %s489 = sand.u32 %s488, 85
    %s490 = sshrl.u32 %s489, 1
    %s491 = sor.u32 %s489, %s490
    %s492 = sand.u32 51, %s491
    %s493 = sshrl.u32 %s492, 2
    %s494 = sor.u32 %s492, %s493
    %s495 = sand.u32 15, %s494
    %v496 = vld [vmem:[%s486] sm:%s495]
    %v497 = vunpack.c.l.bf16 %v496
    %v498 = vunpack.c.h.bf16 %v496
    %s499 = scalar_lea.vmem [#allocation1], 776
    %500 = vst [vmem:[%s499] sm:%s4] %v497
    %s501 = smul.addr 4, 96
    %s502 = scalar_lea.vmem %s0, %s501
    %s503 = sshrl.u32 %s4, 1
    %s504 = sor.u32 %s4, %s503
    %s505 = sand.u32 %s504, 85
    %s506 = sshrl.u32 %s505, 1
    %s507 = sor.u32 %s505, %s506
    %s508 = sand.u32 51, %s507
    %s509 = sshrl.u32 %s508, 2
    %s510 = sor.u32 %s508, %s509
    %s511 = sand.u32 15, %s510
    %v512 = vld [vmem:[%s502] sm:%s511]
    %v513 = vunpack.c.l.bf16 %v512
    %v514 = vunpack.c.h.bf16 %v512
    %s515 = scalar_lea.vmem [#allocation1], 768
    %516 = vst [vmem:[%s515] sm:%s4] %v513
    %s517 = smul.addr 4, 95
    %s518 = scalar_lea.vmem %s0, %s517
    %s519 = sshrl.u32 %s4, 1
    %s520 = sor.u32 %s4, %s519
    %s521 = sand.u32 %s520, 85
    %s522 = sshrl.u32 %s521, 1
    %s523 = sor.u32 %s521, %s522
    %s524 = sand.u32 51, %s523
    %s525 = sshrl.u32 %s524, 2
    %s526 = sor.u32 %s524, %s525
    %s527 = sand.u32 15, %s526
    %v528 = vld [vmem:[%s518] sm:%s527]
    %v529 = vunpack.c.l.bf16 %v528
    %v530 = vunpack.c.h.bf16 %v528
    %s531 = scalar_lea.vmem [#allocation1], 760
    %532 = vst [vmem:[%s531] sm:%s4] %v529
    %s533 = smul.addr 4, 94
    %s534 = scalar_lea.vmem %s0, %s533
    %s535 = sshrl.u32 %s4, 1
    %s536 = sor.u32 %s4, %s535
    %s537 = sand.u32 %s536, 85
    %s538 = sshrl.u32 %s537, 1
    %s539 = sor.u32 %s537, %s538
    %s540 = sand.u32 51, %s539
    %s541 = sshrl.u32 %s540, 2
    %s542 = sor.u32 %s540, %s541
    %s543 = sand.u32 15, %s542
    %v544 = vld [vmem:[%s534] sm:%s543]
    %v545 = vunpack.c.l.bf16 %v544
    %v546 = vunpack.c.h.bf16 %v544
    %s547 = scalar_lea.vmem [#allocation1], 752
    %548 = vst [vmem:[%s547] sm:%s4] %v545
    %s549 = smul.addr 4, 93
    %s550 = scalar_lea.vmem %s0, %s549
    %s551 = sshrl.u32 %s4, 1
    %s552 = sor.u32 %s4, %s551
    %s553 = sand.u32 %s552, 85
    %s554 = sshrl.u32 %s553, 1
    %s555 = sor.u32 %s553, %s554
    %s556 = sand.u32 51, %s555
    %s557 = sshrl.u32 %s556, 2
    %s558 = sor.u32 %s556, %s557
    %s559 = sand.u32 15, %s558
    %v560 = vld [vmem:[%s550] sm:%s559]
    %v561 = vunpack.c.l.bf16 %v560
    %v562 = vunpack.c.h.bf16 %v560
    %s563 = scalar_lea.vmem [#allocation1], 744
    %564 = vst [vmem:[%s563] sm:%s4] %v561
    %s565 = smul.addr 4, 92
    %s566 = scalar_lea.vmem %s0, %s565
    %s567 = sshrl.u32 %s4, 1
    %s568 = sor.u32 %s4, %s567
    %s569 = sand.u32 %s568, 85
    %s570 = sshrl.u32 %s569, 1
    %s571 = sor.u32 %s569, %s570
    %s572 = sand.u32 51, %s571
    %s573 = sshrl.u32 %s572, 2
    %s574 = sor.u32 %s572, %s573
    %s575 = sand.u32 15, %s574
    %v576 = vld [vmem:[%s566] sm:%s575]
    %v577 = vunpack.c.l.bf16 %v576
    %v578 = vunpack.c.h.bf16 %v576
    %s579 = scalar_lea.vmem [#allocation1], 736
    %580 = vst [vmem:[%s579] sm:%s4] %v577
    %s581 = smul.addr 4, 91
    %s582 = scalar_lea.vmem %s0, %s581
    %s583 = sshrl.u32 %s4, 1
    %s584 = sor.u32 %s4, %s583
    %s585 = sand.u32 %s584, 85
    %s586 = sshrl.u32 %s585, 1
    %s587 = sor.u32 %s585, %s586
    %s588 = sand.u32 51, %s587
    %s589 = sshrl.u32 %s588, 2
    %s590 = sor.u32 %s588, %s589
    %s591 = sand.u32 15, %s590
    %v592 = vld [vmem:[%s582] sm:%s591]
    %v593 = vunpack.c.l.bf16 %v592
    %v594 = vunpack.c.h.bf16 %v592
    %s595 = scalar_lea.vmem [#allocation1], 728
    %596 = vst [vmem:[%s595] sm:%s4] %v593
    %s597 = smul.addr 4, 90
    %s598 = scalar_lea.vmem %s0, %s597
    %s599 = sshrl.u32 %s4, 1
    %s600 = sor.u32 %s4, %s599
    %s601 = sand.u32 %s600, 85
    %s602 = sshrl.u32 %s601, 1
    %s603 = sor.u32 %s601, %s602
    %s604 = sand.u32 51, %s603
    %s605 = sshrl.u32 %s604, 2
    %s606 = sor.u32 %s604, %s605
    %s607 = sand.u32 15, %s606
    %v608 = vld [vmem:[%s598] sm:%s607]
    %v609 = vunpack.c.l.bf16 %v608
    %v610 = vunpack.c.h.bf16 %v608
    %s611 = scalar_lea.vmem [#allocation1], 720
    %612 = vst [vmem:[%s611] sm:%s4] %v609
    %s613 = smul.addr 4, 89
    %s614 = scalar_lea.vmem %s0, %s613
    %s615 = sshrl.u32 %s4, 1
    %s616 = sor.u32 %s4, %s615
    %s617 = sand.u32 %s616, 85
    %s618 = sshrl.u32 %s617, 1
    %s619 = sor.u32 %s617, %s618
    %s620 = sand.u32 51, %s619
    %s621 = sshrl.u32 %s620, 2
    %s622 = sor.u32 %s620, %s621
    %s623 = sand.u32 15, %s622
    %v624 = vld [vmem:[%s614] sm:%s623]
    %v625 = vunpack.c.l.bf16 %v624
    %v626 = vunpack.c.h.bf16 %v624
    %s627 = scalar_lea.vmem [#allocation1], 712
    %628 = vst [vmem:[%s627] sm:%s4] %v625
    %s629 = smul.addr 4, 88
    %s630 = scalar_lea.vmem %s0, %s629
    %s631 = sshrl.u32 %s4, 1
    %s632 = sor.u32 %s4, %s631
    %s633 = sand.u32 %s632, 85
    %s634 = sshrl.u32 %s633, 1
    %s635 = sor.u32 %s633, %s634
    %s636 = sand.u32 51, %s635
    %s637 = sshrl.u32 %s636, 2
    %s638 = sor.u32 %s636, %s637
    %s639 = sand.u32 15, %s638
    %v640 = vld [vmem:[%s630] sm:%s639]
    %v641 = vunpack.c.l.bf16 %v640
    %v642 = vunpack.c.h.bf16 %v640
    %s643 = scalar_lea.vmem [#allocation1], 704
    %644 = vst [vmem:[%s643] sm:%s4] %v641
    %s645 = smul.addr 4, 87
    %s646 = scalar_lea.vmem %s0, %s645
    %s647 = sshrl.u32 %s4, 1
    %s648 = sor.u32 %s4, %s647
    %s649 = sand.u32 %s648, 85
    %s650 = sshrl.u32 %s649, 1
    %s651 = sor.u32 %s649, %s650
    %s652 = sand.u32 51, %s651
    %s653 = sshrl.u32 %s652, 2
    %s654 = sor.u32 %s652, %s653
    %s655 = sand.u32 15, %s654
    %v656 = vld [vmem:[%s646] sm:%s655]
    %v657 = vunpack.c.l.bf16 %v656
    %v658 = vunpack.c.h.bf16 %v656
    %s659 = scalar_lea.vmem [#allocation1], 696
    %660 = vst [vmem:[%s659] sm:%s4] %v657
    %s661 = smul.addr 4, 86
    %s662 = scalar_lea.vmem %s0, %s661
    %s663 = sshrl.u32 %s4, 1
    %s664 = sor.u32 %s4, %s663
    %s665 = sand.u32 %s664, 85
    %s666 = sshrl.u32 %s665, 1
    %s667 = sor.u32 %s665, %s666
    %s668 = sand.u32 51, %s667
    %s669 = sshrl.u32 %s668, 2
    %s670 = sor.u32 %s668, %s669
    %s671 = sand.u32 15, %s670
    %v672 = vld [vmem:[%s662] sm:%s671]
    %v673 = vunpack.c.l.bf16 %v672
    %v674 = vunpack.c.h.bf16 %v672
    %s675 = scalar_lea.vmem [#allocation1], 688
    %676 = vst [vmem:[%s675] sm:%s4] %v673
    %s677 = smul.addr 4, 85
    %s678 = scalar_lea.vmem %s0, %s677
    %s679 = sshrl.u32 %s4, 1
    %s680 = sor.u32 %s4, %s679
    %s681 = sand.u32 %s680, 85
    %s682 = sshrl.u32 %s681, 1
    %s683 = sor.u32 %s681, %s682
    %s684 = sand.u32 51, %s683
    %s685 = sshrl.u32 %s684, 2
    %s686 = sor.u32 %s684, %s685
    %s687 = sand.u32 15, %s686
    %v688 = vld [vmem:[%s678] sm:%s687]
    %v689 = vunpack.c.l.bf16 %v688
    %v690 = vunpack.c.h.bf16 %v688
    %s691 = scalar_lea.vmem [#allocation1], 680
    %692 = vst [vmem:[%s691] sm:%s4] %v689
    %s693 = smul.addr 4, 84
    %s694 = scalar_lea.vmem %s0, %s693
    %s695 = sshrl.u32 %s4, 1
    %s696 = sor.u32 %s4, %s695
    %s697 = sand.u32 %s696, 85
    %s698 = sshrl.u32 %s697, 1
    %s699 = sor.u32 %s697, %s698
    %s700 = sand.u32 51, %s699
    %s701 = sshrl.u32 %s700, 2
    %s702 = sor.u32 %s700, %s701
    %s703 = sand.u32 15, %s702
    %v704 = vld [vmem:[%s694] sm:%s703]
    %v705 = vunpack.c.l.bf16 %v704
    %v706 = vunpack.c.h.bf16 %v704
    %s707 = scalar_lea.vmem [#allocation1], 672
    %708 = vst [vmem:[%s707] sm:%s4] %v705
    %s709 = smul.addr 4, 83
    %s710 = scalar_lea.vmem %s0, %s709
    %s711 = sshrl.u32 %s4, 1
    %s712 = sor.u32 %s4, %s711
    %s713 = sand.u32 %s712, 85
    %s714 = sshrl.u32 %s713, 1
    %s715 = sor.u32 %s713, %s714
    %s716 = sand.u32 51, %s715
    %s717 = sshrl.u32 %s716, 2
    %s718 = sor.u32 %s716, %s717
    %s719 = sand.u32 15, %s718
    %v720 = vld [vmem:[%s710] sm:%s719]
    %v721 = vunpack.c.l.bf16 %v720
    %v722 = vunpack.c.h.bf16 %v720
    %s723 = scalar_lea.vmem [#allocation1], 664
    %724 = vst [vmem:[%s723] sm:%s4] %v721
    %s725 = smul.addr 4, 82
    %s726 = scalar_lea.vmem %s0, %s725
    %s727 = sshrl.u32 %s4, 1
    %s728 = sor.u32 %s4, %s727
    %s729 = sand.u32 %s728, 85
    %s730 = sshrl.u32 %s729, 1
    %s731 = sor.u32 %s729, %s730
    %s732 = sand.u32 51, %s731
    %s733 = sshrl.u32 %s732, 2
    %s734 = sor.u32 %s732, %s733
    %s735 = sand.u32 15, %s734
    %v736 = vld [vmem:[%s726] sm:%s735]
    %v737 = vunpack.c.l.bf16 %v736
    %v738 = vunpack.c.h.bf16 %v736
    %s739 = scalar_lea.vmem [#allocation1], 656
    %740 = vst [vmem:[%s739] sm:%s4] %v737
    %s741 = smul.addr 4, 81
    %s742 = scalar_lea.vmem %s0, %s741
    %s743 = sshrl.u32 %s4, 1
    %s744 = sor.u32 %s4, %s743
    %s745 = sand.u32 %s744, 85
    %s746 = sshrl.u32 %s745, 1
    %s747 = sor.u32 %s745, %s746
    %s748 = sand.u32 51, %s747
    %s749 = sshrl.u32 %s748, 2
    %s750 = sor.u32 %s748, %s749
    %s751 = sand.u32 15, %s750
    %v752 = vld [vmem:[%s742] sm:%s751]
    %v753 = vunpack.c.l.bf16 %v752
    %v754 = vunpack.c.h.bf16 %v752
    %s755 = scalar_lea.vmem [#allocation1], 648
    %756 = vst [vmem:[%s755] sm:%s4] %v753
    %s757 = smul.addr 4, 80
    %s758 = scalar_lea.vmem %s0, %s757
    %s759 = sshrl.u32 %s4, 1
    %s760 = sor.u32 %s4, %s759
    %s761 = sand.u32 %s760, 85
    %s762 = sshrl.u32 %s761, 1
    %s763 = sor.u32 %s761, %s762
    %s764 = sand.u32 51, %s763
    %s765 = sshrl.u32 %s764, 2
    %s766 = sor.u32 %s764, %s765
    %s767 = sand.u32 15, %s766
    %v768 = vld [vmem:[%s758] sm:%s767]
    %v769 = vunpack.c.l.bf16 %v768
    %v770 = vunpack.c.h.bf16 %v768
    %s771 = scalar_lea.vmem [#allocation1], 640
    %772 = vst [vmem:[%s771] sm:%s4] %v769
    %s773 = smul.addr 4, 79
    %s774 = scalar_lea.vmem %s0, %s773
    %s775 = sshrl.u32 %s4, 1
    %s776 = sor.u32 %s4, %s775
    %s777 = sand.u32 %s776, 85
    %s778 = sshrl.u32 %s777, 1
    %s779 = sor.u32 %s777, %s778
    %s780 = sand.u32 51, %s779
    %s781 = sshrl.u32 %s780, 2
    %s782 = sor.u32 %s780, %s781
    %s783 = sand.u32 15, %s782
    %v784 = vld [vmem:[%s774] sm:%s783]
    %v785 = vunpack.c.l.bf16 %v784
    %v786 = vunpack.c.h.bf16 %v784
    %s787 = scalar_lea.vmem [#allocation1], 632
    %788 = vst [vmem:[%s787] sm:%s4] %v785
    %s789 = smul.addr 4, 78
    %s790 = scalar_lea.vmem %s0, %s789
    %s791 = sshrl.u32 %s4, 1
    %s792 = sor.u32 %s4, %s791
    %s793 = sand.u32 %s792, 85
    %s794 = sshrl.u32 %s793, 1
    %s795 = sor.u32 %s793, %s794
    %s796 = sand.u32 51, %s795
    %s797 = sshrl.u32 %s796, 2
    %s798 = sor.u32 %s796, %s797
    %s799 = sand.u32 15, %s798
    %v800 = vld [vmem:[%s790] sm:%s799]
    %v801 = vunpack.c.l.bf16 %v800
    %v802 = vunpack.c.h.bf16 %v800
    %s803 = scalar_lea.vmem [#allocation1], 624
    %804 = vst [vmem:[%s803] sm:%s4] %v801
    %s805 = smul.addr 4, 77
    %s806 = scalar_lea.vmem %s0, %s805
    %s807 = sshrl.u32 %s4, 1
    %s808 = sor.u32 %s4, %s807
    %s809 = sand.u32 %s808, 85
    %s810 = sshrl.u32 %s809, 1
    %s811 = sor.u32 %s809, %s810
    %s812 = sand.u32 51, %s811
    %s813 = sshrl.u32 %s812, 2
    %s814 = sor.u32 %s812, %s813
    %s815 = sand.u32 15, %s814
    %v816 = vld [vmem:[%s806] sm:%s815]
    %v817 = vunpack.c.l.bf16 %v816
    %v818 = vunpack.c.h.bf16 %v816
    %s819 = scalar_lea.vmem [#allocation1], 616
    %820 = vst [vmem:[%s819] sm:%s4] %v817
    %s821 = smul.addr 4, 76
    %s822 = scalar_lea.vmem %s0, %s821
    %s823 = sshrl.u32 %s4, 1
    %s824 = sor.u32 %s4, %s823
    %s825 = sand.u32 %s824, 85
    %s826 = sshrl.u32 %s825, 1
    %s827 = sor.u32 %s825, %s826
    %s828 = sand.u32 51, %s827
    %s829 = sshrl.u32 %s828, 2
    %s830 = sor.u32 %s828, %s829
    %s831 = sand.u32 15, %s830
    %v832 = vld [vmem:[%s822] sm:%s831]
    %v833 = vunpack.c.l.bf16 %v832
    %v834 = vunpack.c.h.bf16 %v832
    %s835 = scalar_lea.vmem [#allocation1], 608
    %836 = vst [vmem:[%s835] sm:%s4] %v833
    %s837 = smul.addr 4, 75
    %s838 = scalar_lea.vmem %s0, %s837
    %s839 = sshrl.u32 %s4, 1
    %s840 = sor.u32 %s4, %s839
    %s841 = sand.u32 %s840, 85
    %s842 = sshrl.u32 %s841, 1
    %s843 = sor.u32 %s841, %s842
    %s844 = sand.u32 51, %s843
    %s845 = sshrl.u32 %s844, 2
    %s846 = sor.u32 %s844, %s845
    %s847 = sand.u32 15, %s846
    %v848 = vld [vmem:[%s838] sm:%s847]
    %v849 = vunpack.c.l.bf16 %v848
    %v850 = vunpack.c.h.bf16 %v848
    %s851 = scalar_lea.vmem [#allocation1], 600
    %852 = vst [vmem:[%s851] sm:%s4] %v849
    %s853 = smul.addr 4, 74
    %s854 = scalar_lea.vmem %s0, %s853
    %s855 = sshrl.u32 %s4, 1
    %s856 = sor.u32 %s4, %s855
    %s857 = sand.u32 %s856, 85
    %s858 = sshrl.u32 %s857, 1
    %s859 = sor.u32 %s857, %s858
    %s860 = sand.u32 51, %s859
    %s861 = sshrl.u32 %s860, 2
    %s862 = sor.u32 %s860, %s861
    %s863 = sand.u32 15, %s862
    %v864 = vld [vmem:[%s854] sm:%s863]
    %v865 = vunpack.c.l.bf16 %v864
    %v866 = vunpack.c.h.bf16 %v864
    %s867 = scalar_lea.vmem [#allocation1], 592
    %868 = vst [vmem:[%s867] sm:%s4] %v865
    %s869 = smul.addr 4, 73
    %s870 = scalar_lea.vmem %s0, %s869
    %s871 = sshrl.u32 %s4, 1
    %s872 = sor.u32 %s4, %s871
    %s873 = sand.u32 %s872, 85
    %s874 = sshrl.u32 %s873, 1
    %s875 = sor.u32 %s873, %s874
    %s876 = sand.u32 51, %s875
    %s877 = sshrl.u32 %s876, 2
    %s878 = sor.u32 %s876, %s877
    %s879 = sand.u32 15, %s878
    %v880 = vld [vmem:[%s870] sm:%s879]
    %v881 = vunpack.c.l.bf16 %v880
    %v882 = vunpack.c.h.bf16 %v880
    %s883 = scalar_lea.vmem [#allocation1], 584
    %884 = vst [vmem:[%s883] sm:%s4] %v881
    %s885 = smul.addr 4, 72
    %s886 = scalar_lea.vmem %s0, %s885
    %s887 = sshrl.u32 %s4, 1
    %s888 = sor.u32 %s4, %s887
    %s889 = sand.u32 %s888, 85
    %s890 = sshrl.u32 %s889, 1
    %s891 = sor.u32 %s889, %s890
    %s892 = sand.u32 51, %s891
    %s893 = sshrl.u32 %s892, 2
    %s894 = sor.u32 %s892, %s893
    %s895 = sand.u32 15, %s894
    %v896 = vld [vmem:[%s886] sm:%s895]
    %v897 = vunpack.c.l.bf16 %v896
    %v898 = vunpack.c.h.bf16 %v896
    %s899 = scalar_lea.vmem [#allocation1], 576
    %900 = vst [vmem:[%s899] sm:%s4] %v897
    %s901 = smul.addr 4, 71
    %s902 = scalar_lea.vmem %s0, %s901
    %s903 = sshrl.u32 %s4, 1
    %s904 = sor.u32 %s4, %s903
    %s905 = sand.u32 %s904, 85
    %s906 = sshrl.u32 %s905, 1
    %s907 = sor.u32 %s905, %s906
    %s908 = sand.u32 51, %s907
    %s909 = sshrl.u32 %s908, 2
    %s910 = sor.u32 %s908, %s909
    %s911 = sand.u32 15, %s910
    %v912 = vld [vmem:[%s902] sm:%s911]
    %v913 = vunpack.c.l.bf16 %v912
    %v914 = vunpack.c.h.bf16 %v912
    %s915 = scalar_lea.vmem [#allocation1], 568
    %916 = vst [vmem:[%s915] sm:%s4] %v913
    %s917 = smul.addr 4, 70
    %s918 = scalar_lea.vmem %s0, %s917
    %s919 = sshrl.u32 %s4, 1
    %s920 = sor.u32 %s4, %s919
    %s921 = sand.u32 %s920, 85
    %s922 = sshrl.u32 %s921, 1
    %s923 = sor.u32 %s921, %s922
    %s924 = sand.u32 51, %s923
    %s925 = sshrl.u32 %s924, 2
    %s926 = sor.u32 %s924, %s925
    %s927 = sand.u32 15, %s926
    %v928 = vld [vmem:[%s918] sm:%s927]
    %v929 = vunpack.c.l.bf16 %v928
    %v930 = vunpack.c.h.bf16 %v928
    %s931 = scalar_lea.vmem [#allocation1], 560
    %932 = vst [vmem:[%s931] sm:%s4] %v929
    %s933 = smul.addr 4, 69
    %s934 = scalar_lea.vmem %s0, %s933
    %s935 = sshrl.u32 %s4, 1
    %s936 = sor.u32 %s4, %s935
    %s937 = sand.u32 %s936, 85
    %s938 = sshrl.u32 %s937, 1
    %s939 = sor.u32 %s937, %s938
    %s940 = sand.u32 51, %s939
    %s941 = sshrl.u32 %s940, 2
    %s942 = sor.u32 %s940, %s941
    %s943 = sand.u32 15, %s942
    %v944 = vld [vmem:[%s934] sm:%s943]
    %v945 = vunpack.c.l.bf16 %v944
    %v946 = vunpack.c.h.bf16 %v944
    %s947 = scalar_lea.vmem [#allocation1], 552
    %948 = vst [vmem:[%s947] sm:%s4] %v945
    %s949 = smul.addr 4, 68
    %s950 = scalar_lea.vmem %s0, %s949
    %s951 = sshrl.u32 %s4, 1
    %s952 = sor.u32 %s4, %s951
    %s953 = sand.u32 %s952, 85
    %s954 = sshrl.u32 %s953, 1
    %s955 = sor.u32 %s953, %s954
    %s956 = sand.u32 51, %s955
    %s957 = sshrl.u32 %s956, 2
    %s958 = sor.u32 %s956, %s957
    %s959 = sand.u32 15, %s958
    %v960 = vld [vmem:[%s950] sm:%s959]
    %v961 = vunpack.c.l.bf16 %v960
    %v962 = vunpack.c.h.bf16 %v960
    %s963 = scalar_lea.vmem [#allocation1], 544
    %964 = vst [vmem:[%s963] sm:%s4] %v961
    %s965 = smul.addr 4, 67
    %s966 = scalar_lea.vmem %s0, %s965
    %s967 = sshrl.u32 %s4, 1
    %s968 = sor.u32 %s4, %s967
    %s969 = sand.u32 %s968, 85
    %s970 = sshrl.u32 %s969, 1
    %s971 = sor.u32 %s969, %s970
    %s972 = sand.u32 51, %s971
    %s973 = sshrl.u32 %s972, 2
    %s974 = sor.u32 %s972, %s973
    %s975 = sand.u32 15, %s974
    %v976 = vld [vmem:[%s966] sm:%s975]
    %v977 = vunpack.c.l.bf16 %v976
    %v978 = vunpack.c.h.bf16 %v976
    %s979 = scalar_lea.vmem [#allocation1], 536
    %980 = vst [vmem:[%s979] sm:%s4] %v977
    %s981 = smul.addr 4, 66
    %s982 = scalar_lea.vmem %s0, %s981
    %s983 = sshrl.u32 %s4, 1
    %s984 = sor.u32 %s4, %s983
    %s985 = sand.u32 %s984, 85
    %s986 = sshrl.u32 %s985, 1
    %s987 = sor.u32 %s985, %s986
    %s988 = sand.u32 51, %s987
    %s989 = sshrl.u32 %s988, 2
    %s990 = sor.u32 %s988, %s989
    %s991 = sand.u32 15, %s990
    %v992 = vld [vmem:[%s982] sm:%s991]
    %v993 = vunpack.c.l.bf16 %v992
    %v994 = vunpack.c.h.bf16 %v992
    %s995 = scalar_lea.vmem [#allocation1], 528
    %996 = vst [vmem:[%s995] sm:%s4] %v993
    %s997 = smul.addr 4, 65
    %s998 = scalar_lea.vmem %s0, %s997
    %s999 = sshrl.u32 %s4, 1
    %s1000 = sor.u32 %s4, %s999
    %s1001 = sand.u32 %s1000, 85
    %s1002 = sshrl.u32 %s1001, 1
    %s1003 = sor.u32 %s1001, %s1002
    %s1004 = sand.u32 51, %s1003
    %s1005 = sshrl.u32 %s1004, 2
    %s1006 = sor.u32 %s1004, %s1005
    %s1007 = sand.u32 15, %s1006
    %v1008 = vld [vmem:[%s998] sm:%s1007]
    %v1009 = vunpack.c.l.bf16 %v1008
    %v1010 = vunpack.c.h.bf16 %v1008
    %s1011 = scalar_lea.vmem [#allocation1], 520
    %1012 = vst [vmem:[%s1011] sm:%s4] %v1009
    %s1013 = smul.addr 4, 64
    %s1014 = scalar_lea.vmem %s0, %s1013
    %s1015 = sshrl.u32 %s4, 1
    %s1016 = sor.u32 %s4, %s1015
    %s1017 = sand.u32 %s1016, 85
    %s1018 = sshrl.u32 %s1017, 1
    %s1019 = sor.u32 %s1017, %s1018
    %s1020 = sand.u32 51, %s1019
    %s1021 = sshrl.u32 %s1020, 2
    %s1022 = sor.u32 %s1020, %s1021
    %s1023 = sand.u32 15, %s1022
    %v1024 = vld [vmem:[%s1014] sm:%s1023]
    %v1025 = vunpack.c.l.bf16 %v1024
    %v1026 = vunpack.c.h.bf16 %v1024
    %s1027 = scalar_lea.vmem [#allocation1], 512
    %1028 = vst [vmem:[%s1027] sm:%s4] %v1025
    %s1029 = smul.addr 4, 63
    %s1030 = scalar_lea.vmem %s0, %s1029
    %s1031 = sshrl.u32 %s4, 1
    %s1032 = sor.u32 %s4, %s1031
    %s1033 = sand.u32 %s1032, 85
    %s1034 = sshrl.u32 %s1033, 1
    %s1035 = sor.u32 %s1033, %s1034
    %s1036 = sand.u32 51, %s1035
    %s1037 = sshrl.u32 %s1036, 2
    %s1038 = sor.u32 %s1036, %s1037
    %s1039 = sand.u32 15, %s1038
    %v1040 = vld [vmem:[%s1030] sm:%s1039]
    %v1041 = vunpack.c.l.bf16 %v1040
    %v1042 = vunpack.c.h.bf16 %v1040
    %s1043 = scalar_lea.vmem [#allocation1], 504
    %1044 = vst [vmem:[%s1043] sm:%s4] %v1041
    %s1045 = smul.addr 4, 62
    %s1046 = scalar_lea.vmem %s0, %s1045
    %s1047 = sshrl.u32 %s4, 1
    %s1048 = sor.u32 %s4, %s1047
    %s1049 = sand.u32 %s1048, 85
    %s1050 = sshrl.u32 %s1049, 1
    %s1051 = sor.u32 %s1049, %s1050
    %s1052 = sand.u32 51, %s1051
    %s1053 = sshrl.u32 %s1052, 2
    %s1054 = sor.u32 %s1052, %s1053
    %s1055 = sand.u32 15, %s1054
    %v1056 = vld [vmem:[%s1046] sm:%s1055]
    %v1057 = vunpack.c.l.bf16 %v1056
    %v1058 = vunpack.c.h.bf16 %v1056
    %s1059 = scalar_lea.vmem [#allocation1], 496
    %1060 = vst [vmem:[%s1059] sm:%s4] %v1057
    %s1061 = smul.addr 4, 61
    %s1062 = scalar_lea.vmem %s0, %s1061
    %s1063 = sshrl.u32 %s4, 1
    %s1064 = sor.u32 %s4, %s1063
    %s1065 = sand.u32 %s1064, 85
    %s1066 = sshrl.u32 %s1065, 1
    %s1067 = sor.u32 %s1065, %s1066
    %s1068 = sand.u32 51, %s1067
    %s1069 = sshrl.u32 %s1068, 2
    %s1070 = sor.u32 %s1068, %s1069
    %s1071 = sand.u32 15, %s1070
    %v1072 = vld [vmem:[%s1062] sm:%s1071]
    %v1073 = vunpack.c.l.bf16 %v1072
    %v1074 = vunpack.c.h.bf16 %v1072
    %s1075 = scalar_lea.vmem [#allocation1], 488
    %1076 = vst [vmem:[%s1075] sm:%s4] %v1073
    %s1077 = smul.addr 4, 60
    %s1078 = scalar_lea.vmem %s0, %s1077
    %s1079 = sshrl.u32 %s4, 1
    %s1080 = sor.u32 %s4, %s1079
    %s1081 = sand.u32 %s1080, 85
    %s1082 = sshrl.u32 %s1081, 1
    %s1083 = sor.u32 %s1081, %s1082
    %s1084 = sand.u32 51, %s1083
    %s1085 = sshrl.u32 %s1084, 2
    %s1086 = sor.u32 %s1084, %s1085
    %s1087 = sand.u32 15, %s1086
    %v1088 = vld [vmem:[%s1078] sm:%s1087]
    %v1089 = vunpack.c.l.bf16 %v1088
    %v1090 = vunpack.c.h.bf16 %v1088
    %s1091 = scalar_lea.vmem [#allocation1], 480
    %1092 = vst [vmem:[%s1091] sm:%s4] %v1089
    %s1093 = smul.addr 4, 59
    %s1094 = scalar_lea.vmem %s0, %s1093
    %s1095 = sshrl.u32 %s4, 1
    %s1096 = sor.u32 %s4, %s1095
    %s1097 = sand.u32 %s1096, 85
    %s1098 = sshrl.u32 %s1097, 1
    %s1099 = sor.u32 %s1097, %s1098
    %s1100 = sand.u32 51, %s1099
    %s1101 = sshrl.u32 %s1100, 2
    %s1102 = sor.u32 %s1100, %s1101
    %s1103 = sand.u32 15, %s1102
    %v1104 = vld [vmem:[%s1094] sm:%s1103]
    %v1105 = vunpack.c.l.bf16 %v1104
    %v1106 = vunpack.c.h.bf16 %v1104
    %s1107 = scalar_lea.vmem [#allocation1], 472
    %1108 = vst [vmem:[%s1107] sm:%s4] %v1105
    %s1109 = smul.addr 4, 58
    %s1110 = scalar_lea.vmem %s0, %s1109
    %s1111 = sshrl.u32 %s4, 1
    %s1112 = sor.u32 %s4, %s1111
    %s1113 = sand.u32 %s1112, 85
    %s1114 = sshrl.u32 %s1113, 1
    %s1115 = sor.u32 %s1113, %s1114
    %s1116 = sand.u32 51, %s1115
    %s1117 = sshrl.u32 %s1116, 2
    %s1118 = sor.u32 %s1116, %s1117
    %s1119 = sand.u32 15, %s1118
    %v1120 = vld [vmem:[%s1110] sm:%s1119]
    %v1121 = vunpack.c.l.bf16 %v1120
    %v1122 = vunpack.c.h.bf16 %v1120
    %s1123 = scalar_lea.vmem [#allocation1], 464
    %1124 = vst [vmem:[%s1123] sm:%s4] %v1121
    %s1125 = smul.addr 4, 57
    %s1126 = scalar_lea.vmem %s0, %s1125
    %s1127 = sshrl.u32 %s4, 1
    %s1128 = sor.u32 %s4, %s1127
    %s1129 = sand.u32 %s1128, 85
    %s1130 = sshrl.u32 %s1129, 1
    %s1131 = sor.u32 %s1129, %s1130
    %s1132 = sand.u32 51, %s1131
    %s1133 = sshrl.u32 %s1132, 2
    %s1134 = sor.u32 %s1132, %s1133
    %s1135 = sand.u32 15, %s1134
    %v1136 = vld [vmem:[%s1126] sm:%s1135]
    %v1137 = vunpack.c.l.bf16 %v1136
    %v1138 = vunpack.c.h.bf16 %v1136
    %s1139 = scalar_lea.vmem [#allocation1], 456
    %1140 = vst [vmem:[%s1139] sm:%s4] %v1137
    %s1141 = smul.addr 4, 56
    %s1142 = scalar_lea.vmem %s0, %s1141
    %s1143 = sshrl.u32 %s4, 1
    %s1144 = sor.u32 %s4, %s1143
    %s1145 = sand.u32 %s1144, 85
    %s1146 = sshrl.u32 %s1145, 1
    %s1147 = sor.u32 %s1145, %s1146
    %s1148 = sand.u32 51, %s1147
    %s1149 = sshrl.u32 %s1148, 2
    %s1150 = sor.u32 %s1148, %s1149
    %s1151 = sand.u32 15, %s1150
    %v1152 = vld [vmem:[%s1142] sm:%s1151]
    %v1153 = vunpack.c.l.bf16 %v1152
    %v1154 = vunpack.c.h.bf16 %v1152
    %s1155 = scalar_lea.vmem [#allocation1], 448
    %1156 = vst [vmem:[%s1155] sm:%s4] %v1153
    %s1157 = smul.addr 4, 55
    %s1158 = scalar_lea.vmem %s0, %s1157
    %s1159 = sshrl.u32 %s4, 1
    %s1160 = sor.u32 %s4, %s1159
    %s1161 = sand.u32 %s1160, 85
    %s1162 = sshrl.u32 %s1161, 1
    %s1163 = sor.u32 %s1161, %s1162
    %s1164 = sand.u32 51, %s1163
    %s1165 = sshrl.u32 %s1164, 2
    %s1166 = sor.u32 %s1164, %s1165
    %s1167 = sand.u32 15, %s1166
    %v1168 = vld [vmem:[%s1158] sm:%s1167]
    %v1169 = vunpack.c.l.bf16 %v1168
    %v1170 = vunpack.c.h.bf16 %v1168
    %s1171 = scalar_lea.vmem [#allocation1], 440
    %1172 = vst [vmem:[%s1171] sm:%s4] %v1169
    %s1173 = smul.addr 4, 54
    %s1174 = scalar_lea.vmem %s0, %s1173
    %s1175 = sshrl.u32 %s4, 1
    %s1176 = sor.u32 %s4, %s1175
    %s1177 = sand.u32 %s1176, 85
    %s1178 = sshrl.u32 %s1177, 1
    %s1179 = sor.u32 %s1177, %s1178
    %s1180 = sand.u32 51, %s1179
    %s1181 = sshrl.u32 %s1180, 2
    %s1182 = sor.u32 %s1180, %s1181
    %s1183 = sand.u32 15, %s1182
    %v1184 = vld [vmem:[%s1174] sm:%s1183]
    %v1185 = vunpack.c.l.bf16 %v1184
    %v1186 = vunpack.c.h.bf16 %v1184
    %s1187 = scalar_lea.vmem [#allocation1], 432
    %1188 = vst [vmem:[%s1187] sm:%s4] %v1185
    %s1189 = smul.addr 4, 53
    %s1190 = scalar_lea.vmem %s0, %s1189
    %s1191 = sshrl.u32 %s4, 1
    %s1192 = sor.u32 %s4, %s1191
    %s1193 = sand.u32 %s1192, 85
    %s1194 = sshrl.u32 %s1193, 1
    %s1195 = sor.u32 %s1193, %s1194
    %s1196 = sand.u32 51, %s1195
    %s1197 = sshrl.u32 %s1196, 2
    %s1198 = sor.u32 %s1196, %s1197
    %s1199 = sand.u32 15, %s1198
    %v1200 = vld [vmem:[%s1190] sm:%s1199]
    %v1201 = vunpack.c.l.bf16 %v1200
    %v1202 = vunpack.c.h.bf16 %v1200
    %s1203 = scalar_lea.vmem [#allocation1], 424
    %1204 = vst [vmem:[%s1203] sm:%s4] %v1201
    %s1205 = smul.addr 4, 52
    %s1206 = scalar_lea.vmem %s0, %s1205
    %s1207 = sshrl.u32 %s4, 1
    %s1208 = sor.u32 %s4, %s1207
    %s1209 = sand.u32 %s1208, 85
    %s1210 = sshrl.u32 %s1209, 1
    %s1211 = sor.u32 %s1209, %s1210
    %s1212 = sand.u32 51, %s1211
    %s1213 = sshrl.u32 %s1212, 2
    %s1214 = sor.u32 %s1212, %s1213
    %s1215 = sand.u32 15, %s1214
    %v1216 = vld [vmem:[%s1206] sm:%s1215]
    %v1217 = vunpack.c.l.bf16 %v1216
    %v1218 = vunpack.c.h.bf16 %v1216
    %s1219 = scalar_lea.vmem [#allocation1], 416
    %1220 = vst [vmem:[%s1219] sm:%s4] %v1217
    %s1221 = smul.addr 4, 51
    %s1222 = scalar_lea.vmem %s0, %s1221
    %s1223 = sshrl.u32 %s4, 1
    %s1224 = sor.u32 %s4, %s1223
    %s1225 = sand.u32 %s1224, 85
    %s1226 = sshrl.u32 %s1225, 1
    %s1227 = sor.u32 %s1225, %s1226
    %s1228 = sand.u32 51, %s1227
    %s1229 = sshrl.u32 %s1228, 2
    %s1230 = sor.u32 %s1228, %s1229
    %s1231 = sand.u32 15, %s1230
    %v1232 = vld [vmem:[%s1222] sm:%s1231]
    %v1233 = vunpack.c.l.bf16 %v1232
    %v1234 = vunpack.c.h.bf16 %v1232
    %s1235 = scalar_lea.vmem [#allocation1], 408
    %1236 = vst [vmem:[%s1235] sm:%s4] %v1233
    %s1237 = smul.addr 4, 50
    %s1238 = scalar_lea.vmem %s0, %s1237
    %s1239 = sshrl.u32 %s4, 1
    %s1240 = sor.u32 %s4, %s1239
    %s1241 = sand.u32 %s1240, 85
    %s1242 = sshrl.u32 %s1241, 1
    %s1243 = sor.u32 %s1241, %s1242
    %s1244 = sand.u32 51, %s1243
    %s1245 = sshrl.u32 %s1244, 2
    %s1246 = sor.u32 %s1244, %s1245
    %s1247 = sand.u32 15, %s1246
    %v1248 = vld [vmem:[%s1238] sm:%s1247]
    %v1249 = vunpack.c.l.bf16 %v1248
    %v1250 = vunpack.c.h.bf16 %v1248
    %s1251 = scalar_lea.vmem [#allocation1], 400
    %1252 = vst [vmem:[%s1251] sm:%s4] %v1249
    %s1253 = smul.addr 4, 49
    %s1254 = scalar_lea.vmem %s0, %s1253
    %s1255 = sshrl.u32 %s4, 1
    %s1256 = sor.u32 %s4, %s1255
    %s1257 = sand.u32 %s1256, 85
    %s1258 = sshrl.u32 %s1257, 1
    %s1259 = sor.u32 %s1257, %s1258
    %s1260 = sand.u32 51, %s1259
    %s1261 = sshrl.u32 %s1260, 2
    %s1262 = sor.u32 %s1260, %s1261
    %s1263 = sand.u32 15, %s1262
    %v1264 = vld [vmem:[%s1254] sm:%s1263]
    %v1265 = vunpack.c.l.bf16 %v1264
    %v1266 = vunpack.c.h.bf16 %v1264
    %s1267 = scalar_lea.vmem [#allocation1], 392
    %1268 = vst [vmem:[%s1267] sm:%s4] %v1265
    %s1269 = smul.addr 4, 48
    %s1270 = scalar_lea.vmem %s0, %s1269
    %s1271 = sshrl.u32 %s4, 1
    %s1272 = sor.u32 %s4, %s1271
    %s1273 = sand.u32 %s1272, 85
    %s1274 = sshrl.u32 %s1273, 1
    %s1275 = sor.u32 %s1273, %s1274
    %s1276 = sand.u32 51, %s1275
    %s1277 = sshrl.u32 %s1276, 2
    %s1278 = sor.u32 %s1276, %s1277
    %s1279 = sand.u32 15, %s1278
    %v1280 = vld [vmem:[%s1270] sm:%s1279]
    %v1281 = vunpack.c.l.bf16 %v1280
    %v1282 = vunpack.c.h.bf16 %v1280
    %s1283 = scalar_lea.vmem [#allocation1], 384
    %1284 = vst [vmem:[%s1283] sm:%s4] %v1281
    %s1285 = smul.addr 4, 47
    %s1286 = scalar_lea.vmem %s0, %s1285
    %s1287 = sshrl.u32 %s4, 1
    %s1288 = sor.u32 %s4, %s1287
    %s1289 = sand.u32 %s1288, 85
    %s1290 = sshrl.u32 %s1289, 1
    %s1291 = sor.u32 %s1289, %s1290
    %s1292 = sand.u32 51, %s1291
    %s1293 = sshrl.u32 %s1292, 2
    %s1294 = sor.u32 %s1292, %s1293
    %s1295 = sand.u32 15, %s1294
    %v1296 = vld [vmem:[%s1286] sm:%s1295]
    %v1297 = vunpack.c.l.bf16 %v1296
    %v1298 = vunpack.c.h.bf16 %v1296
    %s1299 = scalar_lea.vmem [#allocation1], 376
    %1300 = vst [vmem:[%s1299] sm:%s4] %v1297
    %s1301 = smul.addr 4, 46
    %s1302 = scalar_lea.vmem %s0, %s1301
    %s1303 = sshrl.u32 %s4, 1
    %s1304 = sor.u32 %s4, %s1303
    %s1305 = sand.u32 %s1304, 85
    %s1306 = sshrl.u32 %s1305, 1
    %s1307 = sor.u32 %s1305, %s1306
    %s1308 = sand.u32 51, %s1307
    %s1309 = sshrl.u32 %s1308, 2
    %s1310 = sor.u32 %s1308, %s1309
    %s1311 = sand.u32 15, %s1310
    %v1312 = vld [vmem:[%s1302] sm:%s1311]
    %v1313 = vunpack.c.l.bf16 %v1312
    %v1314 = vunpack.c.h.bf16 %v1312
    %s1315 = scalar_lea.vmem [#allocation1], 368
    %1316 = vst [vmem:[%s1315] sm:%s4] %v1313
    %s1317 = smul.addr 4, 45
    %s1318 = scalar_lea.vmem %s0, %s1317
    %s1319 = sshrl.u32 %s4, 1
    %s1320 = sor.u32 %s4, %s1319
    %s1321 = sand.u32 %s1320, 85
    %s1322 = sshrl.u32 %s1321, 1
    %s1323 = sor.u32 %s1321, %s1322
    %s1324 = sand.u32 51, %s1323
    %s1325 = sshrl.u32 %s1324, 2
    %s1326 = sor.u32 %s1324, %s1325
    %s1327 = sand.u32 15, %s1326
    %v1328 = vld [vmem:[%s1318] sm:%s1327]
    %v1329 = vunpack.c.l.bf16 %v1328
    %v1330 = vunpack.c.h.bf16 %v1328
    %s1331 = scalar_lea.vmem [#allocation1], 360
    %1332 = vst [vmem:[%s1331] sm:%s4] %v1329
    %s1333 = smul.addr 4, 44
    %s1334 = scalar_lea.vmem %s0, %s1333
    %s1335 = sshrl.u32 %s4, 1
    %s1336 = sor.u32 %s4, %s1335
    %s1337 = sand.u32 %s1336, 85
    %s1338 = sshrl.u32 %s1337, 1
    %s1339 = sor.u32 %s1337, %s1338
    %s1340 = sand.u32 51, %s1339
    %s1341 = sshrl.u32 %s1340, 2
    %s1342 = sor.u32 %s1340, %s1341
    %s1343 = sand.u32 15, %s1342
    %v1344 = vld [vmem:[%s1334] sm:%s1343]
    %v1345 = vunpack.c.l.bf16 %v1344
    %v1346 = vunpack.c.h.bf16 %v1344
    %s1347 = scalar_lea.vmem [#allocation1], 352
    %1348 = vst [vmem:[%s1347] sm:%s4] %v1345
    %s1349 = smul.addr 4, 43
    %s1350 = scalar_lea.vmem %s0, %s1349
    %s1351 = sshrl.u32 %s4, 1
    %s1352 = sor.u32 %s4, %s1351
    %s1353 = sand.u32 %s1352, 85
    %s1354 = sshrl.u32 %s1353, 1
    %s1355 = sor.u32 %s1353, %s1354
    %s1356 = sand.u32 51, %s1355
    %s1357 = sshrl.u32 %s1356, 2
    %s1358 = sor.u32 %s1356, %s1357
    %s1359 = sand.u32 15, %s1358
    %v1360 = vld [vmem:[%s1350] sm:%s1359]
    %v1361 = vunpack.c.l.bf16 %v1360
    %v1362 = vunpack.c.h.bf16 %v1360
    %s1363 = scalar_lea.vmem [#allocation1], 344
    %1364 = vst [vmem:[%s1363] sm:%s4] %v1361
    %s1365 = smul.addr 4, 42
    %s1366 = scalar_lea.vmem %s0, %s1365
    %s1367 = sshrl.u32 %s4, 1
    %s1368 = sor.u32 %s4, %s1367
    %s1369 = sand.u32 %s1368, 85
    %s1370 = sshrl.u32 %s1369, 1
    %s1371 = sor.u32 %s1369, %s1370
    %s1372 = sand.u32 51, %s1371
    %s1373 = sshrl.u32 %s1372, 2
    %s1374 = sor.u32 %s1372, %s1373
    %s1375 = sand.u32 15, %s1374
    %v1376 = vld [vmem:[%s1366] sm:%s1375]
    %v1377 = vunpack.c.l.bf16 %v1376
    %v1378 = vunpack.c.h.bf16 %v1376
    %s1379 = scalar_lea.vmem [#allocation1], 336
    %1380 = vst [vmem:[%s1379] sm:%s4] %v1377
    %s1381 = smul.addr 4, 41
    %s1382 = scalar_lea.vmem %s0, %s1381
    %s1383 = sshrl.u32 %s4, 1
    %s1384 = sor.u32 %s4, %s1383
    %s1385 = sand.u32 %s1384, 85
    %s1386 = sshrl.u32 %s1385, 1
    %s1387 = sor.u32 %s1385, %s1386
    %s1388 = sand.u32 51, %s1387
    %s1389 = sshrl.u32 %s1388, 2
    %s1390 = sor.u32 %s1388, %s1389
    %s1391 = sand.u32 15, %s1390
    %v1392 = vld [vmem:[%s1382] sm:%s1391]
    %v1393 = vunpack.c.l.bf16 %v1392
    %v1394 = vunpack.c.h.bf16 %v1392
    %s1395 = scalar_lea.vmem [#allocation1], 328
    %1396 = vst [vmem:[%s1395] sm:%s4] %v1393
    %s1397 = smul.addr 4, 40
    %s1398 = scalar_lea.vmem %s0, %s1397
    %s1399 = sshrl.u32 %s4, 1
    %s1400 = sor.u32 %s4, %s1399
    %s1401 = sand.u32 %s1400, 85
    %s1402 = sshrl.u32 %s1401, 1
    %s1403 = sor.u32 %s1401, %s1402
    %s1404 = sand.u32 51, %s1403
    %s1405 = sshrl.u32 %s1404, 2
    %s1406 = sor.u32 %s1404, %s1405
    %s1407 = sand.u32 15, %s1406
    %v1408 = vld [vmem:[%s1398] sm:%s1407]
    %v1409 = vunpack.c.l.bf16 %v1408
    %v1410 = vunpack.c.h.bf16 %v1408
    %s1411 = scalar_lea.vmem [#allocation1], 320
    %1412 = vst [vmem:[%s1411] sm:%s4] %v1409
    %s1413 = smul.addr 4, 39
    %s1414 = scalar_lea.vmem %s0, %s1413
    %s1415 = sshrl.u32 %s4, 1
    %s1416 = sor.u32 %s4, %s1415
    %s1417 = sand.u32 %s1416, 85
    %s1418 = sshrl.u32 %s1417, 1
    %s1419 = sor.u32 %s1417, %s1418
    %s1420 = sand.u32 51, %s1419
    %s1421 = sshrl.u32 %s1420, 2
    %s1422 = sor.u32 %s1420, %s1421
    %s1423 = sand.u32 15, %s1422
    %v1424 = vld [vmem:[%s1414] sm:%s1423]
    %v1425 = vunpack.c.l.bf16 %v1424
    %v1426 = vunpack.c.h.bf16 %v1424
    %s1427 = scalar_lea.vmem [#allocation1], 312
    %1428 = vst [vmem:[%s1427] sm:%s4] %v1425
    %s1429 = smul.addr 4, 38
    %s1430 = scalar_lea.vmem %s0, %s1429
    %s1431 = sshrl.u32 %s4, 1
    %s1432 = sor.u32 %s4, %s1431
    %s1433 = sand.u32 %s1432, 85
    %s1434 = sshrl.u32 %s1433, 1
    %s1435 = sor.u32 %s1433, %s1434
    %s1436 = sand.u32 51, %s1435
    %s1437 = sshrl.u32 %s1436, 2
    %s1438 = sor.u32 %s1436, %s1437
    %s1439 = sand.u32 15, %s1438
    %v1440 = vld [vmem:[%s1430] sm:%s1439]
    %v1441 = vunpack.c.l.bf16 %v1440
    %v1442 = vunpack.c.h.bf16 %v1440
    %s1443 = scalar_lea.vmem [#allocation1], 304
    %1444 = vst [vmem:[%s1443] sm:%s4] %v1441
    %s1445 = smul.addr 4, 37
    %s1446 = scalar_lea.vmem %s0, %s1445
    %s1447 = sshrl.u32 %s4, 1
    %s1448 = sor.u32 %s4, %s1447
    %s1449 = sand.u32 %s1448, 85
    %s1450 = sshrl.u32 %s1449, 1
    %s1451 = sor.u32 %s1449, %s1450
    %s1452 = sand.u32 51, %s1451
    %s1453 = sshrl.u32 %s1452, 2
    %s1454 = sor.u32 %s1452, %s1453
    %s1455 = sand.u32 15, %s1454
    %v1456 = vld [vmem:[%s1446] sm:%s1455]
    %v1457 = vunpack.c.l.bf16 %v1456
    %v1458 = vunpack.c.h.bf16 %v1456
    %s1459 = scalar_lea.vmem [#allocation1], 296
    %1460 = vst [vmem:[%s1459] sm:%s4] %v1457
    %s1461 = smul.addr 4, 36
    %s1462 = scalar_lea.vmem %s0, %s1461
    %s1463 = sshrl.u32 %s4, 1
    %s1464 = sor.u32 %s4, %s1463
    %s1465 = sand.u32 %s1464, 85
    %s1466 = sshrl.u32 %s1465, 1
    %s1467 = sor.u32 %s1465, %s1466
    %s1468 = sand.u32 51, %s1467
    %s1469 = sshrl.u32 %s1468, 2
    %s1470 = sor.u32 %s1468, %s1469
    %s1471 = sand.u32 15, %s1470
    %v1472 = vld [vmem:[%s1462] sm:%s1471]
    %v1473 = vunpack.c.l.bf16 %v1472
    %v1474 = vunpack.c.h.bf16 %v1472
    %s1475 = scalar_lea.vmem [#allocation1], 288
    %1476 = vst [vmem:[%s1475] sm:%s4] %v1473
    %s1477 = smul.addr 4, 35
    %s1478 = scalar_lea.vmem %s0, %s1477
    %s1479 = sshrl.u32 %s4, 1
    %s1480 = sor.u32 %s4, %s1479
    %s1481 = sand.u32 %s1480, 85
    %s1482 = sshrl.u32 %s1481, 1
    %s1483 = sor.u32 %s1481, %s1482
    %s1484 = sand.u32 51, %s1483
    %s1485 = sshrl.u32 %s1484, 2
    %s1486 = sor.u32 %s1484, %s1485
    %s1487 = sand.u32 15, %s1486
    %v1488 = vld [vmem:[%s1478] sm:%s1487]
    %v1489 = vunpack.c.l.bf16 %v1488
    %v1490 = vunpack.c.h.bf16 %v1488
    %s1491 = scalar_lea.vmem [#allocation1], 280
    %1492 = vst [vmem:[%s1491] sm:%s4] %v1489
    %s1493 = smul.addr 4, 34
    %s1494 = scalar_lea.vmem %s0, %s1493
    %s1495 = sshrl.u32 %s4, 1
    %s1496 = sor.u32 %s4, %s1495
    %s1497 = sand.u32 %s1496, 85
    %s1498 = sshrl.u32 %s1497, 1
    %s1499 = sor.u32 %s1497, %s1498
    %s1500 = sand.u32 51, %s1499
    %s1501 = sshrl.u32 %s1500, 2
    %s1502 = sor.u32 %s1500, %s1501
    %s1503 = sand.u32 15, %s1502
    %v1504 = vld [vmem:[%s1494] sm:%s1503]
    %v1505 = vunpack.c.l.bf16 %v1504
    %v1506 = vunpack.c.h.bf16 %v1504
    %s1507 = scalar_lea.vmem [#allocation1], 272
    %1508 = vst [vmem:[%s1507] sm:%s4] %v1505
    %s1509 = smul.addr 4, 33
    %s1510 = scalar_lea.vmem %s0, %s1509
    %s1511 = sshrl.u32 %s4, 1
    %s1512 = sor.u32 %s4, %s1511
    %s1513 = sand.u32 %s1512, 85
    %s1514 = sshrl.u32 %s1513, 1
    %s1515 = sor.u32 %s1513, %s1514
    %s1516 = sand.u32 51, %s1515
    %s1517 = sshrl.u32 %s1516, 2
    %s1518 = sor.u32 %s1516, %s1517
    %s1519 = sand.u32 15, %s1518
    %v1520 = vld [vmem:[%s1510] sm:%s1519]
    %v1521 = vunpack.c.l.bf16 %v1520
    %v1522 = vunpack.c.h.bf16 %v1520
    %s1523 = scalar_lea.vmem [#allocation1], 264
    %1524 = vst [vmem:[%s1523] sm:%s4] %v1521
    %s1525 = smul.addr 4, 32
    %s1526 = scalar_lea.vmem %s0, %s1525
    %s1527 = sshrl.u32 %s4, 1
    %s1528 = sor.u32 %s4, %s1527
    %s1529 = sand.u32 %s1528, 85
    %s1530 = sshrl.u32 %s1529, 1
    %s1531 = sor.u32 %s1529, %s1530
    %s1532 = sand.u32 51, %s1531
    %s1533 = sshrl.u32 %s1532, 2
    %s1534 = sor.u32 %s1532, %s1533
    %s1535 = sand.u32 15, %s1534
    %v1536 = vld [vmem:[%s1526] sm:%s1535]
    %v1537 = vunpack.c.l.bf16 %v1536
    %v1538 = vunpack.c.h.bf16 %v1536
    %s1539 = scalar_lea.vmem [#allocation1], 256
    %1540 = vst [vmem:[%s1539] sm:%s4] %v1537
    %s1541 = smul.addr 4, 31
    %s1542 = scalar_lea.vmem %s0, %s1541
    %s1543 = sshrl.u32 %s4, 1
    %s1544 = sor.u32 %s4, %s1543
    %s1545 = sand.u32 %s1544, 85
    %s1546 = sshrl.u32 %s1545, 1
    %s1547 = sor.u32 %s1545, %s1546
    %s1548 = sand.u32 51, %s1547
    %s1549 = sshrl.u32 %s1548, 2
    %s1550 = sor.u32 %s1548, %s1549
    %s1551 = sand.u32 15, %s1550
    %v1552 = vld [vmem:[%s1542] sm:%s1551]
    %v1553 = vunpack.c.l.bf16 %v1552
    %v1554 = vunpack.c.h.bf16 %v1552
    %s1555 = scalar_lea.vmem [#allocation1], 248
    %1556 = vst [vmem:[%s1555] sm:%s4] %v1553
    %s1557 = smul.addr 4, 30
    %s1558 = scalar_lea.vmem %s0, %s1557
    %s1559 = sshrl.u32 %s4, 1
    %s1560 = sor.u32 %s4, %s1559
    %s1561 = sand.u32 %s1560, 85
    %s1562 = sshrl.u32 %s1561, 1
    %s1563 = sor.u32 %s1561, %s1562
    %s1564 = sand.u32 51, %s1563
    %s1565 = sshrl.u32 %s1564, 2
    %s1566 = sor.u32 %s1564, %s1565
    %s1567 = sand.u32 15, %s1566
    %v1568 = vld [vmem:[%s1558] sm:%s1567]
    %v1569 = vunpack.c.l.bf16 %v1568
    %v1570 = vunpack.c.h.bf16 %v1568
    %s1571 = scalar_lea.vmem [#allocation1], 240
    %1572 = vst [vmem:[%s1571] sm:%s4] %v1569
    %s1573 = smul.addr 4, 29
    %s1574 = scalar_lea.vmem %s0, %s1573
    %s1575 = sshrl.u32 %s4, 1
    %s1576 = sor.u32 %s4, %s1575
    %s1577 = sand.u32 %s1576, 85
    %s1578 = sshrl.u32 %s1577, 1
    %s1579 = sor.u32 %s1577, %s1578
    %s1580 = sand.u32 51, %s1579
    %s1581 = sshrl.u32 %s1580, 2
    %s1582 = sor.u32 %s1580, %s1581
    %s1583 = sand.u32 15, %s1582
    %v1584 = vld [vmem:[%s1574] sm:%s1583]
    %v1585 = vunpack.c.l.bf16 %v1584
    %v1586 = vunpack.c.h.bf16 %v1584
    %s1587 = scalar_lea.vmem [#allocation1], 232
    %1588 = vst [vmem:[%s1587] sm:%s4] %v1585
    %s1589 = smul.addr 4, 28
    %s1590 = scalar_lea.vmem %s0, %s1589
    %s1591 = sshrl.u32 %s4, 1
    %s1592 = sor.u32 %s4, %s1591
    %s1593 = sand.u32 %s1592, 85
    %s1594 = sshrl.u32 %s1593, 1
    %s1595 = sor.u32 %s1593, %s1594
    %s1596 = sand.u32 51, %s1595
    %s1597 = sshrl.u32 %s1596, 2
    %s1598 = sor.u32 %s1596, %s1597
    %s1599 = sand.u32 15, %s1598
    %v1600 = vld [vmem:[%s1590] sm:%s1599]
    %v1601 = vunpack.c.l.bf16 %v1600
    %v1602 = vunpack.c.h.bf16 %v1600
    %s1603 = scalar_lea.vmem [#allocation1], 224
    %1604 = vst [vmem:[%s1603] sm:%s4] %v1601
    %s1605 = smul.addr 4, 27
    %s1606 = scalar_lea.vmem %s0, %s1605
    %s1607 = sshrl.u32 %s4, 1
    %s1608 = sor.u32 %s4, %s1607
    %s1609 = sand.u32 %s1608, 85
    %s1610 = sshrl.u32 %s1609, 1
    %s1611 = sor.u32 %s1609, %s1610
    %s1612 = sand.u32 51, %s1611
    %s1613 = sshrl.u32 %s1612, 2
    %s1614 = sor.u32 %s1612, %s1613
    %s1615 = sand.u32 15, %s1614
    %v1616 = vld [vmem:[%s1606] sm:%s1615]
    %v1617 = vunpack.c.l.bf16 %v1616
    %v1618 = vunpack.c.h.bf16 %v1616
    %s1619 = scalar_lea.vmem [#allocation1], 216
    %1620 = vst [vmem:[%s1619] sm:%s4] %v1617
    %s1621 = smul.addr 4, 26
    %s1622 = scalar_lea.vmem %s0, %s1621
    %s1623 = sshrl.u32 %s4, 1
    %s1624 = sor.u32 %s4, %s1623
    %s1625 = sand.u32 %s1624, 85
    %s1626 = sshrl.u32 %s1625, 1
    %s1627 = sor.u32 %s1625, %s1626
    %s1628 = sand.u32 51, %s1627
    %s1629 = sshrl.u32 %s1628, 2
    %s1630 = sor.u32 %s1628, %s1629
    %s1631 = sand.u32 15, %s1630
    %v1632 = vld [vmem:[%s1622] sm:%s1631]
    %v1633 = vunpack.c.l.bf16 %v1632
    %v1634 = vunpack.c.h.bf16 %v1632
    %s1635 = scalar_lea.vmem [#allocation1], 208
    %1636 = vst [vmem:[%s1635] sm:%s4] %v1633
    %s1637 = smul.addr 4, 25
    %s1638 = scalar_lea.vmem %s0, %s1637
    %s1639 = sshrl.u32 %s4, 1
    %s1640 = sor.u32 %s4, %s1639
    %s1641 = sand.u32 %s1640, 85
    %s1642 = sshrl.u32 %s1641, 1
    %s1643 = sor.u32 %s1641, %s1642
    %s1644 = sand.u32 51, %s1643
    %s1645 = sshrl.u32 %s1644, 2
    %s1646 = sor.u32 %s1644, %s1645
    %s1647 = sand.u32 15, %s1646
    %v1648 = vld [vmem:[%s1638] sm:%s1647]
    %v1649 = vunpack.c.l.bf16 %v1648
    %v1650 = vunpack.c.h.bf16 %v1648
    %s1651 = scalar_lea.vmem [#allocation1], 200
    %1652 = vst [vmem:[%s1651] sm:%s4] %v1649
    %s1653 = smul.addr 4, 24
    %s1654 = scalar_lea.vmem %s0, %s1653
    %s1655 = sshrl.u32 %s4, 1
    %s1656 = sor.u32 %s4, %s1655
    %s1657 = sand.u32 %s1656, 85
    %s1658 = sshrl.u32 %s1657, 1
    %s1659 = sor.u32 %s1657, %s1658
    %s1660 = sand.u32 51, %s1659
    %s1661 = sshrl.u32 %s1660, 2
    %s1662 = sor.u32 %s1660, %s1661
    %s1663 = sand.u32 15, %s1662
    %v1664 = vld [vmem:[%s1654] sm:%s1663]
    %v1665 = vunpack.c.l.bf16 %v1664
    %v1666 = vunpack.c.h.bf16 %v1664
    %s1667 = scalar_lea.vmem [#allocation1], 192
    %1668 = vst [vmem:[%s1667] sm:%s4] %v1665
    %s1669 = smul.addr 4, 23
    %s1670 = scalar_lea.vmem %s0, %s1669
    %s1671 = sshrl.u32 %s4, 1
    %s1672 = sor.u32 %s4, %s1671
    %s1673 = sand.u32 %s1672, 85
    %s1674 = sshrl.u32 %s1673, 1
    %s1675 = sor.u32 %s1673, %s1674
    %s1676 = sand.u32 51, %s1675
    %s1677 = sshrl.u32 %s1676, 2
    %s1678 = sor.u32 %s1676, %s1677
    %s1679 = sand.u32 15, %s1678
    %v1680 = vld [vmem:[%s1670] sm:%s1679]
    %v1681 = vunpack.c.l.bf16 %v1680
    %v1682 = vunpack.c.h.bf16 %v1680
    %s1683 = scalar_lea.vmem [#allocation1], 184
    %1684 = vst [vmem:[%s1683] sm:%s4] %v1681
    %s1685 = smul.addr 4, 22
    %s1686 = scalar_lea.vmem %s0, %s1685
    %s1687 = sshrl.u32 %s4, 1
    %s1688 = sor.u32 %s4, %s1687
    %s1689 = sand.u32 %s1688, 85
    %s1690 = sshrl.u32 %s1689, 1
    %s1691 = sor.u32 %s1689, %s1690
    %s1692 = sand.u32 51, %s1691
    %s1693 = sshrl.u32 %s1692, 2
    %s1694 = sor.u32 %s1692, %s1693
    %s1695 = sand.u32 15, %s1694
    %v1696 = vld [vmem:[%s1686] sm:%s1695]
    %v1697 = vunpack.c.l.bf16 %v1696
    %v1698 = vunpack.c.h.bf16 %v1696
    %s1699 = scalar_lea.vmem [#allocation1], 176
    %1700 = vst [vmem:[%s1699] sm:%s4] %v1697
    %s1701 = smul.addr 4, 21
    %s1702 = scalar_lea.vmem %s0, %s1701
    %s1703 = sshrl.u32 %s4, 1
    %s1704 = sor.u32 %s4, %s1703
    %s1705 = sand.u32 %s1704, 85
    %s1706 = sshrl.u32 %s1705, 1
    %s1707 = sor.u32 %s1705, %s1706
    %s1708 = sand.u32 51, %s1707
    %s1709 = sshrl.u32 %s1708, 2
    %s1710 = sor.u32 %s1708, %s1709
    %s1711 = sand.u32 15, %s1710
    %v1712 = vld [vmem:[%s1702] sm:%s1711]
    %v1713 = vunpack.c.l.bf16 %v1712
    %v1714 = vunpack.c.h.bf16 %v1712
    %s1715 = scalar_lea.vmem [#allocation1], 168
    %1716 = vst [vmem:[%s1715] sm:%s4] %v1713
    %s1717 = smul.addr 4, 20
    %s1718 = scalar_lea.vmem %s0, %s1717
    %s1719 = sshrl.u32 %s4, 1
    %s1720 = sor.u32 %s4, %s1719
    %s1721 = sand.u32 %s1720, 85
    %s1722 = sshrl.u32 %s1721, 1
    %s1723 = sor.u32 %s1721, %s1722
    %s1724 = sand.u32 51, %s1723
    %s1725 = sshrl.u32 %s1724, 2
    %s1726 = sor.u32 %s1724, %s1725
    %s1727 = sand.u32 15, %s1726
    %v1728 = vld [vmem:[%s1718] sm:%s1727]
    %v1729 = vunpack.c.l.bf16 %v1728
    %v1730 = vunpack.c.h.bf16 %v1728
    %s1731 = scalar_lea.vmem [#allocation1], 160
    %1732 = vst [vmem:[%s1731] sm:%s4] %v1729
    %s1733 = smul.addr 4, 19
    %s1734 = scalar_lea.vmem %s0, %s1733
    %s1735 = sshrl.u32 %s4, 1
    %s1736 = sor.u32 %s4, %s1735
    %s1737 = sand.u32 %s1736, 85
    %s1738 = sshrl.u32 %s1737, 1
    %s1739 = sor.u32 %s1737, %s1738
    %s1740 = sand.u32 51, %s1739
    %s1741 = sshrl.u32 %s1740, 2
    %s1742 = sor.u32 %s1740, %s1741
    %s1743 = sand.u32 15, %s1742
    %v1744 = vld [vmem:[%s1734] sm:%s1743]
    %v1745 = vunpack.c.l.bf16 %v1744
    %v1746 = vunpack.c.h.bf16 %v1744
    %s1747 = scalar_lea.vmem [#allocation1], 152
    %1748 = vst [vmem:[%s1747] sm:%s4] %v1745
    %s1749 = smul.addr 4, 18
    %s1750 = scalar_lea.vmem %s0, %s1749
    %s1751 = sshrl.u32 %s4, 1
    %s1752 = sor.u32 %s4, %s1751
    %s1753 = sand.u32 %s1752, 85
    %s1754 = sshrl.u32 %s1753, 1
    %s1755 = sor.u32 %s1753, %s1754
    %s1756 = sand.u32 51, %s1755
    %s1757 = sshrl.u32 %s1756, 2
    %s1758 = sor.u32 %s1756, %s1757
    %s1759 = sand.u32 15, %s1758
    %v1760 = vld [vmem:[%s1750] sm:%s1759]
    %v1761 = vunpack.c.l.bf16 %v1760
    %v1762 = vunpack.c.h.bf16 %v1760
    %s1763 = scalar_lea.vmem [#allocation1], 144
    %1764 = vst [vmem:[%s1763] sm:%s4] %v1761
    %s1765 = smul.addr 4, 17
    %s1766 = scalar_lea.vmem %s0, %s1765
    %s1767 = sshrl.u32 %s4, 1
    %s1768 = sor.u32 %s4, %s1767
    %s1769 = sand.u32 %s1768, 85
    %s1770 = sshrl.u32 %s1769, 1
    %s1771 = sor.u32 %s1769, %s1770
    %s1772 = sand.u32 51, %s1771
    %s1773 = sshrl.u32 %s1772, 2
    %s1774 = sor.u32 %s1772, %s1773
    %s1775 = sand.u32 15, %s1774
    %v1776 = vld [vmem:[%s1766] sm:%s1775]
    %v1777 = vunpack.c.l.bf16 %v1776
    %v1778 = vunpack.c.h.bf16 %v1776
    %s1779 = scalar_lea.vmem [#allocation1], 136
    %1780 = vst [vmem:[%s1779] sm:%s4] %v1777
    %s1781 = smul.addr 4, 16
    %s1782 = scalar_lea.vmem %s0, %s1781
    %s1783 = sshrl.u32 %s4, 1
    %s1784 = sor.u32 %s4, %s1783
    %s1785 = sand.u32 %s1784, 85
    %s1786 = sshrl.u32 %s1785, 1
    %s1787 = sor.u32 %s1785, %s1786
    %s1788 = sand.u32 51, %s1787
    %s1789 = sshrl.u32 %s1788, 2
    %s1790 = sor.u32 %s1788, %s1789
    %s1791 = sand.u32 15, %s1790
    %v1792 = vld [vmem:[%s1782] sm:%s1791]
    %v1793 = vunpack.c.l.bf16 %v1792
    %v1794 = vunpack.c.h.bf16 %v1792
    %s1795 = scalar_lea.vmem [#allocation1], 128
    %1796 = vst [vmem:[%s1795] sm:%s4] %v1793
    %s1797 = smul.addr 4, 15
    %s1798 = scalar_lea.vmem %s0, %s1797
    %s1799 = sshrl.u32 %s4, 1
    %s1800 = sor.u32 %s4, %s1799
    %s1801 = sand.u32 %s1800, 85
    %s1802 = sshrl.u32 %s1801, 1
    %s1803 = sor.u32 %s1801, %s1802
    %s1804 = sand.u32 51, %s1803
    %s1805 = sshrl.u32 %s1804, 2
    %s1806 = sor.u32 %s1804, %s1805
    %s1807 = sand.u32 15, %s1806
    %v1808 = vld [vmem:[%s1798] sm:%s1807]
    %v1809 = vunpack.c.l.bf16 %v1808
    %v1810 = vunpack.c.h.bf16 %v1808
    %s1811 = scalar_lea.vmem [#allocation1], 120
    %1812 = vst [vmem:[%s1811] sm:%s4] %v1809
    %s1813 = smul.addr 4, 14
    %s1814 = scalar_lea.vmem %s0, %s1813
    %s1815 = sshrl.u32 %s4, 1
    %s1816 = sor.u32 %s4, %s1815
    %s1817 = sand.u32 %s1816, 85
    %s1818 = sshrl.u32 %s1817, 1
    %s1819 = sor.u32 %s1817, %s1818
    %s1820 = sand.u32 51, %s1819
    %s1821 = sshrl.u32 %s1820, 2
    %s1822 = sor.u32 %s1820, %s1821
    %s1823 = sand.u32 15, %s1822
    %v1824 = vld [vmem:[%s1814] sm:%s1823]
    %v1825 = vunpack.c.l.bf16 %v1824
    %v1826 = vunpack.c.h.bf16 %v1824
    %s1827 = scalar_lea.vmem [#allocation1], 112
    %1828 = vst [vmem:[%s1827] sm:%s4] %v1825
    %s1829 = smul.addr 4, 13
    %s1830 = scalar_lea.vmem %s0, %s1829
    %s1831 = sshrl.u32 %s4, 1
    %s1832 = sor.u32 %s4, %s1831
    %s1833 = sand.u32 %s1832, 85
    %s1834 = sshrl.u32 %s1833, 1
    %s1835 = sor.u32 %s1833, %s1834
    %s1836 = sand.u32 51, %s1835
    %s1837 = sshrl.u32 %s1836, 2
    %s1838 = sor.u32 %s1836, %s1837
    %s1839 = sand.u32 15, %s1838
    %v1840 = vld [vmem:[%s1830] sm:%s1839]
    %v1841 = vunpack.c.l.bf16 %v1840
    %v1842 = vunpack.c.h.bf16 %v1840
    %s1843 = scalar_lea.vmem [#allocation1], 104
    %1844 = vst [vmem:[%s1843] sm:%s4] %v1841
    %s1845 = smul.addr 4, 12
    %s1846 = scalar_lea.vmem %s0, %s1845
    %s1847 = sshrl.u32 %s4, 1
    %s1848 = sor.u32 %s4, %s1847
    %s1849 = sand.u32 %s1848, 85
    %s1850 = sshrl.u32 %s1849, 1
    %s1851 = sor.u32 %s1849, %s1850
    %s1852 = sand.u32 51, %s1851
    %s1853 = sshrl.u32 %s1852, 2
    %s1854 = sor.u32 %s1852, %s1853
    %s1855 = sand.u32 15, %s1854
    %v1856 = vld [vmem:[%s1846] sm:%s1855]
    %v1857 = vunpack.c.l.bf16 %v1856
    %v1858 = vunpack.c.h.bf16 %v1856
    %s1859 = scalar_lea.vmem [#allocation1], 96
    %1860 = vst [vmem:[%s1859] sm:%s4] %v1857
    %s1861 = smul.addr 4, 11
    %s1862 = scalar_lea.vmem %s0, %s1861
    %s1863 = sshrl.u32 %s4, 1
    %s1864 = sor.u32 %s4, %s1863
    %s1865 = sand.u32 %s1864, 85
    %s1866 = sshrl.u32 %s1865, 1
    %s1867 = sor.u32 %s1865, %s1866
    %s1868 = sand.u32 51, %s1867
    %s1869 = sshrl.u32 %s1868, 2
    %s1870 = sor.u32 %s1868, %s1869
    %s1871 = sand.u32 15, %s1870
    %v1872 = vld [vmem:[%s1862] sm:%s1871]
    %v1873 = vunpack.c.l.bf16 %v1872
    %v1874 = vunpack.c.h.bf16 %v1872
    %s1875 = scalar_lea.vmem [#allocation1], 88
    %1876 = vst [vmem:[%s1875] sm:%s4] %v1873
    %s1877 = smul.addr 4, 10
    %s1878 = scalar_lea.vmem %s0, %s1877
    %s1879 = sshrl.u32 %s4, 1
    %s1880 = sor.u32 %s4, %s1879
    %s1881 = sand.u32 %s1880, 85
    %s1882 = sshrl.u32 %s1881, 1
    %s1883 = sor.u32 %s1881, %s1882
    %s1884 = sand.u32 51, %s1883
    %s1885 = sshrl.u32 %s1884, 2
    %s1886 = sor.u32 %s1884, %s1885
    %s1887 = sand.u32 15, %s1886
    %v1888 = vld [vmem:[%s1878] sm:%s1887]
    %v1889 = vunpack.c.l.bf16 %v1888
    %v1890 = vunpack.c.h.bf16 %v1888
    %s1891 = scalar_lea.vmem [#allocation1], 80
    %1892 = vst [vmem:[%s1891] sm:%s4] %v1889
    %s1893 = smul.addr 4, 9
    %s1894 = scalar_lea.vmem %s0, %s1893
    %s1895 = sshrl.u32 %s4, 1
    %s1896 = sor.u32 %s4, %s1895
    %s1897 = sand.u32 %s1896, 85
    %s1898 = sshrl.u32 %s1897, 1
    %s1899 = sor.u32 %s1897, %s1898
    %s1900 = sand.u32 51, %s1899
    %s1901 = sshrl.u32 %s1900, 2
    %s1902 = sor.u32 %s1900, %s1901
    %s1903 = sand.u32 15, %s1902
    %v1904 = vld [vmem:[%s1894] sm:%s1903]
    %v1905 = vunpack.c.l.bf16 %v1904
    %v1906 = vunpack.c.h.bf16 %v1904
    %s1907 = scalar_lea.vmem [#allocation1], 72
    %1908 = vst [vmem:[%s1907] sm:%s4] %v1905
    %s1909 = smul.addr 4, 8
    %s1910 = scalar_lea.vmem %s0, %s1909
    %s1911 = sshrl.u32 %s4, 1
    %s1912 = sor.u32 %s4, %s1911
    %s1913 = sand.u32 %s1912, 85
    %s1914 = sshrl.u32 %s1913, 1
    %s1915 = sor.u32 %s1913, %s1914
    %s1916 = sand.u32 51, %s1915
    %s1917 = sshrl.u32 %s1916, 2
    %s1918 = sor.u32 %s1916, %s1917
    %s1919 = sand.u32 15, %s1918
    %v1920 = vld [vmem:[%s1910] sm:%s1919]
    %v1921 = vunpack.c.l.bf16 %v1920
    %v1922 = vunpack.c.h.bf16 %v1920
    %s1923 = scalar_lea.vmem [#allocation1], 64
    %1924 = vst [vmem:[%s1923] sm:%s4] %v1921
    %s1925 = smul.addr 4, 7
    %s1926 = scalar_lea.vmem %s0, %s1925
    %s1927 = sshrl.u32 %s4, 1
    %s1928 = sor.u32 %s4, %s1927
    %s1929 = sand.u32 %s1928, 85
    %s1930 = sshrl.u32 %s1929, 1
    %s1931 = sor.u32 %s1929, %s1930
    %s1932 = sand.u32 51, %s1931
    %s1933 = sshrl.u32 %s1932, 2
    %s1934 = sor.u32 %s1932, %s1933
    %s1935 = sand.u32 15, %s1934
    %v1936 = vld [vmem:[%s1926] sm:%s1935]
    %v1937 = vunpack.c.l.bf16 %v1936
    %v1938 = vunpack.c.h.bf16 %v1936
    %s1939 = scalar_lea.vmem [#allocation1], 56
    %1940 = vst [vmem:[%s1939] sm:%s4] %v1937
    %s1941 = smul.addr 4, 6
    %s1942 = scalar_lea.vmem %s0, %s1941
    %s1943 = sshrl.u32 %s4, 1
    %s1944 = sor.u32 %s4, %s1943
    %s1945 = sand.u32 %s1944, 85
    %s1946 = sshrl.u32 %s1945, 1
    %s1947 = sor.u32 %s1945, %s1946
    %s1948 = sand.u32 51, %s1947
    %s1949 = sshrl.u32 %s1948, 2
    %s1950 = sor.u32 %s1948, %s1949
    %s1951 = sand.u32 15, %s1950
    %v1952 = vld [vmem:[%s1942] sm:%s1951]
    %v1953 = vunpack.c.l.bf16 %v1952
    %v1954 = vunpack.c.h.bf16 %v1952
    %s1955 = scalar_lea.vmem [#allocation1], 48
    %1956 = vst [vmem:[%s1955] sm:%s4] %v1953
    %s1957 = smul.addr 4, 5
    %s1958 = scalar_lea.vmem %s0, %s1957
    %s1959 = sshrl.u32 %s4, 1
    %s1960 = sor.u32 %s4, %s1959
    %s1961 = sand.u32 %s1960, 85
    %s1962 = sshrl.u32 %s1961, 1
    %s1963 = sor.u32 %s1961, %s1962
    %s1964 = sand.u32 51, %s1963
    %s1965 = sshrl.u32 %s1964, 2
    %s1966 = sor.u32 %s1964, %s1965
    %s1967 = sand.u32 15, %s1966
    %v1968 = vld [vmem:[%s1958] sm:%s1967]
    %v1969 = vunpack.c.l.bf16 %v1968
    %v1970 = vunpack.c.h.bf16 %v1968
    %s1971 = scalar_lea.vmem [#allocation1], 40
    %1972 = vst [vmem:[%s1971] sm:%s4] %v1969
    %s1973 = smul.addr 4, 4
    %s1974 = scalar_lea.vmem %s0, %s1973
    %s1975 = sshrl.u32 %s4, 1
    %s1976 = sor.u32 %s4, %s1975
    %s1977 = sand.u32 %s1976, 85
    %s1978 = sshrl.u32 %s1977, 1
    %s1979 = sor.u32 %s1977, %s1978
    %s1980 = sand.u32 51, %s1979
    %s1981 = sshrl.u32 %s1980, 2
    %s1982 = sor.u32 %s1980, %s1981
    %s1983 = sand.u32 15, %s1982
    %v1984 = vld [vmem:[%s1974] sm:%s1983]
    %v1985 = vunpack.c.l.bf16 %v1984
    %v1986 = vunpack.c.h.bf16 %v1984
    %s1987 = scalar_lea.vmem [#allocation1], 32
    %1988 = vst [vmem:[%s1987] sm:%s4] %v1985
    %s1989 = smul.addr 4, 3
    %s1990 = scalar_lea.vmem %s0, %s1989
    %s1991 = sshrl.u32 %s4, 1
    %s1992 = sor.u32 %s4, %s1991
    %s1993 = sand.u32 %s1992, 85
    %s1994 = sshrl.u32 %s1993, 1
    %s1995 = sor.u32 %s1993, %s1994
    %s1996 = sand.u32 51, %s1995
    %s1997 = sshrl.u32 %s1996, 2
    %s1998 = sor.u32 %s1996, %s1997
    %s1999 = sand.u32 15, %s1998
    %v2000 = vld [vmem:[%s1990] sm:%s1999]
    %v2001 = vunpack.c.l.bf16 %v2000
    %v2002 = vunpack.c.h.bf16 %v2000
    %s2003 = scalar_lea.vmem [#allocation1], 24
    %2004 = vst [vmem:[%s2003] sm:%s4] %v2001
    %s2005 = smul.addr 4, 2
    %s2006 = scalar_lea.vmem %s0, %s2005
    %s2007 = sshrl.u32 %s4, 1
    %s2008 = sor.u32 %s4, %s2007
    %s2009 = sand.u32 %s2008, 85
    %s2010 = sshrl.u32 %s2009, 1
    %s2011 = sor.u32 %s2009, %s2010
    %s2012 = sand.u32 51, %s2011
    %s2013 = sshrl.u32 %s2012, 2
    %s2014 = sor.u32 %s2012, %s2013
    %s2015 = sand.u32 15, %s2014
    %v2016 = vld [vmem:[%s2006] sm:%s2015]
    %v2017 = vunpack.c.l.bf16 %v2016
    %v2018 = vunpack.c.h.bf16 %v2016
    %s2019 = scalar_lea.vmem [#allocation1], 16
    %2020 = vst [vmem:[%s2019] sm:%s4] %v2017
    %s2021 = scalar_lea.vmem %s0, 4
    %s2022 = sshrl.u32 %s4, 1
    %s2023 = sor.u32 %s4, %s2022
    %s2024 = sand.u32 %s2023, 85
    %s2025 = sshrl.u32 %s2024, 1
    %s2026 = sor.u32 %s2024, %s2025
    %s2027 = sand.u32 51, %s2026
    %s2028 = sshrl.u32 %s2027, 2
    %s2029 = sor.u32 %s2027, %s2028
    %s2030 = sand.u32 15, %s2029
    %v2031 = vld [vmem:[%s2021] sm:%s2030]
    %v2032 = vunpack.c.l.bf16 %v2031
    %v2033 = vunpack.c.h.bf16 %v2031
    %s2034 = scalar_lea.vmem [#allocation1], 8
    %2035 = vst [vmem:[%s2034] sm:%s4] %v2032
    %s2036 = sshrl.u32 %s4, 1
    %s2037 = sor.u32 %s4, %s2036
    %s2038 = sand.u32 %s2037, 85
    %s2039 = sshrl.u32 %s2038, 1
    %s2040 = sor.u32 %s2038, %s2039
    %s2041 = sand.u32 51, %s2040
    %s2042 = sshrl.u32 %s2041, 2
    %s2043 = sor.u32 %s2041, %s2042
    %s2044 = sand.u32 15, %s2043
    %v2045 = vld [vmem:[%s0] sm:%s2044]
    %v2046 = vunpack.c.l.bf16 %v2045
    %v2047 = vunpack.c.h.bf16 %v2045
    %2048 = vst [vmem:[#allocation1] sm:%s4] %v2046
    %v2049 = vld [vmem:[#allocation1] ss:$8 sm:$0xf]
    %v2050 = vld [vmem:[#allocation1] ss:$8 sm:$0xf0]
    %vm2051 = vcmask 1047556
    %v2052 = vsel %vm2051, %v2050, %v2049
    %vm2053 = vcmask 130048
    %2054 = vst.msk [vmem:[#allocation0] ss:$16 sm:$0x3] %vm2053, %v2052
    %2055 = vst.msk [vmem:[#allocation0] ss:$16 sm:$0xc] %vm2053, %v2052
    %2056 = vst.msk [vmem:[#allocation0] ss:$16 sm:$0x30] %vm2053, %v2052
    %2057 = vst.msk [vmem:[#allocation0] ss:$16 sm:$0xc0] %vm2053, %v2052
    %s2058 = scalar_lea.vmem [#allocation1], 64
    %v2059 = vld [vmem:[%s2058] ss:$8 sm:$0xf]
    %s2060 = scalar_lea.vmem [#allocation1], 64
    %v2061 = vld [vmem:[%s2060] ss:$8 sm:$0xf0]
    %vm2062 = vcmask 1047556
    %v2063 = vsel %vm2062, %v2061, %v2059
    %vm2064 = vcmask 130048
    %s2065 = scalar_lea.vmem [#allocation0], 1
    %2066 = vst.msk [vmem:[%s2065] ss:$16 sm:$0x3] %vm2064, %v2063
    %s2067 = scalar_lea.vmem [#allocation0], 1
    %2068 = vst.msk [vmem:[%s2067] ss:$16 sm:$0xc] %vm2064, %v2063
    %s2069 = scalar_lea.vmem [#allocation0], 1
    %2070 = vst.msk [vmem:[%s2069] ss:$16 sm:$0x30] %vm2064, %v2063
    %s2071 = scalar_lea.vmem [#allocation0], 1
    %2072 = vst.msk [vmem:[%s2071] ss:$16 sm:$0xc0] %vm2064, %v2063
    %s2073 = scalar_lea.vmem [#allocation1], 128
    %v2074 = vld [vmem:[%s2073] ss:$8 sm:$0xf]
    %s2075 = scalar_lea.vmem [#allocation1], 128
    %v2076 = vld [vmem:[%s2075] ss:$8 sm:$0xf0]
    %vm2077 = vcmask 1047556
    %v2078 = vsel %vm2077, %v2076, %v2074
    %vm2079 = vcmask 130048
    %s2080 = scalar_lea.vmem [#allocation0], 2
    %2081 = vst.msk [vmem:[%s2080] ss:$16 sm:$0x3] %vm2079, %v2078
    %s2082 = scalar_lea.vmem [#allocation0], 2
    %2083 = vst.msk [vmem:[%s2082] ss:$16 sm:$0xc] %vm2079, %v2078
    %s2084 = scalar_lea.vmem [#allocation0], 2
    %2085 = vst.msk [vmem:[%s2084] ss:$16 sm:$0x30] %vm2079, %v2078
    %s2086 = scalar_lea.vmem [#allocation0], 2
    %2087 = vst.msk [vmem:[%s2086] ss:$16 sm:$0xc0] %vm2079, %v2078
    %s2088 = scalar_lea.vmem [#allocation1], 192
    %v2089 = vld [vmem:[%s2088] ss:$8 sm:$0xf]
    %s2090 = scalar_lea.vmem [#allocation1], 192
    %v2091 = vld [vmem:[%s2090] ss:$8 sm:$0xf0]
    %vm2092 = vcmask 1047556
    %v2093 = vsel %vm2092, %v2091, %v2089
    %vm2094 = vcmask 130048
    %s2095 = scalar_lea.vmem [#allocation0], 3
    %2096 = vst.msk [vmem:[%s2095] ss:$16 sm:$0x3] %vm2094, %v2093
    %s2097 = scalar_lea.vmem [#allocation0], 3
    %2098 = vst.msk [vmem:[%s2097] ss:$16 sm:$0xc] %vm2094, %v2093
    %s2099 = scalar_lea.vmem [#allocation0], 3
    %2100 = vst.msk [vmem:[%s2099] ss:$16 sm:$0x30] %vm2094, %v2093
    %s2101 = scalar_lea.vmem [#allocation0], 3
    %2102 = vst.msk [vmem:[%s2101] ss:$16 sm:$0xc0] %vm2094, %v2093
    %s2103 = scalar_lea.vmem [#allocation1], 256
    %v2104 = vld [vmem:[%s2103] ss:$8 sm:$0xf]
    %s2105 = scalar_lea.vmem [#allocation1], 256
    %v2106 = vld [vmem:[%s2105] ss:$8 sm:$0xf0]
    %vm2107 = vcmask 1047556
    %v2108 = vsel %vm2107, %v2106, %v2104
    %vm2109 = vcmask 130048
    %s2110 = scalar_lea.vmem [#allocation0], 4
    %2111 = vst.msk [vmem:[%s2110] ss:$16 sm:$0x3] %vm2109, %v2108
    %s2112 = scalar_lea.vmem [#allocation0], 4
    %2113 = vst.msk [vmem:[%s2112] ss:$16 sm:$0xc] %vm2109, %v2108
    %s2114 = scalar_lea.vmem [#allocation0], 4
    %2115 = vst.msk [vmem:[%s2114] ss:$16 sm:$0x30] %vm2109, %v2108
    %s2116 = scalar_lea.vmem [#allocation0], 4
    %2117 = vst.msk [vmem:[%s2116] ss:$16 sm:$0xc0] %vm2109, %v2108
    %s2118 = scalar_lea.vmem [#allocation1], 320
    %v2119 = vld [vmem:[%s2118] ss:$8 sm:$0xf]
    %s2120 = scalar_lea.vmem [#allocation1], 320
    %v2121 = vld [vmem:[%s2120] ss:$8 sm:$0xf0]
    %vm2122 = vcmask 1047556
    %v2123 = vsel %vm2122, %v2121, %v2119
    %vm2124 = vcmask 130048
    %s2125 = scalar_lea.vmem [#allocation0], 5
    %2126 = vst.msk [vmem:[%s2125] ss:$16 sm:$0x3] %vm2124, %v2123
    %s2127 = scalar_lea.vmem [#allocation0], 5
    %2128 = vst.msk [vmem:[%s2127] ss:$16 sm:$0xc] %vm2124, %v2123
    %s2129 = scalar_lea.vmem [#allocation0], 5
    %2130 = vst.msk [vmem:[%s2129] ss:$16 sm:$0x30] %vm2124, %v2123
    %s2131 = scalar_lea.vmem [#allocation0], 5
    %2132 = vst.msk [vmem:[%s2131] ss:$16 sm:$0xc0] %vm2124, %v2123
    %s2133 = scalar_lea.vmem [#allocation1], 384
    %v2134 = vld [vmem:[%s2133] ss:$8 sm:$0xf]
    %s2135 = scalar_lea.vmem [#allocation1], 384
    %v2136 = vld [vmem:[%s2135] ss:$8 sm:$0xf0]
    %vm2137 = vcmask 1047556
    %v2138 = vsel %vm2137, %v2136, %v2134
    %vm2139 = vcmask 130048
    %s2140 = scalar_lea.vmem [#allocation0], 6
    %2141 = vst.msk [vmem:[%s2140] ss:$16 sm:$0x3] %vm2139, %v2138
    %s2142 = scalar_lea.vmem [#allocation0], 6
    %2143 = vst.msk [vmem:[%s2142] ss:$16 sm:$0xc] %vm2139, %v2138
    %s2144 = scalar_lea.vmem [#allocation0], 6
    %2145 = vst.msk [vmem:[%s2144] ss:$16 sm:$0x30] %vm2139, %v2138
    %s2146 = scalar_lea.vmem [#allocation0], 6
    %2147 = vst.msk [vmem:[%s2146] ss:$16 sm:$0xc0] %vm2139, %v2138
    %s2148 = scalar_lea.vmem [#allocation1], 448
    %v2149 = vld [vmem:[%s2148] ss:$8 sm:$0xf]
    %s2150 = scalar_lea.vmem [#allocation1], 448
    %v2151 = vld [vmem:[%s2150] ss:$8 sm:$0xf0]
    %vm2152 = vcmask 1047556
    %v2153 = vsel %vm2152, %v2151, %v2149
    %vm2154 = vcmask 130048
    %s2155 = scalar_lea.vmem [#allocation0], 7
    %2156 = vst.msk [vmem:[%s2155] ss:$16 sm:$0x3] %vm2154, %v2153
    %s2157 = scalar_lea.vmem [#allocation0], 7
    %2158 = vst.msk [vmem:[%s2157] ss:$16 sm:$0xc] %vm2154, %v2153
    %s2159 = scalar_lea.vmem [#allocation0], 7
    %2160 = vst.msk [vmem:[%s2159] ss:$16 sm:$0x30] %vm2154, %v2153
    %s2161 = scalar_lea.vmem [#allocation0], 7
    %2162 = vst.msk [vmem:[%s2161] ss:$16 sm:$0xc0] %vm2154, %v2153
    %s2163 = scalar_lea.vmem [#allocation1], 512
    %v2164 = vld [vmem:[%s2163] ss:$8 sm:$0xf]
    %s2165 = scalar_lea.vmem [#allocation1], 512
    %v2166 = vld [vmem:[%s2165] ss:$8 sm:$0xf0]
    %vm2167 = vcmask 1047556
    %v2168 = vsel %vm2167, %v2166, %v2164
    %vm2169 = vcmask 130048
    %s2170 = scalar_lea.vmem [#allocation0], 8
    %2171 = vst.msk [vmem:[%s2170] ss:$16 sm:$0x3] %vm2169, %v2168
    %s2172 = scalar_lea.vmem [#allocation0], 8
    %2173 = vst.msk [vmem:[%s2172] ss:$16 sm:$0xc] %vm2169, %v2168
    %s2174 = scalar_lea.vmem [#allocation0], 8
    %2175 = vst.msk [vmem:[%s2174] ss:$16 sm:$0x30] %vm2169, %v2168
    %s2176 = scalar_lea.vmem [#allocation0], 8
    %2177 = vst.msk [vmem:[%s2176] ss:$16 sm:$0xc0] %vm2169, %v2168
    %s2178 = scalar_lea.vmem [#allocation1], 576
    %v2179 = vld [vmem:[%s2178] ss:$8 sm:$0xf]
    %s2180 = scalar_lea.vmem [#allocation1], 576
    %v2181 = vld [vmem:[%s2180] ss:$8 sm:$0xf0]
    %vm2182 = vcmask 1047556
    %v2183 = vsel %vm2182, %v2181, %v2179
    %vm2184 = vcmask 130048
    %s2185 = scalar_lea.vmem [#allocation0], 9
    %2186 = vst.msk [vmem:[%s2185] ss:$16 sm:$0x3] %vm2184, %v2183
    %s2187 = scalar_lea.vmem [#allocation0], 9
    %2188 = vst.msk [vmem:[%s2187] ss:$16 sm:$0xc] %vm2184, %v2183
    %s2189 = scalar_lea.vmem [#allocation0], 9
    %2190 = vst.msk [vmem:[%s2189] ss:$16 sm:$0x30] %vm2184, %v2183
    %s2191 = scalar_lea.vmem [#allocation0], 9
    %2192 = vst.msk [vmem:[%s2191] ss:$16 sm:$0xc0] %vm2184, %v2183
    %s2193 = scalar_lea.vmem [#allocation1], 640
    %v2194 = vld [vmem:[%s2193] ss:$8 sm:$0xf]
    %s2195 = scalar_lea.vmem [#allocation1], 640
    %v2196 = vld [vmem:[%s2195] ss:$8 sm:$0xf0]
    %vm2197 = vcmask 1047556
    %v2198 = vsel %vm2197, %v2196, %v2194
    %vm2199 = vcmask 130048
    %s2200 = scalar_lea.vmem [#allocation0], 10
    %2201 = vst.msk [vmem:[%s2200] ss:$16 sm:$0x3] %vm2199, %v2198
    %s2202 = scalar_lea.vmem [#allocation0], 10
    %2203 = vst.msk [vmem:[%s2202] ss:$16 sm:$0xc] %vm2199, %v2198
    %s2204 = scalar_lea.vmem [#allocation0], 10
    %2205 = vst.msk [vmem:[%s2204] ss:$16 sm:$0x30] %vm2199, %v2198
    %s2206 = scalar_lea.vmem [#allocation0], 10
    %2207 = vst.msk [vmem:[%s2206] ss:$16 sm:$0xc0] %vm2199, %v2198
    %s2208 = scalar_lea.vmem [#allocation1], 704
    %v2209 = vld [vmem:[%s2208] ss:$8 sm:$0xf]
    %s2210 = scalar_lea.vmem [#allocation1], 704
    %v2211 = vld [vmem:[%s2210] ss:$8 sm:$0xf0]
    %vm2212 = vcmask 1047556
    %v2213 = vsel %vm2212, %v2211, %v2209
    %vm2214 = vcmask 130048
    %s2215 = scalar_lea.vmem [#allocation0], 11
    %2216 = vst.msk [vmem:[%s2215] ss:$16 sm:$0x3] %vm2214, %v2213
    %s2217 = scalar_lea.vmem [#allocation0], 11
    %2218 = vst.msk [vmem:[%s2217] ss:$16 sm:$0xc] %vm2214, %v2213
    %s2219 = scalar_lea.vmem [#allocation0], 11
    %2220 = vst.msk [vmem:[%s2219] ss:$16 sm:$0x30] %vm2214, %v2213
    %s2221 = scalar_lea.vmem [#allocation0], 11
    %2222 = vst.msk [vmem:[%s2221] ss:$16 sm:$0xc0] %vm2214, %v2213
    %s2223 = scalar_lea.vmem [#allocation1], 768
    %v2224 = vld [vmem:[%s2223] ss:$8 sm:$0xf]
    %s2225 = scalar_lea.vmem [#allocation1], 768
    %v2226 = vld [vmem:[%s2225] ss:$8 sm:$0xf0]
    %vm2227 = vcmask 1047556
    %v2228 = vsel %vm2227, %v2226, %v2224
    %vm2229 = vcmask 130048
    %s2230 = scalar_lea.vmem [#allocation0], 12
    %2231 = vst.msk [vmem:[%s2230] ss:$16 sm:$0x3] %vm2229, %v2228
    %s2232 = scalar_lea.vmem [#allocation0], 12
    %2233 = vst.msk [vmem:[%s2232] ss:$16 sm:$0xc] %vm2229, %v2228
    %s2234 = scalar_lea.vmem [#allocation0], 12
    %2235 = vst.msk [vmem:[%s2234] ss:$16 sm:$0x30] %vm2229, %v2228
    %s2236 = scalar_lea.vmem [#allocation0], 12
    %2237 = vst.msk [vmem:[%s2236] ss:$16 sm:$0xc0] %vm2229, %v2228
    %s2238 = scalar_lea.vmem [#allocation1], 832
    %v2239 = vld [vmem:[%s2238] ss:$8 sm:$0xf]
    %s2240 = scalar_lea.vmem [#allocation1], 832
    %v2241 = vld [vmem:[%s2240] ss:$8 sm:$0xf0]
    %vm2242 = vcmask 1047556
    %v2243 = vsel %vm2242, %v2241, %v2239
    %vm2244 = vcmask 130048
    %s2245 = scalar_lea.vmem [#allocation0], 13
    %2246 = vst.msk [vmem:[%s2245] ss:$16 sm:$0x3] %vm2244, %v2243
    %s2247 = scalar_lea.vmem [#allocation0], 13
    %2248 = vst.msk [vmem:[%s2247] ss:$16 sm:$0xc] %vm2244, %v2243
    %s2249 = scalar_lea.vmem [#allocation0], 13
    %2250 = vst.msk [vmem:[%s2249] ss:$16 sm:$0x30] %vm2244, %v2243
    %s2251 = scalar_lea.vmem [#allocation0], 13
    %2252 = vst.msk [vmem:[%s2251] ss:$16 sm:$0xc0] %vm2244, %v2243
    %s2253 = scalar_lea.vmem [#allocation1], 896
    %v2254 = vld [vmem:[%s2253] ss:$8 sm:$0xf]
    %s2255 = scalar_lea.vmem [#allocation1], 896
    %v2256 = vld [vmem:[%s2255] ss:$8 sm:$0xf0]
    %vm2257 = vcmask 1047556
    %v2258 = vsel %vm2257, %v2256, %v2254
    %vm2259 = vcmask 130048
    %s2260 = scalar_lea.vmem [#allocation0], 14
    %2261 = vst.msk [vmem:[%s2260] ss:$16 sm:$0x3] %vm2259, %v2258
    %s2262 = scalar_lea.vmem [#allocation0], 14
    %2263 = vst.msk [vmem:[%s2262] ss:$16 sm:$0xc] %vm2259, %v2258
    %s2264 = scalar_lea.vmem [#allocation0], 14
    %2265 = vst.msk [vmem:[%s2264] ss:$16 sm:$0x30] %vm2259, %v2258
    %s2266 = scalar_lea.vmem [#allocation0], 14
    %2267 = vst.msk [vmem:[%s2266] ss:$16 sm:$0xc0] %vm2259, %v2258
    %s2268 = scalar_lea.vmem [#allocation1], 960
    %v2269 = vld [vmem:[%s2268] ss:$8 sm:$0xf]
    %s2270 = scalar_lea.vmem [#allocation1], 960
    %v2271 = vld [vmem:[%s2270] ss:$8 sm:$0xf0]
    %vm2272 = vcmask 1047556
    %v2273 = vsel %vm2272, %v2271, %v2269
    %vm2274 = vcmask 130048
    %s2275 = scalar_lea.vmem [#allocation0], 15
    %2276 = vst.msk [vmem:[%s2275] ss:$16 sm:$0x3] %vm2274, %v2273
    %s2277 = scalar_lea.vmem [#allocation0], 15
    %2278 = vst.msk [vmem:[%s2277] ss:$16 sm:$0xc] %vm2274, %v2273
    %s2279 = scalar_lea.vmem [#allocation0], 15
    %2280 = vst.msk [vmem:[%s2279] ss:$16 sm:$0x30] %vm2274, %v2273
    %s2281 = scalar_lea.vmem [#allocation0], 15
    %2282 = vst.msk [vmem:[%s2281] ss:$16 sm:$0xc0] %vm2274, %v2273
    %s2283 = scalar_lea.vmem [#allocation1], 7
    %v2284 = vld [vmem:[%s2283] sm:$0x1]
    %s2285 = scalar_lea.vmem [#allocation1], 70
    %v2286 = vld [vmem:[%s2285] sm:$0x2]
    %vm2287 = vcmask 1041409
    %v2288 = vsel %vm2287, %v2286, %v2284
    %s2289 = scalar_lea.vmem [#allocation1], 133
    %v2290 = vld [vmem:[%s2289] sm:$0x4]
    %vm2291 = vcmask 1042434
    %v2292 = vsel %vm2291, %v2290, %v2288
    %s2293 = scalar_lea.vmem [#allocation1], 196
    %v2294 = vld [vmem:[%s2293] sm:$0x8]
    %vm2295 = vcmask 1043459
    %v2296 = vsel %vm2295, %v2294, %v2292
    %s2297 = scalar_lea.vmem [#allocation1], 259
    %v2298 = vld [vmem:[%s2297] sm:$0x10]
    %vm2299 = vcmask 1044484
    %v2300 = vsel %vm2299, %v2298, %v2296
    %s2301 = scalar_lea.vmem [#allocation1], 322
    %v2302 = vld [vmem:[%s2301] sm:$0x20]
    %vm2303 = vcmask 1045509
    %v2304 = vsel %vm2303, %v2302, %v2300
    %s2305 = scalar_lea.vmem [#allocation1], 385
    %v2306 = vld [vmem:[%s2305] sm:$0x40]
    %vm2307 = vcmask 1046534
    %v2308 = vsel %vm2307, %v2306, %v2304
    %s2309 = scalar_lea.vmem [#allocation1], 448
    %v2310 = vld [vmem:[%s2309] sm:$0x80]
    %vm2311 = vcmask 1047559
    %v2312 = vsel %vm2311, %v2310, %v2308
    %2313 = vrot.lane.b32.xlu0 %v2312, 112
    %v2314 = vpop.permute.xlu0 %2313
    %vm2315 = vcmask 1048448
    %2316 = vst.msk [vmem:[#allocation0] sm:$0xff] %vm2315, %v2314
    %s2317 = scalar_lea.vmem [#allocation1], 23
    %v2318 = vld [vmem:[%s2317] sm:$0x1]
    %s2319 = scalar_lea.vmem [#allocation1], 86
    %v2320 = vld [vmem:[%s2319] sm:$0x2]
    %vm2321 = vcmask 1041409
    %v2322 = vsel %vm2321, %v2320, %v2318
    %s2323 = scalar_lea.vmem [#allocation1], 149
    %v2324 = vld [vmem:[%s2323] sm:$0x4]
    %vm2325 = vcmask 1042434
    %v2326 = vsel %vm2325, %v2324, %v2322
    %s2327 = scalar_lea.vmem [#allocation1], 212
    %v2328 = vld [vmem:[%s2327] sm:$0x8]
    %vm2329 = vcmask 1043459
    %v2330 = vsel %vm2329, %v2328, %v2326
    %s2331 = scalar_lea.vmem [#allocation1], 275
    %v2332 = vld [vmem:[%s2331] sm:$0x10]
    %vm2333 = vcmask 1044484
    %v2334 = vsel %vm2333, %v2332, %v2330
    %s2335 = scalar_lea.vmem [#allocation1], 338
    %v2336 = vld [vmem:[%s2335] sm:$0x20]
    %vm2337 = vcmask 1045509
    %v2338 = vsel %vm2337, %v2336, %v2334
    %s2339 = scalar_lea.vmem [#allocation1], 401
    %v2340 = vld [vmem:[%s2339] sm:$0x40]
    %vm2341 = vcmask 1046534
    %v2342 = vsel %vm2341, %v2340, %v2338
    %s2343 = scalar_lea.vmem [#allocation1], 464
    %v2344 = vld [vmem:[%s2343] sm:$0x80]
    %vm2345 = vcmask 1047559
    %v2346 = vsel %vm2345, %v2344, %v2342
    %2347 = vrot.lane.b32.xlu0 %v2346, 112
    %v2348 = vpop.permute.xlu0 %2347
    %vm2349 = vcmask 1048448
    %s2350 = scalar_lea.vmem [#allocation0], 32
    %2351 = vst.msk [vmem:[%s2350] sm:$0xff] %vm2349, %v2348
    %s2352 = scalar_lea.vmem [#allocation1], 39
    %v2353 = vld [vmem:[%s2352] sm:$0x1]
    %s2354 = scalar_lea.vmem [#allocation1], 102
    %v2355 = vld [vmem:[%s2354] sm:$0x2]
    %vm2356 = vcmask 1041409
    %v2357 = vsel %vm2356, %v2355, %v2353
    %s2358 = scalar_lea.vmem [#allocation1], 165
    %v2359 = vld [vmem:[%s2358] sm:$0x4]
    %vm2360 = vcmask 1042434
    %v2361 = vsel %vm2360, %v2359, %v2357
    %s2362 = scalar_lea.vmem [#allocation1], 228
    %v2363 = vld [vmem:[%s2362] sm:$0x8]
    %vm2364 = vcmask 1043459
    %v2365 = vsel %vm2364, %v2363, %v2361
    %s2366 = scalar_lea.vmem [#allocation1], 291
    %v2367 = vld [vmem:[%s2366] sm:$0x10]
    %vm2368 = vcmask 1044484
    %v2369 = vsel %vm2368, %v2367, %v2365
    %s2370 = scalar_lea.vmem [#allocation1], 354
    %v2371 = vld [vmem:[%s2370] sm:$0x20]
    %vm2372 = vcmask 1045509
    %v2373 = vsel %vm2372, %v2371, %v2369
    %s2374 = scalar_lea.vmem [#allocation1], 417
    %v2375 = vld [vmem:[%s2374] sm:$0x40]
    %vm2376 = vcmask 1046534
    %v2377 = vsel %vm2376, %v2375, %v2373
    %s2378 = scalar_lea.vmem [#allocation1], 480
    %v2379 = vld [vmem:[%s2378] sm:$0x80]
    %vm2380 = vcmask 1047559
    %v2381 = vsel %vm2380, %v2379, %v2377
    %2382 = vrot.lane.b32.xlu0 %v2381, 112
    %v2383 = vpop.permute.xlu0 %2382
    %vm2384 = vcmask 1048448
    %s2385 = scalar_lea.vmem [#allocation0], 64
    %2386 = vst.msk [vmem:[%s2385] sm:$0xff] %vm2384, %v2383
    %s2387 = scalar_lea.vmem [#allocation1], 55
    %v2388 = vld [vmem:[%s2387] sm:$0x1]
    %s2389 = scalar_lea.vmem [#allocation1], 118
    %v2390 = vld [vmem:[%s2389] sm:$0x2]
    %vm2391 = vcmask 1041409
    %v2392 = vsel %vm2391, %v2390, %v2388
    %s2393 = scalar_lea.vmem [#allocation1], 181
    %v2394 = vld [vmem:[%s2393] sm:$0x4]
    %vm2395 = vcmask 1042434
    %v2396 = vsel %vm2395, %v2394, %v2392
    %s2397 = scalar_lea.vmem [#allocation1], 244
    %v2398 = vld [vmem:[%s2397] sm:$0x8]
    %vm2399 = vcmask 1043459
    %v2400 = vsel %vm2399, %v2398, %v2396
    %s2401 = scalar_lea.vmem [#allocation1], 307
    %v2402 = vld [vmem:[%s2401] sm:$0x10]
    %vm2403 = vcmask 1044484
    %v2404 = vsel %vm2403, %v2402, %v2400
    %s2405 = scalar_lea.vmem [#allocation1], 370
    %v2406 = vld [vmem:[%s2405] sm:$0x20]
    %vm2407 = vcmask 1045509
    %v2408 = vsel %vm2407, %v2406, %v2404
    %s2409 = scalar_lea.vmem [#allocation1], 433
    %v2410 = vld [vmem:[%s2409] sm:$0x40]
    %vm2411 = vcmask 1046534
    %v2412 = vsel %vm2411, %v2410, %v2408
    %s2413 = scalar_lea.vmem [#allocation1], 496
    %v2414 = vld [vmem:[%s2413] sm:$0x80]
    %vm2415 = vcmask 1047559
    %v2416 = vsel %vm2415, %v2414, %v2412
    %2417 = vrot.lane.b32.xlu0 %v2416, 112
    %v2418 = vpop.permute.xlu0 %2417
    %vm2419 = vcmask 1048448
    %s2420 = scalar_lea.vmem [#allocation0], 96
    %2421 = vst.msk [vmem:[%s2420] sm:$0xff] %vm2419, %v2418
    %s2422 = scalar_lea.vmem [#allocation1], 519
    %v2423 = vld [vmem:[%s2422] sm:$0x1]
    %s2424 = scalar_lea.vmem [#allocation1], 582
    %v2425 = vld [vmem:[%s2424] sm:$0x2]
    %vm2426 = vcmask 1041409
    %v2427 = vsel %vm2426, %v2425, %v2423
    %s2428 = scalar_lea.vmem [#allocation1], 645
    %v2429 = vld [vmem:[%s2428] sm:$0x4]
    %vm2430 = vcmask 1042434
    %v2431 = vsel %vm2430, %v2429, %v2427
    %s2432 = scalar_lea.vmem [#allocation1], 708
    %v2433 = vld [vmem:[%s2432] sm:$0x8]
    %vm2434 = vcmask 1043459
    %v2435 = vsel %vm2434, %v2433, %v2431
    %s2436 = scalar_lea.vmem [#allocation1], 771
    %v2437 = vld [vmem:[%s2436] sm:$0x10]
    %vm2438 = vcmask 1044484
    %v2439 = vsel %vm2438, %v2437, %v2435
    %s2440 = scalar_lea.vmem [#allocation1], 834
    %v2441 = vld [vmem:[%s2440] sm:$0x20]
    %vm2442 = vcmask 1045509
    %v2443 = vsel %vm2442, %v2441, %v2439
    %s2444 = scalar_lea.vmem [#allocation1], 897
    %v2445 = vld [vmem:[%s2444] sm:$0x40]
    %vm2446 = vcmask 1046534
    %v2447 = vsel %vm2446, %v2445, %v2443
    %s2448 = scalar_lea.vmem [#allocation1], 960
    %v2449 = vld [vmem:[%s2448] sm:$0x80]
    %vm2450 = vcmask 1047559
    %v2451 = vsel %vm2450, %v2449, %v2447
    %2452 = vrot.lane.b32.xlu0 %v2451, 112
    %v2453 = vpop.permute.xlu0 %2452
    %vm2454 = vcmask 1048448
    %s2455 = scalar_lea.vmem [#allocation0], 8
    %2456 = vst.msk [vmem:[%s2455] sm:$0xff] %vm2454, %v2453
    %s2457 = scalar_lea.vmem [#allocation1], 535
    %v2458 = vld [vmem:[%s2457] sm:$0x1]
    %s2459 = scalar_lea.vmem [#allocation1], 598
    %v2460 = vld [vmem:[%s2459] sm:$0x2]
    %vm2461 = vcmask 1041409
    %v2462 = vsel %vm2461, %v2460, %v2458
    %s2463 = scalar_lea.vmem [#allocation1], 661
    %v2464 = vld [vmem:[%s2463] sm:$0x4]
    %vm2465 = vcmask 1042434
    %v2466 = vsel %vm2465, %v2464, %v2462
    %s2467 = scalar_lea.vmem [#allocation1], 724
    %v2468 = vld [vmem:[%s2467] sm:$0x8]
    %vm2469 = vcmask 1043459
    %v2470 = vsel %vm2469, %v2468, %v2466
    %s2471 = scalar_lea.vmem [#allocation1], 787
    %v2472 = vld [vmem:[%s2471] sm:$0x10]
    %vm2473 = vcmask 1044484
    %v2474 = vsel %vm2473, %v2472, %v2470
    %s2475 = scalar_lea.vmem [#allocation1], 850
    %v2476 = vld [vmem:[%s2475] sm:$0x20]
    %vm2477 = vcmask 1045509
    %v2478 = vsel %vm2477, %v2476, %v2474
    %s2479 = scalar_lea.vmem [#allocation1], 913
    %v2480 = vld [vmem:[%s2479] sm:$0x40]
    %vm2481 = vcmask 1046534
    %v2482 = vsel %vm2481, %v2480, %v2478
    %s2483 = scalar_lea.vmem [#allocation1], 976
    %v2484 = vld [vmem:[%s2483] sm:$0x80]
    %vm2485 = vcmask 1047559
    %v2486 = vsel %vm2485, %v2484, %v2482
    %2487 = vrot.lane.b32.xlu0 %v2486, 112
    %v2488 = vpop.permute.xlu0 %2487
    %vm2489 = vcmask 1048448
    %s2490 = scalar_lea.vmem [#allocation0], 40
    %2491 = vst.msk [vmem:[%s2490] sm:$0xff] %vm2489, %v2488
    %s2492 = scalar_lea.vmem [#allocation1], 551
    %v2493 = vld [vmem:[%s2492] sm:$0x1]
    %s2494 = scalar_lea.vmem [#allocation1], 614
    %v2495 = vld [vmem:[%s2494] sm:$0x2]
    %vm2496 = vcmask 1041409
    %v2497 = vsel %vm2496, %v2495, %v2493
    %s2498 = scalar_lea.vmem [#allocation1], 677
    %v2499 = vld [vmem:[%s2498] sm:$0x4]
    %vm2500 = vcmask 1042434
    %v2501 = vsel %vm2500, %v2499, %v2497
    %s2502 = scalar_lea.vmem [#allocation1], 740
    %v2503 = vld [vmem:[%s2502] sm:$0x8]
    %vm2504 = vcmask 1043459
    %v2505 = vsel %vm2504, %v2503, %v2501
    %s2506 = scalar_lea.vmem [#allocation1], 803
    %v2507 = vld [vmem:[%s2506] sm:$0x10]
    %vm2508 = vcmask 1044484
    %v2509 = vsel %vm2508, %v2507, %v2505
    %s2510 = scalar_lea.vmem [#allocation1], 866
    %v2511 = vld [vmem:[%s2510] sm:$0x20]
    %vm2512 = vcmask 1045509
    %v2513 = vsel %vm2512, %v2511, %v2509
    %s2514 = scalar_lea.vmem [#allocation1], 929
    %v2515 = vld [vmem:[%s2514] sm:$0x40]
    %vm2516 = vcmask 1046534
    %v2517 = vsel %vm2516, %v2515, %v2513
    %s2518 = scalar_lea.vmem [#allocation1], 992
    %v2519 = vld [vmem:[%s2518] sm:$0x80]
    %vm2520 = vcmask 1047559
    %v2521 = vsel %vm2520, %v2519, %v2517
    %2522 = vrot.lane.b32.xlu0 %v2521, 112
    %v2523 = vpop.permute.xlu0 %2522
    %vm2524 = vcmask 1048448
    %s2525 = scalar_lea.vmem [#allocation0], 72
    %2526 = vst.msk [vmem:[%s2525] sm:$0xff] %vm2524, %v2523
    %s2527 = scalar_lea.vmem [#allocation1], 567
    %v2528 = vld [vmem:[%s2527] sm:$0x1]
    %s2529 = scalar_lea.vmem [#allocation1], 630
    %v2530 = vld [vmem:[%s2529] sm:$0x2]
    %vm2531 = vcmask 1041409
    %v2532 = vsel %vm2531, %v2530, %v2528
    %s2533 = scalar_lea.vmem [#allocation1], 693
    %v2534 = vld [vmem:[%s2533] sm:$0x4]
    %vm2535 = vcmask 1042434
    %v2536 = vsel %vm2535, %v2534, %v2532
    %s2537 = scalar_lea.vmem [#allocation1], 756
    %v2538 = vld [vmem:[%s2537] sm:$0x8]
    %vm2539 = vcmask 1043459
    %v2540 = vsel %vm2539, %v2538, %v2536
    %s2541 = scalar_lea.vmem [#allocation1], 819
    %v2542 = vld [vmem:[%s2541] sm:$0x10]
    %vm2543 = vcmask 1044484
    %v2544 = vsel %vm2543, %v2542, %v2540
    %s2545 = scalar_lea.vmem [#allocation1], 882
    %v2546 = vld [vmem:[%s2545] sm:$0x20]
    %vm2547 = vcmask 1045509
    %v2548 = vsel %vm2547, %v2546, %v2544
    %s2549 = scalar_lea.vmem [#allocation1], 945
    %v2550 = vld [vmem:[%s2549] sm:$0x40]
    %vm2551 = vcmask 1046534
    %v2552 = vsel %vm2551, %v2550, %v2548
    %s2553 = scalar_lea.vmem [#allocation1], 1008
    %v2554 = vld [vmem:[%s2553] sm:$0x80]
    %vm2555 = vcmask 1047559
    %v2556 = vsel %vm2555, %v2554, %v2552
    %2557 = vrot.lane.b32.xlu0 %v2556, 112
    %v2558 = vpop.permute.xlu0 %2557
    %vm2559 = vcmask 1048448
    %s2560 = scalar_lea.vmem [#allocation0], 104
    %2561 = vst.msk [vmem:[%s2560] sm:$0xff] %vm2559, %v2558
    %s2562 = scalar_lea.vmem [#allocation1], 15
    %v2563 = vld [vmem:[%s2562] sm:$0x1]
    %s2564 = scalar_lea.vmem [#allocation1], 78
    %v2565 = vld [vmem:[%s2564] sm:$0x2]
    %vm2566 = vcmask 1041409
    %v2567 = vsel %vm2566, %v2565, %v2563
    %s2568 = scalar_lea.vmem [#allocation1], 141
    %v2569 = vld [vmem:[%s2568] sm:$0x4]
    %vm2570 = vcmask 1042434
    %v2571 = vsel %vm2570, %v2569, %v2567
    %s2572 = scalar_lea.vmem [#allocation1], 204
    %v2573 = vld [vmem:[%s2572] sm:$0x8]
    %vm2574 = vcmask 1043459
    %v2575 = vsel %vm2574, %v2573, %v2571
    %s2576 = scalar_lea.vmem [#allocation1], 267
    %v2577 = vld [vmem:[%s2576] sm:$0x10]
    %vm2578 = vcmask 1044484
    %v2579 = vsel %vm2578, %v2577, %v2575
    %s2580 = scalar_lea.vmem [#allocation1], 330
    %v2581 = vld [vmem:[%s2580] sm:$0x20]
    %vm2582 = vcmask 1045509
    %v2583 = vsel %vm2582, %v2581, %v2579
    %s2584 = scalar_lea.vmem [#allocation1], 393
    %v2585 = vld [vmem:[%s2584] sm:$0x40]
    %vm2586 = vcmask 1046534
    %v2587 = vsel %vm2586, %v2585, %v2583
    %s2588 = scalar_lea.vmem [#allocation1], 456
    %v2589 = vld [vmem:[%s2588] sm:$0x80]
    %vm2590 = vcmask 1047559
    %v2591 = vsel %vm2590, %v2589, %v2587
    %2592 = vrot.lane.b32.xlu0 %v2591, 112
    %v2593 = vpop.permute.xlu0 %2592
    %vm2594 = vcmask 1048448
    %s2595 = scalar_lea.vmem [#allocation0], 16
    %2596 = vst.msk [vmem:[%s2595] sm:$0xff] %vm2594, %v2593
    %s2597 = scalar_lea.vmem [#allocation1], 31
    %v2598 = vld [vmem:[%s2597] sm:$0x1]
    %s2599 = scalar_lea.vmem [#allocation1], 94
    %v2600 = vld [vmem:[%s2599] sm:$0x2]
    %vm2601 = vcmask 1041409
    %v2602 = vsel %vm2601, %v2600, %v2598
    %s2603 = scalar_lea.vmem [#allocation1], 157
    %v2604 = vld [vmem:[%s2603] sm:$0x4]
    %vm2605 = vcmask 1042434
    %v2606 = vsel %vm2605, %v2604, %v2602
    %s2607 = scalar_lea.vmem [#allocation1], 220
    %v2608 = vld [vmem:[%s2607] sm:$0x8]
    %vm2609 = vcmask 1043459
    %v2610 = vsel %vm2609, %v2608, %v2606
    %s2611 = scalar_lea.vmem [#allocation1], 283
    %v2612 = vld [vmem:[%s2611] sm:$0x10]
    %vm2613 = vcmask 1044484
    %v2614 = vsel %vm2613, %v2612, %v2610
    %s2615 = scalar_lea.vmem [#allocation1], 346
    %v2616 = vld [vmem:[%s2615] sm:$0x20]
    %vm2617 = vcmask 1045509
    %v2618 = vsel %vm2617, %v2616, %v2614
    %s2619 = scalar_lea.vmem [#allocation1], 409
    %v2620 = vld [vmem:[%s2619] sm:$0x40]
    %vm2621 = vcmask 1046534
    %v2622 = vsel %vm2621, %v2620, %v2618
    %s2623 = scalar_lea.vmem [#allocation1], 472
    %v2624 = vld [vmem:[%s2623] sm:$0x80]
    %vm2625 = vcmask 1047559
    %v2626 = vsel %vm2625, %v2624, %v2622
    %2627 = vrot.lane.b32.xlu0 %v2626, 112
    %v2628 = vpop.permute.xlu0 %2627
    %vm2629 = vcmask 1048448
    %s2630 = scalar_lea.vmem [#allocation0], 48
    %2631 = vst.msk [vmem:[%s2630] sm:$0xff] %vm2629, %v2628
    %s2632 = scalar_lea.vmem [#allocation1], 47
    %v2633 = vld [vmem:[%s2632] sm:$0x1]
    %s2634 = scalar_lea.vmem [#allocation1], 110
    %v2635 = vld [vmem:[%s2634] sm:$0x2]
    %vm2636 = vcmask 1041409
    %v2637 = vsel %vm2636, %v2635, %v2633
    %s2638 = scalar_lea.vmem [#allocation1], 173
    %v2639 = vld [vmem:[%s2638] sm:$0x4]
    %vm2640 = vcmask 1042434
    %v2641 = vsel %vm2640, %v2639, %v2637
    %s2642 = scalar_lea.vmem [#allocation1], 236
    %v2643 = vld [vmem:[%s2642] sm:$0x8]
    %vm2644 = vcmask 1043459
    %v2645 = vsel %vm2644, %v2643, %v2641
    %s2646 = scalar_lea.vmem [#allocation1], 299
    %v2647 = vld [vmem:[%s2646] sm:$0x10]
    %vm2648 = vcmask 1044484
    %v2649 = vsel %vm2648, %v2647, %v2645
    %s2650 = scalar_lea.vmem [#allocation1], 362
    %v2651 = vld [vmem:[%s2650] sm:$0x20]
    %vm2652 = vcmask 1045509
    %v2653 = vsel %vm2652, %v2651, %v2649
    %s2654 = scalar_lea.vmem [#allocation1], 425
    %v2655 = vld [vmem:[%s2654] sm:$0x40]
    %vm2656 = vcmask 1046534
    %v2657 = vsel %vm2656, %v2655, %v2653
    %s2658 = scalar_lea.vmem [#allocation1], 488
    %v2659 = vld [vmem:[%s2658] sm:$0x80]
    %vm2660 = vcmask 1047559
    %v2661 = vsel %vm2660, %v2659, %v2657
    %2662 = vrot.lane.b32.xlu0 %v2661, 112
    %v2663 = vpop.permute.xlu0 %2662
    %vm2664 = vcmask 1048448
    %s2665 = scalar_lea.vmem [#allocation0], 80
    %2666 = vst.msk [vmem:[%s2665] sm:$0xff] %vm2664, %v2663
    %s2667 = scalar_lea.vmem [#allocation1], 63
    %v2668 = vld [vmem:[%s2667] sm:$0x1]
    %s2669 = scalar_lea.vmem [#allocation1], 126
    %v2670 = vld [vmem:[%s2669] sm:$0x2]
    %vm2671 = vcmask 1041409
    %v2672 = vsel %vm2671, %v2670, %v2668
    %s2673 = scalar_lea.vmem [#allocation1], 189
    %v2674 = vld [vmem:[%s2673] sm:$0x4]
    %vm2675 = vcmask 1042434
    %v2676 = vsel %vm2675, %v2674, %v2672
    %s2677 = scalar_lea.vmem [#allocation1], 252
    %v2678 = vld [vmem:[%s2677] sm:$0x8]
    %vm2679 = vcmask 1043459
    %v2680 = vsel %vm2679, %v2678, %v2676
    %s2681 = scalar_lea.vmem [#allocation1], 315
    %v2682 = vld [vmem:[%s2681] sm:$0x10]
    %vm2683 = vcmask 1044484
    %v2684 = vsel %vm2683, %v2682, %v2680
    %s2685 = scalar_lea.vmem [#allocation1], 378
    %v2686 = vld [vmem:[%s2685] sm:$0x20]
    %vm2687 = vcmask 1045509
    %v2688 = vsel %vm2687, %v2686, %v2684
    %s2689 = scalar_lea.vmem [#allocation1], 441
    %v2690 = vld [vmem:[%s2689] sm:$0x40]
    %vm2691 = vcmask 1046534
    %v2692 = vsel %vm2691, %v2690, %v2688
    %s2693 = scalar_lea.vmem [#allocation1], 504
    %v2694 = vld [vmem:[%s2693] sm:$0x80]
    %vm2695 = vcmask 1047559
    %v2696 = vsel %vm2695, %v2694, %v2692
    %2697 = vrot.lane.b32.xlu0 %v2696, 112
    %v2698 = vpop.permute.xlu0 %2697
    %vm2699 = vcmask 1048448
    %s2700 = scalar_lea.vmem [#allocation0], 112
    %2701 = vst.msk [vmem:[%s2700] sm:$0xff] %vm2699, %v2698
    %s2702 = scalar_lea.vmem [#allocation1], 527
    %v2703 = vld [vmem:[%s2702] sm:$0x1]
    %s2704 = scalar_lea.vmem [#allocation1], 590
    %v2705 = vld [vmem:[%s2704] sm:$0x2]
    %vm2706 = vcmask 1041409
    %v2707 = vsel %vm2706, %v2705, %v2703
    %s2708 = scalar_lea.vmem [#allocation1], 653
    %v2709 = vld [vmem:[%s2708] sm:$0x4]
    %vm2710 = vcmask 1042434
    %v2711 = vsel %vm2710, %v2709, %v2707
    %s2712 = scalar_lea.vmem [#allocation1], 716
    %v2713 = vld [vmem:[%s2712] sm:$0x8]
    %vm2714 = vcmask 1043459
    %v2715 = vsel %vm2714, %v2713, %v2711
    %s2716 = scalar_lea.vmem [#allocation1], 779
    %v2717 = vld [vmem:[%s2716] sm:$0x10]
    %vm2718 = vcmask 1044484
    %v2719 = vsel %vm2718, %v2717, %v2715
    %s2720 = scalar_lea.vmem [#allocation1], 842
    %v2721 = vld [vmem:[%s2720] sm:$0x20]
    %vm2722 = vcmask 1045509
    %v2723 = vsel %vm2722, %v2721, %v2719
    %s2724 = scalar_lea.vmem [#allocation1], 905
    %v2725 = vld [vmem:[%s2724] sm:$0x40]
    %vm2726 = vcmask 1046534
    %v2727 = vsel %vm2726, %v2725, %v2723
    %s2728 = scalar_lea.vmem [#allocation1], 968
    %v2729 = vld [vmem:[%s2728] sm:$0x80]
    %vm2730 = vcmask 1047559
    %v2731 = vsel %vm2730, %v2729, %v2727
    %2732 = vrot.lane.b32.xlu0 %v2731, 112
    %v2733 = vpop.permute.xlu0 %2732
    %vm2734 = vcmask 1048448
    %s2735 = scalar_lea.vmem [#allocation0], 24
    %2736 = vst.msk [vmem:[%s2735] sm:$0xff] %vm2734, %v2733
    %s2737 = scalar_lea.vmem [#allocation1], 543
    %v2738 = vld [vmem:[%s2737] sm:$0x1]
    %s2739 = scalar_lea.vmem [#allocation1], 606
    %v2740 = vld [vmem:[%s2739] sm:$0x2]
    %vm2741 = vcmask 1041409
    %v2742 = vsel %vm2741, %v2740, %v2738
    %s2743 = scalar_lea.vmem [#allocation1], 669
    %v2744 = vld [vmem:[%s2743] sm:$0x4]
    %vm2745 = vcmask 1042434
    %v2746 = vsel %vm2745, %v2744, %v2742
    %s2747 = scalar_lea.vmem [#allocation1], 732
    %v2748 = vld [vmem:[%s2747] sm:$0x8]
    %vm2749 = vcmask 1043459
    %v2750 = vsel %vm2749, %v2748, %v2746
    %s2751 = scalar_lea.vmem [#allocation1], 795
    %v2752 = vld [vmem:[%s2751] sm:$0x10]
    %vm2753 = vcmask 1044484
    %v2754 = vsel %vm2753, %v2752, %v2750
    %s2755 = scalar_lea.vmem [#allocation1], 858
    %v2756 = vld [vmem:[%s2755] sm:$0x20]
    %vm2757 = vcmask 1045509
    %v2758 = vsel %vm2757, %v2756, %v2754
    %s2759 = scalar_lea.vmem [#allocation1], 921
    %v2760 = vld [vmem:[%s2759] sm:$0x40]
    %vm2761 = vcmask 1046534
    %v2762 = vsel %vm2761, %v2760, %v2758
    %s2763 = scalar_lea.vmem [#allocation1], 984
    %v2764 = vld [vmem:[%s2763] sm:$0x80]
    %vm2765 = vcmask 1047559
    %v2766 = vsel %vm2765, %v2764, %v2762
    %2767 = vrot.lane.b32.xlu0 %v2766, 112
    %v2768 = vpop.permute.xlu0 %2767
    %vm2769 = vcmask 1048448
    %s2770 = scalar_lea.vmem [#allocation0], 56
    %2771 = vst.msk [vmem:[%s2770] sm:$0xff] %vm2769, %v2768
    %s2772 = scalar_lea.vmem [#allocation1], 559
    %v2773 = vld [vmem:[%s2772] sm:$0x1]
    %s2774 = scalar_lea.vmem [#allocation1], 622
    %v2775 = vld [vmem:[%s2774] sm:$0x2]
    %vm2776 = vcmask 1041409
    %v2777 = vsel %vm2776, %v2775, %v2773
    %s2778 = scalar_lea.vmem [#allocation1], 685
    %v2779 = vld [vmem:[%s2778] sm:$0x4]
    %vm2780 = vcmask 1042434
    %v2781 = vsel %vm2780, %v2779, %v2777
    %s2782 = scalar_lea.vmem [#allocation1], 748
    %v2783 = vld [vmem:[%s2782] sm:$0x8]
    %vm2784 = vcmask 1043459
    %v2785 = vsel %vm2784, %v2783, %v2781
    %s2786 = scalar_lea.vmem [#allocation1], 811
    %v2787 = vld [vmem:[%s2786] sm:$0x10]
    %vm2788 = vcmask 1044484
    %v2789 = vsel %vm2788, %v2787, %v2785
    %s2790 = scalar_lea.vmem [#allocation1], 874
    %v2791 = vld [vmem:[%s2790] sm:$0x20]
    %vm2792 = vcmask 1045509
    %v2793 = vsel %vm2792, %v2791, %v2789
    %s2794 = scalar_lea.vmem [#allocation1], 937
    %v2795 = vld [vmem:[%s2794] sm:$0x40]
    %vm2796 = vcmask 1046534
    %v2797 = vsel %vm2796, %v2795, %v2793
    %s2798 = scalar_lea.vmem [#allocation1], 1000
    %v2799 = vld [vmem:[%s2798] sm:$0x80]
    %vm2800 = vcmask 1047559
    %v2801 = vsel %vm2800, %v2799, %v2797
    %2802 = vrot.lane.b32.xlu0 %v2801, 112
    %v2803 = vpop.permute.xlu0 %2802
    %vm2804 = vcmask 1048448
    %s2805 = scalar_lea.vmem [#allocation0], 88
    %2806 = vst.msk [vmem:[%s2805] sm:$0xff] %vm2804, %v2803
    %s2807 = scalar_lea.vmem [#allocation1], 575
    %v2808 = vld [vmem:[%s2807] sm:$0x1]
    %s2809 = scalar_lea.vmem [#allocation1], 638
    %v2810 = vld [vmem:[%s2809] sm:$0x2]
    %vm2811 = vcmask 1041409
    %v2812 = vsel %vm2811, %v2810, %v2808
    %s2813 = scalar_lea.vmem [#allocation1], 701
    %v2814 = vld [vmem:[%s2813] sm:$0x4]
    %vm2815 = vcmask 1042434
    %v2816 = vsel %vm2815, %v2814, %v2812
    %s2817 = scalar_lea.vmem [#allocation1], 764
    %v2818 = vld [vmem:[%s2817] sm:$0x8]
    %vm2819 = vcmask 1043459
    %v2820 = vsel %vm2819, %v2818, %v2816
    %s2821 = scalar_lea.vmem [#allocation1], 827
    %v2822 = vld [vmem:[%s2821] sm:$0x10]
    %vm2823 = vcmask 1044484
    %v2824 = vsel %vm2823, %v2822, %v2820
    %s2825 = scalar_lea.vmem [#allocation1], 890
    %v2826 = vld [vmem:[%s2825] sm:$0x20]
    %vm2827 = vcmask 1045509
    %v2828 = vsel %vm2827, %v2826, %v2824
    %s2829 = scalar_lea.vmem [#allocation1], 953
    %v2830 = vld [vmem:[%s2829] sm:$0x40]
    %vm2831 = vcmask 1046534
    %v2832 = vsel %vm2831, %v2830, %v2828
    %s2833 = scalar_lea.vmem [#allocation1], 1016
    %v2834 = vld [vmem:[%s2833] sm:$0x80]
    %vm2835 = vcmask 1047559
    %v2836 = vsel %vm2835, %v2834, %v2832
    %2837 = vrot.lane.b32.xlu0 %v2836, 112
    %v2838 = vpop.permute.xlu0 %2837
    %vm2839 = vcmask 1048448
    %s2840 = scalar_lea.vmem [#allocation0], 120
    %2841 = vst.msk [vmem:[%s2840] sm:$0xff] %vm2839, %v2838
    %s2842 = scalar_lea.vmem [#allocation1], 6
    %v2843 = vld [vmem:[%s2842] sm:$0x1]
    %s2844 = scalar_lea.vmem [#allocation1], 69
    %v2845 = vld [vmem:[%s2844] sm:$0x2]
    %vm2846 = vcmask 1041409
    %v2847 = vsel %vm2846, %v2845, %v2843
    %s2848 = scalar_lea.vmem [#allocation1], 132
    %v2849 = vld [vmem:[%s2848] sm:$0x4]
    %vm2850 = vcmask 1042434
    %v2851 = vsel %vm2850, %v2849, %v2847
    %s2852 = scalar_lea.vmem [#allocation1], 195
    %v2853 = vld [vmem:[%s2852] sm:$0x8]
    %vm2854 = vcmask 1043459
    %v2855 = vsel %vm2854, %v2853, %v2851
    %s2856 = scalar_lea.vmem [#allocation1], 258
    %v2857 = vld [vmem:[%s2856] sm:$0x10]
    %vm2858 = vcmask 1044484
    %v2859 = vsel %vm2858, %v2857, %v2855
    %s2860 = scalar_lea.vmem [#allocation1], 321
    %v2861 = vld [vmem:[%s2860] sm:$0x20]
    %vm2862 = vcmask 1045509
    %v2863 = vsel %vm2862, %v2861, %v2859
    %s2864 = scalar_lea.vmem [#allocation1], 384
    %v2865 = vld [vmem:[%s2864] sm:$0x40]
    %vm2866 = vcmask 1046534
    %v2867 = vsel %vm2866, %v2865, %v2863
    %s2868 = scalar_lea.vmem [#allocation1], 447
    %v2869 = vld [vmem:[%s2868] sm:$0x80]
    %vm2870 = vcmask 1047559
    %v2871 = vsel %vm2870, %v2869, %v2867
    %2872 = vrot.lane.b32.xlu0 %v2871, 96
    %v2873 = vpop.permute.xlu0 %2872
    %vm2874 = vcmask 917248
    %2875 = vst.msk [vmem:[#allocation0] sm:$0xff] %vm2874, %v2873
    %s2876 = scalar_lea.vmem [#allocation1], 22
    %v2877 = vld [vmem:[%s2876] sm:$0x1]
    %s2878 = scalar_lea.vmem [#allocation1], 85
    %v2879 = vld [vmem:[%s2878] sm:$0x2]
    %vm2880 = vcmask 1041409
    %v2881 = vsel %vm2880, %v2879, %v2877
    %s2882 = scalar_lea.vmem [#allocation1], 148
    %v2883 = vld [vmem:[%s2882] sm:$0x4]
    %vm2884 = vcmask 1042434
    %v2885 = vsel %vm2884, %v2883, %v2881
    %s2886 = scalar_lea.vmem [#allocation1], 211
    %v2887 = vld [vmem:[%s2886] sm:$0x8]
    %vm2888 = vcmask 1043459
    %v2889 = vsel %vm2888, %v2887, %v2885
    %s2890 = scalar_lea.vmem [#allocation1], 274
    %v2891 = vld [vmem:[%s2890] sm:$0x10]
    %vm2892 = vcmask 1044484
    %v2893 = vsel %vm2892, %v2891, %v2889
    %s2894 = scalar_lea.vmem [#allocation1], 337
    %v2895 = vld [vmem:[%s2894] sm:$0x20]
    %vm2896 = vcmask 1045509
    %v2897 = vsel %vm2896, %v2895, %v2893
    %s2898 = scalar_lea.vmem [#allocation1], 400
    %v2899 = vld [vmem:[%s2898] sm:$0x40]
    %vm2900 = vcmask 1046534
    %v2901 = vsel %vm2900, %v2899, %v2897
    %s2902 = scalar_lea.vmem [#allocation1], 463
    %v2903 = vld [vmem:[%s2902] sm:$0x80]
    %vm2904 = vcmask 1047559
    %v2905 = vsel %vm2904, %v2903, %v2901
    %2906 = vrot.lane.b32.xlu0 %v2905, 96
    %v2907 = vpop.permute.xlu0 %2906
    %vm2908 = vcmask 917248
    %s2909 = scalar_lea.vmem [#allocation0], 32
    %2910 = vst.msk [vmem:[%s2909] sm:$0xff] %vm2908, %v2907
    %s2911 = scalar_lea.vmem [#allocation1], 38
    %v2912 = vld [vmem:[%s2911] sm:$0x1]
    %s2913 = scalar_lea.vmem [#allocation1], 101
    %v2914 = vld [vmem:[%s2913] sm:$0x2]
    %vm2915 = vcmask 1041409
    %v2916 = vsel %vm2915, %v2914, %v2912
    %s2917 = scalar_lea.vmem [#allocation1], 164
    %v2918 = vld [vmem:[%s2917] sm:$0x4]
    %vm2919 = vcmask 1042434
    %v2920 = vsel %vm2919, %v2918, %v2916
    %s2921 = scalar_lea.vmem [#allocation1], 227
    %v2922 = vld [vmem:[%s2921] sm:$0x8]
    %vm2923 = vcmask 1043459
    %v2924 = vsel %vm2923, %v2922, %v2920
    %s2925 = scalar_lea.vmem [#allocation1], 290
    %v2926 = vld [vmem:[%s2925] sm:$0x10]
    %vm2927 = vcmask 1044484
    %v2928 = vsel %vm2927, %v2926, %v2924
    %s2929 = scalar_lea.vmem [#allocation1], 353
    %v2930 = vld [vmem:[%s2929] sm:$0x20]
    %vm2931 = vcmask 1045509
    %v2932 = vsel %vm2931, %v2930, %v2928
    %s2933 = scalar_lea.vmem [#allocation1], 416
    %v2934 = vld [vmem:[%s2933] sm:$0x40]
    %vm2935 = vcmask 1046534
    %v2936 = vsel %vm2935, %v2934, %v2932
    %s2937 = scalar_lea.vmem [#allocation1], 479
    %v2938 = vld [vmem:[%s2937] sm:$0x80]
    %vm2939 = vcmask 1047559
    %v2940 = vsel %vm2939, %v2938, %v2936
    %2941 = vrot.lane.b32.xlu0 %v2940, 96
    %v2942 = vpop.permute.xlu0 %2941
    %vm2943 = vcmask 917248
    %s2944 = scalar_lea.vmem [#allocation0], 64
    %2945 = vst.msk [vmem:[%s2944] sm:$0xff] %vm2943, %v2942
    %s2946 = scalar_lea.vmem [#allocation1], 54
    %v2947 = vld [vmem:[%s2946] sm:$0x1]
    %s2948 = scalar_lea.vmem [#allocation1], 117
    %v2949 = vld [vmem:[%s2948] sm:$0x2]
    %vm2950 = vcmask 1041409
    %v2951 = vsel %vm2950, %v2949, %v2947
    %s2952 = scalar_lea.vmem [#allocation1], 180
    %v2953 = vld [vmem:[%s2952] sm:$0x4]
    %vm2954 = vcmask 1042434
    %v2955 = vsel %vm2954, %v2953, %v2951
    %s2956 = scalar_lea.vmem [#allocation1], 243
    %v2957 = vld [vmem:[%s2956] sm:$0x8]
    %vm2958 = vcmask 1043459
    %v2959 = vsel %vm2958, %v2957, %v2955
    %s2960 = scalar_lea.vmem [#allocation1], 306
    %v2961 = vld [vmem:[%s2960] sm:$0x10]
    %vm2962 = vcmask 1044484
    %v2963 = vsel %vm2962, %v2961, %v2959
    %s2964 = scalar_lea.vmem [#allocation1], 369
    %v2965 = vld [vmem:[%s2964] sm:$0x20]
    %vm2966 = vcmask 1045509
    %v2967 = vsel %vm2966, %v2965, %v2963
    %s2968 = scalar_lea.vmem [#allocation1], 432
    %v2969 = vld [vmem:[%s2968] sm:$0x40]
    %vm2970 = vcmask 1046534
    %v2971 = vsel %vm2970, %v2969, %v2967
    %s2972 = scalar_lea.vmem [#allocation1], 495
    %v2973 = vld [vmem:[%s2972] sm:$0x80]
    %vm2974 = vcmask 1047559
    %v2975 = vsel %vm2974, %v2973, %v2971
    %2976 = vrot.lane.b32.xlu0 %v2975, 96
    %v2977 = vpop.permute.xlu0 %2976
    %vm2978 = vcmask 917248
    %s2979 = scalar_lea.vmem [#allocation0], 96
    %2980 = vst.msk [vmem:[%s2979] sm:$0xff] %vm2978, %v2977
    %s2981 = scalar_lea.vmem [#allocation1], 518
    %v2982 = vld [vmem:[%s2981] sm:$0x1]
    %s2983 = scalar_lea.vmem [#allocation1], 581
    %v2984 = vld [vmem:[%s2983] sm:$0x2]
    %vm2985 = vcmask 1041409
    %v2986 = vsel %vm2985, %v2984, %v2982
    %s2987 = scalar_lea.vmem [#allocation1], 644
    %v2988 = vld [vmem:[%s2987] sm:$0x4]
    %vm2989 = vcmask 1042434
    %v2990 = vsel %vm2989, %v2988, %v2986
    %s2991 = scalar_lea.vmem [#allocation1], 707
    %v2992 = vld [vmem:[%s2991] sm:$0x8]
    %vm2993 = vcmask 1043459
    %v2994 = vsel %vm2993, %v2992, %v2990
    %s2995 = scalar_lea.vmem [#allocation1], 770
    %v2996 = vld [vmem:[%s2995] sm:$0x10]
    %vm2997 = vcmask 1044484
    %v2998 = vsel %vm2997, %v2996, %v2994
    %s2999 = scalar_lea.vmem [#allocation1], 833
    %v3000 = vld [vmem:[%s2999] sm:$0x20]
    %vm3001 = vcmask 1045509
    %v3002 = vsel %vm3001, %v3000, %v2998
    %s3003 = scalar_lea.vmem [#allocation1], 896
    %v3004 = vld [vmem:[%s3003] sm:$0x40]
    %vm3005 = vcmask 1046534
    %v3006 = vsel %vm3005, %v3004, %v3002
    %s3007 = scalar_lea.vmem [#allocation1], 959
    %v3008 = vld [vmem:[%s3007] sm:$0x80]
    %vm3009 = vcmask 1047559
    %v3010 = vsel %vm3009, %v3008, %v3006
    %3011 = vrot.lane.b32.xlu0 %v3010, 96
    %v3012 = vpop.permute.xlu0 %3011
    %vm3013 = vcmask 917248
    %s3014 = scalar_lea.vmem [#allocation0], 8
    %3015 = vst.msk [vmem:[%s3014] sm:$0xff] %vm3013, %v3012
    %s3016 = scalar_lea.vmem [#allocation1], 534
    %v3017 = vld [vmem:[%s3016] sm:$0x1]
    %s3018 = scalar_lea.vmem [#allocation1], 597
    %v3019 = vld [vmem:[%s3018] sm:$0x2]
    %vm3020 = vcmask 1041409
    %v3021 = vsel %vm3020, %v3019, %v3017
    %s3022 = scalar_lea.vmem [#allocation1], 660
    %v3023 = vld [vmem:[%s3022] sm:$0x4]
    %vm3024 = vcmask 1042434
    %v3025 = vsel %vm3024, %v3023, %v3021
    %s3026 = scalar_lea.vmem [#allocation1], 723
    %v3027 = vld [vmem:[%s3026] sm:$0x8]
    %vm3028 = vcmask 1043459
    %v3029 = vsel %vm3028, %v3027, %v3025
    %s3030 = scalar_lea.vmem [#allocation1], 786
    %v3031 = vld [vmem:[%s3030] sm:$0x10]
    %vm3032 = vcmask 1044484
    %v3033 = vsel %vm3032, %v3031, %v3029
    %s3034 = scalar_lea.vmem [#allocation1], 849
    %v3035 = vld [vmem:[%s3034] sm:$0x20]
    %vm3036 = vcmask 1045509
    %v3037 = vsel %vm3036, %v3035, %v3033
    %s3038 = scalar_lea.vmem [#allocation1], 912
    %v3039 = vld [vmem:[%s3038] sm:$0x40]
    %vm3040 = vcmask 1046534
    %v3041 = vsel %vm3040, %v3039, %v3037
    %s3042 = scalar_lea.vmem [#allocation1], 975
    %v3043 = vld [vmem:[%s3042] sm:$0x80]
    %vm3044 = vcmask 1047559
    %v3045 = vsel %vm3044, %v3043, %v3041
    %3046 = vrot.lane.b32.xlu0 %v3045, 96
    %v3047 = vpop.permute.xlu0 %3046
    %vm3048 = vcmask 917248
    %s3049 = scalar_lea.vmem [#allocation0], 40
    %3050 = vst.msk [vmem:[%s3049] sm:$0xff] %vm3048, %v3047
    %s3051 = scalar_lea.vmem [#allocation1], 550
    %v3052 = vld [vmem:[%s3051] sm:$0x1]
    %s3053 = scalar_lea.vmem [#allocation1], 613
    %v3054 = vld [vmem:[%s3053] sm:$0x2]
    %vm3055 = vcmask 1041409
    %v3056 = vsel %vm3055, %v3054, %v3052
    %s3057 = scalar_lea.vmem [#allocation1], 676
    %v3058 = vld [vmem:[%s3057] sm:$0x4]
    %vm3059 = vcmask 1042434
    %v3060 = vsel %vm3059, %v3058, %v3056
    %s3061 = scalar_lea.vmem [#allocation1], 739
    %v3062 = vld [vmem:[%s3061] sm:$0x8]
    %vm3063 = vcmask 1043459
    %v3064 = vsel %vm3063, %v3062, %v3060
    %s3065 = scalar_lea.vmem [#allocation1], 802
    %v3066 = vld [vmem:[%s3065] sm:$0x10]
    %vm3067 = vcmask 1044484
    %v3068 = vsel %vm3067, %v3066, %v3064
    %s3069 = scalar_lea.vmem [#allocation1], 865
    %v3070 = vld [vmem:[%s3069] sm:$0x20]
    %vm3071 = vcmask 1045509
    %v3072 = vsel %vm3071, %v3070, %v3068
    %s3073 = scalar_lea.vmem [#allocation1], 928
    %v3074 = vld [vmem:[%s3073] sm:$0x40]
    %vm3075 = vcmask 1046534
    %v3076 = vsel %vm3075, %v3074, %v3072
    %s3077 = scalar_lea.vmem [#allocation1], 991
    %v3078 = vld [vmem:[%s3077] sm:$0x80]
    %vm3079 = vcmask 1047559
    %v3080 = vsel %vm3079, %v3078, %v3076
    %3081 = vrot.lane.b32.xlu0 %v3080, 96
    %v3082 = vpop.permute.xlu0 %3081
    %vm3083 = vcmask 917248
    %s3084 = scalar_lea.vmem [#allocation0], 72
    %3085 = vst.msk [vmem:[%s3084] sm:$0xff] %vm3083, %v3082
    %s3086 = scalar_lea.vmem [#allocation1], 566
    %v3087 = vld [vmem:[%s3086] sm:$0x1]
    %s3088 = scalar_lea.vmem [#allocation1], 629
    %v3089 = vld [vmem:[%s3088] sm:$0x2]
    %vm3090 = vcmask 1041409
    %v3091 = vsel %vm3090, %v3089, %v3087
    %s3092 = scalar_lea.vmem [#allocation1], 692
    %v3093 = vld [vmem:[%s3092] sm:$0x4]
    %vm3094 = vcmask 1042434
    %v3095 = vsel %vm3094, %v3093, %v3091
    %s3096 = scalar_lea.vmem [#allocation1], 755
    %v3097 = vld [vmem:[%s3096] sm:$0x8]
    %vm3098 = vcmask 1043459
    %v3099 = vsel %vm3098, %v3097, %v3095
    %s3100 = scalar_lea.vmem [#allocation1], 818
    %v3101 = vld [vmem:[%s3100] sm:$0x10]
    %vm3102 = vcmask 1044484
    %v3103 = vsel %vm3102, %v3101, %v3099
    %s3104 = scalar_lea.vmem [#allocation1], 881
    %v3105 = vld [vmem:[%s3104] sm:$0x20]
    %vm3106 = vcmask 1045509
    %v3107 = vsel %vm3106, %v3105, %v3103
    %s3108 = scalar_lea.vmem [#allocation1], 944
    %v3109 = vld [vmem:[%s3108] sm:$0x40]
    %vm3110 = vcmask 1046534
    %v3111 = vsel %vm3110, %v3109, %v3107
    %s3112 = scalar_lea.vmem [#allocation1], 1007
    %v3113 = vld [vmem:[%s3112] sm:$0x80]
    %vm3114 = vcmask 1047559
    %v3115 = vsel %vm3114, %v3113, %v3111
    %3116 = vrot.lane.b32.xlu0 %v3115, 96
    %v3117 = vpop.permute.xlu0 %3116
    %vm3118 = vcmask 917248
    %s3119 = scalar_lea.vmem [#allocation0], 104
    %3120 = vst.msk [vmem:[%s3119] sm:$0xff] %vm3118, %v3117
    %s3121 = scalar_lea.vmem [#allocation1], 14
    %v3122 = vld [vmem:[%s3121] sm:$0x1]
    %s3123 = scalar_lea.vmem [#allocation1], 77
    %v3124 = vld [vmem:[%s3123] sm:$0x2]
    %vm3125 = vcmask 1041409
    %v3126 = vsel %vm3125, %v3124, %v3122
    %s3127 = scalar_lea.vmem [#allocation1], 140
    %v3128 = vld [vmem:[%s3127] sm:$0x4]
    %vm3129 = vcmask 1042434
    %v3130 = vsel %vm3129, %v3128, %v3126
    %s3131 = scalar_lea.vmem [#allocation1], 203
    %v3132 = vld [vmem:[%s3131] sm:$0x8]
    %vm3133 = vcmask 1043459
    %v3134 = vsel %vm3133, %v3132, %v3130
    %s3135 = scalar_lea.vmem [#allocation1], 266
    %v3136 = vld [vmem:[%s3135] sm:$0x10]
    %vm3137 = vcmask 1044484
    %v3138 = vsel %vm3137, %v3136, %v3134
    %s3139 = scalar_lea.vmem [#allocation1], 329
    %v3140 = vld [vmem:[%s3139] sm:$0x20]
    %vm3141 = vcmask 1045509
    %v3142 = vsel %vm3141, %v3140, %v3138
    %s3143 = scalar_lea.vmem [#allocation1], 392
    %v3144 = vld [vmem:[%s3143] sm:$0x40]
    %vm3145 = vcmask 1046534
    %v3146 = vsel %vm3145, %v3144, %v3142
    %s3147 = scalar_lea.vmem [#allocation1], 455
    %v3148 = vld [vmem:[%s3147] sm:$0x80]
    %vm3149 = vcmask 1047559
    %v3150 = vsel %vm3149, %v3148, %v3146
    %3151 = vrot.lane.b32.xlu0 %v3150, 96
    %v3152 = vpop.permute.xlu0 %3151
    %vm3153 = vcmask 917248
    %s3154 = scalar_lea.vmem [#allocation0], 16
    %3155 = vst.msk [vmem:[%s3154] sm:$0xff] %vm3153, %v3152
    %s3156 = scalar_lea.vmem [#allocation1], 30
    %v3157 = vld [vmem:[%s3156] sm:$0x1]
    %s3158 = scalar_lea.vmem [#allocation1], 93
    %v3159 = vld [vmem:[%s3158] sm:$0x2]
    %vm3160 = vcmask 1041409
    %v3161 = vsel %vm3160, %v3159, %v3157
    %s3162 = scalar_lea.vmem [#allocation1], 156
    %v3163 = vld [vmem:[%s3162] sm:$0x4]
    %vm3164 = vcmask 1042434
    %v3165 = vsel %vm3164, %v3163, %v3161
    %s3166 = scalar_lea.vmem [#allocation1], 219
    %v3167 = vld [vmem:[%s3166] sm:$0x8]
    %vm3168 = vcmask 1043459
    %v3169 = vsel %vm3168, %v3167, %v3165
    %s3170 = scalar_lea.vmem [#allocation1], 282
    %v3171 = vld [vmem:[%s3170] sm:$0x10]
    %vm3172 = vcmask 1044484
    %v3173 = vsel %vm3172, %v3171, %v3169
    %s3174 = scalar_lea.vmem [#allocation1], 345
    %v3175 = vld [vmem:[%s3174] sm:$0x20]
    %vm3176 = vcmask 1045509
    %v3177 = vsel %vm3176, %v3175, %v3173
    %s3178 = scalar_lea.vmem [#allocation1], 408
    %v3179 = vld [vmem:[%s3178] sm:$0x40]
    %vm3180 = vcmask 1046534
    %v3181 = vsel %vm3180, %v3179, %v3177
    %s3182 = scalar_lea.vmem [#allocation1], 471
    %v3183 = vld [vmem:[%s3182] sm:$0x80]
    %vm3184 = vcmask 1047559
    %v3185 = vsel %vm3184, %v3183, %v3181
    %3186 = vrot.lane.b32.xlu0 %v3185, 96
    %v3187 = vpop.permute.xlu0 %3186
    %vm3188 = vcmask 917248
    %s3189 = scalar_lea.vmem [#allocation0], 48
    %3190 = vst.msk [vmem:[%s3189] sm:$0xff] %vm3188, %v3187
    %s3191 = scalar_lea.vmem [#allocation1], 46
    %v3192 = vld [vmem:[%s3191] sm:$0x1]
    %s3193 = scalar_lea.vmem [#allocation1], 109
    %v3194 = vld [vmem:[%s3193] sm:$0x2]
    %vm3195 = vcmask 1041409
    %v3196 = vsel %vm3195, %v3194, %v3192
    %s3197 = scalar_lea.vmem [#allocation1], 172
    %v3198 = vld [vmem:[%s3197] sm:$0x4]
    %vm3199 = vcmask 1042434
    %v3200 = vsel %vm3199, %v3198, %v3196
    %s3201 = scalar_lea.vmem [#allocation1], 235
    %v3202 = vld [vmem:[%s3201] sm:$0x8]
    %vm3203 = vcmask 1043459
    %v3204 = vsel %vm3203, %v3202, %v3200
    %s3205 = scalar_lea.vmem [#allocation1], 298
    %v3206 = vld [vmem:[%s3205] sm:$0x10]
    %vm3207 = vcmask 1044484
    %v3208 = vsel %vm3207, %v3206, %v3204
    %s3209 = scalar_lea.vmem [#allocation1], 361
    %v3210 = vld [vmem:[%s3209] sm:$0x20]
    %vm3211 = vcmask 1045509
    %v3212 = vsel %vm3211, %v3210, %v3208
    %s3213 = scalar_lea.vmem [#allocation1], 424
    %v3214 = vld [vmem:[%s3213] sm:$0x40]
    %vm3215 = vcmask 1046534
    %v3216 = vsel %vm3215, %v3214, %v3212
    %s3217 = scalar_lea.vmem [#allocation1], 487
    %v3218 = vld [vmem:[%s3217] sm:$0x80]
    %vm3219 = vcmask 1047559
    %v3220 = vsel %vm3219, %v3218, %v3216
    %3221 = vrot.lane.b32.xlu0 %v3220, 96
    %v3222 = vpop.permute.xlu0 %3221
    %vm3223 = vcmask 917248
    %s3224 = scalar_lea.vmem [#allocation0], 80
    %3225 = vst.msk [vmem:[%s3224] sm:$0xff] %vm3223, %v3222
    %s3226 = scalar_lea.vmem [#allocation1], 62
    %v3227 = vld [vmem:[%s3226] sm:$0x1]
    %s3228 = scalar_lea.vmem [#allocation1], 125
    %v3229 = vld [vmem:[%s3228] sm:$0x2]
    %vm3230 = vcmask 1041409
    %v3231 = vsel %vm3230, %v3229, %v3227
    %s3232 = scalar_lea.vmem [#allocation1], 188
    %v3233 = vld [vmem:[%s3232] sm:$0x4]
    %vm3234 = vcmask 1042434
    %v3235 = vsel %vm3234, %v3233, %v3231
    %s3236 = scalar_lea.vmem [#allocation1], 251
    %v3237 = vld [vmem:[%s3236] sm:$0x8]
    %vm3238 = vcmask 1043459
    %v3239 = vsel %vm3238, %v3237, %v3235
    %s3240 = scalar_lea.vmem [#allocation1], 314
    %v3241 = vld [vmem:[%s3240] sm:$0x10]
    %vm3242 = vcmask 1044484
    %v3243 = vsel %vm3242, %v3241, %v3239
    %s3244 = scalar_lea.vmem [#allocation1], 377
    %v3245 = vld [vmem:[%s3244] sm:$0x20]
    %vm3246 = vcmask 1045509
    %v3247 = vsel %vm3246, %v3245, %v3243
    %s3248 = scalar_lea.vmem [#allocation1], 440
    %v3249 = vld [vmem:[%s3248] sm:$0x40]
    %vm3250 = vcmask 1046534
    %v3251 = vsel %vm3250, %v3249, %v3247
    %s3252 = scalar_lea.vmem [#allocation1], 503
    %v3253 = vld [vmem:[%s3252] sm:$0x80]
    %vm3254 = vcmask 1047559
    %v3255 = vsel %vm3254, %v3253, %v3251
    %3256 = vrot.lane.b32.xlu0 %v3255, 96
    %v3257 = vpop.permute.xlu0 %3256
    %vm3258 = vcmask 917248
    %s3259 = scalar_lea.vmem [#allocation0], 112
    %3260 = vst.msk [vmem:[%s3259] sm:$0xff] %vm3258, %v3257
    %s3261 = scalar_lea.vmem [#allocation1], 526
    %v3262 = vld [vmem:[%s3261] sm:$0x1]
    %s3263 = scalar_lea.vmem [#allocation1], 589
    %v3264 = vld [vmem:[%s3263] sm:$0x2]
    %vm3265 = vcmask 1041409
    %v3266 = vsel %vm3265, %v3264, %v3262
    %s3267 = scalar_lea.vmem [#allocation1], 652
    %v3268 = vld [vmem:[%s3267] sm:$0x4]
    %vm3269 = vcmask 1042434
    %v3270 = vsel %vm3269, %v3268, %v3266
    %s3271 = scalar_lea.vmem [#allocation1], 715
    %v3272 = vld [vmem:[%s3271] sm:$0x8]
    %vm3273 = vcmask 1043459
    %v3274 = vsel %vm3273, %v3272, %v3270
    %s3275 = scalar_lea.vmem [#allocation1], 778
    %v3276 = vld [vmem:[%s3275] sm:$0x10]
    %vm3277 = vcmask 1044484
    %v3278 = vsel %vm3277, %v3276, %v3274
    %s3279 = scalar_lea.vmem [#allocation1], 841
    %v3280 = vld [vmem:[%s3279] sm:$0x20]
    %vm3281 = vcmask 1045509
    %v3282 = vsel %vm3281, %v3280, %v3278
    %s3283 = scalar_lea.vmem [#allocation1], 904
    %v3284 = vld [vmem:[%s3283] sm:$0x40]
    %vm3285 = vcmask 1046534
    %v3286 = vsel %vm3285, %v3284, %v3282
    %s3287 = scalar_lea.vmem [#allocation1], 967
    %v3288 = vld [vmem:[%s3287] sm:$0x80]
    %vm3289 = vcmask 1047559
    %v3290 = vsel %vm3289, %v3288, %v3286
    %3291 = vrot.lane.b32.xlu0 %v3290, 96
    %v3292 = vpop.permute.xlu0 %3291
    %vm3293 = vcmask 917248
    %s3294 = scalar_lea.vmem [#allocation0], 24
    %3295 = vst.msk [vmem:[%s3294] sm:$0xff] %vm3293, %v3292
    %s3296 = scalar_lea.vmem [#allocation1], 542
    %v3297 = vld [vmem:[%s3296] sm:$0x1]
    %s3298 = scalar_lea.vmem [#allocation1], 605
    %v3299 = vld [vmem:[%s3298] sm:$0x2]
    %vm3300 = vcmask 1041409
    %v3301 = vsel %vm3300, %v3299, %v3297
    %s3302 = scalar_lea.vmem [#allocation1], 668
    %v3303 = vld [vmem:[%s3302] sm:$0x4]
    %vm3304 = vcmask 1042434
    %v3305 = vsel %vm3304, %v3303, %v3301
    %s3306 = scalar_lea.vmem [#allocation1], 731
    %v3307 = vld [vmem:[%s3306] sm:$0x8]
    %vm3308 = vcmask 1043459
    %v3309 = vsel %vm3308, %v3307, %v3305
    %s3310 = scalar_lea.vmem [#allocation1], 794
    %v3311 = vld [vmem:[%s3310] sm:$0x10]
    %vm3312 = vcmask 1044484
    %v3313 = vsel %vm3312, %v3311, %v3309
    %s3314 = scalar_lea.vmem [#allocation1], 857
    %v3315 = vld [vmem:[%s3314] sm:$0x20]
    %vm3316 = vcmask 1045509
    %v3317 = vsel %vm3316, %v3315, %v3313
    %s3318 = scalar_lea.vmem [#allocation1], 920
    %v3319 = vld [vmem:[%s3318] sm:$0x40]
    %vm3320 = vcmask 1046534
    %v3321 = vsel %vm3320, %v3319, %v3317
    %s3322 = scalar_lea.vmem [#allocation1], 983
    %v3323 = vld [vmem:[%s3322] sm:$0x80]
    %vm3324 = vcmask 1047559
    %v3325 = vsel %vm3324, %v3323, %v3321
    %3326 = vrot.lane.b32.xlu0 %v3325, 96
    %v3327 = vpop.permute.xlu0 %3326
    %vm3328 = vcmask 917248
    %s3329 = scalar_lea.vmem [#allocation0], 56
    %3330 = vst.msk [vmem:[%s3329] sm:$0xff] %vm3328, %v3327
    %s3331 = scalar_lea.vmem [#allocation1], 558
    %v3332 = vld [vmem:[%s3331] sm:$0x1]
    %s3333 = scalar_lea.vmem [#allocation1], 621
    %v3334 = vld [vmem:[%s3333] sm:$0x2]
    %vm3335 = vcmask 1041409
    %v3336 = vsel %vm3335, %v3334, %v3332
    %s3337 = scalar_lea.vmem [#allocation1], 684
    %v3338 = vld [vmem:[%s3337] sm:$0x4]
    %vm3339 = vcmask 1042434
    %v3340 = vsel %vm3339, %v3338, %v3336
    %s3341 = scalar_lea.vmem [#allocation1], 747
    %v3342 = vld [vmem:[%s3341] sm:$0x8]
    %vm3343 = vcmask 1043459
    %v3344 = vsel %vm3343, %v3342, %v3340
    %s3345 = scalar_lea.vmem [#allocation1], 810
    %v3346 = vld [vmem:[%s3345] sm:$0x10]
    %vm3347 = vcmask 1044484
    %v3348 = vsel %vm3347, %v3346, %v3344
    %s3349 = scalar_lea.vmem [#allocation1], 873
    %v3350 = vld [vmem:[%s3349] sm:$0x20]
    %vm3351 = vcmask 1045509
    %v3352 = vsel %vm3351, %v3350, %v3348
    %s3353 = scalar_lea.vmem [#allocation1], 936
    %v3354 = vld [vmem:[%s3353] sm:$0x40]
    %vm3355 = vcmask 1046534
    %v3356 = vsel %vm3355, %v3354, %v3352
    %s3357 = scalar_lea.vmem [#allocation1], 999
    %v3358 = vld [vmem:[%s3357] sm:$0x80]
    %vm3359 = vcmask 1047559
    %v3360 = vsel %vm3359, %v3358, %v3356
    %3361 = vrot.lane.b32.xlu0 %v3360, 96
    %v3362 = vpop.permute.xlu0 %3361
    %vm3363 = vcmask 917248
    %s3364 = scalar_lea.vmem [#allocation0], 88
    %3365 = vst.msk [vmem:[%s3364] sm:$0xff] %vm3363, %v3362
    %s3366 = scalar_lea.vmem [#allocation1], 574
    %v3367 = vld [vmem:[%s3366] sm:$0x1]
    %s3368 = scalar_lea.vmem [#allocation1], 637
    %v3369 = vld [vmem:[%s3368] sm:$0x2]
    %vm3370 = vcmask 1041409
    %v3371 = vsel %vm3370, %v3369, %v3367
    %s3372 = scalar_lea.vmem [#allocation1], 700
    %v3373 = vld [vmem:[%s3372] sm:$0x4]
    %vm3374 = vcmask 1042434
    %v3375 = vsel %vm3374, %v3373, %v3371
    %s3376 = scalar_lea.vmem [#allocation1], 763
    %v3377 = vld [vmem:[%s3376] sm:$0x8]
    %vm3378 = vcmask 1043459
    %v3379 = vsel %vm3378, %v3377, %v3375
    %s3380 = scalar_lea.vmem [#allocation1], 826
    %v3381 = vld [vmem:[%s3380] sm:$0x10]
    %vm3382 = vcmask 1044484
    %v3383 = vsel %vm3382, %v3381, %v3379
    %s3384 = scalar_lea.vmem [#allocation1], 889
    %v3385 = vld [vmem:[%s3384] sm:$0x20]
    %vm3386 = vcmask 1045509
    %v3387 = vsel %vm3386, %v3385, %v3383
    %s3388 = scalar_lea.vmem [#allocation1], 952
    %v3389 = vld [vmem:[%s3388] sm:$0x40]
    %vm3390 = vcmask 1046534
    %v3391 = vsel %vm3390, %v3389, %v3387
    %s3392 = scalar_lea.vmem [#allocation1], 1015
    %v3393 = vld [vmem:[%s3392] sm:$0x80]
    %vm3394 = vcmask 1047559
    %v3395 = vsel %vm3394, %v3393, %v3391
    %3396 = vrot.lane.b32.xlu0 %v3395, 96
    %v3397 = vpop.permute.xlu0 %3396
    %vm3398 = vcmask 917248
    %s3399 = scalar_lea.vmem [#allocation0], 120
    %3400 = vst.msk [vmem:[%s3399] sm:$0xff] %vm3398, %v3397
    %s3401 = scalar_lea.vmem [#allocation1], 5
    %v3402 = vld [vmem:[%s3401] sm:$0x1]
    %s3403 = scalar_lea.vmem [#allocation1], 68
    %v3404 = vld [vmem:[%s3403] sm:$0x2]
    %vm3405 = vcmask 1041409
    %v3406 = vsel %vm3405, %v3404, %v3402
    %s3407 = scalar_lea.vmem [#allocation1], 131
    %v3408 = vld [vmem:[%s3407] sm:$0x4]
    %vm3409 = vcmask 1042434
    %v3410 = vsel %vm3409, %v3408, %v3406
    %s3411 = scalar_lea.vmem [#allocation1], 194
    %v3412 = vld [vmem:[%s3411] sm:$0x8]
    %vm3413 = vcmask 1043459
    %v3414 = vsel %vm3413, %v3412, %v3410
    %s3415 = scalar_lea.vmem [#allocation1], 257
    %v3416 = vld [vmem:[%s3415] sm:$0x10]
    %vm3417 = vcmask 1044484
    %v3418 = vsel %vm3417, %v3416, %v3414
    %s3419 = scalar_lea.vmem [#allocation1], 320
    %v3420 = vld [vmem:[%s3419] sm:$0x20]
    %vm3421 = vcmask 1045509
    %v3422 = vsel %vm3421, %v3420, %v3418
    %s3423 = scalar_lea.vmem [#allocation1], 383
    %v3424 = vld [vmem:[%s3423] sm:$0x40]
    %vm3425 = vcmask 1046534
    %v3426 = vsel %vm3425, %v3424, %v3422
    %s3427 = scalar_lea.vmem [#allocation1], 446
    %v3428 = vld [vmem:[%s3427] sm:$0x80]
    %vm3429 = vcmask 1047559
    %v3430 = vsel %vm3429, %v3428, %v3426
    %3431 = vrot.lane.b32.xlu0 %v3430, 80
    %v3432 = vpop.permute.xlu0 %3431
    %vm3433 = vcmask 786048
    %3434 = vst.msk [vmem:[#allocation0] sm:$0xff] %vm3433, %v3432
    %s3435 = scalar_lea.vmem [#allocation1], 21
    %v3436 = vld [vmem:[%s3435] sm:$0x1]
    %s3437 = scalar_lea.vmem [#allocation1], 84
    %v3438 = vld [vmem:[%s3437] sm:$0x2]
    %vm3439 = vcmask 1041409
    %v3440 = vsel %vm3439, %v3438, %v3436
    %s3441 = scalar_lea.vmem [#allocation1], 147
    %v3442 = vld [vmem:[%s3441] sm:$0x4]
    %vm3443 = vcmask 1042434
    %v3444 = vsel %vm3443, %v3442, %v3440
    %s3445 = scalar_lea.vmem [#allocation1], 210
    %v3446 = vld [vmem:[%s3445] sm:$0x8]
    %vm3447 = vcmask 1043459
    %v3448 = vsel %vm3447, %v3446, %v3444
    %s3449 = scalar_lea.vmem [#allocation1], 273
    %v3450 = vld [vmem:[%s3449] sm:$0x10]
    %vm3451 = vcmask 1044484
    %v3452 = vsel %vm3451, %v3450, %v3448
    %s3453 = scalar_lea.vmem [#allocation1], 336
    %v3454 = vld [vmem:[%s3453] sm:$0x20]
    %vm3455 = vcmask 1045509
    %v3456 = vsel %vm3455, %v3454, %v3452
    %s3457 = scalar_lea.vmem [#allocation1], 399
    %v3458 = vld [vmem:[%s3457] sm:$0x40]
    %vm3459 = vcmask 1046534
    %v3460 = vsel %vm3459, %v3458, %v3456
    %s3461 = scalar_lea.vmem [#allocation1], 462
    %v3462 = vld [vmem:[%s3461] sm:$0x80]
    %vm3463 = vcmask 1047559
    %v3464 = vsel %vm3463, %v3462, %v3460
    %3465 = vrot.lane.b32.xlu0 %v3464, 80
    %v3466 = vpop.permute.xlu0 %3465
    %vm3467 = vcmask 786048
    %s3468 = scalar_lea.vmem [#allocation0], 32
    %3469 = vst.msk [vmem:[%s3468] sm:$0xff] %vm3467, %v3466
    %s3470 = scalar_lea.vmem [#allocation1], 37
    %v3471 = vld [vmem:[%s3470] sm:$0x1]
    %s3472 = scalar_lea.vmem [#allocation1], 100
    %v3473 = vld [vmem:[%s3472] sm:$0x2]
    %vm3474 = vcmask 1041409
    %v3475 = vsel %vm3474, %v3473, %v3471
    %s3476 = scalar_lea.vmem [#allocation1], 163
    %v3477 = vld [vmem:[%s3476] sm:$0x4]
    %vm3478 = vcmask 1042434
    %v3479 = vsel %vm3478, %v3477, %v3475
    %s3480 = scalar_lea.vmem [#allocation1], 226
    %v3481 = vld [vmem:[%s3480] sm:$0x8]
    %vm3482 = vcmask 1043459
    %v3483 = vsel %vm3482, %v3481, %v3479
    %s3484 = scalar_lea.vmem [#allocation1], 289
    %v3485 = vld [vmem:[%s3484] sm:$0x10]
    %vm3486 = vcmask 1044484
    %v3487 = vsel %vm3486, %v3485, %v3483
    %s3488 = scalar_lea.vmem [#allocation1], 352
    %v3489 = vld [vmem:[%s3488] sm:$0x20]
    %vm3490 = vcmask 1045509
    %v3491 = vsel %vm3490, %v3489, %v3487
    %s3492 = scalar_lea.vmem [#allocation1], 415
    %v3493 = vld [vmem:[%s3492] sm:$0x40]
    %vm3494 = vcmask 1046534
    %v3495 = vsel %vm3494, %v3493, %v3491
    %s3496 = scalar_lea.vmem [#allocation1], 478
    %v3497 = vld [vmem:[%s3496] sm:$0x80]
    %vm3498 = vcmask 1047559
    %v3499 = vsel %vm3498, %v3497, %v3495
    %3500 = vrot.lane.b32.xlu0 %v3499, 80
    %v3501 = vpop.permute.xlu0 %3500
    %vm3502 = vcmask 786048
    %s3503 = scalar_lea.vmem [#allocation0], 64
    %3504 = vst.msk [vmem:[%s3503] sm:$0xff] %vm3502, %v3501
    %s3505 = scalar_lea.vmem [#allocation1], 53
    %v3506 = vld [vmem:[%s3505] sm:$0x1]
    %s3507 = scalar_lea.vmem [#allocation1], 116
    %v3508 = vld [vmem:[%s3507] sm:$0x2]
    %vm3509 = vcmask 1041409
    %v3510 = vsel %vm3509, %v3508, %v3506
    %s3511 = scalar_lea.vmem [#allocation1], 179
    %v3512 = vld [vmem:[%s3511] sm:$0x4]
    %vm3513 = vcmask 1042434
    %v3514 = vsel %vm3513, %v3512, %v3510
    %s3515 = scalar_lea.vmem [#allocation1], 242
    %v3516 = vld [vmem:[%s3515] sm:$0x8]
    %vm3517 = vcmask 1043459
    %v3518 = vsel %vm3517, %v3516, %v3514
    %s3519 = scalar_lea.vmem [#allocation1], 305
    %v3520 = vld [vmem:[%s3519] sm:$0x10]
    %vm3521 = vcmask 1044484
    %v3522 = vsel %vm3521, %v3520, %v3518
    %s3523 = scalar_lea.vmem [#allocation1], 368
    %v3524 = vld [vmem:[%s3523] sm:$0x20]
    %vm3525 = vcmask 1045509
    %v3526 = vsel %vm3525, %v3524, %v3522
    %s3527 = scalar_lea.vmem [#allocation1], 431
    %v3528 = vld [vmem:[%s3527] sm:$0x40]
    %vm3529 = vcmask 1046534
    %v3530 = vsel %vm3529, %v3528, %v3526
    %s3531 = scalar_lea.vmem [#allocation1], 494
    %v3532 = vld [vmem:[%s3531] sm:$0x80]
    %vm3533 = vcmask 1047559
    %v3534 = vsel %vm3533, %v3532, %v3530
    %3535 = vrot.lane.b32.xlu0 %v3534, 80
    %v3536 = vpop.permute.xlu0 %3535
    %vm3537 = vcmask 786048
    %s3538 = scalar_lea.vmem [#allocation0], 96
    %3539 = vst.msk [vmem:[%s3538] sm:$0xff] %vm3537, %v3536
    %s3540 = scalar_lea.vmem [#allocation1], 517
    %v3541 = vld [vmem:[%s3540] sm:$0x1]
    %s3542 = scalar_lea.vmem [#allocation1], 580
    %v3543 = vld [vmem:[%s3542] sm:$0x2]
    %vm3544 = vcmask 1041409
    %v3545 = vsel %vm3544, %v3543, %v3541
    %s3546 = scalar_lea.vmem [#allocation1], 643
    %v3547 = vld [vmem:[%s3546] sm:$0x4]
    %vm3548 = vcmask 1042434
    %v3549 = vsel %vm3548, %v3547, %v3545
    %s3550 = scalar_lea.vmem [#allocation1], 706
    %v3551 = vld [vmem:[%s3550] sm:$0x8]
    %vm3552 = vcmask 1043459
    %v3553 = vsel %vm3552, %v3551, %v3549
    %s3554 = scalar_lea.vmem [#allocation1], 769
    %v3555 = vld [vmem:[%s3554] sm:$0x10]
    %vm3556 = vcmask 1044484
    %v3557 = vsel %vm3556, %v3555, %v3553
    %s3558 = scalar_lea.vmem [#allocation1], 832
    %v3559 = vld [vmem:[%s3558] sm:$0x20]
    %vm3560 = vcmask 1045509
    %v3561 = vsel %vm3560, %v3559, %v3557
    %s3562 = scalar_lea.vmem [#allocation1], 895
    %v3563 = vld [vmem:[%s3562] sm:$0x40]
    %vm3564 = vcmask 1046534
    %v3565 = vsel %vm3564, %v3563, %v3561
    %s3566 = scalar_lea.vmem [#allocation1], 958
    %v3567 = vld [vmem:[%s3566] sm:$0x80]
    %vm3568 = vcmask 1047559
    %v3569 = vsel %vm3568, %v3567, %v3565
    %3570 = vrot.lane.b32.xlu0 %v3569, 80
    %v3571 = vpop.permute.xlu0 %3570
    %vm3572 = vcmask 786048
    %s3573 = scalar_lea.vmem [#allocation0], 8
    %3574 = vst.msk [vmem:[%s3573] sm:$0xff] %vm3572, %v3571
    %s3575 = scalar_lea.vmem [#allocation1], 533
    %v3576 = vld [vmem:[%s3575] sm:$0x1]
    %s3577 = scalar_lea.vmem [#allocation1], 596
    %v3578 = vld [vmem:[%s3577] sm:$0x2]
    %vm3579 = vcmask 1041409
    %v3580 = vsel %vm3579, %v3578, %v3576
    %s3581 = scalar_lea.vmem [#allocation1], 659
    %v3582 = vld [vmem:[%s3581] sm:$0x4]
    %vm3583 = vcmask 1042434
    %v3584 = vsel %vm3583, %v3582, %v3580
    %s3585 = scalar_lea.vmem [#allocation1], 722
    %v3586 = vld [vmem:[%s3585] sm:$0x8]
    %vm3587 = vcmask 1043459
    %v3588 = vsel %vm3587, %v3586, %v3584
    %s3589 = scalar_lea.vmem [#allocation1], 785
    %v3590 = vld [vmem:[%s3589] sm:$0x10]
    %vm3591 = vcmask 1044484
    %v3592 = vsel %vm3591, %v3590, %v3588
    %s3593 = scalar_lea.vmem [#allocation1], 848
    %v3594 = vld [vmem:[%s3593] sm:$0x20]
    %vm3595 = vcmask 1045509
    %v3596 = vsel %vm3595, %v3594, %v3592
    %s3597 = scalar_lea.vmem [#allocation1], 911
    %v3598 = vld [vmem:[%s3597] sm:$0x40]
    %vm3599 = vcmask 1046534
    %v3600 = vsel %vm3599, %v3598, %v3596
    %s3601 = scalar_lea.vmem [#allocation1], 974
    %v3602 = vld [vmem:[%s3601] sm:$0x80]
    %vm3603 = vcmask 1047559
    %v3604 = vsel %vm3603, %v3602, %v3600
    %3605 = vrot.lane.b32.xlu0 %v3604, 80
    %v3606 = vpop.permute.xlu0 %3605
    %vm3607 = vcmask 786048
    %s3608 = scalar_lea.vmem [#allocation0], 40
    %3609 = vst.msk [vmem:[%s3608] sm:$0xff] %vm3607, %v3606
    %s3610 = scalar_lea.vmem [#allocation1], 549
    %v3611 = vld [vmem:[%s3610] sm:$0x1]
    %s3612 = scalar_lea.vmem [#allocation1], 612
    %v3613 = vld [vmem:[%s3612] sm:$0x2]
    %vm3614 = vcmask 1041409
    %v3615 = vsel %vm3614, %v3613, %v3611
    %s3616 = scalar_lea.vmem [#allocation1], 675
    %v3617 = vld [vmem:[%s3616] sm:$0x4]
    %vm3618 = vcmask 1042434
    %v3619 = vsel %vm3618, %v3617, %v3615
    %s3620 = scalar_lea.vmem [#allocation1], 738
    %v3621 = vld [vmem:[%s3620] sm:$0x8]
    %vm3622 = vcmask 1043459
    %v3623 = vsel %vm3622, %v3621, %v3619
    %s3624 = scalar_lea.vmem [#allocation1], 801
    %v3625 = vld [vmem:[%s3624] sm:$0x10]
    %vm3626 = vcmask 1044484
    %v3627 = vsel %vm3626, %v3625, %v3623
    %s3628 = scalar_lea.vmem [#allocation1], 864
    %v3629 = vld [vmem:[%s3628] sm:$0x20]
    %vm3630 = vcmask 1045509
    %v3631 = vsel %vm3630, %v3629, %v3627
    %s3632 = scalar_lea.vmem [#allocation1], 927
    %v3633 = vld [vmem:[%s3632] sm:$0x40]
    %vm3634 = vcmask 1046534
    %v3635 = vsel %vm3634, %v3633, %v3631
    %s3636 = scalar_lea.vmem [#allocation1], 990
    %v3637 = vld [vmem:[%s3636] sm:$0x80]
    %vm3638 = vcmask 1047559
    %v3639 = vsel %vm3638, %v3637, %v3635
    %3640 = vrot.lane.b32.xlu0 %v3639, 80
    %v3641 = vpop.permute.xlu0 %3640
    %vm3642 = vcmask 786048
    %s3643 = scalar_lea.vmem [#allocation0], 72
    %3644 = vst.msk [vmem:[%s3643] sm:$0xff] %vm3642, %v3641
    %s3645 = scalar_lea.vmem [#allocation1], 565
    %v3646 = vld [vmem:[%s3645] sm:$0x1]
    %s3647 = scalar_lea.vmem [#allocation1], 628
    %v3648 = vld [vmem:[%s3647] sm:$0x2]
    %vm3649 = vcmask 1041409
    %v3650 = vsel %vm3649, %v3648, %v3646
    %s3651 = scalar_lea.vmem [#allocation1], 691
    %v3652 = vld [vmem:[%s3651] sm:$0x4]
    %vm3653 = vcmask 1042434
    %v3654 = vsel %vm3653, %v3652, %v3650
    %s3655 = scalar_lea.vmem [#allocation1], 754
    %v3656 = vld [vmem:[%s3655] sm:$0x8]
    %vm3657 = vcmask 1043459
    %v3658 = vsel %vm3657, %v3656, %v3654
    %s3659 = scalar_lea.vmem [#allocation1], 817
    %v3660 = vld [vmem:[%s3659] sm:$0x10]
    %vm3661 = vcmask 1044484
    %v3662 = vsel %vm3661, %v3660, %v3658
    %s3663 = scalar_lea.vmem [#allocation1], 880
    %v3664 = vld [vmem:[%s3663] sm:$0x20]
    %vm3665 = vcmask 1045509
    %v3666 = vsel %vm3665, %v3664, %v3662
    %s3667 = scalar_lea.vmem [#allocation1], 943
    %v3668 = vld [vmem:[%s3667] sm:$0x40]
    %vm3669 = vcmask 1046534
    %v3670 = vsel %vm3669, %v3668, %v3666
    %s3671 = scalar_lea.vmem [#allocation1], 1006
    %v3672 = vld [vmem:[%s3671] sm:$0x80]
    %vm3673 = vcmask 1047559
    %v3674 = vsel %vm3673, %v3672, %v3670
    %3675 = vrot.lane.b32.xlu0 %v3674, 80
    %v3676 = vpop.permute.xlu0 %3675
    %vm3677 = vcmask 786048
    %s3678 = scalar_lea.vmem [#allocation0], 104
    %3679 = vst.msk [vmem:[%s3678] sm:$0xff] %vm3677, %v3676
    %s3680 = scalar_lea.vmem [#allocation1], 13
    %v3681 = vld [vmem:[%s3680] sm:$0x1]
    %s3682 = scalar_lea.vmem [#allocation1], 76
    %v3683 = vld [vmem:[%s3682] sm:$0x2]
    %vm3684 = vcmask 1041409
    %v3685 = vsel %vm3684, %v3683, %v3681
    %s3686 = scalar_lea.vmem [#allocation1], 139
    %v3687 = vld [vmem:[%s3686] sm:$0x4]
    %vm3688 = vcmask 1042434
    %v3689 = vsel %vm3688, %v3687, %v3685
    %s3690 = scalar_lea.vmem [#allocation1], 202
    %v3691 = vld [vmem:[%s3690] sm:$0x8]
    %vm3692 = vcmask 1043459
    %v3693 = vsel %vm3692, %v3691, %v3689
    %s3694 = scalar_lea.vmem [#allocation1], 265
    %v3695 = vld [vmem:[%s3694] sm:$0x10]
    %vm3696 = vcmask 1044484
    %v3697 = vsel %vm3696, %v3695, %v3693
    %s3698 = scalar_lea.vmem [#allocation1], 328
    %v3699 = vld [vmem:[%s3698] sm:$0x20]
    %vm3700 = vcmask 1045509
    %v3701 = vsel %vm3700, %v3699, %v3697
    %s3702 = scalar_lea.vmem [#allocation1], 391
    %v3703 = vld [vmem:[%s3702] sm:$0x40]
    %vm3704 = vcmask 1046534
    %v3705 = vsel %vm3704, %v3703, %v3701
    %s3706 = scalar_lea.vmem [#allocation1], 454
    %v3707 = vld [vmem:[%s3706] sm:$0x80]
    %vm3708 = vcmask 1047559
    %v3709 = vsel %vm3708, %v3707, %v3705
    %3710 = vrot.lane.b32.xlu0 %v3709, 80
    %v3711 = vpop.permute.xlu0 %3710
    %vm3712 = vcmask 786048
    %s3713 = scalar_lea.vmem [#allocation0], 16
    %3714 = vst.msk [vmem:[%s3713] sm:$0xff] %vm3712, %v3711
    %s3715 = scalar_lea.vmem [#allocation1], 29
    %v3716 = vld [vmem:[%s3715] sm:$0x1]
    %s3717 = scalar_lea.vmem [#allocation1], 92
    %v3718 = vld [vmem:[%s3717] sm:$0x2]
    %vm3719 = vcmask 1041409
    %v3720 = vsel %vm3719, %v3718, %v3716
    %s3721 = scalar_lea.vmem [#allocation1], 155
    %v3722 = vld [vmem:[%s3721] sm:$0x4]
    %vm3723 = vcmask 1042434
    %v3724 = vsel %vm3723, %v3722, %v3720
    %s3725 = scalar_lea.vmem [#allocation1], 218
    %v3726 = vld [vmem:[%s3725] sm:$0x8]
    %vm3727 = vcmask 1043459
    %v3728 = vsel %vm3727, %v3726, %v3724
    %s3729 = scalar_lea.vmem [#allocation1], 281
    %v3730 = vld [vmem:[%s3729] sm:$0x10]
    %vm3731 = vcmask 1044484
    %v3732 = vsel %vm3731, %v3730, %v3728
    %s3733 = scalar_lea.vmem [#allocation1], 344
    %v3734 = vld [vmem:[%s3733] sm:$0x20]
    %vm3735 = vcmask 1045509
    %v3736 = vsel %vm3735, %v3734, %v3732
    %s3737 = scalar_lea.vmem [#allocation1], 407
    %v3738 = vld [vmem:[%s3737] sm:$0x40]
    %vm3739 = vcmask 1046534
    %v3740 = vsel %vm3739, %v3738, %v3736
    %s3741 = scalar_lea.vmem [#allocation1], 470
    %v3742 = vld [vmem:[%s3741] sm:$0x80]
    %vm3743 = vcmask 1047559
    %v3744 = vsel %vm3743, %v3742, %v3740
    %3745 = vrot.lane.b32.xlu0 %v3744, 80
    %v3746 = vpop.permute.xlu0 %3745
    %vm3747 = vcmask 786048
    %s3748 = scalar_lea.vmem [#allocation0], 48
    %3749 = vst.msk [vmem:[%s3748] sm:$0xff] %vm3747, %v3746
    %s3750 = scalar_lea.vmem [#allocation1], 45
    %v3751 = vld [vmem:[%s3750] sm:$0x1]
    %s3752 = scalar_lea.vmem [#allocation1], 108
    %v3753 = vld [vmem:[%s3752] sm:$0x2]
    %vm3754 = vcmask 1041409
    %v3755 = vsel %vm3754, %v3753, %v3751
    %s3756 = scalar_lea.vmem [#allocation1], 171
    %v3757 = vld [vmem:[%s3756] sm:$0x4]
    %vm3758 = vcmask 1042434
    %v3759 = vsel %vm3758, %v3757, %v3755
    %s3760 = scalar_lea.vmem [#allocation1], 234
    %v3761 = vld [vmem:[%s3760] sm:$0x8]
    %vm3762 = vcmask 1043459
    %v3763 = vsel %vm3762, %v3761, %v3759
    %s3764 = scalar_lea.vmem [#allocation1], 297
    %v3765 = vld [vmem:[%s3764] sm:$0x10]
    %vm3766 = vcmask 1044484
    %v3767 = vsel %vm3766, %v3765, %v3763
    %s3768 = scalar_lea.vmem [#allocation1], 360
    %v3769 = vld [vmem:[%s3768] sm:$0x20]
    %vm3770 = vcmask 1045509
    %v3771 = vsel %vm3770, %v3769, %v3767
    %s3772 = scalar_lea.vmem [#allocation1], 423
    %v3773 = vld [vmem:[%s3772] sm:$0x40]
    %vm3774 = vcmask 1046534
    %v3775 = vsel %vm3774, %v3773, %v3771
    %s3776 = scalar_lea.vmem [#allocation1], 486
    %v3777 = vld [vmem:[%s3776] sm:$0x80]
    %vm3778 = vcmask 1047559
    %v3779 = vsel %vm3778, %v3777, %v3775
    %3780 = vrot.lane.b32.xlu0 %v3779, 80
    %v3781 = vpop.permute.xlu0 %3780
    %vm3782 = vcmask 786048
    %s3783 = scalar_lea.vmem [#allocation0], 80
    %3784 = vst.msk [vmem:[%s3783] sm:$0xff] %vm3782, %v3781
    %s3785 = scalar_lea.vmem [#allocation1], 61
    %v3786 = vld [vmem:[%s3785] sm:$0x1]
    %s3787 = scalar_lea.vmem [#allocation1], 124
    %v3788 = vld [vmem:[%s3787] sm:$0x2]
    %vm3789 = vcmask 1041409
    %v3790 = vsel %vm3789, %v3788, %v3786
    %s3791 = scalar_lea.vmem [#allocation1], 187
    %v3792 = vld [vmem:[%s3791] sm:$0x4]
    %vm3793 = vcmask 1042434
    %v3794 = vsel %vm3793, %v3792, %v3790
    %s3795 = scalar_lea.vmem [#allocation1], 250
    %v3796 = vld [vmem:[%s3795] sm:$0x8]
    %vm3797 = vcmask 1043459
    %v3798 = vsel %vm3797, %v3796, %v3794
    %s3799 = scalar_lea.vmem [#allocation1], 313
    %v3800 = vld [vmem:[%s3799] sm:$0x10]
    %vm3801 = vcmask 1044484
    %v3802 = vsel %vm3801, %v3800, %v3798
    %s3803 = scalar_lea.vmem [#allocation1], 376
    %v3804 = vld [vmem:[%s3803] sm:$0x20]
    %vm3805 = vcmask 1045509
    %v3806 = vsel %vm3805, %v3804, %v3802
    %s3807 = scalar_lea.vmem [#allocation1], 439
    %v3808 = vld [vmem:[%s3807] sm:$0x40]
    %vm3809 = vcmask 1046534
    %v3810 = vsel %vm3809, %v3808, %v3806
    %s3811 = scalar_lea.vmem [#allocation1], 502
    %v3812 = vld [vmem:[%s3811] sm:$0x80]
    %vm3813 = vcmask 1047559
    %v3814 = vsel %vm3813, %v3812, %v3810
    %3815 = vrot.lane.b32.xlu0 %v3814, 80
    %v3816 = vpop.permute.xlu0 %3815
    %vm3817 = vcmask 786048
    %s3818 = scalar_lea.vmem [#allocation0], 112
    %3819 = vst.msk [vmem:[%s3818] sm:$0xff] %vm3817, %v3816
    %s3820 = scalar_lea.vmem [#allocation1], 525
    %v3821 = vld [vmem:[%s3820] sm:$0x1]
    %s3822 = scalar_lea.vmem [#allocation1], 588
    %v3823 = vld [vmem:[%s3822] sm:$0x2]
    %vm3824 = vcmask 1041409
    %v3825 = vsel %vm3824, %v3823, %v3821
    %s3826 = scalar_lea.vmem [#allocation1], 651
    %v3827 = vld [vmem:[%s3826] sm:$0x4]
    %vm3828 = vcmask 1042434
    %v3829 = vsel %vm3828, %v3827, %v3825
    %s3830 = scalar_lea.vmem [#allocation1], 714
    %v3831 = vld [vmem:[%s3830] sm:$0x8]
    %vm3832 = vcmask 1043459
    %v3833 = vsel %vm3832, %v3831, %v3829
    %s3834 = scalar_lea.vmem [#allocation1], 777
    %v3835 = vld [vmem:[%s3834] sm:$0x10]
    %vm3836 = vcmask 1044484
    %v3837 = vsel %vm3836, %v3835, %v3833
    %s3838 = scalar_lea.vmem [#allocation1], 840
    %v3839 = vld [vmem:[%s3838] sm:$0x20]
    %vm3840 = vcmask 1045509
    %v3841 = vsel %vm3840, %v3839, %v3837
    %s3842 = scalar_lea.vmem [#allocation1], 903
    %v3843 = vld [vmem:[%s3842] sm:$0x40]
    %vm3844 = vcmask 1046534
    %v3845 = vsel %vm3844, %v3843, %v3841
    %s3846 = scalar_lea.vmem [#allocation1], 966
    %v3847 = vld [vmem:[%s3846] sm:$0x80]
    %vm3848 = vcmask 1047559
    %v3849 = vsel %vm3848, %v3847, %v3845
    %3850 = vrot.lane.b32.xlu0 %v3849, 80
    %v3851 = vpop.permute.xlu0 %3850
    %vm3852 = vcmask 786048
    %s3853 = scalar_lea.vmem [#allocation0], 24
    %3854 = vst.msk [vmem:[%s3853] sm:$0xff] %vm3852, %v3851
    %s3855 = scalar_lea.vmem [#allocation1], 541
    %v3856 = vld [vmem:[%s3855] sm:$0x1]
    %s3857 = scalar_lea.vmem [#allocation1], 604
    %v3858 = vld [vmem:[%s3857] sm:$0x2]
    %vm3859 = vcmask 1041409
    %v3860 = vsel %vm3859, %v3858, %v3856
    %s3861 = scalar_lea.vmem [#allocation1], 667
    %v3862 = vld [vmem:[%s3861] sm:$0x4]
    %vm3863 = vcmask 1042434
    %v3864 = vsel %vm3863, %v3862, %v3860
    %s3865 = scalar_lea.vmem [#allocation1], 730
    %v3866 = vld [vmem:[%s3865] sm:$0x8]
    %vm3867 = vcmask 1043459
    %v3868 = vsel %vm3867, %v3866, %v3864
    %s3869 = scalar_lea.vmem [#allocation1], 793
    %v3870 = vld [vmem:[%s3869] sm:$0x10]
    %vm3871 = vcmask 1044484
    %v3872 = vsel %vm3871, %v3870, %v3868
    %s3873 = scalar_lea.vmem [#allocation1], 856
    %v3874 = vld [vmem:[%s3873] sm:$0x20]
    %vm3875 = vcmask 1045509
    %v3876 = vsel %vm3875, %v3874, %v3872
    %s3877 = scalar_lea.vmem [#allocation1], 919
    %v3878 = vld [vmem:[%s3877] sm:$0x40]
    %vm3879 = vcmask 1046534
    %v3880 = vsel %vm3879, %v3878, %v3876
    %s3881 = scalar_lea.vmem [#allocation1], 982
    %v3882 = vld [vmem:[%s3881] sm:$0x80]
    %vm3883 = vcmask 1047559
    %v3884 = vsel %vm3883, %v3882, %v3880
    %3885 = vrot.lane.b32.xlu0 %v3884, 80
    %v3886 = vpop.permute.xlu0 %3885
    %vm3887 = vcmask 786048
    %s3888 = scalar_lea.vmem [#allocation0], 56
    %3889 = vst.msk [vmem:[%s3888] sm:$0xff] %vm3887, %v3886
    %s3890 = scalar_lea.vmem [#allocation1], 557
    %v3891 = vld [vmem:[%s3890] sm:$0x1]
    %s3892 = scalar_lea.vmem [#allocation1], 620
    %v3893 = vld [vmem:[%s3892] sm:$0x2]
    %vm3894 = vcmask 1041409
    %v3895 = vsel %vm3894, %v3893, %v3891
    %s3896 = scalar_lea.vmem [#allocation1], 683
    %v3897 = vld [vmem:[%s3896] sm:$0x4]
    %vm3898 = vcmask 1042434
    %v3899 = vsel %vm3898, %v3897, %v3895
    %s3900 = scalar_lea.vmem [#allocation1], 746
    %v3901 = vld [vmem:[%s3900] sm:$0x8]
    %vm3902 = vcmask 1043459
    %v3903 = vsel %vm3902, %v3901, %v3899
    %s3904 = scalar_lea.vmem [#allocation1], 809
    %v3905 = vld [vmem:[%s3904] sm:$0x10]
    %vm3906 = vcmask 1044484
    %v3907 = vsel %vm3906, %v3905, %v3903
    %s3908 = scalar_lea.vmem [#allocation1], 872
    %v3909 = vld [vmem:[%s3908] sm:$0x20]
    %vm3910 = vcmask 1045509
    %v3911 = vsel %vm3910, %v3909, %v3907
    %s3912 = scalar_lea.vmem [#allocation1], 935
    %v3913 = vld [vmem:[%s3912] sm:$0x40]
    %vm3914 = vcmask 1046534
    %v3915 = vsel %vm3914, %v3913, %v3911
    %s3916 = scalar_lea.vmem [#allocation1], 998
    %v3917 = vld [vmem:[%s3916] sm:$0x80]
    %vm3918 = vcmask 1047559
    %v3919 = vsel %vm3918, %v3917, %v3915
    %3920 = vrot.lane.b32.xlu0 %v3919, 80
    %v3921 = vpop.permute.xlu0 %3920
    %vm3922 = vcmask 786048
    %s3923 = scalar_lea.vmem [#allocation0], 88
    %3924 = vst.msk [vmem:[%s3923] sm:$0xff] %vm3922, %v3921
    %s3925 = scalar_lea.vmem [#allocation1], 573
    %v3926 = vld [vmem:[%s3925] sm:$0x1]
    %s3927 = scalar_lea.vmem [#allocation1], 636
    %v3928 = vld [vmem:[%s3927] sm:$0x2]
    %vm3929 = vcmask 1041409
    %v3930 = vsel %vm3929, %v3928, %v3926
    %s3931 = scalar_lea.vmem [#allocation1], 699
    %v3932 = vld [vmem:[%s3931] sm:$0x4]
    %vm3933 = vcmask 1042434
    %v3934 = vsel %vm3933, %v3932, %v3930
    %s3935 = scalar_lea.vmem [#allocation1], 762
    %v3936 = vld [vmem:[%s3935] sm:$0x8]
    %vm3937 = vcmask 1043459
    %v3938 = vsel %vm3937, %v3936, %v3934
    %s3939 = scalar_lea.vmem [#allocation1], 825
    %v3940 = vld [vmem:[%s3939] sm:$0x10]
    %vm3941 = vcmask 1044484
    %v3942 = vsel %vm3941, %v3940, %v3938
    %s3943 = scalar_lea.vmem [#allocation1], 888
    %v3944 = vld [vmem:[%s3943] sm:$0x20]
    %vm3945 = vcmask 1045509
    %v3946 = vsel %vm3945, %v3944, %v3942
    %s3947 = scalar_lea.vmem [#allocation1], 951
    %v3948 = vld [vmem:[%s3947] sm:$0x40]
    %vm3949 = vcmask 1046534
    %v3950 = vsel %vm3949, %v3948, %v3946
    %s3951 = scalar_lea.vmem [#allocation1], 1014
    %v3952 = vld [vmem:[%s3951] sm:$0x80]
    %vm3953 = vcmask 1047559
    %v3954 = vsel %vm3953, %v3952, %v3950
    %3955 = vrot.lane.b32.xlu0 %v3954, 80
    %v3956 = vpop.permute.xlu0 %3955
    %vm3957 = vcmask 786048
    %s3958 = scalar_lea.vmem [#allocation0], 120
    %3959 = vst.msk [vmem:[%s3958] sm:$0xff] %vm3957, %v3956
    %s3960 = scalar_lea.vmem [#allocation1], 4
    %v3961 = vld [vmem:[%s3960] sm:$0x1]
    %s3962 = scalar_lea.vmem [#allocation1], 67
    %v3963 = vld [vmem:[%s3962] sm:$0x2]
    %vm3964 = vcmask 1041409
    %v3965 = vsel %vm3964, %v3963, %v3961
    %s3966 = scalar_lea.vmem [#allocation1], 130
    %v3967 = vld [vmem:[%s3966] sm:$0x4]
    %vm3968 = vcmask 1042434
    %v3969 = vsel %vm3968, %v3967, %v3965
    %s3970 = scalar_lea.vmem [#allocation1], 193
    %v3971 = vld [vmem:[%s3970] sm:$0x8]
    %vm3972 = vcmask 1043459
    %v3973 = vsel %vm3972, %v3971, %v3969
    %s3974 = scalar_lea.vmem [#allocation1], 256
    %v3975 = vld [vmem:[%s3974] sm:$0x10]
    %vm3976 = vcmask 1044484
    %v3977 = vsel %vm3976, %v3975, %v3973
    %s3978 = scalar_lea.vmem [#allocation1], 319
    %v3979 = vld [vmem:[%s3978] sm:$0x20]
    %vm3980 = vcmask 1045509
    %v3981 = vsel %vm3980, %v3979, %v3977
    %s3982 = scalar_lea.vmem [#allocation1], 382
    %v3983 = vld [vmem:[%s3982] sm:$0x40]
    %vm3984 = vcmask 1046534
    %v3985 = vsel %vm3984, %v3983, %v3981
    %s3986 = scalar_lea.vmem [#allocation1], 445
    %v3987 = vld [vmem:[%s3986] sm:$0x80]
    %vm3988 = vcmask 1047559
    %v3989 = vsel %vm3988, %v3987, %v3985
    %3990 = vrot.lane.b32.xlu0 %v3989, 64
    %v3991 = vpop.permute.xlu0 %3990
    %vm3992 = vcmask 654848
    %3993 = vst.msk [vmem:[#allocation0] sm:$0xff] %vm3992, %v3991
    %s3994 = scalar_lea.vmem [#allocation1], 20
    %v3995 = vld [vmem:[%s3994] sm:$0x1]
    %s3996 = scalar_lea.vmem [#allocation1], 83
    %v3997 = vld [vmem:[%s3996] sm:$0x2]
    %vm3998 = vcmask 1041409
    %v3999 = vsel %vm3998, %v3997, %v3995
    %s4000 = scalar_lea.vmem [#allocation1], 146
    %v4001 = vld [vmem:[%s4000] sm:$0x4]
    %vm4002 = vcmask 1042434
    %v4003 = vsel %vm4002, %v4001, %v3999
    %s4004 = scalar_lea.vmem [#allocation1], 209
    %v4005 = vld [vmem:[%s4004] sm:$0x8]
    %vm4006 = vcmask 1043459
    %v4007 = vsel %vm4006, %v4005, %v4003
    %s4008 = scalar_lea.vmem [#allocation1], 272
    %v4009 = vld [vmem:[%s4008] sm:$0x10]
    %vm4010 = vcmask 1044484
    %v4011 = vsel %vm4010, %v4009, %v4007
    %s4012 = scalar_lea.vmem [#allocation1], 335
    %v4013 = vld [vmem:[%s4012] sm:$0x20]
    %vm4014 = vcmask 1045509
    %v4015 = vsel %vm4014, %v4013, %v4011
    %s4016 = scalar_lea.vmem [#allocation1], 398
    %v4017 = vld [vmem:[%s4016] sm:$0x40]
    %vm4018 = vcmask 1046534
    %v4019 = vsel %vm4018, %v4017, %v4015
    %s4020 = scalar_lea.vmem [#allocation1], 461
    %v4021 = vld [vmem:[%s4020] sm:$0x80]
    %vm4022 = vcmask 1047559
    %v4023 = vsel %vm4022, %v4021, %v4019
    %4024 = vrot.lane.b32.xlu0 %v4023, 64
    %v4025 = vpop.permute.xlu0 %4024
    %vm4026 = vcmask 654848
    %s4027 = scalar_lea.vmem [#allocation0], 32
    %4028 = vst.msk [vmem:[%s4027] sm:$0xff] %vm4026, %v4025
    %s4029 = scalar_lea.vmem [#allocation1], 36
    %v4030 = vld [vmem:[%s4029] sm:$0x1]
    %s4031 = scalar_lea.vmem [#allocation1], 99
    %v4032 = vld [vmem:[%s4031] sm:$0x2]
    %vm4033 = vcmask 1041409
    %v4034 = vsel %vm4033, %v4032, %v4030
    %s4035 = scalar_lea.vmem [#allocation1], 162
    %v4036 = vld [vmem:[%s4035] sm:$0x4]
    %vm4037 = vcmask 1042434
    %v4038 = vsel %vm4037, %v4036, %v4034
    %s4039 = scalar_lea.vmem [#allocation1], 225
    %v4040 = vld [vmem:[%s4039] sm:$0x8]
    %vm4041 = vcmask 1043459
    %v4042 = vsel %vm4041, %v4040, %v4038
    %s4043 = scalar_lea.vmem [#allocation1], 288
    %v4044 = vld [vmem:[%s4043] sm:$0x10]
    %vm4045 = vcmask 1044484
    %v4046 = vsel %vm4045, %v4044, %v4042
    %s4047 = scalar_lea.vmem [#allocation1], 351
    %v4048 = vld [vmem:[%s4047] sm:$0x20]
    %vm4049 = vcmask 1045509
    %v4050 = vsel %vm4049, %v4048, %v4046
    %s4051 = scalar_lea.vmem [#allocation1], 414
    %v4052 = vld [vmem:[%s4051] sm:$0x40]
    %vm4053 = vcmask 1046534
    %v4054 = vsel %vm4053, %v4052, %v4050
    %s4055 = scalar_lea.vmem [#allocation1], 477
    %v4056 = vld [vmem:[%s4055] sm:$0x80]
    %vm4057 = vcmask 1047559
    %v4058 = vsel %vm4057, %v4056, %v4054
    %4059 = vrot.lane.b32.xlu0 %v4058, 64
    %v4060 = vpop.permute.xlu0 %4059
    %vm4061 = vcmask 654848
    %s4062 = scalar_lea.vmem [#allocation0], 64
    %4063 = vst.msk [vmem:[%s4062] sm:$0xff] %vm4061, %v4060
    %s4064 = scalar_lea.vmem [#allocation1], 52
    %v4065 = vld [vmem:[%s4064] sm:$0x1]
    %s4066 = scalar_lea.vmem [#allocation1], 115
    %v4067 = vld [vmem:[%s4066] sm:$0x2]
    %vm4068 = vcmask 1041409
    %v4069 = vsel %vm4068, %v4067, %v4065
    %s4070 = scalar_lea.vmem [#allocation1], 178
    %v4071 = vld [vmem:[%s4070] sm:$0x4]
    %vm4072 = vcmask 1042434
    %v4073 = vsel %vm4072, %v4071, %v4069
    %s4074 = scalar_lea.vmem [#allocation1], 241
    %v4075 = vld [vmem:[%s4074] sm:$0x8]
    %vm4076 = vcmask 1043459
    %v4077 = vsel %vm4076, %v4075, %v4073
    %s4078 = scalar_lea.vmem [#allocation1], 304
    %v4079 = vld [vmem:[%s4078] sm:$0x10]
    %vm4080 = vcmask 1044484
    %v4081 = vsel %vm4080, %v4079, %v4077
    %s4082 = scalar_lea.vmem [#allocation1], 367
    %v4083 = vld [vmem:[%s4082] sm:$0x20]
    %vm4084 = vcmask 1045509
    %v4085 = vsel %vm4084, %v4083, %v4081
    %s4086 = scalar_lea.vmem [#allocation1], 430
    %v4087 = vld [vmem:[%s4086] sm:$0x40]
    %vm4088 = vcmask 1046534
    %v4089 = vsel %vm4088, %v4087, %v4085
    %s4090 = scalar_lea.vmem [#allocation1], 493
    %v4091 = vld [vmem:[%s4090] sm:$0x80]
    %vm4092 = vcmask 1047559
    %v4093 = vsel %vm4092, %v4091, %v4089
    %4094 = vrot.lane.b32.xlu0 %v4093, 64
    %v4095 = vpop.permute.xlu0 %4094
    %vm4096 = vcmask 654848
    %s4097 = scalar_lea.vmem [#allocation0], 96
    %4098 = vst.msk [vmem:[%s4097] sm:$0xff] %vm4096, %v4095
    %s4099 = scalar_lea.vmem [#allocation1], 516
    %v4100 = vld [vmem:[%s4099] sm:$0x1]
    %s4101 = scalar_lea.vmem [#allocation1], 579
    %v4102 = vld [vmem:[%s4101] sm:$0x2]
    %vm4103 = vcmask 1041409
    %v4104 = vsel %vm4103, %v4102, %v4100
    %s4105 = scalar_lea.vmem [#allocation1], 642
    %v4106 = vld [vmem:[%s4105] sm:$0x4]
    %vm4107 = vcmask 1042434
    %v4108 = vsel %vm4107, %v4106, %v4104
    %s4109 = scalar_lea.vmem [#allocation1], 705
    %v4110 = vld [vmem:[%s4109] sm:$0x8]
    %vm4111 = vcmask 1043459
    %v4112 = vsel %vm4111, %v4110, %v4108
    %s4113 = scalar_lea.vmem [#allocation1], 768
    %v4114 = vld [vmem:[%s4113] sm:$0x10]
    %vm4115 = vcmask 1044484
    %v4116 = vsel %vm4115, %v4114, %v4112
    %s4117 = scalar_lea.vmem [#allocation1], 831
    %v4118 = vld [vmem:[%s4117] sm:$0x20]
    %vm4119 = vcmask 1045509
    %v4120 = vsel %vm4119, %v4118, %v4116
    %s4121 = scalar_lea.vmem [#allocation1], 894
    %v4122 = vld [vmem:[%s4121] sm:$0x40]
    %vm4123 = vcmask 1046534
    %v4124 = vsel %vm4123, %v4122, %v4120
    %s4125 = scalar_lea.vmem [#allocation1], 957
    %v4126 = vld [vmem:[%s4125] sm:$0x80]
    %vm4127 = vcmask 1047559
    %v4128 = vsel %vm4127, %v4126, %v4124
    %4129 = vrot.lane.b32.xlu0 %v4128, 64
    %v4130 = vpop.permute.xlu0 %4129
    %vm4131 = vcmask 654848
    %s4132 = scalar_lea.vmem [#allocation0], 8
    %4133 = vst.msk [vmem:[%s4132] sm:$0xff] %vm4131, %v4130
    %s4134 = scalar_lea.vmem [#allocation1], 532
    %v4135 = vld [vmem:[%s4134] sm:$0x1]
    %s4136 = scalar_lea.vmem [#allocation1], 595
    %v4137 = vld [vmem:[%s4136] sm:$0x2]
    %vm4138 = vcmask 1041409
    %v4139 = vsel %vm4138, %v4137, %v4135
    %s4140 = scalar_lea.vmem [#allocation1], 658
    %v4141 = vld [vmem:[%s4140] sm:$0x4]
    %vm4142 = vcmask 1042434
    %v4143 = vsel %vm4142, %v4141, %v4139
    %s4144 = scalar_lea.vmem [#allocation1], 721
    %v4145 = vld [vmem:[%s4144] sm:$0x8]
    %vm4146 = vcmask 1043459
    %v4147 = vsel %vm4146, %v4145, %v4143
    %s4148 = scalar_lea.vmem [#allocation1], 784
    %v4149 = vld [vmem:[%s4148] sm:$0x10]
    %vm4150 = vcmask 1044484
    %v4151 = vsel %vm4150, %v4149, %v4147
    %s4152 = scalar_lea.vmem [#allocation1], 847
    %v4153 = vld [vmem:[%s4152] sm:$0x20]
    %vm4154 = vcmask 1045509
    %v4155 = vsel %vm4154, %v4153, %v4151
    %s4156 = scalar_lea.vmem [#allocation1], 910
    %v4157 = vld [vmem:[%s4156] sm:$0x40]
    %vm4158 = vcmask 1046534
    %v4159 = vsel %vm4158, %v4157, %v4155
    %s4160 = scalar_lea.vmem [#allocation1], 973
    %v4161 = vld [vmem:[%s4160] sm:$0x80]
    %vm4162 = vcmask 1047559
    %v4163 = vsel %vm4162, %v4161, %v4159
    %4164 = vrot.lane.b32.xlu0 %v4163, 64
    %v4165 = vpop.permute.xlu0 %4164
    %vm4166 = vcmask 654848
    %s4167 = scalar_lea.vmem [#allocation0], 40
    %4168 = vst.msk [vmem:[%s4167] sm:$0xff] %vm4166, %v4165
    %s4169 = scalar_lea.vmem [#allocation1], 548
    %v4170 = vld [vmem:[%s4169] sm:$0x1]
    %s4171 = scalar_lea.vmem [#allocation1], 611
    %v4172 = vld [vmem:[%s4171] sm:$0x2]
    %vm4173 = vcmask 1041409
    %v4174 = vsel %vm4173, %v4172, %v4170
    %s4175 = scalar_lea.vmem [#allocation1], 674
    %v4176 = vld [vmem:[%s4175] sm:$0x4]
    %vm4177 = vcmask 1042434
    %v4178 = vsel %vm4177, %v4176, %v4174
    %s4179 = scalar_lea.vmem [#allocation1], 737
    %v4180 = vld [vmem:[%s4179] sm:$0x8]
    %vm4181 = vcmask 1043459
    %v4182 = vsel %vm4181, %v4180, %v4178
    %s4183 = scalar_lea.vmem [#allocation1], 800
    %v4184 = vld [vmem:[%s4183] sm:$0x10]
    %vm4185 = vcmask 1044484
    %v4186 = vsel %vm4185, %v4184, %v4182
    %s4187 = scalar_lea.vmem [#allocation1], 863
    %v4188 = vld [vmem:[%s4187] sm:$0x20]
    %vm4189 = vcmask 1045509
    %v4190 = vsel %vm4189, %v4188, %v4186
    %s4191 = scalar_lea.vmem [#allocation1], 926
    %v4192 = vld [vmem:[%s4191] sm:$0x40]
    %vm4193 = vcmask 1046534
    %v4194 = vsel %vm4193, %v4192, %v4190
    %s4195 = scalar_lea.vmem [#allocation1], 989
    %v4196 = vld [vmem:[%s4195] sm:$0x80]
    %vm4197 = vcmask 1047559
    %v4198 = vsel %vm4197, %v4196, %v4194
    %4199 = vrot.lane.b32.xlu0 %v4198, 64
    %v4200 = vpop.permute.xlu0 %4199
    %vm4201 = vcmask 654848
    %s4202 = scalar_lea.vmem [#allocation0], 72
    %4203 = vst.msk [vmem:[%s4202] sm:$0xff] %vm4201, %v4200
    %s4204 = scalar_lea.vmem [#allocation1], 564
    %v4205 = vld [vmem:[%s4204] sm:$0x1]
    %s4206 = scalar_lea.vmem [#allocation1], 627
    %v4207 = vld [vmem:[%s4206] sm:$0x2]
    %vm4208 = vcmask 1041409
    %v4209 = vsel %vm4208, %v4207, %v4205
    %s4210 = scalar_lea.vmem [#allocation1], 690
    %v4211 = vld [vmem:[%s4210] sm:$0x4]
    %vm4212 = vcmask 1042434
    %v4213 = vsel %vm4212, %v4211, %v4209
    %s4214 = scalar_lea.vmem [#allocation1], 753
    %v4215 = vld [vmem:[%s4214] sm:$0x8]
    %vm4216 = vcmask 1043459
    %v4217 = vsel %vm4216, %v4215, %v4213
    %s4218 = scalar_lea.vmem [#allocation1], 816
    %v4219 = vld [vmem:[%s4218] sm:$0x10]
    %vm4220 = vcmask 1044484
    %v4221 = vsel %vm4220, %v4219, %v4217
    %s4222 = scalar_lea.vmem [#allocation1], 879
    %v4223 = vld [vmem:[%s4222] sm:$0x20]
    %vm4224 = vcmask 1045509
    %v4225 = vsel %vm4224, %v4223, %v4221
    %s4226 = scalar_lea.vmem [#allocation1], 942
    %v4227 = vld [vmem:[%s4226] sm:$0x40]
    %vm4228 = vcmask 1046534
    %v4229 = vsel %vm4228, %v4227, %v4225
    %s4230 = scalar_lea.vmem [#allocation1], 1005
    %v4231 = vld [vmem:[%s4230] sm:$0x80]
    %vm4232 = vcmask 1047559
    %v4233 = vsel %vm4232, %v4231, %v4229
    %4234 = vrot.lane.b32.xlu0 %v4233, 64
    %v4235 = vpop.permute.xlu0 %4234
    %vm4236 = vcmask 654848
    %s4237 = scalar_lea.vmem [#allocation0], 104
    %4238 = vst.msk [vmem:[%s4237] sm:$0xff] %vm4236, %v4235
    %s4239 = scalar_lea.vmem [#allocation1], 12
    %v4240 = vld [vmem:[%s4239] sm:$0x1]
    %s4241 = scalar_lea.vmem [#allocation1], 75
    %v4242 = vld [vmem:[%s4241] sm:$0x2]
    %vm4243 = vcmask 1041409
    %v4244 = vsel %vm4243, %v4242, %v4240
    %s4245 = scalar_lea.vmem [#allocation1], 138
    %v4246 = vld [vmem:[%s4245] sm:$0x4]
    %vm4247 = vcmask 1042434
    %v4248 = vsel %vm4247, %v4246, %v4244
    %s4249 = scalar_lea.vmem [#allocation1], 201
    %v4250 = vld [vmem:[%s4249] sm:$0x8]
    %vm4251 = vcmask 1043459
    %v4252 = vsel %vm4251, %v4250, %v4248
    %s4253 = scalar_lea.vmem [#allocation1], 264
    %v4254 = vld [vmem:[%s4253] sm:$0x10]
    %vm4255 = vcmask 1044484
    %v4256 = vsel %vm4255, %v4254, %v4252
    %s4257 = scalar_lea.vmem [#allocation1], 327
    %v4258 = vld [vmem:[%s4257] sm:$0x20]
    %vm4259 = vcmask 1045509
    %v4260 = vsel %vm4259, %v4258, %v4256
    %s4261 = scalar_lea.vmem [#allocation1], 390
    %v4262 = vld [vmem:[%s4261] sm:$0x40]
    %vm4263 = vcmask 1046534
    %v4264 = vsel %vm4263, %v4262, %v4260
    %s4265 = scalar_lea.vmem [#allocation1], 453
    %v4266 = vld [vmem:[%s4265] sm:$0x80]
    %vm4267 = vcmask 1047559
    %v4268 = vsel %vm4267, %v4266, %v4264
    %4269 = vrot.lane.b32.xlu0 %v4268, 64
    %v4270 = vpop.permute.xlu0 %4269
    %vm4271 = vcmask 654848
    %s4272 = scalar_lea.vmem [#allocation0], 16
    %4273 = vst.msk [vmem:[%s4272] sm:$0xff] %vm4271, %v4270
    %s4274 = scalar_lea.vmem [#allocation1], 28
    %v4275 = vld [vmem:[%s4274] sm:$0x1]
    %s4276 = scalar_lea.vmem [#allocation1], 91
    %v4277 = vld [vmem:[%s4276] sm:$0x2]
    %vm4278 = vcmask 1041409
    %v4279 = vsel %vm4278, %v4277, %v4275
    %s4280 = scalar_lea.vmem [#allocation1], 154
    %v4281 = vld [vmem:[%s4280] sm:$0x4]
    %vm4282 = vcmask 1042434
    %v4283 = vsel %vm4282, %v4281, %v4279
    %s4284 = scalar_lea.vmem [#allocation1], 217
    %v4285 = vld [vmem:[%s4284] sm:$0x8]
    %vm4286 = vcmask 1043459
    %v4287 = vsel %vm4286, %v4285, %v4283
    %s4288 = scalar_lea.vmem [#allocation1], 280
    %v4289 = vld [vmem:[%s4288] sm:$0x10]
    %vm4290 = vcmask 1044484
    %v4291 = vsel %vm4290, %v4289, %v4287
    %s4292 = scalar_lea.vmem [#allocation1], 343
    %v4293 = vld [vmem:[%s4292] sm:$0x20]
    %vm4294 = vcmask 1045509
    %v4295 = vsel %vm4294, %v4293, %v4291
    %s4296 = scalar_lea.vmem [#allocation1], 406
    %v4297 = vld [vmem:[%s4296] sm:$0x40]
    %vm4298 = vcmask 1046534
    %v4299 = vsel %vm4298, %v4297, %v4295
    %s4300 = scalar_lea.vmem [#allocation1], 469
    %v4301 = vld [vmem:[%s4300] sm:$0x80]
    %vm4302 = vcmask 1047559
    %v4303 = vsel %vm4302, %v4301, %v4299
    %4304 = vrot.lane.b32.xlu0 %v4303, 64
    %v4305 = vpop.permute.xlu0 %4304
    %vm4306 = vcmask 654848
    %s4307 = scalar_lea.vmem [#allocation0], 48
    %4308 = vst.msk [vmem:[%s4307] sm:$0xff] %vm4306, %v4305
    %s4309 = scalar_lea.vmem [#allocation1], 44
    %v4310 = vld [vmem:[%s4309] sm:$0x1]
    %s4311 = scalar_lea.vmem [#allocation1], 107
    %v4312 = vld [vmem:[%s4311] sm:$0x2]
    %vm4313 = vcmask 1041409
    %v4314 = vsel %vm4313, %v4312, %v4310
    %s4315 = scalar_lea.vmem [#allocation1], 170
    %v4316 = vld [vmem:[%s4315] sm:$0x4]
    %vm4317 = vcmask 1042434
    %v4318 = vsel %vm4317, %v4316, %v4314
    %s4319 = scalar_lea.vmem [#allocation1], 233
    %v4320 = vld [vmem:[%s4319] sm:$0x8]
    %vm4321 = vcmask 1043459
    %v4322 = vsel %vm4321, %v4320, %v4318
    %s4323 = scalar_lea.vmem [#allocation1], 296
    %v4324 = vld [vmem:[%s4323] sm:$0x10]
    %vm4325 = vcmask 1044484
    %v4326 = vsel %vm4325, %v4324, %v4322
    %s4327 = scalar_lea.vmem [#allocation1], 359
    %v4328 = vld [vmem:[%s4327] sm:$0x20]
    %vm4329 = vcmask 1045509
    %v4330 = vsel %vm4329, %v4328, %v4326
    %s4331 = scalar_lea.vmem [#allocation1], 422
    %v4332 = vld [vmem:[%s4331] sm:$0x40]
    %vm4333 = vcmask 1046534
    %v4334 = vsel %vm4333, %v4332, %v4330
    %s4335 = scalar_lea.vmem [#allocation1], 485
    %v4336 = vld [vmem:[%s4335] sm:$0x80]
    %vm4337 = vcmask 1047559
    %v4338 = vsel %vm4337, %v4336, %v4334
    %4339 = vrot.lane.b32.xlu0 %v4338, 64
    %v4340 = vpop.permute.xlu0 %4339
    %vm4341 = vcmask 654848
    %s4342 = scalar_lea.vmem [#allocation0], 80
    %4343 = vst.msk [vmem:[%s4342] sm:$0xff] %vm4341, %v4340
    %s4344 = scalar_lea.vmem [#allocation1], 60
    %v4345 = vld [vmem:[%s4344] sm:$0x1]
    %s4346 = scalar_lea.vmem [#allocation1], 123
    %v4347 = vld [vmem:[%s4346] sm:$0x2]
    %vm4348 = vcmask 1041409
    %v4349 = vsel %vm4348, %v4347, %v4345
    %s4350 = scalar_lea.vmem [#allocation1], 186
    %v4351 = vld [vmem:[%s4350] sm:$0x4]
    %vm4352 = vcmask 1042434
    %v4353 = vsel %vm4352, %v4351, %v4349
    %s4354 = scalar_lea.vmem [#allocation1], 249
    %v4355 = vld [vmem:[%s4354] sm:$0x8]
    %vm4356 = vcmask 1043459
    %v4357 = vsel %vm4356, %v4355, %v4353
    %s4358 = scalar_lea.vmem [#allocation1], 312
    %v4359 = vld [vmem:[%s4358] sm:$0x10]
    %vm4360 = vcmask 1044484
    %v4361 = vsel %vm4360, %v4359, %v4357
    %s4362 = scalar_lea.vmem [#allocation1], 375
    %v4363 = vld [vmem:[%s4362] sm:$0x20]
    %vm4364 = vcmask 1045509
    %v4365 = vsel %vm4364, %v4363, %v4361
    %s4366 = scalar_lea.vmem [#allocation1], 438
    %v4367 = vld [vmem:[%s4366] sm:$0x40]
    %vm4368 = vcmask 1046534
    %v4369 = vsel %vm4368, %v4367, %v4365
    %s4370 = scalar_lea.vmem [#allocation1], 501
    %v4371 = vld [vmem:[%s4370] sm:$0x80]
    %vm4372 = vcmask 1047559
    %v4373 = vsel %vm4372, %v4371, %v4369
    %4374 = vrot.lane.b32.xlu0 %v4373, 64
    %v4375 = vpop.permute.xlu0 %4374
    %vm4376 = vcmask 654848
    %s4377 = scalar_lea.vmem [#allocation0], 112
    %4378 = vst.msk [vmem:[%s4377] sm:$0xff] %vm4376, %v4375
    %s4379 = scalar_lea.vmem [#allocation1], 524
    %v4380 = vld [vmem:[%s4379] sm:$0x1]
    %s4381 = scalar_lea.vmem [#allocation1], 587
    %v4382 = vld [vmem:[%s4381] sm:$0x2]
    %vm4383 = vcmask 1041409
    %v4384 = vsel %vm4383, %v4382, %v4380
    %s4385 = scalar_lea.vmem [#allocation1], 650
    %v4386 = vld [vmem:[%s4385] sm:$0x4]
    %vm4387 = vcmask 1042434
    %v4388 = vsel %vm4387, %v4386, %v4384
    %s4389 = scalar_lea.vmem [#allocation1], 713
    %v4390 = vld [vmem:[%s4389] sm:$0x8]
    %vm4391 = vcmask 1043459
    %v4392 = vsel %vm4391, %v4390, %v4388
    %s4393 = scalar_lea.vmem [#allocation1], 776
    %v4394 = vld [vmem:[%s4393] sm:$0x10]
    %vm4395 = vcmask 1044484
    %v4396 = vsel %vm4395, %v4394, %v4392
    %s4397 = scalar_lea.vmem [#allocation1], 839
    %v4398 = vld [vmem:[%s4397] sm:$0x20]
    %vm4399 = vcmask 1045509
    %v4400 = vsel %vm4399, %v4398, %v4396
    %s4401 = scalar_lea.vmem [#allocation1], 902
    %v4402 = vld [vmem:[%s4401] sm:$0x40]
    %vm4403 = vcmask 1046534
    %v4404 = vsel %vm4403, %v4402, %v4400
    %s4405 = scalar_lea.vmem [#allocation1], 965
    %v4406 = vld [vmem:[%s4405] sm:$0x80]
    %vm4407 = vcmask 1047559
    %v4408 = vsel %vm4407, %v4406, %v4404
    %4409 = vrot.lane.b32.xlu0 %v4408, 64
    %v4410 = vpop.permute.xlu0 %4409
    %vm4411 = vcmask 654848
    %s4412 = scalar_lea.vmem [#allocation0], 24
    %4413 = vst.msk [vmem:[%s4412] sm:$0xff] %vm4411, %v4410
    %s4414 = scalar_lea.vmem [#allocation1], 540
    %v4415 = vld [vmem:[%s4414] sm:$0x1]
    %s4416 = scalar_lea.vmem [#allocation1], 603
    %v4417 = vld [vmem:[%s4416] sm:$0x2]
    %vm4418 = vcmask 1041409
    %v4419 = vsel %vm4418, %v4417, %v4415
    %s4420 = scalar_lea.vmem [#allocation1], 666
    %v4421 = vld [vmem:[%s4420] sm:$0x4]
    %vm4422 = vcmask 1042434
    %v4423 = vsel %vm4422, %v4421, %v4419
    %s4424 = scalar_lea.vmem [#allocation1], 729
    %v4425 = vld [vmem:[%s4424] sm:$0x8]
    %vm4426 = vcmask 1043459
    %v4427 = vsel %vm4426, %v4425, %v4423
    %s4428 = scalar_lea.vmem [#allocation1], 792
    %v4429 = vld [vmem:[%s4428] sm:$0x10]
    %vm4430 = vcmask 1044484
    %v4431 = vsel %vm4430, %v4429, %v4427
    %s4432 = scalar_lea.vmem [#allocation1], 855
    %v4433 = vld [vmem:[%s4432] sm:$0x20]
    %vm4434 = vcmask 1045509
    %v4435 = vsel %vm4434, %v4433, %v4431
    %s4436 = scalar_lea.vmem [#allocation1], 918
    %v4437 = vld [vmem:[%s4436] sm:$0x40]
    %vm4438 = vcmask 1046534
    %v4439 = vsel %vm4438, %v4437, %v4435
    %s4440 = scalar_lea.vmem [#allocation1], 981
    %v4441 = vld [vmem:[%s4440] sm:$0x80]
    %vm4442 = vcmask 1047559
    %v4443 = vsel %vm4442, %v4441, %v4439
    %4444 = vrot.lane.b32.xlu0 %v4443, 64
    %v4445 = vpop.permute.xlu0 %4444
    %vm4446 = vcmask 654848
    %s4447 = scalar_lea.vmem [#allocation0], 56
    %4448 = vst.msk [vmem:[%s4447] sm:$0xff] %vm4446, %v4445
    %s4449 = scalar_lea.vmem [#allocation1], 556
    %v4450 = vld [vmem:[%s4449] sm:$0x1]
    %s4451 = scalar_lea.vmem [#allocation1], 619
    %v4452 = vld [vmem:[%s4451] sm:$0x2]
    %vm4453 = vcmask 1041409
    %v4454 = vsel %vm4453, %v4452, %v4450
    %s4455 = scalar_lea.vmem [#allocation1], 682
    %v4456 = vld [vmem:[%s4455] sm:$0x4]
    %vm4457 = vcmask 1042434
    %v4458 = vsel %vm4457, %v4456, %v4454
    %s4459 = scalar_lea.vmem [#allocation1], 745
    %v4460 = vld [vmem:[%s4459] sm:$0x8]
    %vm4461 = vcmask 1043459
    %v4462 = vsel %vm4461, %v4460, %v4458
    %s4463 = scalar_lea.vmem [#allocation1], 808
    %v4464 = vld [vmem:[%s4463] sm:$0x10]
    %vm4465 = vcmask 1044484
    %v4466 = vsel %vm4465, %v4464, %v4462
    %s4467 = scalar_lea.vmem [#allocation1], 871
    %v4468 = vld [vmem:[%s4467] sm:$0x20]
    %vm4469 = vcmask 1045509
    %v4470 = vsel %vm4469, %v4468, %v4466
    %s4471 = scalar_lea.vmem [#allocation1], 934
    %v4472 = vld [vmem:[%s4471] sm:$0x40]
    %vm4473 = vcmask 1046534
    %v4474 = vsel %vm4473, %v4472, %v4470
    %s4475 = scalar_lea.vmem [#allocation1], 997
    %v4476 = vld [vmem:[%s4475] sm:$0x80]
    %vm4477 = vcmask 1047559
    %v4478 = vsel %vm4477, %v4476, %v4474
    %4479 = vrot.lane.b32.xlu0 %v4478, 64
    %v4480 = vpop.permute.xlu0 %4479
    %vm4481 = vcmask 654848
    %s4482 = scalar_lea.vmem [#allocation0], 88
    %4483 = vst.msk [vmem:[%s4482] sm:$0xff] %vm4481, %v4480
    %s4484 = scalar_lea.vmem [#allocation1], 572
    %v4485 = vld [vmem:[%s4484] sm:$0x1]
    %s4486 = scalar_lea.vmem [#allocation1], 635
    %v4487 = vld [vmem:[%s4486] sm:$0x2]
    %vm4488 = vcmask 1041409
    %v4489 = vsel %vm4488, %v4487, %v4485
    %s4490 = scalar_lea.vmem [#allocation1], 698
    %v4491 = vld [vmem:[%s4490] sm:$0x4]
    %vm4492 = vcmask 1042434
    %v4493 = vsel %vm4492, %v4491, %v4489
    %s4494 = scalar_lea.vmem [#allocation1], 761
    %v4495 = vld [vmem:[%s4494] sm:$0x8]
    %vm4496 = vcmask 1043459
    %v4497 = vsel %vm4496, %v4495, %v4493
    %s4498 = scalar_lea.vmem [#allocation1], 824
    %v4499 = vld [vmem:[%s4498] sm:$0x10]
    %vm4500 = vcmask 1044484
    %v4501 = vsel %vm4500, %v4499, %v4497
    %s4502 = scalar_lea.vmem [#allocation1], 887
    %v4503 = vld [vmem:[%s4502] sm:$0x20]
    %vm4504 = vcmask 1045509
    %v4505 = vsel %vm4504, %v4503, %v4501
    %s4506 = scalar_lea.vmem [#allocation1], 950
    %v4507 = vld [vmem:[%s4506] sm:$0x40]
    %vm4508 = vcmask 1046534
    %v4509 = vsel %vm4508, %v4507, %v4505
    %s4510 = scalar_lea.vmem [#allocation1], 1013
    %v4511 = vld [vmem:[%s4510] sm:$0x80]
    %vm4512 = vcmask 1047559
    %v4513 = vsel %vm4512, %v4511, %v4509
    %4514 = vrot.lane.b32.xlu0 %v4513, 64
    %v4515 = vpop.permute.xlu0 %4514
    %vm4516 = vcmask 654848
    %s4517 = scalar_lea.vmem [#allocation0], 120
    %4518 = vst.msk [vmem:[%s4517] sm:$0xff] %vm4516, %v4515
    %s4519 = scalar_lea.vmem [#allocation1], 3
    %v4520 = vld [vmem:[%s4519] sm:$0x1]
    %s4521 = scalar_lea.vmem [#allocation1], 66
    %v4522 = vld [vmem:[%s4521] sm:$0x2]
    %vm4523 = vcmask 1041409
    %v4524 = vsel %vm4523, %v4522, %v4520
    %s4525 = scalar_lea.vmem [#allocation1], 129
    %v4526 = vld [vmem:[%s4525] sm:$0x4]
    %vm4527 = vcmask 1042434
    %v4528 = vsel %vm4527, %v4526, %v4524
    %s4529 = scalar_lea.vmem [#allocation1], 192
    %v4530 = vld [vmem:[%s4529] sm:$0x8]
    %vm4531 = vcmask 1043459
    %v4532 = vsel %vm4531, %v4530, %v4528
    %s4533 = scalar_lea.vmem [#allocation1], 255
    %v4534 = vld [vmem:[%s4533] sm:$0x10]
    %vm4535 = vcmask 1044484
    %v4536 = vsel %vm4535, %v4534, %v4532
    %s4537 = scalar_lea.vmem [#allocation1], 318
    %v4538 = vld [vmem:[%s4537] sm:$0x20]
    %vm4539 = vcmask 1045509
    %v4540 = vsel %vm4539, %v4538, %v4536
    %s4541 = scalar_lea.vmem [#allocation1], 381
    %v4542 = vld [vmem:[%s4541] sm:$0x40]
    %vm4543 = vcmask 1046534
    %v4544 = vsel %vm4543, %v4542, %v4540
    %s4545 = scalar_lea.vmem [#allocation1], 444
    %v4546 = vld [vmem:[%s4545] sm:$0x80]
    %vm4547 = vcmask 1047559
    %v4548 = vsel %vm4547, %v4546, %v4544
    %4549 = vrot.lane.b32.xlu0 %v4548, 48
    %v4550 = vpop.permute.xlu0 %4549
    %vm4551 = vcmask 523648
    %4552 = vst.msk [vmem:[#allocation0] sm:$0xff] %vm4551, %v4550
    %s4553 = scalar_lea.vmem [#allocation1], 19
    %v4554 = vld [vmem:[%s4553] sm:$0x1]
    %s4555 = scalar_lea.vmem [#allocation1], 82
    %v4556 = vld [vmem:[%s4555] sm:$0x2]
    %vm4557 = vcmask 1041409
    %v4558 = vsel %vm4557, %v4556, %v4554
    %s4559 = scalar_lea.vmem [#allocation1], 145
    %v4560 = vld [vmem:[%s4559] sm:$0x4]
    %vm4561 = vcmask 1042434
    %v4562 = vsel %vm4561, %v4560, %v4558
    %s4563 = scalar_lea.vmem [#allocation1], 208
    %v4564 = vld [vmem:[%s4563] sm:$0x8]
    %vm4565 = vcmask 1043459
    %v4566 = vsel %vm4565, %v4564, %v4562
    %s4567 = scalar_lea.vmem [#allocation1], 271
    %v4568 = vld [vmem:[%s4567] sm:$0x10]
    %vm4569 = vcmask 1044484
    %v4570 = vsel %vm4569, %v4568, %v4566
    %s4571 = scalar_lea.vmem [#allocation1], 334
    %v4572 = vld [vmem:[%s4571] sm:$0x20]
    %vm4573 = vcmask 1045509
    %v4574 = vsel %vm4573, %v4572, %v4570
    %s4575 = scalar_lea.vmem [#allocation1], 397
    %v4576 = vld [vmem:[%s4575] sm:$0x40]
    %vm4577 = vcmask 1046534
    %v4578 = vsel %vm4577, %v4576, %v4574
    %s4579 = scalar_lea.vmem [#allocation1], 460
    %v4580 = vld [vmem:[%s4579] sm:$0x80]
    %vm4581 = vcmask 1047559
    %v4582 = vsel %vm4581, %v4580, %v4578
    %4583 = vrot.lane.b32.xlu0 %v4582, 48
    %v4584 = vpop.permute.xlu0 %4583
    %vm4585 = vcmask 523648
    %s4586 = scalar_lea.vmem [#allocation0], 32
    %4587 = vst.msk [vmem:[%s4586] sm:$0xff] %vm4585, %v4584
    %s4588 = scalar_lea.vmem [#allocation1], 35
    %v4589 = vld [vmem:[%s4588] sm:$0x1]
    %s4590 = scalar_lea.vmem [#allocation1], 98
    %v4591 = vld [vmem:[%s4590] sm:$0x2]
    %vm4592 = vcmask 1041409
    %v4593 = vsel %vm4592, %v4591, %v4589
    %s4594 = scalar_lea.vmem [#allocation1], 161
    %v4595 = vld [vmem:[%s4594] sm:$0x4]
    %vm4596 = vcmask 1042434
    %v4597 = vsel %vm4596, %v4595, %v4593
    %s4598 = scalar_lea.vmem [#allocation1], 224
    %v4599 = vld [vmem:[%s4598] sm:$0x8]
    %vm4600 = vcmask 1043459
    %v4601 = vsel %vm4600, %v4599, %v4597
    %s4602 = scalar_lea.vmem [#allocation1], 287
    %v4603 = vld [vmem:[%s4602] sm:$0x10]
    %vm4604 = vcmask 1044484
    %v4605 = vsel %vm4604, %v4603, %v4601
    %s4606 = scalar_lea.vmem [#allocation1], 350
    %v4607 = vld [vmem:[%s4606] sm:$0x20]
    %vm4608 = vcmask 1045509
    %v4609 = vsel %vm4608, %v4607, %v4605
    %s4610 = scalar_lea.vmem [#allocation1], 413
    %v4611 = vld [vmem:[%s4610] sm:$0x40]
    %vm4612 = vcmask 1046534
    %v4613 = vsel %vm4612, %v4611, %v4609
    %s4614 = scalar_lea.vmem [#allocation1], 476
    %v4615 = vld [vmem:[%s4614] sm:$0x80]
    %vm4616 = vcmask 1047559
    %v4617 = vsel %vm4616, %v4615, %v4613
    %4618 = vrot.lane.b32.xlu0 %v4617, 48
    %v4619 = vpop.permute.xlu0 %4618
    %vm4620 = vcmask 523648
    %s4621 = scalar_lea.vmem [#allocation0], 64
    %4622 = vst.msk [vmem:[%s4621] sm:$0xff] %vm4620, %v4619
    %s4623 = scalar_lea.vmem [#allocation1], 51
    %v4624 = vld [vmem:[%s4623] sm:$0x1]
    %s4625 = scalar_lea.vmem [#allocation1], 114
    %v4626 = vld [vmem:[%s4625] sm:$0x2]
    %vm4627 = vcmask 1041409
    %v4628 = vsel %vm4627, %v4626, %v4624
    %s4629 = scalar_lea.vmem [#allocation1], 177
    %v4630 = vld [vmem:[%s4629] sm:$0x4]
    %vm4631 = vcmask 1042434
    %v4632 = vsel %vm4631, %v4630, %v4628
    %s4633 = scalar_lea.vmem [#allocation1], 240
    %v4634 = vld [vmem:[%s4633] sm:$0x8]
    %vm4635 = vcmask 1043459
    %v4636 = vsel %vm4635, %v4634, %v4632
    %s4637 = scalar_lea.vmem [#allocation1], 303
    %v4638 = vld [vmem:[%s4637] sm:$0x10]
    %vm4639 = vcmask 1044484
    %v4640 = vsel %vm4639, %v4638, %v4636
    %s4641 = scalar_lea.vmem [#allocation1], 366
    %v4642 = vld [vmem:[%s4641] sm:$0x20]
    %vm4643 = vcmask 1045509
    %v4644 = vsel %vm4643, %v4642, %v4640
    %s4645 = scalar_lea.vmem [#allocation1], 429
    %v4646 = vld [vmem:[%s4645] sm:$0x40]
    %vm4647 = vcmask 1046534
    %v4648 = vsel %vm4647, %v4646, %v4644
    %s4649 = scalar_lea.vmem [#allocation1], 492
    %v4650 = vld [vmem:[%s4649] sm:$0x80]
    %vm4651 = vcmask 1047559
    %v4652 = vsel %vm4651, %v4650, %v4648
    %4653 = vrot.lane.b32.xlu0 %v4652, 48
    %v4654 = vpop.permute.xlu0 %4653
    %vm4655 = vcmask 523648
    %s4656 = scalar_lea.vmem [#allocation0], 96
    %4657 = vst.msk [vmem:[%s4656] sm:$0xff] %vm4655, %v4654
    %s4658 = scalar_lea.vmem [#allocation1], 515
    %v4659 = vld [vmem:[%s4658] sm:$0x1]
    %s4660 = scalar_lea.vmem [#allocation1], 578
    %v4661 = vld [vmem:[%s4660] sm:$0x2]
    %vm4662 = vcmask 1041409
    %v4663 = vsel %vm4662, %v4661, %v4659
    %s4664 = scalar_lea.vmem [#allocation1], 641
    %v4665 = vld [vmem:[%s4664] sm:$0x4]
    %vm4666 = vcmask 1042434
    %v4667 = vsel %vm4666, %v4665, %v4663
    %s4668 = scalar_lea.vmem [#allocation1], 704
    %v4669 = vld [vmem:[%s4668] sm:$0x8]
    %vm4670 = vcmask 1043459
    %v4671 = vsel %vm4670, %v4669, %v4667
    %s4672 = scalar_lea.vmem [#allocation1], 767
    %v4673 = vld [vmem:[%s4672] sm:$0x10]
    %vm4674 = vcmask 1044484
    %v4675 = vsel %vm4674, %v4673, %v4671
    %s4676 = scalar_lea.vmem [#allocation1], 830
    %v4677 = vld [vmem:[%s4676] sm:$0x20]
    %vm4678 = vcmask 1045509
    %v4679 = vsel %vm4678, %v4677, %v4675
    %s4680 = scalar_lea.vmem [#allocation1], 893
    %v4681 = vld [vmem:[%s4680] sm:$0x40]
    %vm4682 = vcmask 1046534
    %v4683 = vsel %vm4682, %v4681, %v4679
    %s4684 = scalar_lea.vmem [#allocation1], 956
    %v4685 = vld [vmem:[%s4684] sm:$0x80]
    %vm4686 = vcmask 1047559
    %v4687 = vsel %vm4686, %v4685, %v4683
    %4688 = vrot.lane.b32.xlu0 %v4687, 48
    %v4689 = vpop.permute.xlu0 %4688
    %vm4690 = vcmask 523648
    %s4691 = scalar_lea.vmem [#allocation0], 8
    %4692 = vst.msk [vmem:[%s4691] sm:$0xff] %vm4690, %v4689
    %s4693 = scalar_lea.vmem [#allocation1], 531
    %v4694 = vld [vmem:[%s4693] sm:$0x1]
    %s4695 = scalar_lea.vmem [#allocation1], 594
    %v4696 = vld [vmem:[%s4695] sm:$0x2]
    %vm4697 = vcmask 1041409
    %v4698 = vsel %vm4697, %v4696, %v4694
    %s4699 = scalar_lea.vmem [#allocation1], 657
    %v4700 = vld [vmem:[%s4699] sm:$0x4]
    %vm4701 = vcmask 1042434
    %v4702 = vsel %vm4701, %v4700, %v4698
    %s4703 = scalar_lea.vmem [#allocation1], 720
    %v4704 = vld [vmem:[%s4703] sm:$0x8]
    %vm4705 = vcmask 1043459
    %v4706 = vsel %vm4705, %v4704, %v4702
    %s4707 = scalar_lea.vmem [#allocation1], 783
    %v4708 = vld [vmem:[%s4707] sm:$0x10]
    %vm4709 = vcmask 1044484
    %v4710 = vsel %vm4709, %v4708, %v4706
    %s4711 = scalar_lea.vmem [#allocation1], 846
    %v4712 = vld [vmem:[%s4711] sm:$0x20]
    %vm4713 = vcmask 1045509
    %v4714 = vsel %vm4713, %v4712, %v4710
    %s4715 = scalar_lea.vmem [#allocation1], 909
    %v4716 = vld [vmem:[%s4715] sm:$0x40]
    %vm4717 = vcmask 1046534
    %v4718 = vsel %vm4717, %v4716, %v4714
    %s4719 = scalar_lea.vmem [#allocation1], 972
    %v4720 = vld [vmem:[%s4719] sm:$0x80]
    %vm4721 = vcmask 1047559
    %v4722 = vsel %vm4721, %v4720, %v4718
    %4723 = vrot.lane.b32.xlu0 %v4722, 48
    %v4724 = vpop.permute.xlu0 %4723
    %vm4725 = vcmask 523648
    %s4726 = scalar_lea.vmem [#allocation0], 40
    %4727 = vst.msk [vmem:[%s4726] sm:$0xff] %vm4725, %v4724
    %s4728 = scalar_lea.vmem [#allocation1], 547
    %v4729 = vld [vmem:[%s4728] sm:$0x1]
    %s4730 = scalar_lea.vmem [#allocation1], 610
    %v4731 = vld [vmem:[%s4730] sm:$0x2]
    %vm4732 = vcmask 1041409
    %v4733 = vsel %vm4732, %v4731, %v4729
    %s4734 = scalar_lea.vmem [#allocation1], 673
    %v4735 = vld [vmem:[%s4734] sm:$0x4]
    %vm4736 = vcmask 1042434
    %v4737 = vsel %vm4736, %v4735, %v4733
    %s4738 = scalar_lea.vmem [#allocation1], 736
    %v4739 = vld [vmem:[%s4738] sm:$0x8]
    %vm4740 = vcmask 1043459
    %v4741 = vsel %vm4740, %v4739, %v4737
    %s4742 = scalar_lea.vmem [#allocation1], 799
    %v4743 = vld [vmem:[%s4742] sm:$0x10]
    %vm4744 = vcmask 1044484
    %v4745 = vsel %vm4744, %v4743, %v4741
    %s4746 = scalar_lea.vmem [#allocation1], 862
    %v4747 = vld [vmem:[%s4746] sm:$0x20]
    %vm4748 = vcmask 1045509
    %v4749 = vsel %vm4748, %v4747, %v4745
    %s4750 = scalar_lea.vmem [#allocation1], 925
    %v4751 = vld [vmem:[%s4750] sm:$0x40]
    %vm4752 = vcmask 1046534
    %v4753 = vsel %vm4752, %v4751, %v4749
    %s4754 = scalar_lea.vmem [#allocation1], 988
    %v4755 = vld [vmem:[%s4754] sm:$0x80]
    %vm4756 = vcmask 1047559
    %v4757 = vsel %vm4756, %v4755, %v4753
    %4758 = vrot.lane.b32.xlu0 %v4757, 48
    %v4759 = vpop.permute.xlu0 %4758
    %vm4760 = vcmask 523648
    %s4761 = scalar_lea.vmem [#allocation0], 72
    %4762 = vst.msk [vmem:[%s4761] sm:$0xff] %vm4760, %v4759
    %s4763 = scalar_lea.vmem [#allocation1], 563
    %v4764 = vld [vmem:[%s4763] sm:$0x1]
    %s4765 = scalar_lea.vmem [#allocation1], 626
    %v4766 = vld [vmem:[%s4765] sm:$0x2]
    %vm4767 = vcmask 1041409
    %v4768 = vsel %vm4767, %v4766, %v4764
    %s4769 = scalar_lea.vmem [#allocation1], 689
    %v4770 = vld [vmem:[%s4769] sm:$0x4]
    %vm4771 = vcmask 1042434
    %v4772 = vsel %vm4771, %v4770, %v4768
    %s4773 = scalar_lea.vmem [#allocation1], 752
    %v4774 = vld [vmem:[%s4773] sm:$0x8]
    %vm4775 = vcmask 1043459
    %v4776 = vsel %vm4775, %v4774, %v4772
    %s4777 = scalar_lea.vmem [#allocation1], 815
    %v4778 = vld [vmem:[%s4777] sm:$0x10]
    %vm4779 = vcmask 1044484
    %v4780 = vsel %vm4779, %v4778, %v4776
    %s4781 = scalar_lea.vmem [#allocation1], 878
    %v4782 = vld [vmem:[%s4781] sm:$0x20]
    %vm4783 = vcmask 1045509
    %v4784 = vsel %vm4783, %v4782, %v4780
    %s4785 = scalar_lea.vmem [#allocation1], 941
    %v4786 = vld [vmem:[%s4785] sm:$0x40]
    %vm4787 = vcmask 1046534
    %v4788 = vsel %vm4787, %v4786, %v4784
    %s4789 = scalar_lea.vmem [#allocation1], 1004
    %v4790 = vld [vmem:[%s4789] sm:$0x80]
    %vm4791 = vcmask 1047559
    %v4792 = vsel %vm4791, %v4790, %v4788
    %4793 = vrot.lane.b32.xlu0 %v4792, 48
    %v4794 = vpop.permute.xlu0 %4793
    %vm4795 = vcmask 523648
    %s4796 = scalar_lea.vmem [#allocation0], 104
    %4797 = vst.msk [vmem:[%s4796] sm:$0xff] %vm4795, %v4794
    %s4798 = scalar_lea.vmem [#allocation1], 11
    %v4799 = vld [vmem:[%s4798] sm:$0x1]
    %s4800 = scalar_lea.vmem [#allocation1], 74
    %v4801 = vld [vmem:[%s4800] sm:$0x2]
    %vm4802 = vcmask 1041409
    %v4803 = vsel %vm4802, %v4801, %v4799
    %s4804 = scalar_lea.vmem [#allocation1], 137
    %v4805 = vld [vmem:[%s4804] sm:$0x4]
    %vm4806 = vcmask 1042434
    %v4807 = vsel %vm4806, %v4805, %v4803
    %s4808 = scalar_lea.vmem [#allocation1], 200
    %v4809 = vld [vmem:[%s4808] sm:$0x8]
    %vm4810 = vcmask 1043459
    %v4811 = vsel %vm4810, %v4809, %v4807
    %s4812 = scalar_lea.vmem [#allocation1], 263
    %v4813 = vld [vmem:[%s4812] sm:$0x10]
    %vm4814 = vcmask 1044484
    %v4815 = vsel %vm4814, %v4813, %v4811
    %s4816 = scalar_lea.vmem [#allocation1], 326
    %v4817 = vld [vmem:[%s4816] sm:$0x20]
    %vm4818 = vcmask 1045509
    %v4819 = vsel %vm4818, %v4817, %v4815
    %s4820 = scalar_lea.vmem [#allocation1], 389
    %v4821 = vld [vmem:[%s4820] sm:$0x40]
    %vm4822 = vcmask 1046534
    %v4823 = vsel %vm4822, %v4821, %v4819
    %s4824 = scalar_lea.vmem [#allocation1], 452
    %v4825 = vld [vmem:[%s4824] sm:$0x80]
    %vm4826 = vcmask 1047559
    %v4827 = vsel %vm4826, %v4825, %v4823
    %4828 = vrot.lane.b32.xlu0 %v4827, 48
    %v4829 = vpop.permute.xlu0 %4828
    %vm4830 = vcmask 523648
    %s4831 = scalar_lea.vmem [#allocation0], 16
    %4832 = vst.msk [vmem:[%s4831] sm:$0xff] %vm4830, %v4829
    %s4833 = scalar_lea.vmem [#allocation1], 27
    %v4834 = vld [vmem:[%s4833] sm:$0x1]
    %s4835 = scalar_lea.vmem [#allocation1], 90
    %v4836 = vld [vmem:[%s4835] sm:$0x2]
    %vm4837 = vcmask 1041409
    %v4838 = vsel %vm4837, %v4836, %v4834
    %s4839 = scalar_lea.vmem [#allocation1], 153
    %v4840 = vld [vmem:[%s4839] sm:$0x4]
    %vm4841 = vcmask 1042434
    %v4842 = vsel %vm4841, %v4840, %v4838
    %s4843 = scalar_lea.vmem [#allocation1], 216
    %v4844 = vld [vmem:[%s4843] sm:$0x8]
    %vm4845 = vcmask 1043459
    %v4846 = vsel %vm4845, %v4844, %v4842
    %s4847 = scalar_lea.vmem [#allocation1], 279
    %v4848 = vld [vmem:[%s4847] sm:$0x10]
    %vm4849 = vcmask 1044484
    %v4850 = vsel %vm4849, %v4848, %v4846
    %s4851 = scalar_lea.vmem [#allocation1], 342
    %v4852 = vld [vmem:[%s4851] sm:$0x20]
    %vm4853 = vcmask 1045509
    %v4854 = vsel %vm4853, %v4852, %v4850
    %s4855 = scalar_lea.vmem [#allocation1], 405
    %v4856 = vld [vmem:[%s4855] sm:$0x40]
    %vm4857 = vcmask 1046534
    %v4858 = vsel %vm4857, %v4856, %v4854
    %s4859 = scalar_lea.vmem [#allocation1], 468
    %v4860 = vld [vmem:[%s4859] sm:$0x80]
    %vm4861 = vcmask 1047559
    %v4862 = vsel %vm4861, %v4860, %v4858
    %4863 = vrot.lane.b32.xlu0 %v4862, 48
    %v4864 = vpop.permute.xlu0 %4863
    %vm4865 = vcmask 523648
    %s4866 = scalar_lea.vmem [#allocation0], 48
    %4867 = vst.msk [vmem:[%s4866] sm:$0xff] %vm4865, %v4864
    %s4868 = scalar_lea.vmem [#allocation1], 43
    %v4869 = vld [vmem:[%s4868] sm:$0x1]
    %s4870 = scalar_lea.vmem [#allocation1], 106
    %v4871 = vld [vmem:[%s4870] sm:$0x2]
    %vm4872 = vcmask 1041409
    %v4873 = vsel %vm4872, %v4871, %v4869
    %s4874 = scalar_lea.vmem [#allocation1], 169
    %v4875 = vld [vmem:[%s4874] sm:$0x4]
    %vm4876 = vcmask 1042434
    %v4877 = vsel %vm4876, %v4875, %v4873
    %s4878 = scalar_lea.vmem [#allocation1], 232
    %v4879 = vld [vmem:[%s4878] sm:$0x8]
    %vm4880 = vcmask 1043459
    %v4881 = vsel %vm4880, %v4879, %v4877
    %s4882 = scalar_lea.vmem [#allocation1], 295
    %v4883 = vld [vmem:[%s4882] sm:$0x10]
    %vm4884 = vcmask 1044484
    %v4885 = vsel %vm4884, %v4883, %v4881
    %s4886 = scalar_lea.vmem [#allocation1], 358
    %v4887 = vld [vmem:[%s4886] sm:$0x20]
    %vm4888 = vcmask 1045509
    %v4889 = vsel %vm4888, %v4887, %v4885
    %s4890 = scalar_lea.vmem [#allocation1], 421
    %v4891 = vld [vmem:[%s4890] sm:$0x40]
    %vm4892 = vcmask 1046534
    %v4893 = vsel %vm4892, %v4891, %v4889
    %s4894 = scalar_lea.vmem [#allocation1], 484
    %v4895 = vld [vmem:[%s4894] sm:$0x80]
    %vm4896 = vcmask 1047559
    %v4897 = vsel %vm4896, %v4895, %v4893
    %4898 = vrot.lane.b32.xlu0 %v4897, 48
    %v4899 = vpop.permute.xlu0 %4898
    %vm4900 = vcmask 523648
    %s4901 = scalar_lea.vmem [#allocation0], 80
    %4902 = vst.msk [vmem:[%s4901] sm:$0xff] %vm4900, %v4899
    %s4903 = scalar_lea.vmem [#allocation1], 59
    %v4904 = vld [vmem:[%s4903] sm:$0x1]
    %s4905 = scalar_lea.vmem [#allocation1], 122
    %v4906 = vld [vmem:[%s4905] sm:$0x2]
    %vm4907 = vcmask 1041409
    %v4908 = vsel %vm4907, %v4906, %v4904
    %s4909 = scalar_lea.vmem [#allocation1], 185
    %v4910 = vld [vmem:[%s4909] sm:$0x4]
    %vm4911 = vcmask 1042434
    %v4912 = vsel %vm4911, %v4910, %v4908
    %s4913 = scalar_lea.vmem [#allocation1], 248
    %v4914 = vld [vmem:[%s4913] sm:$0x8]
    %vm4915 = vcmask 1043459
    %v4916 = vsel %vm4915, %v4914, %v4912
    %s4917 = scalar_lea.vmem [#allocation1], 311
    %v4918 = vld [vmem:[%s4917] sm:$0x10]
    %vm4919 = vcmask 1044484
    %v4920 = vsel %vm4919, %v4918, %v4916
    %s4921 = scalar_lea.vmem [#allocation1], 374
    %v4922 = vld [vmem:[%s4921] sm:$0x20]
    %vm4923 = vcmask 1045509
    %v4924 = vsel %vm4923, %v4922, %v4920
    %s4925 = scalar_lea.vmem [#allocation1], 437
    %v4926 = vld [vmem:[%s4925] sm:$0x40]
    %vm4927 = vcmask 1046534
    %v4928 = vsel %vm4927, %v4926, %v4924
    %s4929 = scalar_lea.vmem [#allocation1], 500
    %v4930 = vld [vmem:[%s4929] sm:$0x80]
    %vm4931 = vcmask 1047559
    %v4932 = vsel %vm4931, %v4930, %v4928
    %4933 = vrot.lane.b32.xlu0 %v4932, 48
    %v4934 = vpop.permute.xlu0 %4933
    %vm4935 = vcmask 523648
    %s4936 = scalar_lea.vmem [#allocation0], 112
    %4937 = vst.msk [vmem:[%s4936] sm:$0xff] %vm4935, %v4934
    %s4938 = scalar_lea.vmem [#allocation1], 523
    %v4939 = vld [vmem:[%s4938] sm:$0x1]
    %s4940 = scalar_lea.vmem [#allocation1], 586
    %v4941 = vld [vmem:[%s4940] sm:$0x2]
    %vm4942 = vcmask 1041409
    %v4943 = vsel %vm4942, %v4941, %v4939
    %s4944 = scalar_lea.vmem [#allocation1], 649
    %v4945 = vld [vmem:[%s4944] sm:$0x4]
    %vm4946 = vcmask 1042434
    %v4947 = vsel %vm4946, %v4945, %v4943
    %s4948 = scalar_lea.vmem [#allocation1], 712
    %v4949 = vld [vmem:[%s4948] sm:$0x8]
    %vm4950 = vcmask 1043459
    %v4951 = vsel %vm4950, %v4949, %v4947
    %s4952 = scalar_lea.vmem [#allocation1], 775
    %v4953 = vld [vmem:[%s4952] sm:$0x10]
    %vm4954 = vcmask 1044484
    %v4955 = vsel %vm4954, %v4953, %v4951
    %s4956 = scalar_lea.vmem [#allocation1], 838
    %v4957 = vld [vmem:[%s4956] sm:$0x20]
    %vm4958 = vcmask 1045509
    %v4959 = vsel %vm4958, %v4957, %v4955
    %s4960 = scalar_lea.vmem [#allocation1], 901
    %v4961 = vld [vmem:[%s4960] sm:$0x40]
    %vm4962 = vcmask 1046534
    %v4963 = vsel %vm4962, %v4961, %v4959
    %s4964 = scalar_lea.vmem [#allocation1], 964
    %v4965 = vld [vmem:[%s4964] sm:$0x80]
    %vm4966 = vcmask 1047559
    %v4967 = vsel %vm4966, %v4965, %v4963
    %4968 = vrot.lane.b32.xlu0 %v4967, 48
    %v4969 = vpop.permute.xlu0 %4968
    %vm4970 = vcmask 523648
    %s4971 = scalar_lea.vmem [#allocation0], 24
    %4972 = vst.msk [vmem:[%s4971] sm:$0xff] %vm4970, %v4969
    %s4973 = scalar_lea.vmem [#allocation1], 539
    %v4974 = vld [vmem:[%s4973] sm:$0x1]
    %s4975 = scalar_lea.vmem [#allocation1], 602
    %v4976 = vld [vmem:[%s4975] sm:$0x2]
    %vm4977 = vcmask 1041409
    %v4978 = vsel %vm4977, %v4976, %v4974
    %s4979 = scalar_lea.vmem [#allocation1], 665
    %v4980 = vld [vmem:[%s4979] sm:$0x4]
    %vm4981 = vcmask 1042434
    %v4982 = vsel %vm4981, %v4980, %v4978
    %s4983 = scalar_lea.vmem [#allocation1], 728
    %v4984 = vld [vmem:[%s4983] sm:$0x8]
    %vm4985 = vcmask 1043459
    %v4986 = vsel %vm4985, %v4984, %v4982
    %s4987 = scalar_lea.vmem [#allocation1], 791
    %v4988 = vld [vmem:[%s4987] sm:$0x10]
    %vm4989 = vcmask 1044484
    %v4990 = vsel %vm4989, %v4988, %v4986
    %s4991 = scalar_lea.vmem [#allocation1], 854
    %v4992 = vld [vmem:[%s4991] sm:$0x20]
    %vm4993 = vcmask 1045509
    %v4994 = vsel %vm4993, %v4992, %v4990
    %s4995 = scalar_lea.vmem [#allocation1], 917
    %v4996 = vld [vmem:[%s4995] sm:$0x40]
    %vm4997 = vcmask 1046534
    %v4998 = vsel %vm4997, %v4996, %v4994
    %s4999 = scalar_lea.vmem [#allocation1], 980
    %v5000 = vld [vmem:[%s4999] sm:$0x80]
    %vm5001 = vcmask 1047559
    %v5002 = vsel %vm5001, %v5000, %v4998
    %5003 = vrot.lane.b32.xlu0 %v5002, 48
    %v5004 = vpop.permute.xlu0 %5003
    %vm5005 = vcmask 523648
    %s5006 = scalar_lea.vmem [#allocation0], 56
    %5007 = vst.msk [vmem:[%s5006] sm:$0xff] %vm5005, %v5004
    %s5008 = scalar_lea.vmem [#allocation1], 555
    %v5009 = vld [vmem:[%s5008] sm:$0x1]
    %s5010 = scalar_lea.vmem [#allocation1], 618
    %v5011 = vld [vmem:[%s5010] sm:$0x2]
    %vm5012 = vcmask 1041409
    %v5013 = vsel %vm5012, %v5011, %v5009
    %s5014 = scalar_lea.vmem [#allocation1], 681
    %v5015 = vld [vmem:[%s5014] sm:$0x4]
    %vm5016 = vcmask 1042434
    %v5017 = vsel %vm5016, %v5015, %v5013
    %s5018 = scalar_lea.vmem [#allocation1], 744
    %v5019 = vld [vmem:[%s5018] sm:$0x8]
    %vm5020 = vcmask 1043459
    %v5021 = vsel %vm5020, %v5019, %v5017
    %s5022 = scalar_lea.vmem [#allocation1], 807
    %v5023 = vld [vmem:[%s5022] sm:$0x10]
    %vm5024 = vcmask 1044484
    %v5025 = vsel %vm5024, %v5023, %v5021
    %s5026 = scalar_lea.vmem [#allocation1], 870
    %v5027 = vld [vmem:[%s5026] sm:$0x20]
    %vm5028 = vcmask 1045509
    %v5029 = vsel %vm5028, %v5027, %v5025
    %s5030 = scalar_lea.vmem [#allocation1], 933
    %v5031 = vld [vmem:[%s5030] sm:$0x40]
    %vm5032 = vcmask 1046534
    %v5033 = vsel %vm5032, %v5031, %v5029
    %s5034 = scalar_lea.vmem [#allocation1], 996
    %v5035 = vld [vmem:[%s5034] sm:$0x80]
    %vm5036 = vcmask 1047559
    %v5037 = vsel %vm5036, %v5035, %v5033
    %5038 = vrot.lane.b32.xlu0 %v5037, 48
    %v5039 = vpop.permute.xlu0 %5038
    %vm5040 = vcmask 523648
    %s5041 = scalar_lea.vmem [#allocation0], 88
    %5042 = vst.msk [vmem:[%s5041] sm:$0xff] %vm5040, %v5039
    %s5043 = scalar_lea.vmem [#allocation1], 571
    %v5044 = vld [vmem:[%s5043] sm:$0x1]
    %s5045 = scalar_lea.vmem [#allocation1], 634
    %v5046 = vld [vmem:[%s5045] sm:$0x2]
    %vm5047 = vcmask 1041409
    %v5048 = vsel %vm5047, %v5046, %v5044
    %s5049 = scalar_lea.vmem [#allocation1], 697
    %v5050 = vld [vmem:[%s5049] sm:$0x4]
    %vm5051 = vcmask 1042434
    %v5052 = vsel %vm5051, %v5050, %v5048
    %s5053 = scalar_lea.vmem [#allocation1], 760
    %v5054 = vld [vmem:[%s5053] sm:$0x8]
    %vm5055 = vcmask 1043459
    %v5056 = vsel %vm5055, %v5054, %v5052
    %s5057 = scalar_lea.vmem [#allocation1], 823
    %v5058 = vld [vmem:[%s5057] sm:$0x10]
    %vm5059 = vcmask 1044484
    %v5060 = vsel %vm5059, %v5058, %v5056
    %s5061 = scalar_lea.vmem [#allocation1], 886
    %v5062 = vld [vmem:[%s5061] sm:$0x20]
    %vm5063 = vcmask 1045509
    %v5064 = vsel %vm5063, %v5062, %v5060
    %s5065 = scalar_lea.vmem [#allocation1], 949
    %v5066 = vld [vmem:[%s5065] sm:$0x40]
    %vm5067 = vcmask 1046534
    %v5068 = vsel %vm5067, %v5066, %v5064
    %s5069 = scalar_lea.vmem [#allocation1], 1012
    %v5070 = vld [vmem:[%s5069] sm:$0x80]
    %vm5071 = vcmask 1047559
    %v5072 = vsel %vm5071, %v5070, %v5068
    %5073 = vrot.lane.b32.xlu0 %v5072, 48
    %v5074 = vpop.permute.xlu0 %5073
    %vm5075 = vcmask 523648
    %s5076 = scalar_lea.vmem [#allocation0], 120
    %5077 = vst.msk [vmem:[%s5076] sm:$0xff] %vm5075, %v5074
    %s5078 = scalar_lea.vmem [#allocation1], 2
    %v5079 = vld [vmem:[%s5078] sm:$0x1]
    %s5080 = scalar_lea.vmem [#allocation1], 65
    %v5081 = vld [vmem:[%s5080] sm:$0x2]
    %vm5082 = vcmask 1041409
    %v5083 = vsel %vm5082, %v5081, %v5079
    %s5084 = scalar_lea.vmem [#allocation1], 128
    %v5085 = vld [vmem:[%s5084] sm:$0x4]
    %vm5086 = vcmask 1042434
    %v5087 = vsel %vm5086, %v5085, %v5083
    %s5088 = scalar_lea.vmem [#allocation1], 191
    %v5089 = vld [vmem:[%s5088] sm:$0x8]
    %vm5090 = vcmask 1043459
    %v5091 = vsel %vm5090, %v5089, %v5087
    %s5092 = scalar_lea.vmem [#allocation1], 254
    %v5093 = vld [vmem:[%s5092] sm:$0x10]
    %vm5094 = vcmask 1044484
    %v5095 = vsel %vm5094, %v5093, %v5091
    %s5096 = scalar_lea.vmem [#allocation1], 317
    %v5097 = vld [vmem:[%s5096] sm:$0x20]
    %vm5098 = vcmask 1045509
    %v5099 = vsel %vm5098, %v5097, %v5095
    %s5100 = scalar_lea.vmem [#allocation1], 380
    %v5101 = vld [vmem:[%s5100] sm:$0x40]
    %vm5102 = vcmask 1046534
    %v5103 = vsel %vm5102, %v5101, %v5099
    %s5104 = scalar_lea.vmem [#allocation1], 443
    %v5105 = vld [vmem:[%s5104] sm:$0x80]
    %vm5106 = vcmask 1047559
    %v5107 = vsel %vm5106, %v5105, %v5103
    %5108 = vrot.lane.b32.xlu0 %v5107, 32
    %v5109 = vpop.permute.xlu0 %5108
    %vm5110 = vcmask 392448
    %5111 = vst.msk [vmem:[#allocation0] sm:$0xff] %vm5110, %v5109
    %s5112 = scalar_lea.vmem [#allocation1], 18
    %v5113 = vld [vmem:[%s5112] sm:$0x1]
    %s5114 = scalar_lea.vmem [#allocation1], 81
    %v5115 = vld [vmem:[%s5114] sm:$0x2]
    %vm5116 = vcmask 1041409
    %v5117 = vsel %vm5116, %v5115, %v5113
    %s5118 = scalar_lea.vmem [#allocation1], 144
    %v5119 = vld [vmem:[%s5118] sm:$0x4]
    %vm5120 = vcmask 1042434
    %v5121 = vsel %vm5120, %v5119, %v5117
    %s5122 = scalar_lea.vmem [#allocation1], 207
    %v5123 = vld [vmem:[%s5122] sm:$0x8]
    %vm5124 = vcmask 1043459
    %v5125 = vsel %vm5124, %v5123, %v5121
    %s5126 = scalar_lea.vmem [#allocation1], 270
    %v5127 = vld [vmem:[%s5126] sm:$0x10]
    %vm5128 = vcmask 1044484
    %v5129 = vsel %vm5128, %v5127, %v5125
    %s5130 = scalar_lea.vmem [#allocation1], 333
    %v5131 = vld [vmem:[%s5130] sm:$0x20]
    %vm5132 = vcmask 1045509
    %v5133 = vsel %vm5132, %v5131, %v5129
    %s5134 = scalar_lea.vmem [#allocation1], 396
    %v5135 = vld [vmem:[%s5134] sm:$0x40]
    %vm5136 = vcmask 1046534
    %v5137 = vsel %vm5136, %v5135, %v5133
    %s5138 = scalar_lea.vmem [#allocation1], 459
    %v5139 = vld [vmem:[%s5138] sm:$0x80]
    %vm5140 = vcmask 1047559
    %v5141 = vsel %vm5140, %v5139, %v5137
    %5142 = vrot.lane.b32.xlu0 %v5141, 32
    %v5143 = vpop.permute.xlu0 %5142
    %vm5144 = vcmask 392448
    %s5145 = scalar_lea.vmem [#allocation0], 32
    %5146 = vst.msk [vmem:[%s5145] sm:$0xff] %vm5144, %v5143
    %s5147 = scalar_lea.vmem [#allocation1], 34
    %v5148 = vld [vmem:[%s5147] sm:$0x1]
    %s5149 = scalar_lea.vmem [#allocation1], 97
    %v5150 = vld [vmem:[%s5149] sm:$0x2]
    %vm5151 = vcmask 1041409
    %v5152 = vsel %vm5151, %v5150, %v5148
    %s5153 = scalar_lea.vmem [#allocation1], 160
    %v5154 = vld [vmem:[%s5153] sm:$0x4]
    %vm5155 = vcmask 1042434
    %v5156 = vsel %vm5155, %v5154, %v5152
    %s5157 = scalar_lea.vmem [#allocation1], 223
    %v5158 = vld [vmem:[%s5157] sm:$0x8]
    %vm5159 = vcmask 1043459
    %v5160 = vsel %vm5159, %v5158, %v5156
    %s5161 = scalar_lea.vmem [#allocation1], 286
    %v5162 = vld [vmem:[%s5161] sm:$0x10]
    %vm5163 = vcmask 1044484
    %v5164 = vsel %vm5163, %v5162, %v5160
    %s5165 = scalar_lea.vmem [#allocation1], 349
    %v5166 = vld [vmem:[%s5165] sm:$0x20]
    %vm5167 = vcmask 1045509
    %v5168 = vsel %vm5167, %v5166, %v5164
    %s5169 = scalar_lea.vmem [#allocation1], 412
    %v5170 = vld [vmem:[%s5169] sm:$0x40]
    %vm5171 = vcmask 1046534
    %v5172 = vsel %vm5171, %v5170, %v5168
    %s5173 = scalar_lea.vmem [#allocation1], 475
    %v5174 = vld [vmem:[%s5173] sm:$0x80]
    %vm5175 = vcmask 1047559
    %v5176 = vsel %vm5175, %v5174, %v5172
    %5177 = vrot.lane.b32.xlu0 %v5176, 32
    %v5178 = vpop.permute.xlu0 %5177
    %vm5179 = vcmask 392448
    %s5180 = scalar_lea.vmem [#allocation0], 64
    %5181 = vst.msk [vmem:[%s5180] sm:$0xff] %vm5179, %v5178
    %s5182 = scalar_lea.vmem [#allocation1], 50
    %v5183 = vld [vmem:[%s5182] sm:$0x1]
    %s5184 = scalar_lea.vmem [#allocation1], 113
    %v5185 = vld [vmem:[%s5184] sm:$0x2]
    %vm5186 = vcmask 1041409
    %v5187 = vsel %vm5186, %v5185, %v5183
    %s5188 = scalar_lea.vmem [#allocation1], 176
    %v5189 = vld [vmem:[%s5188] sm:$0x4]
    %vm5190 = vcmask 1042434
    %v5191 = vsel %vm5190, %v5189, %v5187
    %s5192 = scalar_lea.vmem [#allocation1], 239
    %v5193 = vld [vmem:[%s5192] sm:$0x8]
    %vm5194 = vcmask 1043459
    %v5195 = vsel %vm5194, %v5193, %v5191
    %s5196 = scalar_lea.vmem [#allocation1], 302
    %v5197 = vld [vmem:[%s5196] sm:$0x10]
    %vm5198 = vcmask 1044484
    %v5199 = vsel %vm5198, %v5197, %v5195
    %s5200 = scalar_lea.vmem [#allocation1], 365
    %v5201 = vld [vmem:[%s5200] sm:$0x20]
    %vm5202 = vcmask 1045509
    %v5203 = vsel %vm5202, %v5201, %v5199
    %s5204 = scalar_lea.vmem [#allocation1], 428
    %v5205 = vld [vmem:[%s5204] sm:$0x40]
    %vm5206 = vcmask 1046534
    %v5207 = vsel %vm5206, %v5205, %v5203
    %s5208 = scalar_lea.vmem [#allocation1], 491
    %v5209 = vld [vmem:[%s5208] sm:$0x80]
    %vm5210 = vcmask 1047559
    %v5211 = vsel %vm5210, %v5209, %v5207
    %5212 = vrot.lane.b32.xlu0 %v5211, 32
    %v5213 = vpop.permute.xlu0 %5212
    %vm5214 = vcmask 392448
    %s5215 = scalar_lea.vmem [#allocation0], 96
    %5216 = vst.msk [vmem:[%s5215] sm:$0xff] %vm5214, %v5213
    %s5217 = scalar_lea.vmem [#allocation1], 514
    %v5218 = vld [vmem:[%s5217] sm:$0x1]
    %s5219 = scalar_lea.vmem [#allocation1], 577
    %v5220 = vld [vmem:[%s5219] sm:$0x2]
    %vm5221 = vcmask 1041409
    %v5222 = vsel %vm5221, %v5220, %v5218
    %s5223 = scalar_lea.vmem [#allocation1], 640
    %v5224 = vld [vmem:[%s5223] sm:$0x4]
    %vm5225 = vcmask 1042434
    %v5226 = vsel %vm5225, %v5224, %v5222
    %s5227 = scalar_lea.vmem [#allocation1], 703
    %v5228 = vld [vmem:[%s5227] sm:$0x8]
    %vm5229 = vcmask 1043459
    %v5230 = vsel %vm5229, %v5228, %v5226
    %s5231 = scalar_lea.vmem [#allocation1], 766
    %v5232 = vld [vmem:[%s5231] sm:$0x10]
    %vm5233 = vcmask 1044484
    %v5234 = vsel %vm5233, %v5232, %v5230
    %s5235 = scalar_lea.vmem [#allocation1], 829
    %v5236 = vld [vmem:[%s5235] sm:$0x20]
    %vm5237 = vcmask 1045509
    %v5238 = vsel %vm5237, %v5236, %v5234
    %s5239 = scalar_lea.vmem [#allocation1], 892
    %v5240 = vld [vmem:[%s5239] sm:$0x40]
    %vm5241 = vcmask 1046534
    %v5242 = vsel %vm5241, %v5240, %v5238
    %s5243 = scalar_lea.vmem [#allocation1], 955
    %v5244 = vld [vmem:[%s5243] sm:$0x80]
    %vm5245 = vcmask 1047559
    %v5246 = vsel %vm5245, %v5244, %v5242
    %5247 = vrot.lane.b32.xlu0 %v5246, 32
    %v5248 = vpop.permute.xlu0 %5247
    %vm5249 = vcmask 392448
    %s5250 = scalar_lea.vmem [#allocation0], 8
    %5251 = vst.msk [vmem:[%s5250] sm:$0xff] %vm5249, %v5248
    %s5252 = scalar_lea.vmem [#allocation1], 530
    %v5253 = vld [vmem:[%s5252] sm:$0x1]
    %s5254 = scalar_lea.vmem [#allocation1], 593
    %v5255 = vld [vmem:[%s5254] sm:$0x2]
    %vm5256 = vcmask 1041409
    %v5257 = vsel %vm5256, %v5255, %v5253
    %s5258 = scalar_lea.vmem [#allocation1], 656
    %v5259 = vld [vmem:[%s5258] sm:$0x4]
    %vm5260 = vcmask 1042434
    %v5261 = vsel %vm5260, %v5259, %v5257
    %s5262 = scalar_lea.vmem [#allocation1], 719
    %v5263 = vld [vmem:[%s5262] sm:$0x8]
    %vm5264 = vcmask 1043459
    %v5265 = vsel %vm5264, %v5263, %v5261
    %s5266 = scalar_lea.vmem [#allocation1], 782
    %v5267 = vld [vmem:[%s5266] sm:$0x10]
    %vm5268 = vcmask 1044484
    %v5269 = vsel %vm5268, %v5267, %v5265
    %s5270 = scalar_lea.vmem [#allocation1], 845
    %v5271 = vld [vmem:[%s5270] sm:$0x20]
    %vm5272 = vcmask 1045509
    %v5273 = vsel %vm5272, %v5271, %v5269
    %s5274 = scalar_lea.vmem [#allocation1], 908
    %v5275 = vld [vmem:[%s5274] sm:$0x40]
    %vm5276 = vcmask 1046534
    %v5277 = vsel %vm5276, %v5275, %v5273
    %s5278 = scalar_lea.vmem [#allocation1], 971
    %v5279 = vld [vmem:[%s5278] sm:$0x80]
    %vm5280 = vcmask 1047559
    %v5281 = vsel %vm5280, %v5279, %v5277
    %5282 = vrot.lane.b32.xlu0 %v5281, 32
    %v5283 = vpop.permute.xlu0 %5282
    %vm5284 = vcmask 392448
    %s5285 = scalar_lea.vmem [#allocation0], 40
    %5286 = vst.msk [vmem:[%s5285] sm:$0xff] %vm5284, %v5283
    %s5287 = scalar_lea.vmem [#allocation1], 546
    %v5288 = vld [vmem:[%s5287] sm:$0x1]
    %s5289 = scalar_lea.vmem [#allocation1], 609
    %v5290 = vld [vmem:[%s5289] sm:$0x2]
    %vm5291 = vcmask 1041409
    %v5292 = vsel %vm5291, %v5290, %v5288
    %s5293 = scalar_lea.vmem [#allocation1], 672
    %v5294 = vld [vmem:[%s5293] sm:$0x4]
    %vm5295 = vcmask 1042434
    %v5296 = vsel %vm5295, %v5294, %v5292
    %s5297 = scalar_lea.vmem [#allocation1], 735
    %v5298 = vld [vmem:[%s5297] sm:$0x8]
    %vm5299 = vcmask 1043459
    %v5300 = vsel %vm5299, %v5298, %v5296
    %s5301 = scalar_lea.vmem [#allocation1], 798
    %v5302 = vld [vmem:[%s5301] sm:$0x10]
    %vm5303 = vcmask 1044484
    %v5304 = vsel %vm5303, %v5302, %v5300
    %s5305 = scalar_lea.vmem [#allocation1], 861
    %v5306 = vld [vmem:[%s5305] sm:$0x20]
    %vm5307 = vcmask 1045509
    %v5308 = vsel %vm5307, %v5306, %v5304
    %s5309 = scalar_lea.vmem [#allocation1], 924
    %v5310 = vld [vmem:[%s5309] sm:$0x40]
    %vm5311 = vcmask 1046534
    %v5312 = vsel %vm5311, %v5310, %v5308
    %s5313 = scalar_lea.vmem [#allocation1], 987
    %v5314 = vld [vmem:[%s5313] sm:$0x80]
    %vm5315 = vcmask 1047559
    %v5316 = vsel %vm5315, %v5314, %v5312
    %5317 = vrot.lane.b32.xlu0 %v5316, 32
    %v5318 = vpop.permute.xlu0 %5317
    %vm5319 = vcmask 392448
    %s5320 = scalar_lea.vmem [#allocation0], 72
    %5321 = vst.msk [vmem:[%s5320] sm:$0xff] %vm5319, %v5318
    %s5322 = scalar_lea.vmem [#allocation1], 562
    %v5323 = vld [vmem:[%s5322] sm:$0x1]
    %s5324 = scalar_lea.vmem [#allocation1], 625
    %v5325 = vld [vmem:[%s5324] sm:$0x2]
    %vm5326 = vcmask 1041409
    %v5327 = vsel %vm5326, %v5325, %v5323
    %s5328 = scalar_lea.vmem [#allocation1], 688
    %v5329 = vld [vmem:[%s5328] sm:$0x4]
    %vm5330 = vcmask 1042434
    %v5331 = vsel %vm5330, %v5329, %v5327
    %s5332 = scalar_lea.vmem [#allocation1], 751
    %v5333 = vld [vmem:[%s5332] sm:$0x8]
    %vm5334 = vcmask 1043459
    %v5335 = vsel %vm5334, %v5333, %v5331
    %s5336 = scalar_lea.vmem [#allocation1], 814
    %v5337 = vld [vmem:[%s5336] sm:$0x10]
    %vm5338 = vcmask 1044484
    %v5339 = vsel %vm5338, %v5337, %v5335
    %s5340 = scalar_lea.vmem [#allocation1], 877
    %v5341 = vld [vmem:[%s5340] sm:$0x20]
    %vm5342 = vcmask 1045509
    %v5343 = vsel %vm5342, %v5341, %v5339
    %s5344 = scalar_lea.vmem [#allocation1], 940
    %v5345 = vld [vmem:[%s5344] sm:$0x40]
    %vm5346 = vcmask 1046534
    %v5347 = vsel %vm5346, %v5345, %v5343
    %s5348 = scalar_lea.vmem [#allocation1], 1003
    %v5349 = vld [vmem:[%s5348] sm:$0x80]
    %vm5350 = vcmask 1047559
    %v5351 = vsel %vm5350, %v5349, %v5347
    %5352 = vrot.lane.b32.xlu0 %v5351, 32
    %v5353 = vpop.permute.xlu0 %5352
    %vm5354 = vcmask 392448
    %s5355 = scalar_lea.vmem [#allocation0], 104
    %5356 = vst.msk [vmem:[%s5355] sm:$0xff] %vm5354, %v5353
    %s5357 = scalar_lea.vmem [#allocation1], 10
    %v5358 = vld [vmem:[%s5357] sm:$0x1]
    %s5359 = scalar_lea.vmem [#allocation1], 73
    %v5360 = vld [vmem:[%s5359] sm:$0x2]
    %vm5361 = vcmask 1041409
    %v5362 = vsel %vm5361, %v5360, %v5358
    %s5363 = scalar_lea.vmem [#allocation1], 136
    %v5364 = vld [vmem:[%s5363] sm:$0x4]
    %vm5365 = vcmask 1042434
    %v5366 = vsel %vm5365, %v5364, %v5362
    %s5367 = scalar_lea.vmem [#allocation1], 199
    %v5368 = vld [vmem:[%s5367] sm:$0x8]
    %vm5369 = vcmask 1043459
    %v5370 = vsel %vm5369, %v5368, %v5366
    %s5371 = scalar_lea.vmem [#allocation1], 262
    %v5372 = vld [vmem:[%s5371] sm:$0x10]
    %vm5373 = vcmask 1044484
    %v5374 = vsel %vm5373, %v5372, %v5370
    %s5375 = scalar_lea.vmem [#allocation1], 325
    %v5376 = vld [vmem:[%s5375] sm:$0x20]
    %vm5377 = vcmask 1045509
    %v5378 = vsel %vm5377, %v5376, %v5374
    %s5379 = scalar_lea.vmem [#allocation1], 388
    %v5380 = vld [vmem:[%s5379] sm:$0x40]
    %vm5381 = vcmask 1046534
    %v5382 = vsel %vm5381, %v5380, %v5378
    %s5383 = scalar_lea.vmem [#allocation1], 451
    %v5384 = vld [vmem:[%s5383] sm:$0x80]
    %vm5385 = vcmask 1047559
    %v5386 = vsel %vm5385, %v5384, %v5382
    %5387 = vrot.lane.b32.xlu0 %v5386, 32
    %v5388 = vpop.permute.xlu0 %5387
    %vm5389 = vcmask 392448
    %s5390 = scalar_lea.vmem [#allocation0], 16
    %5391 = vst.msk [vmem:[%s5390] sm:$0xff] %vm5389, %v5388
    %s5392 = scalar_lea.vmem [#allocation1], 26
    %v5393 = vld [vmem:[%s5392] sm:$0x1]
    %s5394 = scalar_lea.vmem [#allocation1], 89
    %v5395 = vld [vmem:[%s5394] sm:$0x2]
    %vm5396 = vcmask 1041409
    %v5397 = vsel %vm5396, %v5395, %v5393
    %s5398 = scalar_lea.vmem [#allocation1], 152
    %v5399 = vld [vmem:[%s5398] sm:$0x4]
    %vm5400 = vcmask 1042434
    %v5401 = vsel %vm5400, %v5399, %v5397
    %s5402 = scalar_lea.vmem [#allocation1], 215
    %v5403 = vld [vmem:[%s5402] sm:$0x8]
    %vm5404 = vcmask 1043459
    %v5405 = vsel %vm5404, %v5403, %v5401
    %s5406 = scalar_lea.vmem [#allocation1], 278
    %v5407 = vld [vmem:[%s5406] sm:$0x10]
    %vm5408 = vcmask 1044484
    %v5409 = vsel %vm5408, %v5407, %v5405
    %s5410 = scalar_lea.vmem [#allocation1], 341
    %v5411 = vld [vmem:[%s5410] sm:$0x20]
    %vm5412 = vcmask 1045509
    %v5413 = vsel %vm5412, %v5411, %v5409
    %s5414 = scalar_lea.vmem [#allocation1], 404
    %v5415 = vld [vmem:[%s5414] sm:$0x40]
    %vm5416 = vcmask 1046534
    %v5417 = vsel %vm5416, %v5415, %v5413
    %s5418 = scalar_lea.vmem [#allocation1], 467
    %v5419 = vld [vmem:[%s5418] sm:$0x80]
    %vm5420 = vcmask 1047559
    %v5421 = vsel %vm5420, %v5419, %v5417
    %5422 = vrot.lane.b32.xlu0 %v5421, 32
    %v5423 = vpop.permute.xlu0 %5422
    %vm5424 = vcmask 392448
    %s5425 = scalar_lea.vmem [#allocation0], 48
    %5426 = vst.msk [vmem:[%s5425] sm:$0xff] %vm5424, %v5423
    %s5427 = scalar_lea.vmem [#allocation1], 42
    %v5428 = vld [vmem:[%s5427] sm:$0x1]
    %s5429 = scalar_lea.vmem [#allocation1], 105
    %v5430 = vld [vmem:[%s5429] sm:$0x2]
    %vm5431 = vcmask 1041409
    %v5432 = vsel %vm5431, %v5430, %v5428
    %s5433 = scalar_lea.vmem [#allocation1], 168
    %v5434 = vld [vmem:[%s5433] sm:$0x4]
    %vm5435 = vcmask 1042434
    %v5436 = vsel %vm5435, %v5434, %v5432
    %s5437 = scalar_lea.vmem [#allocation1], 231
    %v5438 = vld [vmem:[%s5437] sm:$0x8]
    %vm5439 = vcmask 1043459
    %v5440 = vsel %vm5439, %v5438, %v5436
    %s5441 = scalar_lea.vmem [#allocation1], 294
    %v5442 = vld [vmem:[%s5441] sm:$0x10]
    %vm5443 = vcmask 1044484
    %v5444 = vsel %vm5443, %v5442, %v5440
    %s5445 = scalar_lea.vmem [#allocation1], 357
    %v5446 = vld [vmem:[%s5445] sm:$0x20]
    %vm5447 = vcmask 1045509
    %v5448 = vsel %vm5447, %v5446, %v5444
    %s5449 = scalar_lea.vmem [#allocation1], 420
    %v5450 = vld [vmem:[%s5449] sm:$0x40]
    %vm5451 = vcmask 1046534
    %v5452 = vsel %vm5451, %v5450, %v5448
    %s5453 = scalar_lea.vmem [#allocation1], 483
    %v5454 = vld [vmem:[%s5453] sm:$0x80]
    %vm5455 = vcmask 1047559
    %v5456 = vsel %vm5455, %v5454, %v5452
    %5457 = vrot.lane.b32.xlu0 %v5456, 32
    %v5458 = vpop.permute.xlu0 %5457
    %vm5459 = vcmask 392448
    %s5460 = scalar_lea.vmem [#allocation0], 80
    %5461 = vst.msk [vmem:[%s5460] sm:$0xff] %vm5459, %v5458
    %s5462 = scalar_lea.vmem [#allocation1], 58
    %v5463 = vld [vmem:[%s5462] sm:$0x1]
    %s5464 = scalar_lea.vmem [#allocation1], 121
    %v5465 = vld [vmem:[%s5464] sm:$0x2]
    %vm5466 = vcmask 1041409
    %v5467 = vsel %vm5466, %v5465, %v5463
    %s5468 = scalar_lea.vmem [#allocation1], 184
    %v5469 = vld [vmem:[%s5468] sm:$0x4]
    %vm5470 = vcmask 1042434
    %v5471 = vsel %vm5470, %v5469, %v5467
    %s5472 = scalar_lea.vmem [#allocation1], 247
    %v5473 = vld [vmem:[%s5472] sm:$0x8]
    %vm5474 = vcmask 1043459
    %v5475 = vsel %vm5474, %v5473, %v5471
    %s5476 = scalar_lea.vmem [#allocation1], 310
    %v5477 = vld [vmem:[%s5476] sm:$0x10]
    %vm5478 = vcmask 1044484
    %v5479 = vsel %vm5478, %v5477, %v5475
    %s5480 = scalar_lea.vmem [#allocation1], 373
    %v5481 = vld [vmem:[%s5480] sm:$0x20]
    %vm5482 = vcmask 1045509
    %v5483 = vsel %vm5482, %v5481, %v5479
    %s5484 = scalar_lea.vmem [#allocation1], 436
    %v5485 = vld [vmem:[%s5484] sm:$0x40]
    %vm5486 = vcmask 1046534
    %v5487 = vsel %vm5486, %v5485, %v5483
    %s5488 = scalar_lea.vmem [#allocation1], 499
    %v5489 = vld [vmem:[%s5488] sm:$0x80]
    %vm5490 = vcmask 1047559
    %v5491 = vsel %vm5490, %v5489, %v5487
    %5492 = vrot.lane.b32.xlu0 %v5491, 32
    %v5493 = vpop.permute.xlu0 %5492
    %vm5494 = vcmask 392448
    %s5495 = scalar_lea.vmem [#allocation0], 112
    %5496 = vst.msk [vmem:[%s5495] sm:$0xff] %vm5494, %v5493
    %s5497 = scalar_lea.vmem [#allocation1], 522
    %v5498 = vld [vmem:[%s5497] sm:$0x1]
    %s5499 = scalar_lea.vmem [#allocation1], 585
    %v5500 = vld [vmem:[%s5499] sm:$0x2]
    %vm5501 = vcmask 1041409
    %v5502 = vsel %vm5501, %v5500, %v5498
    %s5503 = scalar_lea.vmem [#allocation1], 648
    %v5504 = vld [vmem:[%s5503] sm:$0x4]
    %vm5505 = vcmask 1042434
    %v5506 = vsel %vm5505, %v5504, %v5502
    %s5507 = scalar_lea.vmem [#allocation1], 711
    %v5508 = vld [vmem:[%s5507] sm:$0x8]
    %vm5509 = vcmask 1043459
    %v5510 = vsel %vm5509, %v5508, %v5506
    %s5511 = scalar_lea.vmem [#allocation1], 774
    %v5512 = vld [vmem:[%s5511] sm:$0x10]
    %vm5513 = vcmask 1044484
    %v5514 = vsel %vm5513, %v5512, %v5510
    %s5515 = scalar_lea.vmem [#allocation1], 837
    %v5516 = vld [vmem:[%s5515] sm:$0x20]
    %vm5517 = vcmask 1045509
    %v5518 = vsel %vm5517, %v5516, %v5514
    %s5519 = scalar_lea.vmem [#allocation1], 900
    %v5520 = vld [vmem:[%s5519] sm:$0x40]
    %vm5521 = vcmask 1046534
    %v5522 = vsel %vm5521, %v5520, %v5518
    %s5523 = scalar_lea.vmem [#allocation1], 963
    %v5524 = vld [vmem:[%s5523] sm:$0x80]
    %vm5525 = vcmask 1047559
    %v5526 = vsel %vm5525, %v5524, %v5522
    %5527 = vrot.lane.b32.xlu0 %v5526, 32
    %v5528 = vpop.permute.xlu0 %5527
    %vm5529 = vcmask 392448
    %s5530 = scalar_lea.vmem [#allocation0], 24
    %5531 = vst.msk [vmem:[%s5530] sm:$0xff] %vm5529, %v5528
    %s5532 = scalar_lea.vmem [#allocation1], 538
    %v5533 = vld [vmem:[%s5532] sm:$0x1]
    %s5534 = scalar_lea.vmem [#allocation1], 601
    %v5535 = vld [vmem:[%s5534] sm:$0x2]
    %vm5536 = vcmask 1041409
    %v5537 = vsel %vm5536, %v5535, %v5533
    %s5538 = scalar_lea.vmem [#allocation1], 664
    %v5539 = vld [vmem:[%s5538] sm:$0x4]
    %vm5540 = vcmask 1042434
    %v5541 = vsel %vm5540, %v5539, %v5537
    %s5542 = scalar_lea.vmem [#allocation1], 727
    %v5543 = vld [vmem:[%s5542] sm:$0x8]
    %vm5544 = vcmask 1043459
    %v5545 = vsel %vm5544, %v5543, %v5541
    %s5546 = scalar_lea.vmem [#allocation1], 790
    %v5547 = vld [vmem:[%s5546] sm:$0x10]
    %vm5548 = vcmask 1044484
    %v5549 = vsel %vm5548, %v5547, %v5545
    %s5550 = scalar_lea.vmem [#allocation1], 853
    %v5551 = vld [vmem:[%s5550] sm:$0x20]
    %vm5552 = vcmask 1045509
    %v5553 = vsel %vm5552, %v5551, %v5549
    %s5554 = scalar_lea.vmem [#allocation1], 916
    %v5555 = vld [vmem:[%s5554] sm:$0x40]
    %vm5556 = vcmask 1046534
    %v5557 = vsel %vm5556, %v5555, %v5553
    %s5558 = scalar_lea.vmem [#allocation1], 979
    %v5559 = vld [vmem:[%s5558] sm:$0x80]
    %vm5560 = vcmask 1047559
    %v5561 = vsel %vm5560, %v5559, %v5557
    %5562 = vrot.lane.b32.xlu0 %v5561, 32
    %v5563 = vpop.permute.xlu0 %5562
    %vm5564 = vcmask 392448
    %s5565 = scalar_lea.vmem [#allocation0], 56
    %5566 = vst.msk [vmem:[%s5565] sm:$0xff] %vm5564, %v5563
    %s5567 = scalar_lea.vmem [#allocation1], 554
    %v5568 = vld [vmem:[%s5567] sm:$0x1]
    %s5569 = scalar_lea.vmem [#allocation1], 617
    %v5570 = vld [vmem:[%s5569] sm:$0x2]
    %vm5571 = vcmask 1041409
    %v5572 = vsel %vm5571, %v5570, %v5568
    %s5573 = scalar_lea.vmem [#allocation1], 680
    %v5574 = vld [vmem:[%s5573] sm:$0x4]
    %vm5575 = vcmask 1042434
    %v5576 = vsel %vm5575, %v5574, %v5572
    %s5577 = scalar_lea.vmem [#allocation1], 743
    %v5578 = vld [vmem:[%s5577] sm:$0x8]
    %vm5579 = vcmask 1043459
    %v5580 = vsel %vm5579, %v5578, %v5576
    %s5581 = scalar_lea.vmem [#allocation1], 806
    %v5582 = vld [vmem:[%s5581] sm:$0x10]
    %vm5583 = vcmask 1044484
    %v5584 = vsel %vm5583, %v5582, %v5580
    %s5585 = scalar_lea.vmem [#allocation1], 869
    %v5586 = vld [vmem:[%s5585] sm:$0x20]
    %vm5587 = vcmask 1045509
    %v5588 = vsel %vm5587, %v5586, %v5584
    %s5589 = scalar_lea.vmem [#allocation1], 932
    %v5590 = vld [vmem:[%s5589] sm:$0x40]
    %vm5591 = vcmask 1046534
    %v5592 = vsel %vm5591, %v5590, %v5588
    %s5593 = scalar_lea.vmem [#allocation1], 995
    %v5594 = vld [vmem:[%s5593] sm:$0x80]
    %vm5595 = vcmask 1047559
    %v5596 = vsel %vm5595, %v5594, %v5592
    %5597 = vrot.lane.b32.xlu0 %v5596, 32
    %v5598 = vpop.permute.xlu0 %5597
    %vm5599 = vcmask 392448
    %s5600 = scalar_lea.vmem [#allocation0], 88
    %5601 = vst.msk [vmem:[%s5600] sm:$0xff] %vm5599, %v5598
    %s5602 = scalar_lea.vmem [#allocation1], 570
    %v5603 = vld [vmem:[%s5602] sm:$0x1]
    %s5604 = scalar_lea.vmem [#allocation1], 633
    %v5605 = vld [vmem:[%s5604] sm:$0x2]
    %vm5606 = vcmask 1041409
    %v5607 = vsel %vm5606, %v5605, %v5603
    %s5608 = scalar_lea.vmem [#allocation1], 696
    %v5609 = vld [vmem:[%s5608] sm:$0x4]
    %vm5610 = vcmask 1042434
    %v5611 = vsel %vm5610, %v5609, %v5607
    %s5612 = scalar_lea.vmem [#allocation1], 759
    %v5613 = vld [vmem:[%s5612] sm:$0x8]
    %vm5614 = vcmask 1043459
    %v5615 = vsel %vm5614, %v5613, %v5611
    %s5616 = scalar_lea.vmem [#allocation1], 822
    %v5617 = vld [vmem:[%s5616] sm:$0x10]
    %vm5618 = vcmask 1044484
    %v5619 = vsel %vm5618, %v5617, %v5615
    %s5620 = scalar_lea.vmem [#allocation1], 885
    %v5621 = vld [vmem:[%s5620] sm:$0x20]
    %vm5622 = vcmask 1045509
    %v5623 = vsel %vm5622, %v5621, %v5619
    %s5624 = scalar_lea.vmem [#allocation1], 948
    %v5625 = vld [vmem:[%s5624] sm:$0x40]
    %vm5626 = vcmask 1046534
    %v5627 = vsel %vm5626, %v5625, %v5623
    %s5628 = scalar_lea.vmem [#allocation1], 1011
    %v5629 = vld [vmem:[%s5628] sm:$0x80]
    %vm5630 = vcmask 1047559
    %v5631 = vsel %vm5630, %v5629, %v5627
    %5632 = vrot.lane.b32.xlu0 %v5631, 32
    %v5633 = vpop.permute.xlu0 %5632
    %vm5634 = vcmask 392448
    %s5635 = scalar_lea.vmem [#allocation0], 120
    %5636 = vst.msk [vmem:[%s5635] sm:$0xff] %vm5634, %v5633
    %s5637 = scalar_lea.vmem [#allocation1], 1
    %v5638 = vld [vmem:[%s5637] sm:$0x1]
    %s5639 = scalar_lea.vmem [#allocation1], 64
    %v5640 = vld [vmem:[%s5639] sm:$0x2]
    %vm5641 = vcmask 1041409
    %v5642 = vsel %vm5641, %v5640, %v5638
    %s5643 = scalar_lea.vmem [#allocation1], 127
    %v5644 = vld [vmem:[%s5643] sm:$0x4]
    %vm5645 = vcmask 1042434
    %v5646 = vsel %vm5645, %v5644, %v5642
    %s5647 = scalar_lea.vmem [#allocation1], 190
    %v5648 = vld [vmem:[%s5647] sm:$0x8]
    %vm5649 = vcmask 1043459
    %v5650 = vsel %vm5649, %v5648, %v5646
    %s5651 = scalar_lea.vmem [#allocation1], 253
    %v5652 = vld [vmem:[%s5651] sm:$0x10]
    %vm5653 = vcmask 1044484
    %v5654 = vsel %vm5653, %v5652, %v5650
    %s5655 = scalar_lea.vmem [#allocation1], 316
    %v5656 = vld [vmem:[%s5655] sm:$0x20]
    %vm5657 = vcmask 1045509
    %v5658 = vsel %vm5657, %v5656, %v5654
    %s5659 = scalar_lea.vmem [#allocation1], 379
    %v5660 = vld [vmem:[%s5659] sm:$0x40]
    %vm5661 = vcmask 1046534
    %v5662 = vsel %vm5661, %v5660, %v5658
    %s5663 = scalar_lea.vmem [#allocation1], 442
    %v5664 = vld [vmem:[%s5663] sm:$0x80]
    %vm5665 = vcmask 1047559
    %v5666 = vsel %vm5665, %v5664, %v5662
    %5667 = vrot.lane.b32.xlu0 %v5666, 16
    %v5668 = vpop.permute.xlu0 %5667
    %vm5669 = vcmask 261248
    %5670 = vst.msk [vmem:[#allocation0] sm:$0xff] %vm5669, %v5668
    %s5671 = scalar_lea.vmem [#allocation1], 17
    %v5672 = vld [vmem:[%s5671] sm:$0x1]
    %s5673 = scalar_lea.vmem [#allocation1], 80
    %v5674 = vld [vmem:[%s5673] sm:$0x2]
    %vm5675 = vcmask 1041409
    %v5676 = vsel %vm5675, %v5674, %v5672
    %s5677 = scalar_lea.vmem [#allocation1], 143
    %v5678 = vld [vmem:[%s5677] sm:$0x4]
    %vm5679 = vcmask 1042434
    %v5680 = vsel %vm5679, %v5678, %v5676
    %s5681 = scalar_lea.vmem [#allocation1], 206
    %v5682 = vld [vmem:[%s5681] sm:$0x8]
    %vm5683 = vcmask 1043459
    %v5684 = vsel %vm5683, %v5682, %v5680
    %s5685 = scalar_lea.vmem [#allocation1], 269
    %v5686 = vld [vmem:[%s5685] sm:$0x10]
    %vm5687 = vcmask 1044484
    %v5688 = vsel %vm5687, %v5686, %v5684
    %s5689 = scalar_lea.vmem [#allocation1], 332
    %v5690 = vld [vmem:[%s5689] sm:$0x20]
    %vm5691 = vcmask 1045509
    %v5692 = vsel %vm5691, %v5690, %v5688
    %s5693 = scalar_lea.vmem [#allocation1], 395
    %v5694 = vld [vmem:[%s5693] sm:$0x40]
    %vm5695 = vcmask 1046534
    %v5696 = vsel %vm5695, %v5694, %v5692
    %s5697 = scalar_lea.vmem [#allocation1], 458
    %v5698 = vld [vmem:[%s5697] sm:$0x80]
    %vm5699 = vcmask 1047559
    %v5700 = vsel %vm5699, %v5698, %v5696
    %5701 = vrot.lane.b32.xlu0 %v5700, 16
    %v5702 = vpop.permute.xlu0 %5701
    %vm5703 = vcmask 261248
    %s5704 = scalar_lea.vmem [#allocation0], 32
    %5705 = vst.msk [vmem:[%s5704] sm:$0xff] %vm5703, %v5702
    %s5706 = scalar_lea.vmem [#allocation1], 33
    %v5707 = vld [vmem:[%s5706] sm:$0x1]
    %s5708 = scalar_lea.vmem [#allocation1], 96
    %v5709 = vld [vmem:[%s5708] sm:$0x2]
    %vm5710 = vcmask 1041409
    %v5711 = vsel %vm5710, %v5709, %v5707
    %s5712 = scalar_lea.vmem [#allocation1], 159
    %v5713 = vld [vmem:[%s5712] sm:$0x4]
    %vm5714 = vcmask 1042434
    %v5715 = vsel %vm5714, %v5713, %v5711
    %s5716 = scalar_lea.vmem [#allocation1], 222
    %v5717 = vld [vmem:[%s5716] sm:$0x8]
    %vm5718 = vcmask 1043459
    %v5719 = vsel %vm5718, %v5717, %v5715
    %s5720 = scalar_lea.vmem [#allocation1], 285
    %v5721 = vld [vmem:[%s5720] sm:$0x10]
    %vm5722 = vcmask 1044484
    %v5723 = vsel %vm5722, %v5721, %v5719
    %s5724 = scalar_lea.vmem [#allocation1], 348
    %v5725 = vld [vmem:[%s5724] sm:$0x20]
    %vm5726 = vcmask 1045509
    %v5727 = vsel %vm5726, %v5725, %v5723
    %s5728 = scalar_lea.vmem [#allocation1], 411
    %v5729 = vld [vmem:[%s5728] sm:$0x40]
    %vm5730 = vcmask 1046534
    %v5731 = vsel %vm5730, %v5729, %v5727
    %s5732 = scalar_lea.vmem [#allocation1], 474
    %v5733 = vld [vmem:[%s5732] sm:$0x80]
    %vm5734 = vcmask 1047559
    %v5735 = vsel %vm5734, %v5733, %v5731
    %5736 = vrot.lane.b32.xlu0 %v5735, 16
    %v5737 = vpop.permute.xlu0 %5736
    %vm5738 = vcmask 261248
    %s5739 = scalar_lea.vmem [#allocation0], 64
    %5740 = vst.msk [vmem:[%s5739] sm:$0xff] %vm5738, %v5737
    %s5741 = scalar_lea.vmem [#allocation1], 49
    %v5742 = vld [vmem:[%s5741] sm:$0x1]
    %s5743 = scalar_lea.vmem [#allocation1], 112
    %v5744 = vld [vmem:[%s5743] sm:$0x2]
    %vm5745 = vcmask 1041409
    %v5746 = vsel %vm5745, %v5744, %v5742
    %s5747 = scalar_lea.vmem [#allocation1], 175
    %v5748 = vld [vmem:[%s5747] sm:$0x4]
    %vm5749 = vcmask 1042434
    %v5750 = vsel %vm5749, %v5748, %v5746
    %s5751 = scalar_lea.vmem [#allocation1], 238
    %v5752 = vld [vmem:[%s5751] sm:$0x8]
    %vm5753 = vcmask 1043459
    %v5754 = vsel %vm5753, %v5752, %v5750
    %s5755 = scalar_lea.vmem [#allocation1], 301
    %v5756 = vld [vmem:[%s5755] sm:$0x10]
    %vm5757 = vcmask 1044484
    %v5758 = vsel %vm5757, %v5756, %v5754
    %s5759 = scalar_lea.vmem [#allocation1], 364
    %v5760 = vld [vmem:[%s5759] sm:$0x20]
    %vm5761 = vcmask 1045509
    %v5762 = vsel %vm5761, %v5760, %v5758
    %s5763 = scalar_lea.vmem [#allocation1], 427
    %v5764 = vld [vmem:[%s5763] sm:$0x40]
    %vm5765 = vcmask 1046534
    %v5766 = vsel %vm5765, %v5764, %v5762
    %s5767 = scalar_lea.vmem [#allocation1], 490
    %v5768 = vld [vmem:[%s5767] sm:$0x80]
    %vm5769 = vcmask 1047559
    %v5770 = vsel %vm5769, %v5768, %v5766
    %5771 = vrot.lane.b32.xlu0 %v5770, 16
    %v5772 = vpop.permute.xlu0 %5771
    %vm5773 = vcmask 261248
    %s5774 = scalar_lea.vmem [#allocation0], 96
    %5775 = vst.msk [vmem:[%s5774] sm:$0xff] %vm5773, %v5772
    %s5776 = scalar_lea.vmem [#allocation1], 513
    %v5777 = vld [vmem:[%s5776] sm:$0x1]
    %s5778 = scalar_lea.vmem [#allocation1], 576
    %v5779 = vld [vmem:[%s5778] sm:$0x2]
    %vm5780 = vcmask 1041409
    %v5781 = vsel %vm5780, %v5779, %v5777
    %s5782 = scalar_lea.vmem [#allocation1], 639
    %v5783 = vld [vmem:[%s5782] sm:$0x4]
    %vm5784 = vcmask 1042434
    %v5785 = vsel %vm5784, %v5783, %v5781
    %s5786 = scalar_lea.vmem [#allocation1], 702
    %v5787 = vld [vmem:[%s5786] sm:$0x8]
    %vm5788 = vcmask 1043459
    %v5789 = vsel %vm5788, %v5787, %v5785
    %s5790 = scalar_lea.vmem [#allocation1], 765
    %v5791 = vld [vmem:[%s5790] sm:$0x10]
    %vm5792 = vcmask 1044484
    %v5793 = vsel %vm5792, %v5791, %v5789
    %s5794 = scalar_lea.vmem [#allocation1], 828
    %v5795 = vld [vmem:[%s5794] sm:$0x20]
    %vm5796 = vcmask 1045509
    %v5797 = vsel %vm5796, %v5795, %v5793
    %s5798 = scalar_lea.vmem [#allocation1], 891
    %v5799 = vld [vmem:[%s5798] sm:$0x40]
    %vm5800 = vcmask 1046534
    %v5801 = vsel %vm5800, %v5799, %v5797
    %s5802 = scalar_lea.vmem [#allocation1], 954
    %v5803 = vld [vmem:[%s5802] sm:$0x80]
    %vm5804 = vcmask 1047559
    %v5805 = vsel %vm5804, %v5803, %v5801
    %5806 = vrot.lane.b32.xlu0 %v5805, 16
    %v5807 = vpop.permute.xlu0 %5806
    %vm5808 = vcmask 261248
    %s5809 = scalar_lea.vmem [#allocation0], 8
    %5810 = vst.msk [vmem:[%s5809] sm:$0xff] %vm5808, %v5807
    %s5811 = scalar_lea.vmem [#allocation1], 529
    %v5812 = vld [vmem:[%s5811] sm:$0x1]
    %s5813 = scalar_lea.vmem [#allocation1], 592
    %v5814 = vld [vmem:[%s5813] sm:$0x2]
    %vm5815 = vcmask 1041409
    %v5816 = vsel %vm5815, %v5814, %v5812
    %s5817 = scalar_lea.vmem [#allocation1], 655
    %v5818 = vld [vmem:[%s5817] sm:$0x4]
    %vm5819 = vcmask 1042434
    %v5820 = vsel %vm5819, %v5818, %v5816
    %s5821 = scalar_lea.vmem [#allocation1], 718
    %v5822 = vld [vmem:[%s5821] sm:$0x8]
    %vm5823 = vcmask 1043459
    %v5824 = vsel %vm5823, %v5822, %v5820
    %s5825 = scalar_lea.vmem [#allocation1], 781
    %v5826 = vld [vmem:[%s5825] sm:$0x10]
    %vm5827 = vcmask 1044484
    %v5828 = vsel %vm5827, %v5826, %v5824
    %s5829 = scalar_lea.vmem [#allocation1], 844
    %v5830 = vld [vmem:[%s5829] sm:$0x20]
    %vm5831 = vcmask 1045509
    %v5832 = vsel %vm5831, %v5830, %v5828
    %s5833 = scalar_lea.vmem [#allocation1], 907
    %v5834 = vld [vmem:[%s5833] sm:$0x40]
    %vm5835 = vcmask 1046534
    %v5836 = vsel %vm5835, %v5834, %v5832
    %s5837 = scalar_lea.vmem [#allocation1], 970
    %v5838 = vld [vmem:[%s5837] sm:$0x80]
    %vm5839 = vcmask 1047559
    %v5840 = vsel %vm5839, %v5838, %v5836
    %5841 = vrot.lane.b32.xlu0 %v5840, 16
    %v5842 = vpop.permute.xlu0 %5841
    %vm5843 = vcmask 261248
    %s5844 = scalar_lea.vmem [#allocation0], 40
    %5845 = vst.msk [vmem:[%s5844] sm:$0xff] %vm5843, %v5842
    %s5846 = scalar_lea.vmem [#allocation1], 545
    %v5847 = vld [vmem:[%s5846] sm:$0x1]
    %s5848 = scalar_lea.vmem [#allocation1], 608
    %v5849 = vld [vmem:[%s5848] sm:$0x2]
    %vm5850 = vcmask 1041409
    %v5851 = vsel %vm5850, %v5849, %v5847
    %s5852 = scalar_lea.vmem [#allocation1], 671
    %v5853 = vld [vmem:[%s5852] sm:$0x4]
    %vm5854 = vcmask 1042434
    %v5855 = vsel %vm5854, %v5853, %v5851
    %s5856 = scalar_lea.vmem [#allocation1], 734
    %v5857 = vld [vmem:[%s5856] sm:$0x8]
    %vm5858 = vcmask 1043459
    %v5859 = vsel %vm5858, %v5857, %v5855
    %s5860 = scalar_lea.vmem [#allocation1], 797
    %v5861 = vld [vmem:[%s5860] sm:$0x10]
    %vm5862 = vcmask 1044484
    %v5863 = vsel %vm5862, %v5861, %v5859
    %s5864 = scalar_lea.vmem [#allocation1], 860
    %v5865 = vld [vmem:[%s5864] sm:$0x20]
    %vm5866 = vcmask 1045509
    %v5867 = vsel %vm5866, %v5865, %v5863
    %s5868 = scalar_lea.vmem [#allocation1], 923
    %v5869 = vld [vmem:[%s5868] sm:$0x40]
    %vm5870 = vcmask 1046534
    %v5871 = vsel %vm5870, %v5869, %v5867
    %s5872 = scalar_lea.vmem [#allocation1], 986
    %v5873 = vld [vmem:[%s5872] sm:$0x80]
    %vm5874 = vcmask 1047559
    %v5875 = vsel %vm5874, %v5873, %v5871
    %5876 = vrot.lane.b32.xlu0 %v5875, 16
    %v5877 = vpop.permute.xlu0 %5876
    %vm5878 = vcmask 261248
    %s5879 = scalar_lea.vmem [#allocation0], 72
    %5880 = vst.msk [vmem:[%s5879] sm:$0xff] %vm5878, %v5877
    %s5881 = scalar_lea.vmem [#allocation1], 561
    %v5882 = vld [vmem:[%s5881] sm:$0x1]
    %s5883 = scalar_lea.vmem [#allocation1], 624
    %v5884 = vld [vmem:[%s5883] sm:$0x2]
    %vm5885 = vcmask 1041409
    %v5886 = vsel %vm5885, %v5884, %v5882
    %s5887 = scalar_lea.vmem [#allocation1], 687
    %v5888 = vld [vmem:[%s5887] sm:$0x4]
    %vm5889 = vcmask 1042434
    %v5890 = vsel %vm5889, %v5888, %v5886
    %s5891 = scalar_lea.vmem [#allocation1], 750
    %v5892 = vld [vmem:[%s5891] sm:$0x8]
    %vm5893 = vcmask 1043459
    %v5894 = vsel %vm5893, %v5892, %v5890
    %s5895 = scalar_lea.vmem [#allocation1], 813
    %v5896 = vld [vmem:[%s5895] sm:$0x10]
    %vm5897 = vcmask 1044484
    %v5898 = vsel %vm5897, %v5896, %v5894
    %s5899 = scalar_lea.vmem [#allocation1], 876
    %v5900 = vld [vmem:[%s5899] sm:$0x20]
    %vm5901 = vcmask 1045509
    %v5902 = vsel %vm5901, %v5900, %v5898
    %s5903 = scalar_lea.vmem [#allocation1], 939
    %v5904 = vld [vmem:[%s5903] sm:$0x40]
    %vm5905 = vcmask 1046534
    %v5906 = vsel %vm5905, %v5904, %v5902
    %s5907 = scalar_lea.vmem [#allocation1], 1002
    %v5908 = vld [vmem:[%s5907] sm:$0x80]
    %vm5909 = vcmask 1047559
    %v5910 = vsel %vm5909, %v5908, %v5906
    %5911 = vrot.lane.b32.xlu0 %v5910, 16
    %v5912 = vpop.permute.xlu0 %5911
    %vm5913 = vcmask 261248
    %s5914 = scalar_lea.vmem [#allocation0], 104
    %5915 = vst.msk [vmem:[%s5914] sm:$0xff] %vm5913, %v5912
    %s5916 = scalar_lea.vmem [#allocation1], 9
    %v5917 = vld [vmem:[%s5916] sm:$0x1]
    %s5918 = scalar_lea.vmem [#allocation1], 72
    %v5919 = vld [vmem:[%s5918] sm:$0x2]
    %vm5920 = vcmask 1041409
    %v5921 = vsel %vm5920, %v5919, %v5917
    %s5922 = scalar_lea.vmem [#allocation1], 135
    %v5923 = vld [vmem:[%s5922] sm:$0x4]
    %vm5924 = vcmask 1042434
    %v5925 = vsel %vm5924, %v5923, %v5921
    %s5926 = scalar_lea.vmem [#allocation1], 198
    %v5927 = vld [vmem:[%s5926] sm:$0x8]
    %vm5928 = vcmask 1043459
    %v5929 = vsel %vm5928, %v5927, %v5925
    %s5930 = scalar_lea.vmem [#allocation1], 261
    %v5931 = vld [vmem:[%s5930] sm:$0x10]
    %vm5932 = vcmask 1044484
    %v5933 = vsel %vm5932, %v5931, %v5929
    %s5934 = scalar_lea.vmem [#allocation1], 324
    %v5935 = vld [vmem:[%s5934] sm:$0x20]
    %vm5936 = vcmask 1045509
    %v5937 = vsel %vm5936, %v5935, %v5933
    %s5938 = scalar_lea.vmem [#allocation1], 387
    %v5939 = vld [vmem:[%s5938] sm:$0x40]
    %vm5940 = vcmask 1046534
    %v5941 = vsel %vm5940, %v5939, %v5937
    %s5942 = scalar_lea.vmem [#allocation1], 450
    %v5943 = vld [vmem:[%s5942] sm:$0x80]
    %vm5944 = vcmask 1047559
    %v5945 = vsel %vm5944, %v5943, %v5941
    %5946 = vrot.lane.b32.xlu0 %v5945, 16
    %v5947 = vpop.permute.xlu0 %5946
    %vm5948 = vcmask 261248
    %s5949 = scalar_lea.vmem [#allocation0], 16
    %5950 = vst.msk [vmem:[%s5949] sm:$0xff] %vm5948, %v5947
    %s5951 = scalar_lea.vmem [#allocation1], 25
    %v5952 = vld [vmem:[%s5951] sm:$0x1]
    %s5953 = scalar_lea.vmem [#allocation1], 88
    %v5954 = vld [vmem:[%s5953] sm:$0x2]
    %vm5955 = vcmask 1041409
    %v5956 = vsel %vm5955, %v5954, %v5952
    %s5957 = scalar_lea.vmem [#allocation1], 151
    %v5958 = vld [vmem:[%s5957] sm:$0x4]
    %vm5959 = vcmask 1042434
    %v5960 = vsel %vm5959, %v5958, %v5956
    %s5961 = scalar_lea.vmem [#allocation1], 214
    %v5962 = vld [vmem:[%s5961] sm:$0x8]
    %vm5963 = vcmask 1043459
    %v5964 = vsel %vm5963, %v5962, %v5960
    %s5965 = scalar_lea.vmem [#allocation1], 277
    %v5966 = vld [vmem:[%s5965] sm:$0x10]
    %vm5967 = vcmask 1044484
    %v5968 = vsel %vm5967, %v5966, %v5964
    %s5969 = scalar_lea.vmem [#allocation1], 340
    %v5970 = vld [vmem:[%s5969] sm:$0x20]
    %vm5971 = vcmask 1045509
    %v5972 = vsel %vm5971, %v5970, %v5968
    %s5973 = scalar_lea.vmem [#allocation1], 403
    %v5974 = vld [vmem:[%s5973] sm:$0x40]
    %vm5975 = vcmask 1046534
    %v5976 = vsel %vm5975, %v5974, %v5972
    %s5977 = scalar_lea.vmem [#allocation1], 466
    %v5978 = vld [vmem:[%s5977] sm:$0x80]
    %vm5979 = vcmask 1047559
    %v5980 = vsel %vm5979, %v5978, %v5976
    %5981 = vrot.lane.b32.xlu0 %v5980, 16
    %v5982 = vpop.permute.xlu0 %5981
    %vm5983 = vcmask 261248
    %s5984 = scalar_lea.vmem [#allocation0], 48
    %5985 = vst.msk [vmem:[%s5984] sm:$0xff] %vm5983, %v5982
    %s5986 = scalar_lea.vmem [#allocation1], 41
    %v5987 = vld [vmem:[%s5986] sm:$0x1]
    %s5988 = scalar_lea.vmem [#allocation1], 104
    %v5989 = vld [vmem:[%s5988] sm:$0x2]
    %vm5990 = vcmask 1041409
    %v5991 = vsel %vm5990, %v5989, %v5987
    %s5992 = scalar_lea.vmem [#allocation1], 167
    %v5993 = vld [vmem:[%s5992] sm:$0x4]
    %vm5994 = vcmask 1042434
    %v5995 = vsel %vm5994, %v5993, %v5991
    %s5996 = scalar_lea.vmem [#allocation1], 230
    %v5997 = vld [vmem:[%s5996] sm:$0x8]
    %vm5998 = vcmask 1043459
    %v5999 = vsel %vm5998, %v5997, %v5995
    %s6000 = scalar_lea.vmem [#allocation1], 293
    %v6001 = vld [vmem:[%s6000] sm:$0x10]
    %vm6002 = vcmask 1044484
    %v6003 = vsel %vm6002, %v6001, %v5999
    %s6004 = scalar_lea.vmem [#allocation1], 356
    %v6005 = vld [vmem:[%s6004] sm:$0x20]
    %vm6006 = vcmask 1045509
    %v6007 = vsel %vm6006, %v6005, %v6003
    %s6008 = scalar_lea.vmem [#allocation1], 419
    %v6009 = vld [vmem:[%s6008] sm:$0x40]
    %vm6010 = vcmask 1046534
    %v6011 = vsel %vm6010, %v6009, %v6007
    %s6012 = scalar_lea.vmem [#allocation1], 482
    %v6013 = vld [vmem:[%s6012] sm:$0x80]
    %vm6014 = vcmask 1047559
    %v6015 = vsel %vm6014, %v6013, %v6011
    %6016 = vrot.lane.b32.xlu0 %v6015, 16
    %v6017 = vpop.permute.xlu0 %6016
    %vm6018 = vcmask 261248
    %s6019 = scalar_lea.vmem [#allocation0], 80
    %6020 = vst.msk [vmem:[%s6019] sm:$0xff] %vm6018, %v6017
    %s6021 = scalar_lea.vmem [#allocation1], 57
    %v6022 = vld [vmem:[%s6021] sm:$0x1]
    %s6023 = scalar_lea.vmem [#allocation1], 120
    %v6024 = vld [vmem:[%s6023] sm:$0x2]
    %vm6025 = vcmask 1041409
    %v6026 = vsel %vm6025, %v6024, %v6022
    %s6027 = scalar_lea.vmem [#allocation1], 183
    %v6028 = vld [vmem:[%s6027] sm:$0x4]
    %vm6029 = vcmask 1042434
    %v6030 = vsel %vm6029, %v6028, %v6026
    %s6031 = scalar_lea.vmem [#allocation1], 246
    %v6032 = vld [vmem:[%s6031] sm:$0x8]
    %vm6033 = vcmask 1043459
    %v6034 = vsel %vm6033, %v6032, %v6030
    %s6035 = scalar_lea.vmem [#allocation1], 309
    %v6036 = vld [vmem:[%s6035] sm:$0x10]
    %vm6037 = vcmask 1044484
    %v6038 = vsel %vm6037, %v6036, %v6034
    %s6039 = scalar_lea.vmem [#allocation1], 372
    %v6040 = vld [vmem:[%s6039] sm:$0x20]
    %vm6041 = vcmask 1045509
    %v6042 = vsel %vm6041, %v6040, %v6038
    %s6043 = scalar_lea.vmem [#allocation1], 435
    %v6044 = vld [vmem:[%s6043] sm:$0x40]
    %vm6045 = vcmask 1046534
    %v6046 = vsel %vm6045, %v6044, %v6042
    %s6047 = scalar_lea.vmem [#allocation1], 498
    %v6048 = vld [vmem:[%s6047] sm:$0x80]
    %vm6049 = vcmask 1047559
    %v6050 = vsel %vm6049, %v6048, %v6046
    %6051 = vrot.lane.b32.xlu0 %v6050, 16
    %v6052 = vpop.permute.xlu0 %6051
    %vm6053 = vcmask 261248
    %s6054 = scalar_lea.vmem [#allocation0], 112
    %6055 = vst.msk [vmem:[%s6054] sm:$0xff] %vm6053, %v6052
    %s6056 = scalar_lea.vmem [#allocation1], 521
    %v6057 = vld [vmem:[%s6056] sm:$0x1]
    %s6058 = scalar_lea.vmem [#allocation1], 584
    %v6059 = vld [vmem:[%s6058] sm:$0x2]
    %vm6060 = vcmask 1041409
    %v6061 = vsel %vm6060, %v6059, %v6057
    %s6062 = scalar_lea.vmem [#allocation1], 647
    %v6063 = vld [vmem:[%s6062] sm:$0x4]
    %vm6064 = vcmask 1042434
    %v6065 = vsel %vm6064, %v6063, %v6061
    %s6066 = scalar_lea.vmem [#allocation1], 710
    %v6067 = vld [vmem:[%s6066] sm:$0x8]
    %vm6068 = vcmask 1043459
    %v6069 = vsel %vm6068, %v6067, %v6065
    %s6070 = scalar_lea.vmem [#allocation1], 773
    %v6071 = vld [vmem:[%s6070] sm:$0x10]
    %vm6072 = vcmask 1044484
    %v6073 = vsel %vm6072, %v6071, %v6069
    %s6074 = scalar_lea.vmem [#allocation1], 836
    %v6075 = vld [vmem:[%s6074] sm:$0x20]
    %vm6076 = vcmask 1045509
    %v6077 = vsel %vm6076, %v6075, %v6073
    %s6078 = scalar_lea.vmem [#allocation1], 899
    %v6079 = vld [vmem:[%s6078] sm:$0x40]
    %vm6080 = vcmask 1046534
    %v6081 = vsel %vm6080, %v6079, %v6077
    %s6082 = scalar_lea.vmem [#allocation1], 962
    %v6083 = vld [vmem:[%s6082] sm:$0x80]
    %vm6084 = vcmask 1047559
    %v6085 = vsel %vm6084, %v6083, %v6081
    %6086 = vrot.lane.b32.xlu0 %v6085, 16
    %v6087 = vpop.permute.xlu0 %6086
    %vm6088 = vcmask 261248
    %s6089 = scalar_lea.vmem [#allocation0], 24
    %6090 = vst.msk [vmem:[%s6089] sm:$0xff] %vm6088, %v6087
    %s6091 = scalar_lea.vmem [#allocation1], 537
    %v6092 = vld [vmem:[%s6091] sm:$0x1]
    %s6093 = scalar_lea.vmem [#allocation1], 600
    %v6094 = vld [vmem:[%s6093] sm:$0x2]
    %vm6095 = vcmask 1041409
    %v6096 = vsel %vm6095, %v6094, %v6092
    %s6097 = scalar_lea.vmem [#allocation1], 663
    %v6098 = vld [vmem:[%s6097] sm:$0x4]
    %vm6099 = vcmask 1042434
    %v6100 = vsel %vm6099, %v6098, %v6096
    %s6101 = scalar_lea.vmem [#allocation1], 726
    %v6102 = vld [vmem:[%s6101] sm:$0x8]
    %vm6103 = vcmask 1043459
    %v6104 = vsel %vm6103, %v6102, %v6100
    %s6105 = scalar_lea.vmem [#allocation1], 789
    %v6106 = vld [vmem:[%s6105] sm:$0x10]
    %vm6107 = vcmask 1044484
    %v6108 = vsel %vm6107, %v6106, %v6104
    %s6109 = scalar_lea.vmem [#allocation1], 852
    %v6110 = vld [vmem:[%s6109] sm:$0x20]
    %vm6111 = vcmask 1045509
    %v6112 = vsel %vm6111, %v6110, %v6108
    %s6113 = scalar_lea.vmem [#allocation1], 915
    %v6114 = vld [vmem:[%s6113] sm:$0x40]
    %vm6115 = vcmask 1046534
    %v6116 = vsel %vm6115, %v6114, %v6112
    %s6117 = scalar_lea.vmem [#allocation1], 978
    %v6118 = vld [vmem:[%s6117] sm:$0x80]
    %vm6119 = vcmask 1047559
    %v6120 = vsel %vm6119, %v6118, %v6116
    %6121 = vrot.lane.b32.xlu0 %v6120, 16
    %v6122 = vpop.permute.xlu0 %6121
    %vm6123 = vcmask 261248
    %s6124 = scalar_lea.vmem [#allocation0], 56
    %6125 = vst.msk [vmem:[%s6124] sm:$0xff] %vm6123, %v6122
    %s6126 = scalar_lea.vmem [#allocation1], 553
    %v6127 = vld [vmem:[%s6126] sm:$0x1]
    %s6128 = scalar_lea.vmem [#allocation1], 616
    %v6129 = vld [vmem:[%s6128] sm:$0x2]
    %vm6130 = vcmask 1041409
    %v6131 = vsel %vm6130, %v6129, %v6127
    %s6132 = scalar_lea.vmem [#allocation1], 679
    %v6133 = vld [vmem:[%s6132] sm:$0x4]
    %vm6134 = vcmask 1042434
    %v6135 = vsel %vm6134, %v6133, %v6131
    %s6136 = scalar_lea.vmem [#allocation1], 742
    %v6137 = vld [vmem:[%s6136] sm:$0x8]
    %vm6138 = vcmask 1043459
    %v6139 = vsel %vm6138, %v6137, %v6135
    %s6140 = scalar_lea.vmem [#allocation1], 805
    %v6141 = vld [vmem:[%s6140] sm:$0x10]
    %vm6142 = vcmask 1044484
    %v6143 = vsel %vm6142, %v6141, %v6139
    %s6144 = scalar_lea.vmem [#allocation1], 868
    %v6145 = vld [vmem:[%s6144] sm:$0x20]
    %vm6146 = vcmask 1045509
    %v6147 = vsel %vm6146, %v6145, %v6143
    %s6148 = scalar_lea.vmem [#allocation1], 931
    %v6149 = vld [vmem:[%s6148] sm:$0x40]
    %vm6150 = vcmask 1046534
    %v6151 = vsel %vm6150, %v6149, %v6147
    %s6152 = scalar_lea.vmem [#allocation1], 994
    %v6153 = vld [vmem:[%s6152] sm:$0x80]
    %vm6154 = vcmask 1047559
    %v6155 = vsel %vm6154, %v6153, %v6151
    %6156 = vrot.lane.b32.xlu0 %v6155, 16
    %v6157 = vpop.permute.xlu0 %6156
    %vm6158 = vcmask 261248
    %s6159 = scalar_lea.vmem [#allocation0], 88
    %6160 = vst.msk [vmem:[%s6159] sm:$0xff] %vm6158, %v6157
    %s6161 = scalar_lea.vmem [#allocation1], 569
    %v6162 = vld [vmem:[%s6161] sm:$0x1]
    %s6163 = scalar_lea.vmem [#allocation1], 632
    %v6164 = vld [vmem:[%s6163] sm:$0x2]
    %vm6165 = vcmask 1041409
    %v6166 = vsel %vm6165, %v6164, %v6162
    %s6167 = scalar_lea.vmem [#allocation1], 695
    %v6168 = vld [vmem:[%s6167] sm:$0x4]
    %vm6169 = vcmask 1042434
    %v6170 = vsel %vm6169, %v6168, %v6166
    %s6171 = scalar_lea.vmem [#allocation1], 758
    %v6172 = vld [vmem:[%s6171] sm:$0x8]
    %vm6173 = vcmask 1043459
    %v6174 = vsel %vm6173, %v6172, %v6170
    %s6175 = scalar_lea.vmem [#allocation1], 821
    %v6176 = vld [vmem:[%s6175] sm:$0x10]
    %vm6177 = vcmask 1044484
    %v6178 = vsel %vm6177, %v6176, %v6174
    %s6179 = scalar_lea.vmem [#allocation1], 884
    %v6180 = vld [vmem:[%s6179] sm:$0x20]
    %vm6181 = vcmask 1045509
    %v6182 = vsel %vm6181, %v6180, %v6178
    %s6183 = scalar_lea.vmem [#allocation1], 947
    %v6184 = vld [vmem:[%s6183] sm:$0x40]
    %vm6185 = vcmask 1046534
    %v6186 = vsel %vm6185, %v6184, %v6182
    %s6187 = scalar_lea.vmem [#allocation1], 1010
    %v6188 = vld [vmem:[%s6187] sm:$0x80]
    %vm6189 = vcmask 1047559
    %v6190 = vsel %vm6189, %v6188, %v6186
    %6191 = vrot.lane.b32.xlu0 %v6190, 16
    %v6192 = vpop.permute.xlu0 %6191
    %vm6193 = vcmask 261248
    %s6194 = scalar_lea.vmem [#allocation0], 120
    %6195 = vst.msk [vmem:[%s6194] sm:$0xff] %vm6193, %v6192
    %s6197 = smul.u32 4, 2
    %s6198 = sshllo.u32 0, %s6197
    %s6199 = sshrl.u32 %s6197, 1
    %v6200 = vld [vmem:[#allocation0] sm:%s6198]
    %v6201 = vpack.c.bf16 0.0, %v6200
    %s6202 = sshllo.u32 0, %s6199
    %6203 = vst [vmem:[%s1] sm:%s6202] %v6201
    %s6204 = scalar_lea.vmem [#allocation0], 8
    %v6205 = vld [vmem:[%s6204] sm:%s6198]
    %v6206 = vpack.c.bf16 0.0, %v6205
    %s6207 = sshllo.u32 0, %s6199
    %s6208 = scalar_lea.vmem %s1, 4
    %6209 = vst [vmem:[%s6208] sm:%s6207] %v6206
    %s6210 = scalar_lea.vmem [#allocation0], 16
    %v6211 = vld [vmem:[%s6210] sm:%s6198]
    %v6212 = vpack.c.bf16 0.0, %v6211
    %s6213 = sshllo.u32 0, %s6199
    %s6214 = smul.addr 4, 2
    %s6215 = scalar_lea.vmem %s1, %s6214
    %6216 = vst [vmem:[%s6215] sm:%s6213] %v6212
    %s6217 = scalar_lea.vmem [#allocation0], 24
    %v6218 = vld [vmem:[%s6217] sm:%s6198]
    %v6219 = vpack.c.bf16 0.0, %v6218
    %s6220 = sshllo.u32 0, %s6199
    %s6221 = smul.addr 4, 3
    %s6222 = scalar_lea.vmem %s1, %s6221
    %6223 = vst [vmem:[%s6222] sm:%s6220] %v6219
    %s6224 = scalar_lea.vmem [#allocation0], 32
    %v6225 = vld [vmem:[%s6224] sm:%s6198]
    %v6226 = vpack.c.bf16 0.0, %v6225
    %s6227 = sshllo.u32 0, %s6199
    %s6228 = smul.addr 4, 4
    %s6229 = scalar_lea.vmem %s1, %s6228
    %6230 = vst [vmem:[%s6229] sm:%s6227] %v6226
    %s6231 = scalar_lea.vmem [#allocation0], 40
    %v6232 = vld [vmem:[%s6231] sm:%s6198]
    %v6233 = vpack.c.bf16 0.0, %v6232
    %s6234 = sshllo.u32 0, %s6199
    %s6235 = smul.addr 4, 5
    %s6236 = scalar_lea.vmem %s1, %s6235
    %6237 = vst [vmem:[%s6236] sm:%s6234] %v6233
    %s6238 = scalar_lea.vmem [#allocation0], 48
    %v6239 = vld [vmem:[%s6238] sm:%s6198]
    %v6240 = vpack.c.bf16 0.0, %v6239
    %s6241 = sshllo.u32 0, %s6199
    %s6242 = smul.addr 4, 6
    %s6243 = scalar_lea.vmem %s1, %s6242
    %6244 = vst [vmem:[%s6243] sm:%s6241] %v6240
    %s6245 = scalar_lea.vmem [#allocation0], 56
    %v6246 = vld [vmem:[%s6245] sm:%s6198]
    %v6247 = vpack.c.bf16 0.0, %v6246
    %s6248 = sshllo.u32 0, %s6199
    %s6249 = smul.addr 4, 7
    %s6250 = scalar_lea.vmem %s1, %s6249
    %6251 = vst [vmem:[%s6250] sm:%s6248] %v6247
    %s6252 = scalar_lea.vmem [#allocation0], 64
    %v6253 = vld [vmem:[%s6252] sm:%s6198]
    %v6254 = vpack.c.bf16 0.0, %v6253
    %s6255 = sshllo.u32 0, %s6199
    %s6256 = smul.addr 4, 8
    %s6257 = scalar_lea.vmem %s1, %s6256
    %6258 = vst [vmem:[%s6257] sm:%s6255] %v6254
    %s6259 = scalar_lea.vmem [#allocation0], 72
    %v6260 = vld [vmem:[%s6259] sm:%s6198]
    %v6261 = vpack.c.bf16 0.0, %v6260
    %s6262 = sshllo.u32 0, %s6199
    %s6263 = smul.addr 4, 9
    %s6264 = scalar_lea.vmem %s1, %s6263
    %6265 = vst [vmem:[%s6264] sm:%s6262] %v6261
    %s6266 = scalar_lea.vmem [#allocation0], 80
    %v6267 = vld [vmem:[%s6266] sm:%s6198]
    %v6268 = vpack.c.bf16 0.0, %v6267
    %s6269 = sshllo.u32 0, %s6199
    %s6270 = smul.addr 4, 10
    %s6271 = scalar_lea.vmem %s1, %s6270
    %6272 = vst [vmem:[%s6271] sm:%s6269] %v6268
    %s6273 = scalar_lea.vmem [#allocation0], 88
    %v6274 = vld [vmem:[%s6273] sm:%s6198]
    %v6275 = vpack.c.bf16 0.0, %v6274
    %s6276 = sshllo.u32 0, %s6199
    %s6277 = smul.addr 4, 11
    %s6278 = scalar_lea.vmem %s1, %s6277
    %6279 = vst [vmem:[%s6278] sm:%s6276] %v6275
    %s6280 = scalar_lea.vmem [#allocation0], 96
    %v6281 = vld [vmem:[%s6280] sm:%s6198]
    %v6282 = vpack.c.bf16 0.0, %v6281
    %s6283 = sshllo.u32 0, %s6199
    %s6284 = smul.addr 4, 12
    %s6285 = scalar_lea.vmem %s1, %s6284
    %6286 = vst [vmem:[%s6285] sm:%s6283] %v6282
    %s6287 = scalar_lea.vmem [#allocation0], 104
    %v6288 = vld [vmem:[%s6287] sm:%s6198]
    %v6289 = vpack.c.bf16 0.0, %v6288
    %s6290 = sshllo.u32 0, %s6199
    %s6291 = smul.addr 4, 13
    %s6292 = scalar_lea.vmem %s1, %s6291
    %6293 = vst [vmem:[%s6292] sm:%s6290] %v6289
    %s6294 = scalar_lea.vmem [#allocation0], 112
    %v6295 = vld [vmem:[%s6294] sm:%s6198]
    %v6296 = vpack.c.bf16 0.0, %v6295
    %s6297 = sshllo.u32 0, %s6199
    %s6298 = smul.addr 4, 14
    %s6299 = scalar_lea.vmem %s1, %s6298
    %6300 = vst [vmem:[%s6299] sm:%s6297] %v6296
    %s6301 = scalar_lea.vmem [#allocation0], 120
    %v6302 = vld [vmem:[%s6301] sm:%s6198]
    %v6303 = vpack.c.bf16 0.0, %v6302
    %s6304 = sshllo.u32 0, %s6199
    %s6305 = smul.addr 4, 15
    %s6306 = scalar_lea.vmem %s1, %s6305
    %6307 = vst [vmem:[%s6306] sm:%s6304] %v6303

// kernel: mul.37
$region0: #{mul.37}
  %s0 = inlined_call_operand.vmem [shape: f32[64,16], index: 0, kind: input, shape index: {}]
  %s1 = inlined_call_operand.vmem [shape: f32[1024], index: 1, kind: output, shape index: {}]
  %v2 = vld [vmem:[%s0] ss:$8 sm:$0xf]
  %v3 = vld [vmem:[%s0] ss:$8 sm:$0xf0]
  %vm4 = vcmask 1047556
  %v5 = vsel %vm4, %v3, %v2
  %vm6 = vcmask 130048
  %7 = vst.msk [vmem:[%s1] sm:$0xff] %vm6, %v5
  %s8 = scalar_lea.vmem %s0, 7
  %v9 = vld [vmem:[%s8] ss:$8 sm:$0xf]
  %s10 = scalar_lea.vmem %s0, 7
  %v11 = vld [vmem:[%s10] ss:$8 sm:$0xf0]
  %vm12 = vcmask 1047556
  %v13 = vsel %vm12, %v11, %v9
  %14 = vrot.lane.b32.xlu0 %v13, 112
  %v15 = vpop.permute.xlu0 %14
  %vm16 = vcmask 1048448
  %17 = vst.msk [vmem:[%s1] sm:$0xff] %vm16, %v15
  %s18 = scalar_lea.vmem %s0, 6
  %v19 = vld [vmem:[%s18] ss:$8 sm:$0xf]
  %s20 = scalar_lea.vmem %s0, 6
  %v21 = vld [vmem:[%s20] ss:$8 sm:$0xf0]
  %vm22 = vcmask 1047556
  %v23 = vsel %vm22, %v21, %v19
  %24 = vrot.lane.b32.xlu0 %v23, 96
  %v25 = vpop.permute.xlu0 %24
  %vm26 = vcmask 917248
  %27 = vst.msk [vmem:[%s1] sm:$0xff] %vm26, %v25
  %s28 = scalar_lea.vmem %s0, 5
  %v29 = vld [vmem:[%s28] ss:$8 sm:$0xf]
  %s30 = scalar_lea.vmem %s0, 5
  %v31 = vld [vmem:[%s30] ss:$8 sm:$0xf0]
  %vm32 = vcmask 1047556
  %v33 = vsel %vm32, %v31, %v29
  %34 = vrot.lane.b32.xlu0 %v33, 80
  %v35 = vpop.permute.xlu0 %34
  %vm36 = vcmask 786048
  %37 = vst.msk [vmem:[%s1] sm:$0xff] %vm36, %v35
  %s38 = scalar_lea.vmem %s0, 4
  %v39 = vld [vmem:[%s38] ss:$8 sm:$0xf]
  %s40 = scalar_lea.vmem %s0, 4
  %v41 = vld [vmem:[%s40] ss:$8 sm:$0xf0]
  %vm42 = vcmask 1047556
  %v43 = vsel %vm42, %v41, %v39
  %44 = vrot.lane.b32.xlu0 %v43, 64
  %v45 = vpop.permute.xlu0 %44
  %vm46 = vcmask 654848
  %47 = vst.msk [vmem:[%s1] sm:$0xff] %vm46, %v45
  %s48 = scalar_lea.vmem %s0, 3
  %v49 = vld [vmem:[%s48] ss:$8 sm:$0xf]
  %s50 = scalar_lea.vmem %s0, 3
  %v51 = vld [vmem:[%s50] ss:$8 sm:$0xf0]
  %vm52 = vcmask 1047556
  %v53 = vsel %vm52, %v51, %v49
  %54 = vrot.lane.b32.xlu0 %v53, 48
  %v55 = vpop.permute.xlu0 %54
  %vm56 = vcmask 523648
  %57 = vst.msk [vmem:[%s1] sm:$0xff] %vm56, %v55
  %s58 = scalar_lea.vmem %s0, 2
  %v59 = vld [vmem:[%s58] ss:$8 sm:$0xf]
  %s60 = scalar_lea.vmem %s0, 2
  %v61 = vld [vmem:[%s60] ss:$8 sm:$0xf0]
  %vm62 = vcmask 1047556
  %v63 = vsel %vm62, %v61, %v59
  %64 = vrot.lane.b32.xlu0 %v63, 32
  %v65 = vpop.permute.xlu0 %64
  %vm66 = vcmask 392448
  %67 = vst.msk [vmem:[%s1] sm:$0xff] %vm66, %v65
  %s68 = scalar_lea.vmem %s0, 1
  %v69 = vld [vmem:[%s68] ss:$8 sm:$0xf]
  %s70 = scalar_lea.vmem %s0, 1
  %v71 = vld [vmem:[%s70] ss:$8 sm:$0xf0]
  %vm72 = vcmask 1047556
  %v73 = vsel %vm72, %v71, %v69
  %74 = vrot.lane.b32.xlu0 %v73, 16
  %v75 = vpop.permute.xlu0 %74
  %vm76 = vcmask 261248
  %77 = vst.msk [vmem:[%s1] sm:$0xff] %vm76, %v75

// kernel: mamba_block.1
$region0: #{mamba_block.1}
  #allocation0 [shape = 'u32[]', space=smem, size = 0x4, offset = 0x4, fixed_abs, tag = 'smem constant byte address 0x4 - core index']
  #allocation1 [shape = 'u32[144,128]{1,0:T(1,128)}', space=vmem, size = 0x12000, scoped, tag = 'internal scratch']
  %s0 = inlined_call_operand.vmem [shape: f32[16,128], index: 0, kind: input, shape index: {}]
  %s1 = inlined_call_operand.vmem [shape: f32[128,128], index: 1, kind: input, shape index: {}]
  %s2 = inlined_call_operand.vmem [shape: f32[1,128], index: 2, kind: input, shape index: {}]
  %s3 = inlined_call_operand.vmem [shape: f32[64,2176], index: 3, kind: input, shape index: {}]
  %s4 = inlined_call_operand.vmem [shape: f32[1,64], index: 4, kind: input, shape index: {}]
  %s5 = inlined_call_operand.vmem [shape: f32[64,1024], index: 5, kind: input, shape index: {}]
  %s6 = inlined_call_operand.vmem [shape: f32[64,1024], index: 6, kind: input, shape index: {}]
  %s7 = inlined_call_operand.vmem [shape: f32[1024,64], index: 7, kind: input, shape index: {}]
  %s8 = inlined_call_operand.vmem [shape: f32[1,64], index: 8, kind: input, shape index: {}]
  %s9 = inlined_call_operand.vmem [shape: f32[64,128], index: 9, kind: input, shape index: {}]
  %s10 = inlined_call_operand.vmem [shape: f32[16,128], index: 10, kind: output, shape index: {}]
  %s11 = sld [smem:[#allocation0]]
  $region50: #{mamba_block.1} parent=0
    _
  %s13 = ssub.s32 1, %s11
  %s14 = scalar_select 0, %s13, %s11
  // Predicated region
  $region2: #{mamba_block.1} parent=0 // pred_check
    _
  $region3: #{mamba_block.1} parent=0 // pred_check_branch
    %16 = sbr.rel (0) target = $region5
  $region4: #{mamba_block.1} parent=0 // pred_region
    _
  $region5: #{mamba_block.1} parent=0 // pred_fallthru
    _
  // Predicated region
  $region6: #{mamba_block.1} parent=0 // pred_check
    _
  $region7: #{mamba_block.1} parent=0 // pred_check_branch
    %18 = sbr.rel (0) target = $region9
  $region8: #{mamba_block.1} parent=0 // pred_region
    _
  $region9: #{mamba_block.1} parent=0 // pred_fallthru
    _
  // Predicated region
  $region10: #{mamba_block.1} parent=0 // pred_check
    _
  $region11: #{mamba_block.1} parent=0 // pred_check_branch
    %20 = sbr.rel (0) target = $region13
  $region12: #{mamba_block.1} parent=0 // pred_region
    _
  $region13: #{mamba_block.1} parent=0 // pred_fallthru
    _
  // Predicated region
  $region14: #{mamba_block.1} parent=0 // pred_check
    _
  $region15: #{mamba_block.1} parent=0 // pred_check_branch
    %22 = sbr.rel (0) target = $region17
  $region16: #{mamba_block.1} parent=0 // pred_region
    _
  $region17: #{mamba_block.1} parent=0 // pred_fallthru
    _
  // Predicated region
  $region18: #{mamba_block.1} parent=0 // pred_check
    _
  $region19: #{mamba_block.1} parent=0 // pred_check_branch
    %24 = sbr.rel (0) target = $region21
  $region20: #{mamba_block.1} parent=0 // pred_region
    _
  $region21: #{mamba_block.1} parent=0 // pred_fallthru
    _
  // Predicated region
  $region22: #{mamba_block.1} parent=0 // pred_check
    _
  $region23: #{mamba_block.1} parent=0 // pred_check_branch
    %26 = sbr.rel (0) target = $region25
  $region24: #{mamba_block.1} parent=0 // pred_region
    _
  $region25: #{mamba_block.1} parent=0 // pred_fallthru
    _
  // Predicated region
  $region26: #{mamba_block.1} parent=0 // pred_check
    _
  $region27: #{mamba_block.1} parent=0 // pred_check_branch
    %28 = sbr.rel (0) target = $region29
  $region28: #{mamba_block.1} parent=0 // pred_region
    _
  $region29: #{mamba_block.1} parent=0 // pred_fallthru
    _
  // Predicated region
  $region30: #{mamba_block.1} parent=0 // pred_check
    _
  $region31: #{mamba_block.1} parent=0 // pred_check_branch
    %30 = sbr.rel (0) target = $region33
  $region32: #{mamba_block.1} parent=0 // pred_region
    _
  $region33: #{mamba_block.1} parent=0 // pred_fallthru
    _
  // Predicated region
  $region34: #{mamba_block.1} parent=0 // pred_check
    _
  $region35: #{mamba_block.1} parent=0 // pred_check_branch
    %32 = sbr.rel (0) target = $region37
  $region36: #{mamba_block.1} parent=0 // pred_region
    _
  $region37: #{mamba_block.1} parent=0 // pred_fallthru
    _
  // Predicated region
  $region38: #{mamba_block.1} parent=0 // pred_check
    _
  $region39: #{mamba_block.1} parent=0 // pred_check_branch
    %34 = sbr.rel (0) target = $region41
  $region40: #{mamba_block.1} parent=0 // pred_region
    _
  $region41: #{mamba_block.1} parent=0 // pred_fallthru
    _
  %v35 = vld [vmem:[%s0] sm:$0xff]
  %v36 = vld [vmem:[%s0 + $0x8] sm:$0xff]
  %v37 = vld [vmem:[%s1] sm:$0xff]
  %v38 = vld [vmem:[%s1 + $0x8] sm:$0xff]
  %v39 = vld [vmem:[%s1 + $0x10] sm:$0xff]
  %v40 = vld [vmem:[%s1 + $0x18] sm:$0xff]
  %v41 = vld [vmem:[%s1 + $0x20] sm:$0xff]
  %v42 = vld [vmem:[%s1 + $0x28] sm:$0xff]
  %v43 = vld [vmem:[%s1 + $0x30] sm:$0xff]
  %v44 = vld [vmem:[%s1 + $0x38] sm:$0xff]
  %v45 = vld [vmem:[%s1 + $0x40] sm:$0xff]
  %v46 = vld [vmem:[%s1 + $0x48] sm:$0xff]
  %v47 = vld [vmem:[%s1 + $0x50] sm:$0xff]
  %v48 = vld [vmem:[%s1 + $0x58] sm:$0xff]
  %v49 = vld [vmem:[%s1 + $0x60] sm:$0xff]
  %v50 = vld [vmem:[%s1 + $0x68] sm:$0xff]
  %v51 = vld [vmem:[%s1 + $0x70] sm:$0xff]
  %v52 = vld [vmem:[%s1 + $0x78] sm:$0xff]
  %v53 = vld [vmem:[%s2] sm:$0x1]
  %v55 = vlaneseq
  %v56 = vshrl.u32 %v55, 7
  %v57 = vsub.s32 0, %v56
  %v58 = vrot.slane %v53, %v57
  %60 = vmatprep.subr.mxu0 0.0
  %61 = vmatpush1.msra.mxu0 %v37
  %62 = vmatprep.subr.mxu0 0.0
  %63 = vmatpush1.msra.mxu0 %v38
  %64 = vmatprep.subr.mxu0 0.0
  %65 = vmatpush1.msra.mxu0 %v39
  %66 = vmatprep.subr.mxu0 0.0
  %67 = vmatpush1.msra.mxu0 %v40
  %68 = vmatprep.subr.mxu0 0.0
  %69 = vmatpush1.msra.mxu0 %v41
  %70 = vmatprep.subr.mxu0 0.0
  %71 = vmatpush1.msra.mxu0 %v42
  %72 = vmatprep.subr.mxu0 0.0
  %73 = vmatpush1.msra.mxu0 %v43
  %74 = vmatprep.subr.mxu0 0.0
  %75 = vmatpush1.msra.mxu0 %v44
  %76 = vmatprep.subr.mxu0 0.0
  %77 = vmatpush1.msra.mxu0 %v45
  %78 = vmatprep.subr.mxu0 0.0
  %79 = vmatpush1.msra.mxu0 %v46
  %80 = vmatprep.subr.mxu0 0.0
  %81 = vmatpush1.msra.mxu0 %v47
  %82 = vmatprep.subr.mxu0 0.0
  %83 = vmatpush1.msra.mxu0 %v48
  %84 = vmatprep.subr.mxu0 0.0
  %85 = vmatpush1.msra.mxu0 %v49
  %86 = vmatprep.subr.mxu0 0.0
  %87 = vmatpush1.msra.mxu0 %v50
  %88 = vmatprep.subr.mxu0 0.0
  %89 = vmatpush1.msra.mxu0 %v51
  %90 = vmatprep.subr.mxu0 0.0
  %91 = vmatpush1.msra.mxu0 %v52
  %92 = vmatprep.subr.mxu0 0.0
  %93 = vmatpush1.msra.mxu0 0.0
  %94 = vmatprep.subr.mxu0 0.0
  %95 = vmatpush1.msra.mxu0 0.0
  %96 = vmatprep.subr.mxu0 0.0
  %97 = vmatpush1.msra.mxu0 0.0
  %98 = vmatprep.subr.mxu0 0.0
  %99 = vmatpush1.msra.mxu0 0.0
  %100 = vmatprep.subr.mxu0 0.0
  %101 = vmatpush1.msra.mxu0 0.0
  %102 = vmatprep.subr.mxu0 0.0
  %103 = vmatpush1.msra.mxu0 0.0
  %104 = vmatprep.subr.mxu0 0.0
  %105 = vmatpush1.msra.mxu0 0.0
  %106 = vmatprep.subr.mxu0 0.0
  %107 = vmatpush1.msra.mxu0 0.0
  %108 = vmatprep.subr.mxu0 0.0
  %109 = vmatpush1.msra.mxu0 0.0
  %110 = vmatprep.subr.mxu0 0.0
  %111 = vmatpush1.msra.mxu0 0.0
  %112 = vmatprep.subr.mxu0 0.0
  %113 = vmatpush1.msra.mxu0 0.0
  %114 = vmatprep.subr.mxu0 0.0
  %115 = vmatpush1.msra.mxu0 0.0
  %116 = vmatprep.subr.mxu0 0.0
  %117 = vmatpush1.msra.mxu0 0.0
  %118 = vmatprep.subr.mxu0 0.0
  %119 = vmatpush1.msra.mxu0 0.0
  %120 = vmatprep.subr.mxu0 0.0
  %121 = vmatpush1.msra.mxu0 0.0
  %122 = vmatprep.subr.mxu0 0.0
  %123 = vmatpush1.msra.mxu0 0.0
  %124 = vmatprep.mubr.f32.mxu0 0.0
  %125 = vmatmul.mubr.f32.gmra.mrb[0].mxu0 %v35
  %v126 = vpop.f32.mrb[0].mxu0
  %v127 = vadd.f32 %v58, %v126
  %v128 = vpop.f32.mrb[0].mxu0
  %129 = vmatprep.mubr.f32.mxu0 0.0
  %130 = vmatmul.mubr.f32.gmra.mrb[0].mxu0 %v36
  %v131 = vpop.f32.mrb[0].mxu0
  %v132 = vadd.f32 %v58, %v131
  %v133 = vpop.f32.mrb[0].mxu0
  %134 = vdwg.mxu0
  %v135 = vxor.u32 %v127, 2147483648
  %v136 = vxor.u32 %v132, 2147483648
  %v137 = vmul.f32 %v135, 1.442695
  %v138 = vpow.pop %v137
  %v139 = vmul.f32 %v136, 1.442695
  %v140 = vpow.pop %v139
  %v141 = vadd.f32 %v138, 1.0
  %v142 = vadd.f32 %v140, 1.0
  %v143 = vrcp.pop %v141
  %v144 = vmul.f32 1.0, %v143
  %v145 = vrcp.pop %v142
  %v146 = vmul.f32 1.0, %v145
  %v147 = vmul.f32 %v127, %v144
  %v148 = vmul.f32 %v132, %v146
  %v149 = vld [vmem:[%s3] sm:$0xff]
  %v150 = vld [vmem:[%s3 + $0x8] sm:$0xff]
  %v151 = vld [vmem:[%s3 + $0x10] sm:$0xff]
  %v152 = vld [vmem:[%s3 + $0x18] sm:$0xff]
  %v153 = vld [vmem:[%s3 + $0x20] sm:$0xff]
  %v154 = vld [vmem:[%s3 + $0x28] sm:$0xff]
  %v155 = vld [vmem:[%s3 + $0x30] sm:$0xff]
  %v156 = vld [vmem:[%s3 + $0x38] sm:$0xff]
  %v157 = vld [vmem:[%s3 + $0x40] sm:$0xff]
  %v158 = vld [vmem:[%s3 + $0x48] sm:$0xff]
  %v159 = vld [vmem:[%s3 + $0x50] sm:$0xff]
  %v160 = vld [vmem:[%s3 + $0x58] sm:$0xff]
  %v161 = vld [vmem:[%s3 + $0x60] sm:$0xff]
  %v162 = vld [vmem:[%s3 + $0x68] sm:$0xff]
  %v163 = vld [vmem:[%s3 + $0x70] sm:$0xff]
  %v164 = vld [vmem:[%s3 + $0x78] sm:$0xff]
  %v165 = vld [vmem:[%s3 + $0x80] sm:$0xff]
  %v166 = vld [vmem:[%s3 + $0x88] sm:$0xff]
  %v167 = vld [vmem:[%s3 + $0x90] sm:$0xff]
  %v168 = vld [vmem:[%s3 + $0x98] sm:$0xff]
  %v169 = vld [vmem:[%s3 + $0xa0] sm:$0xff]
  %v170 = vld [vmem:[%s3 + $0xa8] sm:$0xff]
  %v171 = vld [vmem:[%s3 + $0xb0] sm:$0xff]
  %v172 = vld [vmem:[%s3 + $0xb8] sm:$0xff]
  %v173 = vld [vmem:[%s3 + $0xc0] sm:$0xff]
  %v174 = vld [vmem:[%s3 + $0xc8] sm:$0xff]
  %v175 = vld [vmem:[%s3 + $0xd0] sm:$0xff]
  %v176 = vld [vmem:[%s3 + $0xd8] sm:$0xff]
  %v177 = vld [vmem:[%s3 + $0xe0] sm:$0xff]
  %v178 = vld [vmem:[%s3 + $0xe8] sm:$0xff]
  %v179 = vld [vmem:[%s3 + $0xf0] sm:$0xff]
  %v180 = vld [vmem:[%s3 + $0xf8] sm:$0xff]
  %v181 = vld [vmem:[%s3 + $0x100] sm:$0xff]
  %v182 = vld [vmem:[%s3 + $0x108] sm:$0xff]
  %v183 = vld [vmem:[%s3 + $0x110] sm:$0xff]
  %v184 = vld [vmem:[%s3 + $0x118] sm:$0xff]
  %v185 = vld [vmem:[%s3 + $0x120] sm:$0xff]
  %v186 = vld [vmem:[%s3 + $0x128] sm:$0xff]
  %v187 = vld [vmem:[%s3 + $0x130] sm:$0xff]
  %v188 = vld [vmem:[%s3 + $0x138] sm:$0xff]
  %v189 = vld [vmem:[%s3 + $0x140] sm:$0xff]
  %v190 = vld [vmem:[%s3 + $0x148] sm:$0xff]
  %v191 = vld [vmem:[%s3 + $0x150] sm:$0xff]
  %v192 = vld [vmem:[%s3 + $0x158] sm:$0xff]
  %v193 = vld [vmem:[%s3 + $0x160] sm:$0xff]
  %v194 = vld [vmem:[%s3 + $0x168] sm:$0xff]
  %v195 = vld [vmem:[%s3 + $0x170] sm:$0xff]
  %v196 = vld [vmem:[%s3 + $0x178] sm:$0xff]
  %v197 = vld [vmem:[%s3 + $0x180] sm:$0xff]
  %v198 = vld [vmem:[%s3 + $0x188] sm:$0xff]
  %v199 = vld [vmem:[%s3 + $0x190] sm:$0xff]
  %v200 = vld [vmem:[%s3 + $0x198] sm:$0xff]
  %v201 = vld [vmem:[%s3 + $0x1a0] sm:$0xff]
  %v202 = vld [vmem:[%s3 + $0x1a8] sm:$0xff]
  %v203 = vld [vmem:[%s3 + $0x1b0] sm:$0xff]
  %v204 = vld [vmem:[%s3 + $0x1b8] sm:$0xff]
  %v205 = vld [vmem:[%s3 + $0x1c0] sm:$0xff]
  %v206 = vld [vmem:[%s3 + $0x1c8] sm:$0xff]
  %v207 = vld [vmem:[%s3 + $0x1d0] sm:$0xff]
  %v208 = vld [vmem:[%s3 + $0x1d8] sm:$0xff]
  %v209 = vld [vmem:[%s3 + $0x1e0] sm:$0xff]
  %v210 = vld [vmem:[%s3 + $0x1e8] sm:$0xff]
  %v211 = vld [vmem:[%s3 + $0x1f0] sm:$0xff]
  %v212 = vld [vmem:[%s3 + $0x1f8] sm:$0xff]
  %v213 = vld [vmem:[%s3 + $0x200] sm:$0xff]
  %v214 = vld [vmem:[%s3 + $0x208] sm:$0xff]
  %v215 = vld [vmem:[%s3 + $0x210] sm:$0xff]
  %v216 = vld [vmem:[%s3 + $0x218] sm:$0xff]
  %v217 = vld [vmem:[%s3 + $0x220] sm:$0xff]
  %v218 = vld [vmem:[%s3 + $0x228] sm:$0xff]
  %v219 = vld [vmem:[%s3 + $0x230] sm:$0xff]
  %v220 = vld [vmem:[%s3 + $0x238] sm:$0xff]
  %v221 = vld [vmem:[%s3 + $0x240] sm:$0xff]
  %v222 = vld [vmem:[%s3 + $0x248] sm:$0xff]
  %v223 = vld [vmem:[%s3 + $0x250] sm:$0xff]
  %v224 = vld [vmem:[%s3 + $0x258] sm:$0xff]
  %v225 = vld [vmem:[%s3 + $0x260] sm:$0xff]
  %v226 = vld [vmem:[%s3 + $0x268] sm:$0xff]
  %v227 = vld [vmem:[%s3 + $0x270] sm:$0xff]
  %v228 = vld [vmem:[%s3 + $0x278] sm:$0xff]
  %v229 = vld [vmem:[%s3 + $0x280] sm:$0xff]
  %v230 = vld [vmem:[%s3 + $0x288] sm:$0xff]
  %v231 = vld [vmem:[%s3 + $0x290] sm:$0xff]
  %v232 = vld [vmem:[%s3 + $0x298] sm:$0xff]
  %v233 = vld [vmem:[%s3 + $0x2a0] sm:$0xff]
  %v234 = vld [vmem:[%s3 + $0x2a8] sm:$0xff]
  %v235 = vld [vmem:[%s3 + $0x2b0] sm:$0xff]
  %v236 = vld [vmem:[%s3 + $0x2b8] sm:$0xff]
  %v237 = vld [vmem:[%s3 + $0x2c0] sm:$0xff]
  %v238 = vld [vmem:[%s3 + $0x2c8] sm:$0xff]
  %v239 = vld [vmem:[%s3 + $0x2d0] sm:$0xff]
  %v240 = vld [vmem:[%s3 + $0x2d8] sm:$0xff]
  %v241 = vld [vmem:[%s3 + $0x2e0] sm:$0xff]
  %v242 = vld [vmem:[%s3 + $0x2e8] sm:$0xff]
  %v243 = vld [vmem:[%s3 + $0x2f0] sm:$0xff]
  %v244 = vld [vmem:[%s3 + $0x2f8] sm:$0xff]
  %v245 = vld [vmem:[%s3 + $0x300] sm:$0xff]
  %v246 = vld [vmem:[%s3 + $0x308] sm:$0xff]
  %v247 = vld [vmem:[%s3 + $0x310] sm:$0xff]
  %v248 = vld [vmem:[%s3 + $0x318] sm:$0xff]
  %v249 = vld [vmem:[%s3 + $0x320] sm:$0xff]
  %v250 = vld [vmem:[%s3 + $0x328] sm:$0xff]
  %v251 = vld [vmem:[%s3 + $0x330] sm:$0xff]
  %v252 = vld [vmem:[%s3 + $0x338] sm:$0xff]
  %v253 = vld [vmem:[%s3 + $0x340] sm:$0xff]
  %v254 = vld [vmem:[%s3 + $0x348] sm:$0xff]
  %v255 = vld [vmem:[%s3 + $0x350] sm:$0xff]
  %v256 = vld [vmem:[%s3 + $0x358] sm:$0xff]
  %v257 = vld [vmem:[%s3 + $0x360] sm:$0xff]
  %v258 = vld [vmem:[%s3 + $0x368] sm:$0xff]
  %v259 = vld [vmem:[%s3 + $0x370] sm:$0xff]
  %v260 = vld [vmem:[%s3 + $0x378] sm:$0xff]
  %v261 = vld [vmem:[%s3 + $0x380] sm:$0xff]
  %v262 = vld [vmem:[%s3 + $0x388] sm:$0xff]
  %v263 = vld [vmem:[%s3 + $0x390] sm:$0xff]
  %v264 = vld [vmem:[%s3 + $0x398] sm:$0xff]
  %v265 = vld [vmem:[%s3 + $0x3a0] sm:$0xff]
  %v266 = vld [vmem:[%s3 + $0x3a8] sm:$0xff]
  %v267 = vld [vmem:[%s3 + $0x3b0] sm:$0xff]
  %v268 = vld [vmem:[%s3 + $0x3b8] sm:$0xff]
  %v269 = vld [vmem:[%s3 + $0x3c0] sm:$0xff]
  %v270 = vld [vmem:[%s3 + $0x3c8] sm:$0xff]
  %v271 = vld [vmem:[%s3 + $0x3d0] sm:$0xff]
  %v272 = vld [vmem:[%s3 + $0x3d8] sm:$0xff]
  %v273 = vld [vmem:[%s3 + $0x3e0] sm:$0xff]
  %v274 = vld [vmem:[%s3 + $0x3e8] sm:$0xff]
  %v275 = vld [vmem:[%s3 + $0x3f0] sm:$0xff]
  %v276 = vld [vmem:[%s3 + $0x3f8] sm:$0xff]
  %v277 = vld [vmem:[%s3 + $0x400] sm:$0xff]
  %v278 = vld [vmem:[%s3 + $0x408] sm:$0xff]
  %v279 = vld [vmem:[%s3 + $0x410] sm:$0xff]
  %v280 = vld [vmem:[%s3 + $0x418] sm:$0xff]
  %v281 = vld [vmem:[%s3 + $0x420] sm:$0xff]
  %v282 = vld [vmem:[%s3 + $0x428] sm:$0xff]
  %v283 = vld [vmem:[%s3 + $0x430] sm:$0xff]
  %v284 = vld [vmem:[%s3 + $0x438] sm:$0xff]
  %vm285 = vcmask 523264
  %v287 = vsel %vm285, %v147, 0
  %v290 = vsel %vm285, %v148, 0
  %292 = vmatprep.subr.mxu0 %v150
  %293 = vmatpush1.msra.mxu0 %v149
  %294 = vmatprep.subr.mxu0 %v167
  %295 = vmatpush1.msra.mxu0 %v166
  %296 = vmatprep.subr.mxu0 %v184
  %297 = vmatpush1.msra.mxu0 %v183
  %298 = vmatprep.subr.mxu0 %v201
  %299 = vmatpush1.msra.mxu0 %v200
  %300 = vmatprep.subr.mxu0 %v218
  %301 = vmatpush1.msra.mxu0 %v217
  %302 = vmatprep.subr.mxu0 %v235
  %303 = vmatpush1.msra.mxu0 %v234
  %304 = vmatprep.subr.mxu0 %v252
  %305 = vmatpush1.msra.mxu0 %v251
  %306 = vmatprep.subr.mxu0 %v269
  %307 = vmatpush1.msra.mxu0 %v268
  %308 = vmatprep.subr.mxu0 0.0
  %309 = vmatpush1.msra.mxu0 0.0
  %310 = vmatprep.subr.mxu0 0.0
  %311 = vmatpush1.msra.mxu0 0.0
  %312 = vmatprep.subr.mxu0 0.0
  %313 = vmatpush1.msra.mxu0 0.0
  %314 = vmatprep.subr.mxu0 0.0
  %315 = vmatpush1.msra.mxu0 0.0
  %316 = vmatprep.subr.mxu0 0.0
  %317 = vmatpush1.msra.mxu0 0.0
  %318 = vmatprep.subr.mxu0 0.0
  %319 = vmatpush1.msra.mxu0 0.0
  %320 = vmatprep.subr.mxu0 0.0
  %321 = vmatpush1.msra.mxu0 0.0
  %322 = vmatprep.subr.mxu0 0.0
  %323 = vmatpush1.msra.mxu0 0.0
  %324 = vmatprep.subr.mxu0 0.0
  %325 = vmatpush1.msra.mxu0 0.0
  %326 = vmatprep.subr.mxu0 0.0
  %327 = vmatpush1.msra.mxu0 0.0
  %328 = vmatprep.subr.mxu0 0.0
  %329 = vmatpush1.msra.mxu0 0.0
  %330 = vmatprep.subr.mxu0 0.0
  %331 = vmatpush1.msra.mxu0 0.0
  %332 = vmatprep.subr.mxu0 0.0
  %333 = vmatpush1.msra.mxu0 0.0
  %334 = vmatprep.subr.mxu0 0.0
  %335 = vmatpush1.msra.mxu0 0.0
  %336 = vmatprep.subr.mxu0 0.0
  %337 = vmatpush1.msra.mxu0 0.0
  %338 = vmatprep.subr.mxu0 0.0
  %339 = vmatpush1.msra.mxu0 0.0
  %340 = vmatprep.subr.mxu0 0.0
  %341 = vmatpush1.msra.mxu0 0.0
  %342 = vmatprep.subr.mxu0 0.0
  %343 = vmatpush1.msra.mxu0 0.0
  %344 = vmatprep.subr.mxu0 0.0
  %345 = vmatpush1.msra.mxu0 0.0
  %346 = vmatprep.subr.mxu0 0.0
  %347 = vmatpush1.msra.mxu0 0.0
  %348 = vmatprep.subr.mxu0 0.0
  %349 = vmatpush1.msra.mxu0 0.0
  %350 = vmatprep.subr.mxu0 0.0
  %351 = vmatpush1.msra.mxu0 0.0
  %352 = vmatprep.subr.mxu0 0.0
  %353 = vmatpush1.msra.mxu0 0.0
  %354 = vmatprep.subr.mxu0 0.0
  %355 = vmatpush1.msra.mxu0 0.0
  %356 = vmatprep.mubr.f32.mxu0 0.0
  %357 = vmatmul.mubr.f32.gmra.mrb[0].mxu0 %v287
  %v358 = vpop.f32.mrb[0].mxu0
  %v359 = vadd.f32 0.0, %v358
  %v360 = vpop.f32.mrb[0].mxu0
  %v361 = vadd.f32 0.0, %v360
  %362 = vmatprep.mubr.f32.mxu0 0.0
  %363 = vmatmul.mubr.f32.gmra.mrb[0].mxu0 %v290
  %v364 = vpop.f32.mrb[0].mxu0
  %v365 = vadd.f32 0.0, %v364
  %v366 = vpop.f32.mrb[0].mxu0
  %v367 = vadd.f32 0.0, %v366
  %368 = vdwg.mxu0
  %369 = vmatprep.subr.mxu0 %v152
  %370 = vmatpush1.msra.mxu0 %v151
  %371 = vmatprep.subr.mxu0 %v169
  %372 = vmatpush1.msra.mxu0 %v168
  %373 = vmatprep.subr.mxu0 %v186
  %374 = vmatpush1.msra.mxu0 %v185
  %375 = vmatprep.subr.mxu0 %v203
  %376 = vmatpush1.msra.mxu0 %v202
  %377 = vmatprep.subr.mxu0 %v220
  %378 = vmatpush1.msra.mxu0 %v219
  %379 = vmatprep.subr.mxu0 %v237
  %380 = vmatpush1.msra.mxu0 %v236
  %381 = vmatprep.subr.mxu0 %v254
  %382 = vmatpush1.msra.mxu0 %v253
  %383 = vmatprep.subr.mxu0 %v271
  %384 = vmatpush1.msra.mxu0 %v270
  %385 = vmatprep.subr.mxu0 0.0
  %386 = vmatpush1.msra.mxu0 0.0
  %387 = vmatprep.subr.mxu0 0.0
  %388 = vmatpush1.msra.mxu0 0.0
  %389 = vmatprep.subr.mxu0 0.0
  %390 = vmatpush1.msra.mxu0 0.0
  %391 = vmatprep.subr.mxu0 0.0
  %392 = vmatpush1.msra.mxu0 0.0
  %393 = vmatprep.subr.mxu0 0.0
  %394 = vmatpush1.msra.mxu0 0.0
  %395 = vmatprep.subr.mxu0 0.0
  %396 = vmatpush1.msra.mxu0 0.0
  %397 = vmatprep.subr.mxu0 0.0
  %398 = vmatpush1.msra.mxu0 0.0
  %399 = vmatprep.subr.mxu0 0.0
  %400 = vmatpush1.msra.mxu0 0.0
  %401 = vmatprep.subr.mxu0 0.0
  %402 = vmatpush1.msra.mxu0 0.0
  %403 = vmatprep.subr.mxu0 0.0
  %404 = vmatpush1.msra.mxu0 0.0
  %405 = vmatprep.subr.mxu0 0.0
  %406 = vmatpush1.msra.mxu0 0.0
  %407 = vmatprep.subr.mxu0 0.0
  %408 = vmatpush1.msra.mxu0 0.0
  %409 = vmatprep.subr.mxu0 0.0
  %410 = vmatpush1.msra.mxu0 0.0
  %411 = vmatprep.subr.mxu0 0.0
  %412 = vmatpush1.msra.mxu0 0.0
  %413 = vmatprep.subr.mxu0 0.0
  %414 = vmatpush1.msra.mxu0 0.0
  %415 = vmatprep.subr.mxu0 0.0
  %416 = vmatpush1.msra.mxu0 0.0
  %417 = vmatprep.subr.mxu0 0.0
  %418 = vmatpush1.msra.mxu0 0.0
  %419 = vmatprep.subr.mxu0 0.0
  %420 = vmatpush1.msra.mxu0 0.0
  %421 = vmatprep.subr.mxu0 0.0
  %422 = vmatpush1.msra.mxu0 0.0
  %423 = vmatprep.subr.mxu0 0.0
  %424 = vmatpush1.msra.mxu0 0.0
  %425 = vmatprep.subr.mxu0 0.0
  %426 = vmatpush1.msra.mxu0 0.0
  %427 = vmatprep.subr.mxu0 0.0
  %428 = vmatpush1.msra.mxu0 0.0
  %429 = vmatprep.subr.mxu0 0.0
  %430 = vmatpush1.msra.mxu0 0.0
  %431 = vmatprep.subr.mxu0 0.0
  %432 = vmatpush1.msra.mxu0 0.0
  %433 = vmatprep.mubr.f32.mxu0 0.0
  %434 = vmatmul.mubr.f32.gmra.mrb[0].mxu0 %v287
  %v435 = vpop.f32.mrb[0].mxu0
  %v436 = vadd.f32 0.0, %v435
  %v437 = vpop.f32.mrb[0].mxu0
  %v438 = vadd.f32 0.0, %v437
  %439 = vmatprep.mubr.f32.mxu0 0.0
  %440 = vmatmul.mubr.f32.gmra.mrb[0].mxu0 %v290
  %v441 = vpop.f32.mrb[0].mxu0
  %v442 = vadd.f32 0.0, %v441
  %v443 = vpop.f32.mrb[0].mxu0
  %v444 = vadd.f32 0.0, %v443
  %445 = vdwg.mxu0
  %446 = vmatprep.subr.mxu0 %v154
  %447 = vmatpush1.msra.mxu0 %v153
  %448 = vmatprep.subr.mxu0 %v171
  %449 = vmatpush1.msra.mxu0 %v170
  %450 = vmatprep.subr.mxu0 %v188
  %451 = vmatpush1.msra.mxu0 %v187
  %452 = vmatprep.subr.mxu0 %v205
  %453 = vmatpush1.msra.mxu0 %v204
  %454 = vmatprep.subr.mxu0 %v222
  %455 = vmatpush1.msra.mxu0 %v221
  %456 = vmatprep.subr.mxu0 %v239
  %457 = vmatpush1.msra.mxu0 %v238
  %458 = vmatprep.subr.mxu0 %v256
  %459 = vmatpush1.msra.mxu0 %v255
  %460 = vmatprep.subr.mxu0 %v273
  %461 = vmatpush1.msra.mxu0 %v272
  %462 = vmatprep.subr.mxu0 0.0
  %463 = vmatpush1.msra.mxu0 0.0
  %464 = vmatprep.subr.mxu0 0.0
  %465 = vmatpush1.msra.mxu0 0.0
  %466 = vmatprep.subr.mxu0 0.0
  %467 = vmatpush1.msra.mxu0 0.0
  %468 = vmatprep.subr.mxu0 0.0
  %469 = vmatpush1.msra.mxu0 0.0
  %470 = vmatprep.subr.mxu0 0.0
  %471 = vmatpush1.msra.mxu0 0.0
  %472 = vmatprep.subr.mxu0 0.0
  %473 = vmatpush1.msra.mxu0 0.0
  %474 = vmatprep.subr.mxu0 0.0
  %475 = vmatpush1.msra.mxu0 0.0
  %476 = vmatprep.subr.mxu0 0.0
  %477 = vmatpush1.msra.mxu0 0.0
  %478 = vmatprep.subr.mxu0 0.0
  %479 = vmatpush1.msra.mxu0 0.0
  %480 = vmatprep.subr.mxu0 0.0
  %481 = vmatpush1.msra.mxu0 0.0
  %482 = vmatprep.subr.mxu0 0.0
  %483 = vmatpush1.msra.mxu0 0.0
  %484 = vmatprep.subr.mxu0 0.0
  %485 = vmatpush1.msra.mxu0 0.0
  %486 = vmatprep.subr.mxu0 0.0
  %487 = vmatpush1.msra.mxu0 0.0
  %488 = vmatprep.subr.mxu0 0.0
  %489 = vmatpush1.msra.mxu0 0.0
  %490 = vmatprep.subr.mxu0 0.0
  %491 = vmatpush1.msra.mxu0 0.0
  %492 = vmatprep.subr.mxu0 0.0
  %493 = vmatpush1.msra.mxu0 0.0
  %494 = vmatprep.subr.mxu0 0.0
  %495 = vmatpush1.msra.mxu0 0.0
  %496 = vmatprep.subr.mxu0 0.0
  %497 = vmatpush1.msra.mxu0 0.0
  %498 = vmatprep.subr.mxu0 0.0
  %499 = vmatpush1.msra.mxu0 0.0
  %500 = vmatprep.subr.mxu0 0.0
  %501 = vmatpush1.msra.mxu0 0.0
  %502 = vmatprep.subr.mxu0 0.0
  %503 = vmatpush1.msra.mxu0 0.0
  %504 = vmatprep.subr.mxu0 0.0
  %505 = vmatpush1.msra.mxu0 0.0
  %506 = vmatprep.subr.mxu0 0.0
  %507 = vmatpush1.msra.mxu0 0.0
  %508 = vmatprep.subr.mxu0 0.0
  %509 = vmatpush1.msra.mxu0 0.0
  %510 = vmatprep.mubr.f32.mxu0 0.0
  %511 = vmatmul.mubr.f32.gmra.mrb[0].mxu0 %v287
  %v512 = vpop.f32.mrb[0].mxu0
  %v513 = vadd.f32 0.0, %v512
  %v514 = vpop.f32.mrb[0].mxu0
  %v515 = vadd.f32 0.0, %v514
  %516 = vmatprep.mubr.f32.mxu0 0.0
  %517 = vmatmul.mubr.f32.gmra.mrb[0].mxu0 %v290
  %v518 = vpop.f32.mrb[0].mxu0
  %v519 = vadd.f32 0.0, %v518
  %v520 = vpop.f32.mrb[0].mxu0
  %v521 = vadd.f32 0.0, %v520
  %522 = vdwg.mxu0
  %523 = vmatprep.subr.mxu0 %v156
  %524 = vmatpush1.msra.mxu0 %v155
  %525 = vmatprep.subr.mxu0 %v173
  %526 = vmatpush1.msra.mxu0 %v172
  %527 = vmatprep.subr.mxu0 %v190
  %528 = vmatpush1.msra.mxu0 %v189
  %529 = vmatprep.subr.mxu0 %v207
  %530 = vmatpush1.msra.mxu0 %v206
  %531 = vmatprep.subr.mxu0 %v224
  %532 = vmatpush1.msra.mxu0 %v223
  %533 = vmatprep.subr.mxu0 %v241
  %534 = vmatpush1.msra.mxu0 %v240
  %535 = vmatprep.subr.mxu0 %v258
  %536 = vmatpush1.msra.mxu0 %v257
  %537 = vmatprep.subr.mxu0 %v275
  %538 = vmatpush1.msra.mxu0 %v274
  %539 = vmatprep.subr.mxu0 0.0
  %540 = vmatpush1.msra.mxu0 0.0
  %541 = vmatprep.subr.mxu0 0.0
  %542 = vmatpush1.msra.mxu0 0.0
  %543 = vmatprep.subr.mxu0 0.0
  %544 = vmatpush1.msra.mxu0 0.0
  %545 = vmatprep.subr.mxu0 0.0
  %546 = vmatpush1.msra.mxu0 0.0
  %547 = vmatprep.subr.mxu0 0.0
  %548 = vmatpush1.msra.mxu0 0.0
  %549 = vmatprep.subr.mxu0 0.0
  %550 = vmatpush1.msra.mxu0 0.0
  %551 = vmatprep.subr.mxu0 0.0
  %552 = vmatpush1.msra.mxu0 0.0
  %553 = vmatprep.subr.mxu0 0.0
  %554 = vmatpush1.msra.mxu0 0.0
  %555 = vmatprep.subr.mxu0 0.0
  %556 = vmatpush1.msra.mxu0 0.0
  %557 = vmatprep.subr.mxu0 0.0
  %558 = vmatpush1.msra.mxu0 0.0
  %559 = vmatprep.subr.mxu0 0.0
  %560 = vmatpush1.msra.mxu0 0.0
  %561 = vmatprep.subr.mxu0 0.0
  %562 = vmatpush1.msra.mxu0 0.0
  %563 = vmatprep.subr.mxu0 0.0
  %564 = vmatpush1.msra.mxu0 0.0
  %565 = vmatprep.subr.mxu0 0.0
  %566 = vmatpush1.msra.mxu0 0.0
  %567 = vmatprep.subr.mxu0 0.0
  %568 = vmatpush1.msra.mxu0 0.0
  %569 = vmatprep.subr.mxu0 0.0
  %570 = vmatpush1.msra.mxu0 0.0
  %571 = vmatprep.subr.mxu0 0.0
  %572 = vmatpush1.msra.mxu0 0.0
  %573 = vmatprep.subr.mxu0 0.0
  %574 = vmatpush1.msra.mxu0 0.0
  %575 = vmatprep.subr.mxu0 0.0
  %576 = vmatpush1.msra.mxu0 0.0
  %577 = vmatprep.subr.mxu0 0.0
  %578 = vmatpush1.msra.mxu0 0.0
  %579 = vmatprep.subr.mxu0 0.0
  %580 = vmatpush1.msra.mxu0 0.0
  %581 = vmatprep.subr.mxu0 0.0
  %582 = vmatpush1.msra.mxu0 0.0
  %583 = vmatprep.subr.mxu0 0.0
  %584 = vmatpush1.msra.mxu0 0.0
  %585 = vmatprep.subr.mxu0 0.0
  %586 = vmatpush1.msra.mxu0 0.0
  %587 = vmatprep.mubr.f32.mxu0 0.0
  %588 = vmatmul.mubr.f32.gmra.mrb[0].mxu0 %v287
  %v589 = vpop.f32.mrb[0].mxu0
  %v590 = vadd.f32 0.0, %v589
  %v591 = vpop.f32.mrb[0].mxu0
  %v592 = vadd.f32 0.0, %v591
  %593 = vmatprep.mubr.f32.mxu0 0.0
  %594 = vmatmul.mubr.f32.gmra.mrb[0].mxu0 %v290
  %v595 = vpop.f32.mrb[0].mxu0
  %v596 = vadd.f32 0.0, %v595
  %v597 = vpop.f32.mrb[0].mxu0
  %v598 = vadd.f32 0.0, %v597
  %599 = vdwg.mxu0
  %600 = vmatprep.subr.mxu0 %v158
  %601 = vmatpush1.msra.mxu0 %v157
  %602 = vmatprep.subr.mxu0 %v175
  %603 = vmatpush1.msra.mxu0 %v174
  %604 = vmatprep.subr.mxu0 %v192
  %605 = vmatpush1.msra.mxu0 %v191
  %606 = vmatprep.subr.mxu0 %v209
  %607 = vmatpush1.msra.mxu0 %v208
  %608 = vmatprep.subr.mxu0 %v226
  %609 = vmatpush1.msra.mxu0 %v225
  %610 = vmatprep.subr.mxu0 %v243
  %611 = vmatpush1.msra.mxu0 %v242
  %612 = vmatprep.subr.mxu0 %v260
  %613 = vmatpush1.msra.mxu0 %v259
  %614 = vmatprep.subr.mxu0 %v277
  %615 = vmatpush1.msra.mxu0 %v276
  %616 = vmatprep.subr.mxu0 0.0
  %617 = vmatpush1.msra.mxu0 0.0
  %618 = vmatprep.subr.mxu0 0.0
  %619 = vmatpush1.msra.mxu0 0.0
  %620 = vmatprep.subr.mxu0 0.0
  %621 = vmatpush1.msra.mxu0 0.0
  %622 = vmatprep.subr.mxu0 0.0
  %623 = vmatpush1.msra.mxu0 0.0
  %624 = vmatprep.subr.mxu0 0.0
  %625 = vmatpush1.msra.mxu0 0.0
  %626 = vmatprep.subr.mxu0 0.0
  %627 = vmatpush1.msra.mxu0 0.0
  %628 = vmatprep.subr.mxu0 0.0
  %629 = vmatpush1.msra.mxu0 0.0
  %630 = vmatprep.subr.mxu0 0.0
  %631 = vmatpush1.msra.mxu0 0.0
  %632 = vmatprep.subr.mxu0 0.0
  %633 = vmatpush1.msra.mxu0 0.0
  %634 = vmatprep.subr.mxu0 0.0
  %635 = vmatpush1.msra.mxu0 0.0
  %636 = vmatprep.subr.mxu0 0.0
  %637 = vmatpush1.msra.mxu0 0.0
  %638 = vmatprep.subr.mxu0 0.0
  %639 = vmatpush1.msra.mxu0 0.0
  %640 = vmatprep.subr.mxu0 0.0
  %641 = vmatpush1.msra.mxu0 0.0
  %642 = vmatprep.subr.mxu0 0.0
  %643 = vmatpush1.msra.mxu0 0.0
  %644 = vmatprep.subr.mxu0 0.0
  %645 = vmatpush1.msra.mxu0 0.0
  %646 = vmatprep.subr.mxu0 0.0
  %647 = vmatpush1.msra.mxu0 0.0
  %648 = vmatprep.subr.mxu0 0.0
  %649 = vmatpush1.msra.mxu0 0.0
  %650 = vmatprep.subr.mxu0 0.0
  %651 = vmatpush1.msra.mxu0 0.0
  %652 = vmatprep.subr.mxu0 0.0
  %653 = vmatpush1.msra.mxu0 0.0
  %654 = vmatprep.subr.mxu0 0.0
  %655 = vmatpush1.msra.mxu0 0.0
  %656 = vmatprep.subr.mxu0 0.0
  %657 = vmatpush1.msra.mxu0 0.0
  %658 = vmatprep.subr.mxu0 0.0
  %659 = vmatpush1.msra.mxu0 0.0
  %660 = vmatprep.subr.mxu0 0.0
  %661 = vmatpush1.msra.mxu0 0.0
  %662 = vmatprep.subr.mxu0 0.0
  %663 = vmatpush1.msra.mxu0 0.0
  %664 = vmatprep.mubr.f32.mxu0 0.0
  %665 = vmatmul.mubr.f32.gmra.mrb[0].mxu0 %v287
  %v666 = vpop.f32.mrb[0].mxu0
  %v667 = vadd.f32 0.0, %v666
  %v668 = vpop.f32.mrb[0].mxu0
  %v669 = vadd.f32 0.0, %v668
  %670 = vmatprep.mubr.f32.mxu0 0.0
  %671 = vmatmul.mubr.f32.gmra.mrb[0].mxu0 %v290
  %v672 = vpop.f32.mrb[0].mxu0
  %v673 = vadd.f32 0.0, %v672
  %v674 = vpop.f32.mrb[0].mxu0
  %v675 = vadd.f32 0.0, %v674
  %676 = vdwg.mxu0
  %677 = vmatprep.subr.mxu0 %v160
  %678 = vmatpush1.msra.mxu0 %v159
  %679 = vmatprep.subr.mxu0 %v177
  %680 = vmatpush1.msra.mxu0 %v176
  %681 = vmatprep.subr.mxu0 %v194
  %682 = vmatpush1.msra.mxu0 %v193
  %683 = vmatprep.subr.mxu0 %v211
  %684 = vmatpush1.msra.mxu0 %v210
  %685 = vmatprep.subr.mxu0 %v228
  %686 = vmatpush1.msra.mxu0 %v227
  %687 = vmatprep.subr.mxu0 %v245
  %688 = vmatpush1.msra.mxu0 %v244
  %689 = vmatprep.subr.mxu0 %v262
  %690 = vmatpush1.msra.mxu0 %v261
  %691 = vmatprep.subr.mxu0 %v279
  %692 = vmatpush1.msra.mxu0 %v278
  %693 = vmatprep.subr.mxu0 0.0
  %694 = vmatpush1.msra.mxu0 0.0
  %695 = vmatprep.subr.mxu0 0.0
  %696 = vmatpush1.msra.mxu0 0.0
  %697 = vmatprep.subr.mxu0 0.0
  %698 = vmatpush1.msra.mxu0 0.0
  %699 = vmatprep.subr.mxu0 0.0
  %700 = vmatpush1.msra.mxu0 0.0
  %701 = vmatprep.subr.mxu0 0.0
  %702 = vmatpush1.msra.mxu0 0.0
  %703 = vmatprep.subr.mxu0 0.0
  %704 = vmatpush1.msra.mxu0 0.0
  %705 = vmatprep.subr.mxu0 0.0
  %706 = vmatpush1.msra.mxu0 0.0
  %707 = vmatprep.subr.mxu0 0.0
  %708 = vmatpush1.msra.mxu0 0.0
  %709 = vmatprep.subr.mxu0 0.0
  %710 = vmatpush1.msra.mxu0 0.0
  %711 = vmatprep.subr.mxu0 0.0
  %712 = vmatpush1.msra.mxu0 0.0
  %713 = vmatprep.subr.mxu0 0.0
  %714 = vmatpush1.msra.mxu0 0.0
  %715 = vmatprep.subr.mxu0 0.0
  %716 = vmatpush1.msra.mxu0 0.0
  %717 = vmatprep.subr.mxu0 0.0
  %718 = vmatpush1.msra.mxu0 0.0
  %719 = vmatprep.subr.mxu0 0.0
  %720 = vmatpush1.msra.mxu0 0.0
  %721 = vmatprep.subr.mxu0 0.0
  %722 = vmatpush1.msra.mxu0 0.0
  %723 = vmatprep.subr.mxu0 0.0
  %724 = vmatpush1.msra.mxu0 0.0
  %725 = vmatprep.subr.mxu0 0.0
  %726 = vmatpush1.msra.mxu0 0.0
  %727 = vmatprep.subr.mxu0 0.0
  %728 = vmatpush1.msra.mxu0 0.0
  %729 = vmatprep.subr.mxu0 0.0
  %730 = vmatpush1.msra.mxu0 0.0
  %731 = vmatprep.subr.mxu0 0.0
  %732 = vmatpush1.msra.mxu0 0.0
  %733 = vmatprep.subr.mxu0 0.0
  %734 = vmatpush1.msra.mxu0 0.0
  %735 = vmatprep.subr.mxu0 0.0
  %736 = vmatpush1.msra.mxu0 0.0
  %737 = vmatprep.subr.mxu0 0.0
  %738 = vmatpush1.msra.mxu0 0.0
  %739 = vmatprep.subr.mxu0 0.0
  %740 = vmatpush1.msra.mxu0 0.0
  %741 = vmatprep.mubr.f32.mxu0 0.0
  %742 = vmatmul.mubr.f32.gmra.mrb[0].mxu0 %v287
  %v743 = vpop.f32.mrb[0].mxu0
  %v744 = vadd.f32 0.0, %v743
  %v745 = vpop.f32.mrb[0].mxu0
  %v746 = vadd.f32 0.0, %v745
  %747 = vmatprep.mubr.f32.mxu0 0.0
  %748 = vmatmul.mubr.f32.gmra.mrb[0].mxu0 %v290
  %v749 = vpop.f32.mrb[0].mxu0
  %v750 = vadd.f32 0.0, %v749
  %v751 = vpop.f32.mrb[0].mxu0
  %v752 = vadd.f32 0.0, %v751
  %753 = vdwg.mxu0
  %754 = vmatprep.subr.mxu0 %v162
  %755 = vmatpush1.msra.mxu0 %v161
  %756 = vmatprep.subr.mxu0 %v179
  %757 = vmatpush1.msra.mxu0 %v178
  %758 = vmatprep.subr.mxu0 %v196
  %759 = vmatpush1.msra.mxu0 %v195
  %760 = vmatprep.subr.mxu0 %v213
  %761 = vmatpush1.msra.mxu0 %v212
  %762 = vmatprep.subr.mxu0 %v230
  %763 = vmatpush1.msra.mxu0 %v229
  %764 = vmatprep.subr.mxu0 %v247
  %765 = vmatpush1.msra.mxu0 %v246
  %766 = vmatprep.subr.mxu0 %v264
  %767 = vmatpush1.msra.mxu0 %v263
  %768 = vmatprep.subr.mxu0 %v281
  %769 = vmatpush1.msra.mxu0 %v280
  %770 = vmatprep.subr.mxu0 0.0
  %771 = vmatpush1.msra.mxu0 0.0
  %772 = vmatprep.subr.mxu0 0.0
  %773 = vmatpush1.msra.mxu0 0.0
  %774 = vmatprep.subr.mxu0 0.0
  %775 = vmatpush1.msra.mxu0 0.0
  %776 = vmatprep.subr.mxu0 0.0
  %777 = vmatpush1.msra.mxu0 0.0
  %778 = vmatprep.subr.mxu0 0.0
  %779 = vmatpush1.msra.mxu0 0.0
  %780 = vmatprep.subr.mxu0 0.0
  %781 = vmatpush1.msra.mxu0 0.0
  %782 = vmatprep.subr.mxu0 0.0
  %783 = vmatpush1.msra.mxu0 0.0
  %784 = vmatprep.subr.mxu0 0.0
  %785 = vmatpush1.msra.mxu0 0.0
  %786 = vmatprep.subr.mxu0 0.0
  %787 = vmatpush1.msra.mxu0 0.0
  %788 = vmatprep.subr.mxu0 0.0
  %789 = vmatpush1.msra.mxu0 0.0
  %790 = vmatprep.subr.mxu0 0.0
  %791 = vmatpush1.msra.mxu0 0.0
  %792 = vmatprep.subr.mxu0 0.0
  %793 = vmatpush1.msra.mxu0 0.0
  %794 = vmatprep.subr.mxu0 0.0
  %795 = vmatpush1.msra.mxu0 0.0
  %796 = vmatprep.subr.mxu0 0.0
  %797 = vmatpush1.msra.mxu0 0.0
  %798 = vmatprep.subr.mxu0 0.0
  %799 = vmatpush1.msra.mxu0 0.0
  %800 = vmatprep.subr.mxu0 0.0
  %801 = vmatpush1.msra.mxu0 0.0
  %802 = vmatprep.subr.mxu0 0.0
  %803 = vmatpush1.msra.mxu0 0.0
  %804 = vmatprep.subr.mxu0 0.0
  %805 = vmatpush1.msra.mxu0 0.0
  %806 = vmatprep.subr.mxu0 0.0
  %807 = vmatpush1.msra.mxu0 0.0
  %808 = vmatprep.subr.mxu0 0.0
  %809 = vmatpush1.msra.mxu0 0.0
  %810 = vmatprep.subr.mxu0 0.0
  %811 = vmatpush1.msra.mxu0 0.0
  %812 = vmatprep.subr.mxu0 0.0
  %813 = vmatpush1.msra.mxu0 0.0
  %814 = vmatprep.subr.mxu0 0.0
  %815 = vmatpush1.msra.mxu0 0.0
  %816 = vmatprep.subr.mxu0 0.0
  %817 = vmatpush1.msra.mxu0 0.0
  %818 = vmatprep.mubr.f32.mxu0 0.0
  %819 = vmatmul.mubr.f32.gmra.mrb[0].mxu0 %v287
  %v820 = vpop.f32.mrb[0].mxu0
  %v821 = vadd.f32 0.0, %v820
  %v822 = vpop.f32.mrb[0].mxu0
  %v823 = vadd.f32 0.0, %v822
  %824 = vmatprep.mubr.f32.mxu0 0.0
  %825 = vmatmul.mubr.f32.gmra.mrb[0].mxu0 %v290
  %v826 = vpop.f32.mrb[0].mxu0
  %v827 = vadd.f32 0.0, %v826
  %v828 = vpop.f32.mrb[0].mxu0
  %v829 = vadd.f32 0.0, %v828
  %830 = vdwg.mxu0
  %831 = vmatprep.subr.mxu0 %v164
  %832 = vmatpush1.msra.mxu0 %v163
  %833 = vmatprep.subr.mxu0 %v181
  %834 = vmatpush1.msra.mxu0 %v180
  %835 = vmatprep.subr.mxu0 %v198
  %836 = vmatpush1.msra.mxu0 %v197
  %837 = vmatprep.subr.mxu0 %v215
  %838 = vmatpush1.msra.mxu0 %v214
  %839 = vmatprep.subr.mxu0 %v232
  %840 = vmatpush1.msra.mxu0 %v231
  %841 = vmatprep.subr.mxu0 %v249
  %842 = vmatpush1.msra.mxu0 %v248
  %843 = vmatprep.subr.mxu0 %v266
  %844 = vmatpush1.msra.mxu0 %v265
  %845 = vmatprep.subr.mxu0 %v283
  %846 = vmatpush1.msra.mxu0 %v282
  %847 = vmatprep.subr.mxu0 0.0
  %848 = vmatpush1.msra.mxu0 0.0
  %849 = vmatprep.subr.mxu0 0.0
  %850 = vmatpush1.msra.mxu0 0.0
  %851 = vmatprep.subr.mxu0 0.0
  %852 = vmatpush1.msra.mxu0 0.0
  %853 = vmatprep.subr.mxu0 0.0
  %854 = vmatpush1.msra.mxu0 0.0
  %855 = vmatprep.subr.mxu0 0.0
  %856 = vmatpush1.msra.mxu0 0.0
  %857 = vmatprep.subr.mxu0 0.0
  %858 = vmatpush1.msra.mxu0 0.0
  %859 = vmatprep.subr.mxu0 0.0
  %860 = vmatpush1.msra.mxu0 0.0
  %861 = vmatprep.subr.mxu0 0.0
  %862 = vmatpush1.msra.mxu0 0.0
  %863 = vmatprep.subr.mxu0 0.0
  %864 = vmatpush1.msra.mxu0 0.0
  %865 = vmatprep.subr.mxu0 0.0
  %866 = vmatpush1.msra.mxu0 0.0
  %867 = vmatprep.subr.mxu0 0.0
  %868 = vmatpush1.msra.mxu0 0.0
  %869 = vmatprep.subr.mxu0 0.0
  %870 = vmatpush1.msra.mxu0 0.0
  %871 = vmatprep.subr.mxu0 0.0
  %872 = vmatpush1.msra.mxu0 0.0
  %873 = vmatprep.subr.mxu0 0.0
  %874 = vmatpush1.msra.mxu0 0.0
  %875 = vmatprep.subr.mxu0 0.0
  %876 = vmatpush1.msra.mxu0 0.0
  %877 = vmatprep.subr.mxu0 0.0
  %878 = vmatpush1.msra.mxu0 0.0
  %879 = vmatprep.subr.mxu0 0.0
  %880 = vmatpush1.msra.mxu0 0.0
  %881 = vmatprep.subr.mxu0 0.0
  %882 = vmatpush1.msra.mxu0 0.0
  %883 = vmatprep.subr.mxu0 0.0
  %884 = vmatpush1.msra.mxu0 0.0
  %885 = vmatprep.subr.mxu0 0.0
  %886 = vmatpush1.msra.mxu0 0.0
  %887 = vmatprep.subr.mxu0 0.0
  %888 = vmatpush1.msra.mxu0 0.0
  %889 = vmatprep.subr.mxu0 0.0
  %890 = vmatpush1.msra.mxu0 0.0
  %891 = vmatprep.subr.mxu0 0.0
  %892 = vmatpush1.msra.mxu0 0.0
  %893 = vmatprep.subr.mxu0 0.0
  %894 = vmatpush1.msra.mxu0 0.0
  %895 = vmatprep.mubr.f32.mxu0 0.0
  %896 = vmatmul.mubr.f32.gmra.mrb[0].mxu0 %v287
  %v897 = vpop.f32.mrb[0].mxu0
  %v898 = vadd.f32 0.0, %v897
  %v899 = vpop.f32.mrb[0].mxu0
  %v900 = vadd.f32 0.0, %v899
  %901 = vmatprep.mubr.f32.mxu0 0.0
  %902 = vmatmul.mubr.f32.gmra.mrb[0].mxu0 %v290
  %v903 = vpop.f32.mrb[0].mxu0
  %v904 = vadd.f32 0.0, %v903
  %v905 = vpop.f32.mrb[0].mxu0
  %v906 = vadd.f32 0.0, %v905
  %907 = vdwg.mxu0
  %908 = vmatprep.subr.mxu0 0.0
  %909 = vmatpush1.msra.mxu0 %v165
  %910 = vmatprep.subr.mxu0 0.0
  %911 = vmatpush1.msra.mxu0 %v182
  %912 = vmatprep.subr.mxu0 0.0
  %913 = vmatpush1.msra.mxu0 %v199
  %914 = vmatprep.subr.mxu0 0.0
  %915 = vmatpush1.msra.mxu0 %v216
  %916 = vmatprep.subr.mxu0 0.0
  %917 = vmatpush1.msra.mxu0 %v233
  %918 = vmatprep.subr.mxu0 0.0
  %919 = vmatpush1.msra.mxu0 %v250
  %920 = vmatprep.subr.mxu0 0.0
  %921 = vmatpush1.msra.mxu0 %v267
  %922 = vmatprep.subr.mxu0 0.0
  %923 = vmatpush1.msra.mxu0 %v284
  %924 = vmatprep.subr.mxu0 0.0
  %925 = vmatpush1.msra.mxu0 0.0
  %926 = vmatprep.subr.mxu0 0.0
  %927 = vmatpush1.msra.mxu0 0.0
  %928 = vmatprep.subr.mxu0 0.0
  %929 = vmatpush1.msra.mxu0 0.0
  %930 = vmatprep.subr.mxu0 0.0
  %931 = vmatpush1.msra.mxu0 0.0
  %932 = vmatprep.subr.mxu0 0.0
  %933 = vmatpush1.msra.mxu0 0.0
  %934 = vmatprep.subr.mxu0 0.0
  %935 = vmatpush1.msra.mxu0 0.0
  %936 = vmatprep.subr.mxu0 0.0
  %937 = vmatpush1.msra.mxu0 0.0
  %938 = vmatprep.subr.mxu0 0.0
  %939 = vmatpush1.msra.mxu0 0.0
  %940 = vmatprep.subr.mxu0 0.0
  %941 = vmatpush1.msra.mxu0 0.0
  %942 = vmatprep.subr.mxu0 0.0
  %943 = vmatpush1.msra.mxu0 0.0
  %944 = vmatprep.subr.mxu0 0.0
  %945 = vmatpush1.msra.mxu0 0.0
  %946 = vmatprep.subr.mxu0 0.0
  %947 = vmatpush1.msra.mxu0 0.0
  %948 = vmatprep.subr.mxu0 0.0
  %949 = vmatpush1.msra.mxu0 0.0
  %950 = vmatprep.subr.mxu0 0.0
  %951 = vmatpush1.msra.mxu0 0.0
  %952 = vmatprep.subr.mxu0 0.0
  %953 = vmatpush1.msra.mxu0 0.0
  %954 = vmatprep.subr.mxu0 0.0
  %955 = vmatpush1.msra.mxu0 0.0
  %956 = vmatprep.subr.mxu0 0.0
  %957 = vmatpush1.msra.mxu0 0.0
  %958 = vmatprep.subr.mxu0 0.0
  %959 = vmatpush1.msra.mxu0 0.0
  %960 = vmatprep.subr.mxu0 0.0
  %961 = vmatpush1.msra.mxu0 0.0
  %962 = vmatprep.subr.mxu0 0.0
  %963 = vmatpush1.msra.mxu0 0.0
  %964 = vmatprep.subr.mxu0 0.0
  %965 = vmatpush1.msra.mxu0 0.0
  %966 = vmatprep.subr.mxu0 0.0
  %967 = vmatpush1.msra.mxu0 0.0
  %968 = vmatprep.subr.mxu0 0.0
  %969 = vmatpush1.msra.mxu0 0.0
  %970 = vmatprep.subr.mxu0 0.0
  %971 = vmatpush1.msra.mxu0 0.0
  %972 = vmatprep.mubr.f32.mxu0 0.0
  %973 = vmatmul.mubr.f32.gmra.mrb[0].mxu0 %v287
  %v974 = vpop.f32.mrb[0].mxu0
  %v975 = vadd.f32 0.0, %v974
  %v976 = vpop.f32.mrb[0].mxu0
  %977 = vmatprep.mubr.f32.mxu0 0.0
  %978 = vmatmul.mubr.f32.gmra.mrb[0].mxu0 %v290
  %v979 = vpop.f32.mrb[0].mxu0
  %v980 = vadd.f32 0.0, %v979
  %v981 = vpop.f32.mrb[0].mxu0
  %982 = vdwg.mxu0
  %v983 = vld [vmem:[%s4] sm:$0x1]
  %v985 = vlaneseq
  %v986 = vshrl.u32 %v985, 7
  %v987 = vsub.s32 0, %v986
  %v988 = vrot.slane %v983, %v987
  %v990 = vadd.f32 %v359, %v988
  %v991 = vadd.f32 %v365, %v988
  %vm992 = vcmp.gt.f32.partialorder %v990, 20.0
  %vm993 = vcmp.gt.f32.partialorder %v991, 20.0
  %v994 = vmul.f32 %v990, 1.442695
  %v995 = vpow.pop %v994
  %v996 = vmul.f32 %v991, 1.442695
  %v997 = vpow.pop %v996
  %v998 = vadd.f32 %v995, 1.0
  %v999 = vlog2.pop %v998
  %v1000 = vmul.f32 %v999, 0.6931472
  %v1001 = vmul.f32 -0.5, %v995
  %v1002 = vadd.f32 %v1001, 1.0
  %v1003 = vmul.f32 %v1002, %v995
  %v1004 = vand.u32 2147483647, %v995
  %vm1005 = vcmp.lt.f32.partialorder %v1004, 0.0004427343
  %v1006 = vsel %vm1005, %v1003, %v1000
  %v1007 = vadd.f32 %v997, 1.0
  %v1008 = vlog2.pop %v1007
  %v1009 = vmul.f32 %v1008, 0.6931472
  %v1010 = vmul.f32 -0.5, %v997
  %v1011 = vadd.f32 %v1010, 1.0
  %v1012 = vmul.f32 %v1011, %v997
  %v1013 = vand.u32 2147483647, %v997
  %vm1014 = vcmp.lt.f32.partialorder %v1013, 0.0004427343
  %v1015 = vsel %vm1014, %v1012, %v1009
  %v1016 = vsel %vm992, %v990, %v1006
  %v1017 = vsel %vm993, %v991, %v1015
  %v1018 = vld [vmem:[%s5] sm:$0xff]
  %v1019 = vld [vmem:[%s5 + $0x8] sm:$0xff]
  %v1020 = vld [vmem:[%s5 + $0x10] sm:$0xff]
  %v1021 = vld [vmem:[%s5 + $0x18] sm:$0xff]
  %v1022 = vld [vmem:[%s5 + $0x20] sm:$0xff]
  %v1023 = vld [vmem:[%s5 + $0x28] sm:$0xff]
  %v1024 = vld [vmem:[%s5 + $0x30] sm:$0xff]
  %v1025 = vld [vmem:[%s5 + $0x38] sm:$0xff]
  %v1026 = vld [vmem:[%s5 + $0x40] sm:$0xff]
  %v1027 = vld [vmem:[%s5 + $0x48] sm:$0xff]
  %v1028 = vld [vmem:[%s5 + $0x50] sm:$0xff]
  %v1029 = vld [vmem:[%s5 + $0x58] sm:$0xff]
  %v1030 = vld [vmem:[%s5 + $0x60] sm:$0xff]
  %v1031 = vld [vmem:[%s5 + $0x68] sm:$0xff]
  %v1032 = vld [vmem:[%s5 + $0x70] sm:$0xff]
  %v1033 = vld [vmem:[%s5 + $0x78] sm:$0xff]
  %v1034 = vld [vmem:[%s5 + $0x80] sm:$0xff]
  %v1035 = vld [vmem:[%s5 + $0x88] sm:$0xff]
  %v1036 = vld [vmem:[%s5 + $0x90] sm:$0xff]
  %v1037 = vld [vmem:[%s5 + $0x98] sm:$0xff]
  %v1038 = vld [vmem:[%s5 + $0xa0] sm:$0xff]
  %v1039 = vld [vmem:[%s5 + $0xa8] sm:$0xff]
  %v1040 = vld [vmem:[%s5 + $0xb0] sm:$0xff]
  %v1041 = vld [vmem:[%s5 + $0xb8] sm:$0xff]
  %v1042 = vld [vmem:[%s5 + $0xc0] sm:$0xff]
  %v1043 = vld [vmem:[%s5 + $0xc8] sm:$0xff]
  %v1044 = vld [vmem:[%s5 + $0xd0] sm:$0xff]
  %v1045 = vld [vmem:[%s5 + $0xd8] sm:$0xff]
  %v1046 = vld [vmem:[%s5 + $0xe0] sm:$0xff]
  %v1047 = vld [vmem:[%s5 + $0xe8] sm:$0xff]
  %v1048 = vld [vmem:[%s5 + $0xf0] sm:$0xff]
  %v1049 = vld [vmem:[%s5 + $0xf8] sm:$0xff]
  %v1050 = vld [vmem:[%s5 + $0x100] sm:$0xff]
  %v1051 = vld [vmem:[%s5 + $0x108] sm:$0xff]
  %v1052 = vld [vmem:[%s5 + $0x110] sm:$0xff]
  %v1053 = vld [vmem:[%s5 + $0x118] sm:$0xff]
  %v1054 = vld [vmem:[%s5 + $0x120] sm:$0xff]
  %v1055 = vld [vmem:[%s5 + $0x128] sm:$0xff]
  %v1056 = vld [vmem:[%s5 + $0x130] sm:$0xff]
  %v1057 = vld [vmem:[%s5 + $0x138] sm:$0xff]
  %v1058 = vld [vmem:[%s5 + $0x140] sm:$0xff]
  %v1059 = vld [vmem:[%s5 + $0x148] sm:$0xff]
  %v1060 = vld [vmem:[%s5 + $0x150] sm:$0xff]
  %v1061 = vld [vmem:[%s5 + $0x158] sm:$0xff]
  %v1062 = vld [vmem:[%s5 + $0x160] sm:$0xff]
  %v1063 = vld [vmem:[%s5 + $0x168] sm:$0xff]
  %v1064 = vld [vmem:[%s5 + $0x170] sm:$0xff]
  %v1065 = vld [vmem:[%s5 + $0x178] sm:$0xff]
  %v1066 = vld [vmem:[%s5 + $0x180] sm:$0xff]
  %v1067 = vld [vmem:[%s5 + $0x188] sm:$0xff]
  %v1068 = vld [vmem:[%s5 + $0x190] sm:$0xff]
  %v1069 = vld [vmem:[%s5 + $0x198] sm:$0xff]
  %v1070 = vld [vmem:[%s5 + $0x1a0] sm:$0xff]
  %v1071 = vld [vmem:[%s5 + $0x1a8] sm:$0xff]
  %v1072 = vld [vmem:[%s5 + $0x1b0] sm:$0xff]
  %v1073 = vld [vmem:[%s5 + $0x1b8] sm:$0xff]
  %v1074 = vld [vmem:[%s5 + $0x1c0] sm:$0xff]
  %v1075 = vld [vmem:[%s5 + $0x1c8] sm:$0xff]
  %v1076 = vld [vmem:[%s5 + $0x1d0] sm:$0xff]
  %v1077 = vld [vmem:[%s5 + $0x1d8] sm:$0xff]
  %v1078 = vld [vmem:[%s5 + $0x1e0] sm:$0xff]
  %v1079 = vld [vmem:[%s5 + $0x1e8] sm:$0xff]
  %v1080 = vld [vmem:[%s5 + $0x1f0] sm:$0xff]
  %v1081 = vld [vmem:[%s5 + $0x1f8] sm:$0xff]
  %v1083 = vsel %vm285, %v1016, 0
  %v1086 = vsel %vm285, %v1017, 0
  %1088 = vmatprep.subr.mxu0 %v1019
  %1089 = vmatpush1.msra.mxu0 %v1018
  %1090 = vmatprep.subr.mxu0 %v1027
  %1091 = vmatpush1.msra.mxu0 %v1026
  %1092 = vmatprep.subr.mxu0 %v1035
  %1093 = vmatpush1.msra.mxu0 %v1034
  %1094 = vmatprep.subr.mxu0 %v1043
  %1095 = vmatpush1.msra.mxu0 %v1042
  %1096 = vmatprep.subr.mxu0 %v1051
  %1097 = vmatpush1.msra.mxu0 %v1050
  %1098 = vmatprep.subr.mxu0 %v1059
  %1099 = vmatpush1.msra.mxu0 %v1058
  %1100 = vmatprep.subr.mxu0 %v1067
  %1101 = vmatpush1.msra.mxu0 %v1066
  %1102 = vmatprep.subr.mxu0 %v1075
  %1103 = vmatpush1.msra.mxu0 %v1074
  %1104 = vmatprep.subr.mxu0 0.0
  %1105 = vmatpush1.msra.mxu0 0.0
  %1106 = vmatprep.subr.mxu0 0.0
  %1107 = vmatpush1.msra.mxu0 0.0
  %1108 = vmatprep.subr.mxu0 0.0
  %1109 = vmatpush1.msra.mxu0 0.0
  %1110 = vmatprep.subr.mxu0 0.0
  %1111 = vmatpush1.msra.mxu0 0.0
  %1112 = vmatprep.subr.mxu0 0.0
  %1113 = vmatpush1.msra.mxu0 0.0
  %1114 = vmatprep.subr.mxu0 0.0
  %1115 = vmatpush1.msra.mxu0 0.0
  %1116 = vmatprep.subr.mxu0 0.0
  %1117 = vmatpush1.msra.mxu0 0.0
  %1118 = vmatprep.subr.mxu0 0.0
  %1119 = vmatpush1.msra.mxu0 0.0
  %1120 = vmatprep.subr.mxu0 0.0
  %1121 = vmatpush1.msra.mxu0 0.0
  %1122 = vmatprep.subr.mxu0 0.0
  %1123 = vmatpush1.msra.mxu0 0.0
  %1124 = vmatprep.subr.mxu0 0.0
  %1125 = vmatpush1.msra.mxu0 0.0
  %1126 = vmatprep.subr.mxu0 0.0
  %1127 = vmatpush1.msra.mxu0 0.0
  %1128 = vmatprep.subr.mxu0 0.0
  %1129 = vmatpush1.msra.mxu0 0.0
  %1130 = vmatprep.subr.mxu0 0.0
  %1131 = vmatpush1.msra.mxu0 0.0
  %1132 = vmatprep.subr.mxu0 0.0
  %1133 = vmatpush1.msra.mxu0 0.0
  %1134 = vmatprep.subr.mxu0 0.0
  %1135 = vmatpush1.msra.mxu0 0.0
  %1136 = vmatprep.subr.mxu0 0.0
  %1137 = vmatpush1.msra.mxu0 0.0
  %1138 = vmatprep.subr.mxu0 0.0
  %1139 = vmatpush1.msra.mxu0 0.0
  %1140 = vmatprep.subr.mxu0 0.0
  %1141 = vmatpush1.msra.mxu0 0.0
  %1142 = vmatprep.subr.mxu0 0.0
  %1143 = vmatpush1.msra.mxu0 0.0
  %1144 = vmatprep.subr.mxu0 0.0
  %1145 = vmatpush1.msra.mxu0 0.0
  %1146 = vmatprep.subr.mxu0 0.0
  %1147 = vmatpush1.msra.mxu0 0.0
  %1148 = vmatprep.subr.mxu0 0.0
  %1149 = vmatpush1.msra.mxu0 0.0
  %1150 = vmatprep.subr.mxu0 0.0
  %1151 = vmatpush1.msra.mxu0 0.0
  %1152 = vmatprep.mubr.f32.mxu0 0.0
  %1153 = vmatmul.mubr.f32.gmra.mrb[0].mxu0 %v1083
  %v1154 = vpop.f32.mrb[0].mxu0
  %v1155 = vadd.f32 0.0, %v1154
  %v1156 = vpop.f32.mrb[0].mxu0
  %v1157 = vadd.f32 0.0, %v1156
  %1158 = vmatprep.mubr.f32.mxu0 0.0
  %1159 = vmatmul.mubr.f32.gmra.mrb[0].mxu0 %v1086
  %v1160 = vpop.f32.mrb[0].mxu0
  %v1161 = vadd.f32 0.0, %v1160
  %v1162 = vpop.f32.mrb[0].mxu0
  %v1163 = vadd.f32 0.0, %v1162
  %1164 = vdwg.mxu0
  %1165 = vmatprep.subr.mxu0 %v1021
  %1166 = vmatpush1.msra.mxu0 %v1020
  %1167 = vmatprep.subr.mxu0 %v1029
  %1168 = vmatpush1.msra.mxu0 %v1028
  %1169 = vmatprep.subr.mxu0 %v1037
  %1170 = vmatpush1.msra.mxu0 %v1036
  %1171 = vmatprep.subr.mxu0 %v1045
  %1172 = vmatpush1.msra.mxu0 %v1044
  %1173 = vmatprep.subr.mxu0 %v1053
  %1174 = vmatpush1.msra.mxu0 %v1052
  %1175 = vmatprep.subr.mxu0 %v1061
  %1176 = vmatpush1.msra.mxu0 %v1060
  %1177 = vmatprep.subr.mxu0 %v1069
  %1178 = vmatpush1.msra.mxu0 %v1068
  %1179 = vmatprep.subr.mxu0 %v1077
  %1180 = vmatpush1.msra.mxu0 %v1076
  %1181 = vmatprep.subr.mxu0 0.0
  %1182 = vmatpush1.msra.mxu0 0.0
  %1183 = vmatprep.subr.mxu0 0.0
  %1184 = vmatpush1.msra.mxu0 0.0
  %1185 = vmatprep.subr.mxu0 0.0
  %1186 = vmatpush1.msra.mxu0 0.0
  %1187 = vmatprep.subr.mxu0 0.0
  %1188 = vmatpush1.msra.mxu0 0.0
  %1189 = vmatprep.subr.mxu0 0.0
  %1190 = vmatpush1.msra.mxu0 0.0
  %1191 = vmatprep.subr.mxu0 0.0
  %1192 = vmatpush1.msra.mxu0 0.0
  %1193 = vmatprep.subr.mxu0 0.0
  %1194 = vmatpush1.msra.mxu0 0.0
  %1195 = vmatprep.subr.mxu0 0.0
  %1196 = vmatpush1.msra.mxu0 0.0
  %1197 = vmatprep.subr.mxu0 0.0
  %1198 = vmatpush1.msra.mxu0 0.0
  %1199 = vmatprep.subr.mxu0 0.0
  %1200 = vmatpush1.msra.mxu0 0.0
  %1201 = vmatprep.subr.mxu0 0.0
  %1202 = vmatpush1.msra.mxu0 0.0
  %1203 = vmatprep.subr.mxu0 0.0
  %1204 = vmatpush1.msra.mxu0 0.0
  %1205 = vmatprep.subr.mxu0 0.0
  %1206 = vmatpush1.msra.mxu0 0.0
  %1207 = vmatprep.subr.mxu0 0.0
  %1208 = vmatpush1.msra.mxu0 0.0
  %1209 = vmatprep.subr.mxu0 0.0
  %1210 = vmatpush1.msra.mxu0 0.0
  %1211 = vmatprep.subr.mxu0 0.0
  %1212 = vmatpush1.msra.mxu0 0.0
  %1213 = vmatprep.subr.mxu0 0.0
  %1214 = vmatpush1.msra.mxu0 0.0
  %1215 = vmatprep.subr.mxu0 0.0
  %1216 = vmatpush1.msra.mxu0 0.0
  %1217 = vmatprep.subr.mxu0 0.0
  %1218 = vmatpush1.msra.mxu0 0.0
  %1219 = vmatprep.subr.mxu0 0.0
  %1220 = vmatpush1.msra.mxu0 0.0
  %1221 = vmatprep.subr.mxu0 0.0
  %1222 = vmatpush1.msra.mxu0 0.0
  %1223 = vmatprep.subr.mxu0 0.0
  %1224 = vmatpush1.msra.mxu0 0.0
  %1225 = vmatprep.subr.mxu0 0.0
  %1226 = vmatpush1.msra.mxu0 0.0
  %1227 = vmatprep.subr.mxu0 0.0
  %1228 = vmatpush1.msra.mxu0 0.0
  %1229 = vmatprep.mubr.f32.mxu0 0.0
  %1230 = vmatmul.mubr.f32.gmra.mrb[0].mxu0 %v1083
  %v1231 = vpop.f32.mrb[0].mxu0
  %v1232 = vadd.f32 0.0, %v1231
  %v1233 = vpop.f32.mrb[0].mxu0
  %v1234 = vadd.f32 0.0, %v1233
  %1235 = vmatprep.mubr.f32.mxu0 0.0
  %1236 = vmatmul.mubr.f32.gmra.mrb[0].mxu0 %v1086
  %v1237 = vpop.f32.mrb[0].mxu0
  %v1238 = vadd.f32 0.0, %v1237
  %v1239 = vpop.f32.mrb[0].mxu0
  %v1240 = vadd.f32 0.0, %v1239
  %1241 = vdwg.mxu0
  %1242 = vmatprep.subr.mxu0 %v1023
  %1243 = vmatpush1.msra.mxu0 %v1022
  %1244 = vmatprep.subr.mxu0 %v1031
  %1245 = vmatpush1.msra.mxu0 %v1030
  %1246 = vmatprep.subr.mxu0 %v1039
  %1247 = vmatpush1.msra.mxu0 %v1038
  %1248 = vmatprep.subr.mxu0 %v1047
  %1249 = vmatpush1.msra.mxu0 %v1046
  %1250 = vmatprep.subr.mxu0 %v1055
  %1251 = vmatpush1.msra.mxu0 %v1054
  %1252 = vmatprep.subr.mxu0 %v1063
  %1253 = vmatpush1.msra.mxu0 %v1062
  %1254 = vmatprep.subr.mxu0 %v1071
  %1255 = vmatpush1.msra.mxu0 %v1070
  %1256 = vmatprep.subr.mxu0 %v1079
  %1257 = vmatpush1.msra.mxu0 %v1078
  %1258 = vmatprep.subr.mxu0 0.0
  %1259 = vmatpush1.msra.mxu0 0.0
  %1260 = vmatprep.subr.mxu0 0.0
  %1261 = vmatpush1.msra.mxu0 0.0
  %1262 = vmatprep.subr.mxu0 0.0
  %1263 = vmatpush1.msra.mxu0 0.0
  %1264 = vmatprep.subr.mxu0 0.0
  %1265 = vmatpush1.msra.mxu0 0.0
  %1266 = vmatprep.subr.mxu0 0.0
  %1267 = vmatpush1.msra.mxu0 0.0
  %1268 = vmatprep.subr.mxu0 0.0
  %1269 = vmatpush1.msra.mxu0 0.0
  %1270 = vmatprep.subr.mxu0 0.0
  %1271 = vmatpush1.msra.mxu0 0.0
  %1272 = vmatprep.subr.mxu0 0.0
  %1273 = vmatpush1.msra.mxu0 0.0
  %1274 = vmatprep.subr.mxu0 0.0
  %1275 = vmatpush1.msra.mxu0 0.0
  %1276 = vmatprep.subr.mxu0 0.0
  %1277 = vmatpush1.msra.mxu0 0.0
  %1278 = vmatprep.subr.mxu0 0.0
  %1279 = vmatpush1.msra.mxu0 0.0
  %1280 = vmatprep.subr.mxu0 0.0
  %1281 = vmatpush1.msra.mxu0 0.0
  %1282 = vmatprep.subr.mxu0 0.0
  %1283 = vmatpush1.msra.mxu0 0.0
  %1284 = vmatprep.subr.mxu0 0.0
  %1285 = vmatpush1.msra.mxu0 0.0
  %1286 = vmatprep.subr.mxu0 0.0
  %1287 = vmatpush1.msra.mxu0 0.0
  %1288 = vmatprep.subr.mxu0 0.0
  %1289 = vmatpush1.msra.mxu0 0.0
  %1290 = vmatprep.subr.mxu0 0.0
  %1291 = vmatpush1.msra.mxu0 0.0
  %1292 = vmatprep.subr.mxu0 0.0
  %1293 = vmatpush1.msra.mxu0 0.0
  %1294 = vmatprep.subr.mxu0 0.0
  %1295 = vmatpush1.msra.mxu0 0.0
  %1296 = vmatprep.subr.mxu0 0.0
  %1297 = vmatpush1.msra.mxu0 0.0
  %1298 = vmatprep.subr.mxu0 0.0
  %1299 = vmatpush1.msra.mxu0 0.0
  %1300 = vmatprep.subr.mxu0 0.0
  %1301 = vmatpush1.msra.mxu0 0.0
  %1302 = vmatprep.subr.mxu0 0.0
  %1303 = vmatpush1.msra.mxu0 0.0
  %1304 = vmatprep.subr.mxu0 0.0
  %1305 = vmatpush1.msra.mxu0 0.0
  %1306 = vmatprep.mubr.f32.mxu0 0.0
  %1307 = vmatmul.mubr.f32.gmra.mrb[0].mxu0 %v1083
  %v1308 = vpop.f32.mrb[0].mxu0
  %v1309 = vadd.f32 0.0, %v1308
  %v1310 = vpop.f32.mrb[0].mxu0
  %v1311 = vadd.f32 0.0, %v1310
  %1312 = vmatprep.mubr.f32.mxu0 0.0
  %1313 = vmatmul.mubr.f32.gmra.mrb[0].mxu0 %v1086
  %v1314 = vpop.f32.mrb[0].mxu0
  %v1315 = vadd.f32 0.0, %v1314
  %v1316 = vpop.f32.mrb[0].mxu0
  %v1317 = vadd.f32 0.0, %v1316
  %1318 = vdwg.mxu0
  %1319 = vmatprep.subr.mxu0 %v1025
  %1320 = vmatpush1.msra.mxu0 %v1024
  %1321 = vmatprep.subr.mxu0 %v1033
  %1322 = vmatpush1.msra.mxu0 %v1032
  %1323 = vmatprep.subr.mxu0 %v1041
  %1324 = vmatpush1.msra.mxu0 %v1040
  %1325 = vmatprep.subr.mxu0 %v1049
  %1326 = vmatpush1.msra.mxu0 %v1048
  %1327 = vmatprep.subr.mxu0 %v1057
  %1328 = vmatpush1.msra.mxu0 %v1056
  %1329 = vmatprep.subr.mxu0 %v1065
  %1330 = vmatpush1.msra.mxu0 %v1064
  %1331 = vmatprep.subr.mxu0 %v1073
  %1332 = vmatpush1.msra.mxu0 %v1072
  %1333 = vmatprep.subr.mxu0 %v1081
  %1334 = vmatpush1.msra.mxu0 %v1080
  %1335 = vmatprep.subr.mxu0 0.0
  %1336 = vmatpush1.msra.mxu0 0.0
  %1337 = vmatprep.subr.mxu0 0.0
  %1338 = vmatpush1.msra.mxu0 0.0
  %1339 = vmatprep.subr.mxu0 0.0
  %1340 = vmatpush1.msra.mxu0 0.0
  %1341 = vmatprep.subr.mxu0 0.0
  %1342 = vmatpush1.msra.mxu0 0.0
  %1343 = vmatprep.subr.mxu0 0.0
  %1344 = vmatpush1.msra.mxu0 0.0
  %1345 = vmatprep.subr.mxu0 0.0
  %1346 = vmatpush1.msra.mxu0 0.0
  %1347 = vmatprep.subr.mxu0 0.0
  %1348 = vmatpush1.msra.mxu0 0.0
  %1349 = vmatprep.subr.mxu0 0.0
  %1350 = vmatpush1.msra.mxu0 0.0
  %1351 = vmatprep.subr.mxu0 0.0
  %1352 = vmatpush1.msra.mxu0 0.0
  %1353 = vmatprep.subr.mxu0 0.0
  %1354 = vmatpush1.msra.mxu0 0.0
  %1355 = vmatprep.subr.mxu0 0.0
  %1356 = vmatpush1.msra.mxu0 0.0
  %1357 = vmatprep.subr.mxu0 0.0
  %1358 = vmatpush1.msra.mxu0 0.0
  %1359 = vmatprep.subr.mxu0 0.0
  %1360 = vmatpush1.msra.mxu0 0.0
  %1361 = vmatprep.subr.mxu0 0.0
  %1362 = vmatpush1.msra.mxu0 0.0
  %1363 = vmatprep.subr.mxu0 0.0
  %1364 = vmatpush1.msra.mxu0 0.0
  %1365 = vmatprep.subr.mxu0 0.0
  %1366 = vmatpush1.msra.mxu0 0.0
  %1367 = vmatprep.subr.mxu0 0.0
  %1368 = vmatpush1.msra.mxu0 0.0
  %1369 = vmatprep.subr.mxu0 0.0
  %1370 = vmatpush1.msra.mxu0 0.0
  %1371 = vmatprep.subr.mxu0 0.0
  %1372 = vmatpush1.msra.mxu0 0.0
  %1373 = vmatprep.subr.mxu0 0.0
  %1374 = vmatpush1.msra.mxu0 0.0
  %1375 = vmatprep.subr.mxu0 0.0
  %1376 = vmatpush1.msra.mxu0 0.0
  %1377 = vmatprep.subr.mxu0 0.0
  %1378 = vmatpush1.msra.mxu0 0.0
  %1379 = vmatprep.subr.mxu0 0.0
  %1380 = vmatpush1.msra.mxu0 0.0
  %1381 = vmatprep.subr.mxu0 0.0
  %1382 = vmatpush1.msra.mxu0 0.0
  %1383 = vmatprep.mubr.f32.mxu0 0.0
  %1384 = vmatmul.mubr.f32.gmra.mrb[0].mxu0 %v1083
  %v1385 = vpop.f32.mrb[0].mxu0
  %v1386 = vadd.f32 0.0, %v1385
  %v1387 = vpop.f32.mrb[0].mxu0
  %v1388 = vadd.f32 0.0, %v1387
  %1389 = vmatprep.mubr.f32.mxu0 0.0
  %1390 = vmatmul.mubr.f32.gmra.mrb[0].mxu0 %v1086
  %v1391 = vpop.f32.mrb[0].mxu0
  %v1392 = vadd.f32 0.0, %v1391
  %v1393 = vpop.f32.mrb[0].mxu0
  %v1394 = vadd.f32 0.0, %v1393
  %1395 = vdwg.mxu0
  %v1396 = vmul.f32 %v1155, 1.442695
  %v1397 = vpow.pop %v1396
  %v1398 = vmul.f32 %v1157, 1.442695
  %v1399 = vpow.pop %v1398
  %v1400 = vmul.f32 %v1232, 1.442695
  %v1401 = vpow.pop %v1400
  %v1402 = vmul.f32 %v1234, 1.442695
  %v1403 = vpow.pop %v1402
  %v1404 = vmul.f32 %v1309, 1.442695
  %v1405 = vpow.pop %v1404
  %v1406 = vmul.f32 %v1311, 1.442695
  %v1407 = vpow.pop %v1406
  %v1408 = vmul.f32 %v1386, 1.442695
  %v1409 = vpow.pop %v1408
  %v1410 = vmul.f32 %v1388, 1.442695
  %v1411 = vpow.pop %v1410
  %v1412 = vmul.f32 %v1161, 1.442695
  %v1413 = vpow.pop %v1412
  %v1414 = vmul.f32 %v1163, 1.442695
  %v1415 = vpow.pop %v1414
  %v1416 = vmul.f32 %v1238, 1.442695
  %v1417 = vpow.pop %v1416
  %v1418 = vmul.f32 %v1240, 1.442695
  %v1419 = vpow.pop %v1418
  %v1420 = vmul.f32 %v1315, 1.442695
  %v1421 = vpow.pop %v1420
  %v1422 = vmul.f32 %v1317, 1.442695
  %v1423 = vpow.pop %v1422
  %v1424 = vmul.f32 %v1392, 1.442695
  %v1425 = vpow.pop %v1424
  %v1426 = vmul.f32 %v1394, 1.442695
  %v1427 = vpow.pop %v1426
  %v1428 = vmul.f32 %v1016, %v147
  %v1429 = vmul.f32 %v1017, %v148
  %v1430 = vld [vmem:[%s6] sm:$0xff]
  %v1431 = vld [vmem:[%s6 + $0x8] sm:$0xff]
  %v1432 = vld [vmem:[%s6 + $0x10] sm:$0xff]
  %v1433 = vld [vmem:[%s6 + $0x18] sm:$0xff]
  %v1434 = vld [vmem:[%s6 + $0x20] sm:$0xff]
  %v1435 = vld [vmem:[%s6 + $0x28] sm:$0xff]
  %v1436 = vld [vmem:[%s6 + $0x30] sm:$0xff]
  %v1437 = vld [vmem:[%s6 + $0x38] sm:$0xff]
  %v1438 = vld [vmem:[%s6 + $0x40] sm:$0xff]
  %v1439 = vld [vmem:[%s6 + $0x48] sm:$0xff]
  %v1440 = vld [vmem:[%s6 + $0x50] sm:$0xff]
  %v1441 = vld [vmem:[%s6 + $0x58] sm:$0xff]
  %v1442 = vld [vmem:[%s6 + $0x60] sm:$0xff]
  %v1443 = vld [vmem:[%s6 + $0x68] sm:$0xff]
  %v1444 = vld [vmem:[%s6 + $0x70] sm:$0xff]
  %v1445 = vld [vmem:[%s6 + $0x78] sm:$0xff]
  %v1446 = vld [vmem:[%s6 + $0x80] sm:$0xff]
  %v1447 = vld [vmem:[%s6 + $0x88] sm:$0xff]
  %v1448 = vld [vmem:[%s6 + $0x90] sm:$0xff]
  %v1449 = vld [vmem:[%s6 + $0x98] sm:$0xff]
  %v1450 = vld [vmem:[%s6 + $0xa0] sm:$0xff]
  %v1451 = vld [vmem:[%s6 + $0xa8] sm:$0xff]
  %v1452 = vld [vmem:[%s6 + $0xb0] sm:$0xff]
  %v1453 = vld [vmem:[%s6 + $0xb8] sm:$0xff]
  %v1454 = vld [vmem:[%s6 + $0xc0] sm:$0xff]
  %v1455 = vld [vmem:[%s6 + $0xc8] sm:$0xff]
  %v1456 = vld [vmem:[%s6 + $0xd0] sm:$0xff]
  %v1457 = vld [vmem:[%s6 + $0xd8] sm:$0xff]
  %v1458 = vld [vmem:[%s6 + $0xe0] sm:$0xff]
  %v1459 = vld [vmem:[%s6 + $0xe8] sm:$0xff]
  %v1460 = vld [vmem:[%s6 + $0xf0] sm:$0xff]
  %v1461 = vld [vmem:[%s6 + $0xf8] sm:$0xff]
  %v1462 = vld [vmem:[%s6 + $0x100] sm:$0xff]
  %v1463 = vld [vmem:[%s6 + $0x108] sm:$0xff]
  %v1464 = vld [vmem:[%s6 + $0x110] sm:$0xff]
  %v1465 = vld [vmem:[%s6 + $0x118] sm:$0xff]
  %v1466 = vld [vmem:[%s6 + $0x120] sm:$0xff]
  %v1467 = vld [vmem:[%s6 + $0x128] sm:$0xff]
  %v1468 = vld [vmem:[%s6 + $0x130] sm:$0xff]
  %v1469 = vld [vmem:[%s6 + $0x138] sm:$0xff]
  %v1470 = vld [vmem:[%s6 + $0x140] sm:$0xff]
  %v1471 = vld [vmem:[%s6 + $0x148] sm:$0xff]
  %v1472 = vld [vmem:[%s6 + $0x150] sm:$0xff]
  %v1473 = vld [vmem:[%s6 + $0x158] sm:$0xff]
  %v1474 = vld [vmem:[%s6 + $0x160] sm:$0xff]
  %v1475 = vld [vmem:[%s6 + $0x168] sm:$0xff]
  %v1476 = vld [vmem:[%s6 + $0x170] sm:$0xff]
  %v1477 = vld [vmem:[%s6 + $0x178] sm:$0xff]
  %v1478 = vld [vmem:[%s6 + $0x180] sm:$0xff]
  %v1479 = vld [vmem:[%s6 + $0x188] sm:$0xff]
  %v1480 = vld [vmem:[%s6 + $0x190] sm:$0xff]
  %v1481 = vld [vmem:[%s6 + $0x198] sm:$0xff]
  %v1482 = vld [vmem:[%s6 + $0x1a0] sm:$0xff]
  %v1483 = vld [vmem:[%s6 + $0x1a8] sm:$0xff]
  %v1484 = vld [vmem:[%s6 + $0x1b0] sm:$0xff]
  %v1485 = vld [vmem:[%s6 + $0x1b8] sm:$0xff]
  %v1486 = vld [vmem:[%s6 + $0x1c0] sm:$0xff]
  %v1487 = vld [vmem:[%s6 + $0x1c8] sm:$0xff]
  %v1488 = vld [vmem:[%s6 + $0x1d0] sm:$0xff]
  %v1489 = vld [vmem:[%s6 + $0x1d8] sm:$0xff]
  %v1490 = vld [vmem:[%s6 + $0x1e0] sm:$0xff]
  %v1491 = vld [vmem:[%s6 + $0x1e8] sm:$0xff]
  %v1492 = vld [vmem:[%s6 + $0x1f0] sm:$0xff]
  %v1493 = vld [vmem:[%s6 + $0x1f8] sm:$0xff]
  %v1495 = vsel %vm285, %v1428, 0
  %v1498 = vsel %vm285, %v1429, 0
  %1500 = vmatprep.subr.mxu0 %v1431
  %1501 = vmatpush1.msra.mxu0 %v1430
  %1502 = vmatprep.subr.mxu0 %v1439
  %1503 = vmatpush1.msra.mxu0 %v1438
  %1504 = vmatprep.subr.mxu0 %v1447
  %1505 = vmatpush1.msra.mxu0 %v1446
  %1506 = vmatprep.subr.mxu0 %v1455
  %1507 = vmatpush1.msra.mxu0 %v1454
  %1508 = vmatprep.subr.mxu0 %v1463
  %1509 = vmatpush1.msra.mxu0 %v1462
  %1510 = vmatprep.subr.mxu0 %v1471
  %1511 = vmatpush1.msra.mxu0 %v1470
  %1512 = vmatprep.subr.mxu0 %v1479
  %1513 = vmatpush1.msra.mxu0 %v1478
  %1514 = vmatprep.subr.mxu0 %v1487
  %1515 = vmatpush1.msra.mxu0 %v1486
  %1516 = vmatprep.subr.mxu0 0.0
  %1517 = vmatpush1.msra.mxu0 0.0
  %1518 = vmatprep.subr.mxu0 0.0
  %1519 = vmatpush1.msra.mxu0 0.0
  %1520 = vmatprep.subr.mxu0 0.0
  %1521 = vmatpush1.msra.mxu0 0.0
  %1522 = vmatprep.subr.mxu0 0.0
  %1523 = vmatpush1.msra.mxu0 0.0
  %1524 = vmatprep.subr.mxu0 0.0
  %1525 = vmatpush1.msra.mxu0 0.0
  %1526 = vmatprep.subr.mxu0 0.0
  %1527 = vmatpush1.msra.mxu0 0.0
  %1528 = vmatprep.subr.mxu0 0.0
  %1529 = vmatpush1.msra.mxu0 0.0
  %1530 = vmatprep.subr.mxu0 0.0
  %1531 = vmatpush1.msra.mxu0 0.0
  %1532 = vmatprep.subr.mxu0 0.0
  %1533 = vmatpush1.msra.mxu0 0.0
  %1534 = vmatprep.subr.mxu0 0.0
  %1535 = vmatpush1.msra.mxu0 0.0
  %1536 = vmatprep.subr.mxu0 0.0
  %1537 = vmatpush1.msra.mxu0 0.0
  %1538 = vmatprep.subr.mxu0 0.0
  %1539 = vmatpush1.msra.mxu0 0.0
  %1540 = vmatprep.subr.mxu0 0.0
  %1541 = vmatpush1.msra.mxu0 0.0
  %1542 = vmatprep.subr.mxu0 0.0
  %1543 = vmatpush1.msra.mxu0 0.0
  %1544 = vmatprep.subr.mxu0 0.0
  %1545 = vmatpush1.msra.mxu0 0.0
  %1546 = vmatprep.subr.mxu0 0.0
  %1547 = vmatpush1.msra.mxu0 0.0
  %1548 = vmatprep.subr.mxu0 0.0
  %1549 = vmatpush1.msra.mxu0 0.0
  %1550 = vmatprep.subr.mxu0 0.0
  %1551 = vmatpush1.msra.mxu0 0.0
  %1552 = vmatprep.subr.mxu0 0.0
  %1553 = vmatpush1.msra.mxu0 0.0
  %1554 = vmatprep.subr.mxu0 0.0
  %1555 = vmatpush1.msra.mxu0 0.0
  %1556 = vmatprep.subr.mxu0 0.0
  %1557 = vmatpush1.msra.mxu0 0.0
  %1558 = vmatprep.subr.mxu0 0.0
  %1559 = vmatpush1.msra.mxu0 0.0
  %1560 = vmatprep.subr.mxu0 0.0
  %1561 = vmatpush1.msra.mxu0 0.0
  %1562 = vmatprep.subr.mxu0 0.0
  %1563 = vmatpush1.msra.mxu0 0.0
  %1564 = vmatprep.mubr.f32.mxu0 0.0
  %1565 = vmatmul.mubr.f32.gmra.mrb[0].mxu0 %v1495
  %v1566 = vpop.f32.mrb[0].mxu0
  %v1567 = vadd.f32 0.0, %v1566
  %v1568 = vpop.f32.mrb[0].mxu0
  %v1569 = vadd.f32 0.0, %v1568
  %1570 = vmatprep.mubr.f32.mxu0 0.0
  %1571 = vmatmul.mubr.f32.gmra.mrb[0].mxu0 %v1498
  %v1572 = vpop.f32.mrb[0].mxu0
  %v1573 = vadd.f32 0.0, %v1572
  %v1574 = vpop.f32.mrb[0].mxu0
  %v1575 = vadd.f32 0.0, %v1574
  %1576 = vdwg.mxu0
  %1577 = vmatprep.subr.mxu0 %v1433
  %1578 = vmatpush1.msra.mxu0 %v1432
  %1579 = vmatprep.subr.mxu0 %v1441
  %1580 = vmatpush1.msra.mxu0 %v1440
  %1581 = vmatprep.subr.mxu0 %v1449
  %1582 = vmatpush1.msra.mxu0 %v1448
  %1583 = vmatprep.subr.mxu0 %v1457
  %1584 = vmatpush1.msra.mxu0 %v1456
  %1585 = vmatprep.subr.mxu0 %v1465
  %1586 = vmatpush1.msra.mxu0 %v1464
  %1587 = vmatprep.subr.mxu0 %v1473
  %1588 = vmatpush1.msra.mxu0 %v1472
  %1589 = vmatprep.subr.mxu0 %v1481
  %1590 = vmatpush1.msra.mxu0 %v1480
  %1591 = vmatprep.subr.mxu0 %v1489
  %1592 = vmatpush1.msra.mxu0 %v1488
  %1593 = vmatprep.subr.mxu0 0.0
  %1594 = vmatpush1.msra.mxu0 0.0
  %1595 = vmatprep.subr.mxu0 0.0
  %1596 = vmatpush1.msra.mxu0 0.0
  %1597 = vmatprep.subr.mxu0 0.0
  %1598 = vmatpush1.msra.mxu0 0.0
  %1599 = vmatprep.subr.mxu0 0.0
  %1600 = vmatpush1.msra.mxu0 0.0
  %1601 = vmatprep.subr.mxu0 0.0
  %1602 = vmatpush1.msra.mxu0 0.0
  %1603 = vmatprep.subr.mxu0 0.0
  %1604 = vmatpush1.msra.mxu0 0.0
  %1605 = vmatprep.subr.mxu0 0.0
  %1606 = vmatpush1.msra.mxu0 0.0
  %1607 = vmatprep.subr.mxu0 0.0
  %1608 = vmatpush1.msra.mxu0 0.0
  %1609 = vmatprep.subr.mxu0 0.0
  %1610 = vmatpush1.msra.mxu0 0.0
  %1611 = vmatprep.subr.mxu0 0.0
  %1612 = vmatpush1.msra.mxu0 0.0
  %1613 = vmatprep.subr.mxu0 0.0
  %1614 = vmatpush1.msra.mxu0 0.0
  %1615 = vmatprep.subr.mxu0 0.0
  %1616 = vmatpush1.msra.mxu0 0.0
  %1617 = vmatprep.subr.mxu0 0.0
  %1618 = vmatpush1.msra.mxu0 0.0
  %1619 = vmatprep.subr.mxu0 0.0
  %1620 = vmatpush1.msra.mxu0 0.0
  %1621 = vmatprep.subr.mxu0 0.0
  %1622 = vmatpush1.msra.mxu0 0.0
  %1623 = vmatprep.subr.mxu0 0.0
  %1624 = vmatpush1.msra.mxu0 0.0
  %1625 = vmatprep.subr.mxu0 0.0
  %1626 = vmatpush1.msra.mxu0 0.0
  %1627 = vmatprep.subr.mxu0 0.0
  %1628 = vmatpush1.msra.mxu0 0.0
  %1629 = vmatprep.subr.mxu0 0.0
  %1630 = vmatpush1.msra.mxu0 0.0
  %1631 = vmatprep.subr.mxu0 0.0
  %1632 = vmatpush1.msra.mxu0 0.0
  %1633 = vmatprep.subr.mxu0 0.0
  %1634 = vmatpush1.msra.mxu0 0.0
  %1635 = vmatprep.subr.mxu0 0.0
  %1636 = vmatpush1.msra.mxu0 0.0
  %1637 = vmatprep.subr.mxu0 0.0
  %1638 = vmatpush1.msra.mxu0 0.0
  %1639 = vmatprep.subr.mxu0 0.0
  %1640 = vmatpush1.msra.mxu0 0.0
  %1641 = vmatprep.mubr.f32.mxu0 0.0
  %1642 = vmatmul.mubr.f32.gmra.mrb[0].mxu0 %v1495
  %v1643 = vpop.f32.mrb[0].mxu0
  %v1644 = vadd.f32 0.0, %v1643
  %v1645 = vpop.f32.mrb[0].mxu0
  %v1646 = vadd.f32 0.0, %v1645
  %1647 = vmatprep.mubr.f32.mxu0 0.0
  %1648 = vmatmul.mubr.f32.gmra.mrb[0].mxu0 %v1498
  %v1649 = vpop.f32.mrb[0].mxu0
  %v1650 = vadd.f32 0.0, %v1649
  %v1651 = vpop.f32.mrb[0].mxu0
  %v1652 = vadd.f32 0.0, %v1651
  %1653 = vdwg.mxu0
  %1654 = vmatprep.subr.mxu0 %v1435
  %1655 = vmatpush1.msra.mxu0 %v1434
  %1656 = vmatprep.subr.mxu0 %v1443
  %1657 = vmatpush1.msra.mxu0 %v1442
  %1658 = vmatprep.subr.mxu0 %v1451
  %1659 = vmatpush1.msra.mxu0 %v1450
  %1660 = vmatprep.subr.mxu0 %v1459
  %1661 = vmatpush1.msra.mxu0 %v1458
  %1662 = vmatprep.subr.mxu0 %v1467
  %1663 = vmatpush1.msra.mxu0 %v1466
  %1664 = vmatprep.subr.mxu0 %v1475
  %1665 = vmatpush1.msra.mxu0 %v1474
  %1666 = vmatprep.subr.mxu0 %v1483
  %1667 = vmatpush1.msra.mxu0 %v1482
  %1668 = vmatprep.subr.mxu0 %v1491
  %1669 = vmatpush1.msra.mxu0 %v1490
  %1670 = vmatprep.subr.mxu0 0.0
  %1671 = vmatpush1.msra.mxu0 0.0
  %1672 = vmatprep.subr.mxu0 0.0
  %1673 = vmatpush1.msra.mxu0 0.0
  %1674 = vmatprep.subr.mxu0 0.0
  %1675 = vmatpush1.msra.mxu0 0.0
  %1676 = vmatprep.subr.mxu0 0.0
  %1677 = vmatpush1.msra.mxu0 0.0
  %1678 = vmatprep.subr.mxu0 0.0
  %1679 = vmatpush1.msra.mxu0 0.0
  %1680 = vmatprep.subr.mxu0 0.0
  %1681 = vmatpush1.msra.mxu0 0.0
  %1682 = vmatprep.subr.mxu0 0.0
  %1683 = vmatpush1.msra.mxu0 0.0
  %1684 = vmatprep.subr.mxu0 0.0
  %1685 = vmatpush1.msra.mxu0 0.0
  %1686 = vmatprep.subr.mxu0 0.0
  %1687 = vmatpush1.msra.mxu0 0.0
  %1688 = vmatprep.subr.mxu0 0.0
  %1689 = vmatpush1.msra.mxu0 0.0
  %1690 = vmatprep.subr.mxu0 0.0
  %1691 = vmatpush1.msra.mxu0 0.0
  %1692 = vmatprep.subr.mxu0 0.0
  %1693 = vmatpush1.msra.mxu0 0.0
  %1694 = vmatprep.subr.mxu0 0.0
  %1695 = vmatpush1.msra.mxu0 0.0
  %1696 = vmatprep.subr.mxu0 0.0
  %1697 = vmatpush1.msra.mxu0 0.0
  %1698 = vmatprep.subr.mxu0 0.0
  %1699 = vmatpush1.msra.mxu0 0.0
  %1700 = vmatprep.subr.mxu0 0.0
  %1701 = vmatpush1.msra.mxu0 0.0
  %1702 = vmatprep.subr.mxu0 0.0
  %1703 = vmatpush1.msra.mxu0 0.0
  %1704 = vmatprep.subr.mxu0 0.0
  %1705 = vmatpush1.msra.mxu0 0.0
  %1706 = vmatprep.subr.mxu0 0.0
  %1707 = vmatpush1.msra.mxu0 0.0
  %1708 = vmatprep.subr.mxu0 0.0
  %1709 = vmatpush1.msra.mxu0 0.0
  %1710 = vmatprep.subr.mxu0 0.0
  %1711 = vmatpush1.msra.mxu0 0.0
  %1712 = vmatprep.subr.mxu0 0.0
  %1713 = vmatpush1.msra.mxu0 0.0
  %1714 = vmatprep.subr.mxu0 0.0
  %1715 = vmatpush1.msra.mxu0 0.0
  %1716 = vmatprep.subr.mxu0 0.0
  %1717 = vmatpush1.msra.mxu0 0.0
  %1718 = vmatprep.mubr.f32.mxu0 0.0
  %1719 = vmatmul.mubr.f32.gmra.mrb[0].mxu0 %v1495
  %v1720 = vpop.f32.mrb[0].mxu0
  %v1721 = vadd.f32 0.0, %v1720
  %v1722 = vpop.f32.mrb[0].mxu0
  %v1723 = vadd.f32 0.0, %v1722
  %1724 = vmatprep.mubr.f32.mxu0 0.0
  %1725 = vmatmul.mubr.f32.gmra.mrb[0].mxu0 %v1498
  %v1726 = vpop.f32.mrb[0].mxu0
  %v1727 = vadd.f32 0.0, %v1726
  %v1728 = vpop.f32.mrb[0].mxu0
  %v1729 = vadd.f32 0.0, %v1728
  %1730 = vdwg.mxu0
  %1731 = vmatprep.subr.mxu0 %v1437
  %1732 = vmatpush1.msra.mxu0 %v1436
  %1733 = vmatprep.subr.mxu0 %v1445
  %1734 = vmatpush1.msra.mxu0 %v1444
  %1735 = vmatprep.subr.mxu0 %v1453
  %1736 = vmatpush1.msra.mxu0 %v1452
  %1737 = vmatprep.subr.mxu0 %v1461
  %1738 = vmatpush1.msra.mxu0 %v1460
  %1739 = vmatprep.subr.mxu0 %v1469
  %1740 = vmatpush1.msra.mxu0 %v1468
  %1741 = vmatprep.subr.mxu0 %v1477
  %1742 = vmatpush1.msra.mxu0 %v1476
  %1743 = vmatprep.subr.mxu0 %v1485
  %1744 = vmatpush1.msra.mxu0 %v1484
  %1745 = vmatprep.subr.mxu0 %v1493
  %1746 = vmatpush1.msra.mxu0 %v1492
  %1747 = vmatprep.subr.mxu0 0.0
  %1748 = vmatpush1.msra.mxu0 0.0
  %1749 = vmatprep.subr.mxu0 0.0
  %1750 = vmatpush1.msra.mxu0 0.0
  %1751 = vmatprep.subr.mxu0 0.0
  %1752 = vmatpush1.msra.mxu0 0.0
  %1753 = vmatprep.subr.mxu0 0.0
  %1754 = vmatpush1.msra.mxu0 0.0
  %1755 = vmatprep.subr.mxu0 0.0
  %1756 = vmatpush1.msra.mxu0 0.0
  %1757 = vmatprep.subr.mxu0 0.0
  %1758 = vmatpush1.msra.mxu0 0.0
  %1759 = vmatprep.subr.mxu0 0.0
  %1760 = vmatpush1.msra.mxu0 0.0
  %1761 = vmatprep.subr.mxu0 0.0
  %1762 = vmatpush1.msra.mxu0 0.0
  %1763 = vmatprep.subr.mxu0 0.0
  %1764 = vmatpush1.msra.mxu0 0.0
  %1765 = vmatprep.subr.mxu0 0.0
  %1766 = vmatpush1.msra.mxu0 0.0
  %1767 = vmatprep.subr.mxu0 0.0
  %1768 = vmatpush1.msra.mxu0 0.0
  %1769 = vmatprep.subr.mxu0 0.0
  %1770 = vmatpush1.msra.mxu0 0.0
  %1771 = vmatprep.subr.mxu0 0.0
  %1772 = vmatpush1.msra.mxu0 0.0
  %1773 = vmatprep.subr.mxu0 0.0
  %1774 = vmatpush1.msra.mxu0 0.0
  %1775 = vmatprep.subr.mxu0 0.0
  %1776 = vmatpush1.msra.mxu0 0.0
  %1777 = vmatprep.subr.mxu0 0.0
  %1778 = vmatpush1.msra.mxu0 0.0
  %1779 = vmatprep.subr.mxu0 0.0
  %1780 = vmatpush1.msra.mxu0 0.0
  %1781 = vmatprep.subr.mxu0 0.0
  %1782 = vmatpush1.msra.mxu0 0.0
  %1783 = vmatprep.subr.mxu0 0.0
  %1784 = vmatpush1.msra.mxu0 0.0
  %1785 = vmatprep.subr.mxu0 0.0
  %1786 = vmatpush1.msra.mxu0 0.0
  %1787 = vmatprep.subr.mxu0 0.0
  %1788 = vmatpush1.msra.mxu0 0.0
  %1789 = vmatprep.subr.mxu0 0.0
  %1790 = vmatpush1.msra.mxu0 0.0
  %1791 = vmatprep.subr.mxu0 0.0
  %1792 = vmatpush1.msra.mxu0 0.0
  %1793 = vmatprep.subr.mxu0 0.0
  %1794 = vmatpush1.msra.mxu0 0.0
  %1795 = vmatprep.mubr.f32.mxu0 0.0
  %1796 = vmatmul.mubr.f32.gmra.mrb[0].mxu0 %v1495
  %v1797 = vpop.f32.mrb[0].mxu0
  %v1798 = vadd.f32 0.0, %v1797
  %v1799 = vpop.f32.mrb[0].mxu0
  %v1800 = vadd.f32 0.0, %v1799
  %1801 = vmatprep.mubr.f32.mxu0 0.0
  %1802 = vmatmul.mubr.f32.gmra.mrb[0].mxu0 %v1498
  %v1803 = vpop.f32.mrb[0].mxu0
  %v1804 = vadd.f32 0.0, %v1803
  %v1805 = vpop.f32.mrb[0].mxu0
  %v1806 = vadd.f32 0.0, %v1805
  %1807 = vdwg.mxu0
  %v1808 = vmul.f32 %v1567, %v361
  %v1809 = vmul.f32 %v1569, %v436
  %v1810 = vmul.f32 %v1644, %v438
  %v1811 = vmul.f32 %v1646, %v513
  %v1812 = vmul.f32 %v1721, %v515
  %v1813 = vmul.f32 %v1723, %v590
  %v1814 = vmul.f32 %v1798, %v592
  %v1815 = vmul.f32 %v1800, %v667
  %v1816 = vmul.f32 %v1573, %v367
  %v1817 = vmul.f32 %v1575, %v442
  %v1818 = vmul.f32 %v1650, %v444
  %v1819 = vmul.f32 %v1652, %v519
  %v1820 = vmul.f32 %v1727, %v521
  %v1821 = vmul.f32 %v1729, %v596
  %v1822 = vmul.f32 %v1804, %v598
  %v1823 = vmul.f32 %v1806, %v673
  %v1824 = vmul.f32 %v1397, 0.0
  %v1825 = vmul.f32 %v1399, 0.0
  %v1826 = vmul.f32 %v1401, 0.0
  %v1827 = vmul.f32 %v1403, 0.0
  %v1828 = vmul.f32 %v1405, 0.0
  %v1829 = vmul.f32 %v1407, 0.0
  %v1830 = vmul.f32 %v1409, 0.0
  %v1831 = vmul.f32 %v1411, 0.0
  %v1832 = vadd.f32 %v1824, %v1808
  %v1833 = vadd.f32 %v1825, %v1809
  %v1834 = vadd.f32 %v1826, %v1810
  %v1835 = vadd.f32 %v1827, %v1811
  %v1836 = vadd.f32 %v1828, %v1812
  %v1837 = vadd.f32 %v1829, %v1813
  %v1838 = vadd.f32 %v1830, %v1814
  %v1839 = vadd.f32 %v1831, %v1815
  %v1848 = vrot.slane %v1832, 6
  %v1849 = vrot.slane %v1833, 6
  %v1850 = vrot.slane %v1834, 6
  %v1851 = vrot.slane %v1835, 6
  %v1852 = vrot.slane %v1836, 6
  %v1853 = vrot.slane %v1837, 6
  %v1854 = vrot.slane %v1838, 6
  %v1855 = vrot.slane %v1839, 6
  %v1864 = vmul.f32 %v1397, %v1848
  %v1865 = vmul.f32 %v1399, %v1849
  %v1866 = vmul.f32 %v1401, %v1850
  %v1867 = vmul.f32 %v1403, %v1851
  %v1868 = vmul.f32 %v1405, %v1852
  %v1869 = vmul.f32 %v1407, %v1853
  %v1870 = vmul.f32 %v1409, %v1854
  %v1871 = vmul.f32 %v1411, %v1855
  %v1872 = vadd.f32 %v1864, %v1808
  %v1873 = vadd.f32 %v1865, %v1809
  %v1874 = vadd.f32 %v1866, %v1810
  %v1875 = vadd.f32 %v1867, %v1811
  %v1876 = vadd.f32 %v1868, %v1812
  %v1877 = vadd.f32 %v1869, %v1813
  %v1878 = vadd.f32 %v1870, %v1814
  %v1879 = vadd.f32 %v1871, %v1815
  %v1888 = vrot.slane %v1872, 6
  %v1889 = vrot.slane %v1873, 6
  %v1890 = vrot.slane %v1874, 6
  %v1891 = vrot.slane %v1875, 6
  %v1892 = vrot.slane %v1876, 6
  %v1893 = vrot.slane %v1877, 6
  %v1894 = vrot.slane %v1878, 6
  %v1895 = vrot.slane %v1879, 6
  %v1904 = vmul.f32 %v1397, %v1888
  %v1905 = vmul.f32 %v1399, %v1889
  %v1906 = vmul.f32 %v1401, %v1890
  %v1907 = vmul.f32 %v1403, %v1891
  %v1908 = vmul.f32 %v1405, %v1892
  %v1909 = vmul.f32 %v1407, %v1893
  %v1910 = vmul.f32 %v1409, %v1894
  %v1911 = vmul.f32 %v1411, %v1895
  %v1912 = vadd.f32 %v1904, %v1808
  %v1913 = vadd.f32 %v1905, %v1809
  %v1914 = vadd.f32 %v1906, %v1810
  %v1915 = vadd.f32 %v1907, %v1811
  %v1916 = vadd.f32 %v1908, %v1812
  %v1917 = vadd.f32 %v1909, %v1813
  %v1918 = vadd.f32 %v1910, %v1814
  %v1919 = vadd.f32 %v1911, %v1815
  %v1928 = vrot.slane %v1912, 6
  %v1929 = vrot.slane %v1913, 6
  %v1930 = vrot.slane %v1914, 6
  %v1931 = vrot.slane %v1915, 6
  %v1932 = vrot.slane %v1916, 6
  %v1933 = vrot.slane %v1917, 6
  %v1934 = vrot.slane %v1918, 6
  %v1935 = vrot.slane %v1919, 6
  %v1944 = vmul.f32 %v1397, %v1928
  %v1945 = vmul.f32 %v1399, %v1929
  %v1946 = vmul.f32 %v1401, %v1930
  %v1947 = vmul.f32 %v1403, %v1931
  %v1948 = vmul.f32 %v1405, %v1932
  %v1949 = vmul.f32 %v1407, %v1933
  %v1950 = vmul.f32 %v1409, %v1934
  %v1951 = vmul.f32 %v1411, %v1935
  %v1952 = vadd.f32 %v1944, %v1808
  %v1953 = vadd.f32 %v1945, %v1809
  %v1954 = vadd.f32 %v1946, %v1810
  %v1955 = vadd.f32 %v1947, %v1811
  %v1956 = vadd.f32 %v1948, %v1812
  %v1957 = vadd.f32 %v1949, %v1813
  %v1958 = vadd.f32 %v1950, %v1814
  %v1959 = vadd.f32 %v1951, %v1815
  %v1968 = vrot.slane %v1952, 6
  %v1969 = vrot.slane %v1953, 6
  %v1970 = vrot.slane %v1954, 6
  %v1971 = vrot.slane %v1955, 6
  %v1972 = vrot.slane %v1956, 6
  %v1973 = vrot.slane %v1957, 6
  %v1974 = vrot.slane %v1958, 6
  %v1975 = vrot.slane %v1959, 6
  %v1984 = vmul.f32 %v1413, %v1968
  %v1985 = vmul.f32 %v1415, %v1969
  %v1986 = vmul.f32 %v1417, %v1970
  %v1987 = vmul.f32 %v1419, %v1971
  %v1988 = vmul.f32 %v1421, %v1972
  %v1989 = vmul.f32 %v1423, %v1973
  %v1990 = vmul.f32 %v1425, %v1974
  %v1991 = vmul.f32 %v1427, %v1975
  %v1992 = vadd.f32 %v1984, %v1816
  %v1993 = vadd.f32 %v1985, %v1817
  %v1994 = vadd.f32 %v1986, %v1818
  %v1995 = vadd.f32 %v1987, %v1819
  %v1996 = vadd.f32 %v1988, %v1820
  %v1997 = vadd.f32 %v1989, %v1821
  %v1998 = vadd.f32 %v1990, %v1822
  %v1999 = vadd.f32 %v1991, %v1823
  %v2008 = vrot.slane %v1992, 6
  %v2009 = vrot.slane %v1993, 6
  %v2010 = vrot.slane %v1994, 6
  %v2011 = vrot.slane %v1995, 6
  %v2012 = vrot.slane %v1996, 6
  %v2013 = vrot.slane %v1997, 6
  %v2014 = vrot.slane %v1998, 6
  %v2015 = vrot.slane %v1999, 6
  %v2024 = vmul.f32 %v1413, %v2008
  %v2025 = vmul.f32 %v1415, %v2009
  %v2026 = vmul.f32 %v1417, %v2010
  %v2027 = vmul.f32 %v1419, %v2011
  %v2028 = vmul.f32 %v1421, %v2012
  %v2029 = vmul.f32 %v1423, %v2013
  %v2030 = vmul.f32 %v1425, %v2014
  %v2031 = vmul.f32 %v1427, %v2015
  %v2032 = vadd.f32 %v2024, %v1816
  %v2033 = vadd.f32 %v2025, %v1817
  %v2034 = vadd.f32 %v2026, %v1818
  %v2035 = vadd.f32 %v2027, %v1819
  %v2036 = vadd.f32 %v2028, %v1820
  %v2037 = vadd.f32 %v2029, %v1821
  %v2038 = vadd.f32 %v2030, %v1822
  %v2039 = vadd.f32 %v2031, %v1823
  %v2048 = vrot.slane %v2032, 6
  %v2049 = vrot.slane %v2033, 6
  %v2050 = vrot.slane %v2034, 6
  %v2051 = vrot.slane %v2035, 6
  %v2052 = vrot.slane %v2036, 6
  %v2053 = vrot.slane %v2037, 6
  %v2054 = vrot.slane %v2038, 6
  %v2055 = vrot.slane %v2039, 6
  %v2064 = vmul.f32 %v1413, %v2048
  %v2065 = vmul.f32 %v1415, %v2049
  %v2066 = vmul.f32 %v1417, %v2050
  %v2067 = vmul.f32 %v1419, %v2051
  %v2068 = vmul.f32 %v1421, %v2052
  %v2069 = vmul.f32 %v1423, %v2053
  %v2070 = vmul.f32 %v1425, %v2054
  %v2071 = vmul.f32 %v1427, %v2055
  %v2072 = vadd.f32 %v2064, %v1816
  %v2073 = vadd.f32 %v2065, %v1817
  %v2074 = vadd.f32 %v2066, %v1818
  %v2075 = vadd.f32 %v2067, %v1819
  %v2076 = vadd.f32 %v2068, %v1820
  %v2077 = vadd.f32 %v2069, %v1821
  %v2078 = vadd.f32 %v2070, %v1822
  %v2079 = vadd.f32 %v2071, %v1823
  %v2088 = vrot.slane %v2072, 6
  %v2089 = vrot.slane %v2073, 6
  %v2090 = vrot.slane %v2074, 6
  %v2091 = vrot.slane %v2075, 6
  %v2092 = vrot.slane %v2076, 6
  %v2093 = vrot.slane %v2077, 6
  %v2094 = vrot.slane %v2078, 6
  %v2095 = vrot.slane %v2079, 6
  %v2104 = vmul.f32 %v1413, %v2088
  %v2105 = vmul.f32 %v1415, %v2089
  %v2106 = vmul.f32 %v1417, %v2090
  %v2107 = vmul.f32 %v1419, %v2091
  %v2108 = vmul.f32 %v1421, %v2092
  %v2109 = vmul.f32 %v1423, %v2093
  %v2110 = vmul.f32 %v1425, %v2094
  %v2111 = vmul.f32 %v1427, %v2095
  %v2112 = vadd.f32 %v2104, %v1816
  %v2113 = vadd.f32 %v2105, %v1817
  %v2114 = vadd.f32 %v2106, %v1818
  %v2115 = vadd.f32 %v2107, %v1819
  %v2116 = vadd.f32 %v2108, %v1820
  %v2117 = vadd.f32 %v2109, %v1821
  %v2118 = vadd.f32 %v2110, %v1822
  %v2119 = vadd.f32 %v2111, %v1823
  %vm2120 = vcmask 1041408
  %v2121 = vsel %vm2120, %v1832, %v1872
  %v2122 = vsel %vm2120, %v1833, %v1873
  %v2123 = vsel %vm2120, %v1834, %v1874
  %v2124 = vsel %vm2120, %v1835, %v1875
  %v2125 = vsel %vm2120, %v1836, %v1876
  %v2126 = vsel %vm2120, %v1837, %v1877
  %v2127 = vsel %vm2120, %v1838, %v1878
  %v2128 = vsel %vm2120, %v1839, %v1879
  %vm2129 = vcmask 1043456
  %v2130 = vsel %vm2129, %v2121, %v1912
  %v2131 = vsel %vm2129, %v2122, %v1913
  %v2132 = vsel %vm2129, %v2123, %v1914
  %v2133 = vsel %vm2129, %v2124, %v1915
  %v2134 = vsel %vm2129, %v2125, %v1916
  %v2135 = vsel %vm2129, %v2126, %v1917
  %v2136 = vsel %vm2129, %v2127, %v1918
  %v2137 = vsel %vm2129, %v2128, %v1919
  %vm2138 = vcmask 1045504
  %v2139 = vsel %vm2138, %v2130, %v1952
  %v2140 = vsel %vm2138, %v2131, %v1953
  %v2141 = vsel %vm2138, %v2132, %v1954
  %v2142 = vsel %vm2138, %v2133, %v1955
  %v2143 = vsel %vm2138, %v2134, %v1956
  %v2144 = vsel %vm2138, %v2135, %v1957
  %v2145 = vsel %vm2138, %v2136, %v1958
  %v2146 = vsel %vm2138, %v2137, %v1959
  %v2147 = vsel %vm2120, %v1992, %v2032
  %v2148 = vsel %vm2120, %v1993, %v2033
  %v2149 = vsel %vm2120, %v1994, %v2034
  %v2150 = vsel %vm2120, %v1995, %v2035
  %v2151 = vsel %vm2120, %v1996, %v2036
  %v2152 = vsel %vm2120, %v1997, %v2037
  %v2153 = vsel %vm2120, %v1998, %v2038
  %v2154 = vsel %vm2120, %v1999, %v2039
  %v2155 = vsel %vm2129, %v2147, %v2072
  %v2156 = vsel %vm2129, %v2148, %v2073
  %v2157 = vsel %vm2129, %v2149, %v2074
  %v2158 = vsel %vm2129, %v2150, %v2075
  %v2159 = vsel %vm2129, %v2151, %v2076
  %v2160 = vsel %vm2129, %v2152, %v2077
  %v2161 = vsel %vm2129, %v2153, %v2078
  %v2162 = vsel %vm2129, %v2154, %v2079
  %v2163 = vsel %vm2138, %v2155, %v2112
  %v2164 = vsel %vm2138, %v2156, %v2113
  %v2165 = vsel %vm2138, %v2157, %v2114
  %v2166 = vsel %vm2138, %v2158, %v2115
  %v2167 = vsel %vm2138, %v2159, %v2116
  %v2168 = vsel %vm2138, %v2160, %v2117
  %v2169 = vsel %vm2138, %v2161, %v2118
  %v2170 = vsel %vm2138, %v2162, %v2119
  %v2171 = vmul.f32 %v2139, %v669
  %v2172 = vmul.f32 %v2140, %v744
  %v2173 = vmul.f32 %v2141, %v746
  %v2174 = vmul.f32 %v2142, %v821
  %v2175 = vmul.f32 %v2143, %v823
  %v2176 = vmul.f32 %v2144, %v898
  %v2177 = vmul.f32 %v2145, %v900
  %v2178 = vmul.f32 %v2146, %v975
  %v2179 = vmul.f32 %v2163, %v675
  %v2180 = vmul.f32 %v2164, %v750
  %v2181 = vmul.f32 %v2165, %v752
  %v2182 = vmul.f32 %v2166, %v827
  %v2183 = vmul.f32 %v2167, %v829
  %v2184 = vmul.f32 %v2168, %v904
  %v2185 = vmul.f32 %v2169, %v906
  %v2186 = vmul.f32 %v2170, %v980
  %v2187 = vld [vmem:[%s7] sm:$0xff]
  %v2188 = vld [vmem:[%s7 + $0x8] sm:$0xff]
  %v2189 = vld [vmem:[%s7 + $0x10] sm:$0xff]
  %v2190 = vld [vmem:[%s7 + $0x18] sm:$0xff]
  %v2191 = vld [vmem:[%s7 + $0x20] sm:$0xff]
  %v2192 = vld [vmem:[%s7 + $0x28] sm:$0xff]
  %v2193 = vld [vmem:[%s7 + $0x30] sm:$0xff]
  %v2194 = vld [vmem:[%s7 + $0x38] sm:$0xff]
  %v2195 = vld [vmem:[%s7 + $0x40] sm:$0xff]
  %v2196 = vld [vmem:[%s7 + $0x48] sm:$0xff]
  %v2197 = vld [vmem:[%s7 + $0x50] sm:$0xff]
  %v2198 = vld [vmem:[%s7 + $0x58] sm:$0xff]
  %v2199 = vld [vmem:[%s7 + $0x60] sm:$0xff]
  %v2200 = vld [vmem:[%s7 + $0x68] sm:$0xff]
  %v2201 = vld [vmem:[%s7 + $0x70] sm:$0xff]
  %v2202 = vld [vmem:[%s7 + $0x78] sm:$0xff]
  %v2203 = vld [vmem:[%s7 + $0x80] sm:$0xff]
  %v2204 = vld [vmem:[%s7 + $0x88] sm:$0xff]
  %v2205 = vld [vmem:[%s7 + $0x90] sm:$0xff]
  %v2206 = vld [vmem:[%s7 + $0x98] sm:$0xff]
  %v2207 = vld [vmem:[%s7 + $0xa0] sm:$0xff]
  %v2208 = vld [vmem:[%s7 + $0xa8] sm:$0xff]
  %v2209 = vld [vmem:[%s7 + $0xb0] sm:$0xff]
  %v2210 = vld [vmem:[%s7 + $0xb8] sm:$0xff]
  %v2211 = vld [vmem:[%s7 + $0xc0] sm:$0xff]
  %v2212 = vld [vmem:[%s7 + $0xc8] sm:$0xff]
  %v2213 = vld [vmem:[%s7 + $0xd0] sm:$0xff]
  %v2214 = vld [vmem:[%s7 + $0xd8] sm:$0xff]
  %v2215 = vld [vmem:[%s7 + $0xe0] sm:$0xff]
  %v2216 = vld [vmem:[%s7 + $0xe8] sm:$0xff]
  %v2217 = vld [vmem:[%s7 + $0xf0] sm:$0xff]
  %v2218 = vld [vmem:[%s7 + $0xf8] sm:$0xff]
  %v2219 = vld [vmem:[%s7 + $0x100] sm:$0xff]
  %v2220 = vld [vmem:[%s7 + $0x108] sm:$0xff]
  %v2221 = vld [vmem:[%s7 + $0x110] sm:$0xff]
  %v2222 = vld [vmem:[%s7 + $0x118] sm:$0xff]
  %v2223 = vld [vmem:[%s7 + $0x120] sm:$0xff]
  %v2224 = vld [vmem:[%s7 + $0x128] sm:$0xff]
  %v2225 = vld [vmem:[%s7 + $0x130] sm:$0xff]
  %v2226 = vld [vmem:[%s7 + $0x138] sm:$0xff]
  %v2227 = vld [vmem:[%s7 + $0x140] sm:$0xff]
  %v2228 = vld [vmem:[%s7 + $0x148] sm:$0xff]
  %v2229 = vld [vmem:[%s7 + $0x150] sm:$0xff]
  %v2230 = vld [vmem:[%s7 + $0x158] sm:$0xff]
  %v2231 = vld [vmem:[%s7 + $0x160] sm:$0xff]
  %v2232 = vld [vmem:[%s7 + $0x168] sm:$0xff]
  %v2233 = vld [vmem:[%s7 + $0x170] sm:$0xff]
  %v2234 = vld [vmem:[%s7 + $0x178] sm:$0xff]
  %v2235 = vld [vmem:[%s7 + $0x180] sm:$0xff]
  %v2236 = vld [vmem:[%s7 + $0x188] sm:$0xff]
  %v2237 = vld [vmem:[%s7 + $0x190] sm:$0xff]
  %v2238 = vld [vmem:[%s7 + $0x198] sm:$0xff]
  %v2239 = vld [vmem:[%s7 + $0x1a0] sm:$0xff]
  %v2240 = vld [vmem:[%s7 + $0x1a8] sm:$0xff]
  %v2241 = vld [vmem:[%s7 + $0x1b0] sm:$0xff]
  %v2242 = vld [vmem:[%s7 + $0x1b8] sm:$0xff]
  %v2243 = vld [vmem:[%s7 + $0x1c0] sm:$0xff]
  %v2244 = vld [vmem:[%s7 + $0x1c8] sm:$0xff]
  %v2245 = vld [vmem:[%s7 + $0x1d0] sm:$0xff]
  %v2246 = vld [vmem:[%s7 + $0x1d8] sm:$0xff]
  %v2247 = vld [vmem:[%s7 + $0x1e0] sm:$0xff]
  %v2248 = vld [vmem:[%s7 + $0x1e8] sm:$0xff]
  %v2249 = vld [vmem:[%s7 + $0x1f0] sm:$0xff]
  %v2250 = vld [vmem:[%s7 + $0x1f8] sm:$0xff]
  %v2251 = vld [vmem:[%s7 + $0x200] sm:$0xff]
  %v2252 = vld [vmem:[%s7 + $0x208] sm:$0xff]
  %v2253 = vld [vmem:[%s7 + $0x210] sm:$0xff]
  %v2254 = vld [vmem:[%s7 + $0x218] sm:$0xff]
  %v2255 = vld [vmem:[%s7 + $0x220] sm:$0xff]
  %v2256 = vld [vmem:[%s7 + $0x228] sm:$0xff]
  %v2257 = vld [vmem:[%s7 + $0x230] sm:$0xff]
  %v2258 = vld [vmem:[%s7 + $0x238] sm:$0xff]
  %v2259 = vld [vmem:[%s7 + $0x240] sm:$0xff]
  %v2260 = vld [vmem:[%s7 + $0x248] sm:$0xff]
  %v2261 = vld [vmem:[%s7 + $0x250] sm:$0xff]
  %v2262 = vld [vmem:[%s7 + $0x258] sm:$0xff]
  %v2263 = vld [vmem:[%s7 + $0x260] sm:$0xff]
  %v2264 = vld [vmem:[%s7 + $0x268] sm:$0xff]
  %v2265 = vld [vmem:[%s7 + $0x270] sm:$0xff]
  %v2266 = vld [vmem:[%s7 + $0x278] sm:$0xff]
  %v2267 = vld [vmem:[%s7 + $0x280] sm:$0xff]
  %v2268 = vld [vmem:[%s7 + $0x288] sm:$0xff]
  %v2269 = vld [vmem:[%s7 + $0x290] sm:$0xff]
  %v2270 = vld [vmem:[%s7 + $0x298] sm:$0xff]
  %v2271 = vld [vmem:[%s7 + $0x2a0] sm:$0xff]
  %v2272 = vld [vmem:[%s7 + $0x2a8] sm:$0xff]
  %v2273 = vld [vmem:[%s7 + $0x2b0] sm:$0xff]
  %v2274 = vld [vmem:[%s7 + $0x2b8] sm:$0xff]
  %v2275 = vld [vmem:[%s7 + $0x2c0] sm:$0xff]
  %v2276 = vld [vmem:[%s7 + $0x2c8] sm:$0xff]
  %v2277 = vld [vmem:[%s7 + $0x2d0] sm:$0xff]
  %v2278 = vld [vmem:[%s7 + $0x2d8] sm:$0xff]
  %v2279 = vld [vmem:[%s7 + $0x2e0] sm:$0xff]
  %v2280 = vld [vmem:[%s7 + $0x2e8] sm:$0xff]
  %v2281 = vld [vmem:[%s7 + $0x2f0] sm:$0xff]
  %v2282 = vld [vmem:[%s7 + $0x2f8] sm:$0xff]
  %v2283 = vld [vmem:[%s7 + $0x300] sm:$0xff]
  %v2284 = vld [vmem:[%s7 + $0x308] sm:$0xff]
  %v2285 = vld [vmem:[%s7 + $0x310] sm:$0xff]
  %v2286 = vld [vmem:[%s7 + $0x318] sm:$0xff]
  %v2287 = vld [vmem:[%s7 + $0x320] sm:$0xff]
  %v2288 = vld [vmem:[%s7 + $0x328] sm:$0xff]
  %v2289 = vld [vmem:[%s7 + $0x330] sm:$0xff]
  %v2290 = vld [vmem:[%s7 + $0x338] sm:$0xff]
  %v2291 = vld [vmem:[%s7 + $0x340] sm:$0xff]
  %v2292 = vld [vmem:[%s7 + $0x348] sm:$0xff]
  %v2293 = vld [vmem:[%s7 + $0x350] sm:$0xff]
  %v2294 = vld [vmem:[%s7 + $0x358] sm:$0xff]
  %v2295 = vld [vmem:[%s7 + $0x360] sm:$0xff]
  %v2296 = vld [vmem:[%s7 + $0x368] sm:$0xff]
  %v2297 = vld [vmem:[%s7 + $0x370] sm:$0xff]
  %v2298 = vld [vmem:[%s7 + $0x378] sm:$0xff]
  %v2299 = vld [vmem:[%s7 + $0x380] sm:$0xff]
  %v2300 = vld [vmem:[%s7 + $0x388] sm:$0xff]
  %v2301 = vld [vmem:[%s7 + $0x390] sm:$0xff]
  %v2302 = vld [vmem:[%s7 + $0x398] sm:$0xff]
  %v2303 = vld [vmem:[%s7 + $0x3a0] sm:$0xff]
  %v2304 = vld [vmem:[%s7 + $0x3a8] sm:$0xff]
  %v2305 = vld [vmem:[%s7 + $0x3b0] sm:$0xff]
  %v2306 = vld [vmem:[%s7 + $0x3b8] sm:$0xff]
  %v2307 = vld [vmem:[%s7 + $0x3c0] sm:$0xff]
  %v2308 = vld [vmem:[%s7 + $0x3c8] sm:$0xff]
  %v2309 = vld [vmem:[%s7 + $0x3d0] sm:$0xff]
  %v2310 = vld [vmem:[%s7 + $0x3d8] sm:$0xff]
  %v2311 = vld [vmem:[%s7 + $0x3e0] sm:$0xff]
  %v2312 = vld [vmem:[%s7 + $0x3e8] sm:$0xff]
  %v2313 = vld [vmem:[%s7 + $0x3f0] sm:$0xff]
  %v2314 = vld [vmem:[%s7 + $0x3f8] sm:$0xff]
  %v2315 = vld [vmem:[%s8] sm:$0x1]
  %v2317 = vlaneseq
  %v2318 = vshrl.u32 %v2317, 7
  %v2319 = vsub.s32 0, %v2318
  %v2320 = vrot.slane %v2315, %v2319
  %v2322 = vmul.f32 %v147, %v2320
  %v2323 = vmul.f32 %v148, %v2320
  %2324 = vmatprep.subr.mxu0 0.0
  %2325 = vmatpush1.msra.mxu0 %v2187
  %2326 = vmatprep.subr.mxu0 0.0
  %2327 = vmatpush1.msra.mxu0 %v2188
  %2328 = vmatprep.subr.mxu0 0.0
  %2329 = vmatpush1.msra.mxu0 %v2189
  %2330 = vmatprep.subr.mxu0 0.0
  %2331 = vmatpush1.msra.mxu0 %v2190
  %2332 = vmatprep.subr.mxu0 0.0
  %2333 = vmatpush1.msra.mxu0 %v2191
  %2334 = vmatprep.subr.mxu0 0.0
  %2335 = vmatpush1.msra.mxu0 %v2192
  %2336 = vmatprep.subr.mxu0 0.0
  %2337 = vmatpush1.msra.mxu0 %v2193
  %2338 = vmatprep.subr.mxu0 0.0
  %2339 = vmatpush1.msra.mxu0 %v2194
  %2340 = vmatprep.subr.mxu0 0.0
  %2341 = vmatpush1.msra.mxu0 %v2195
  %2342 = vmatprep.subr.mxu0 0.0
  %2343 = vmatpush1.msra.mxu0 %v2196
  %2344 = vmatprep.subr.mxu0 0.0
  %2345 = vmatpush1.msra.mxu0 %v2197
  %2346 = vmatprep.subr.mxu0 0.0
  %2347 = vmatpush1.msra.mxu0 %v2198
  %2348 = vmatprep.subr.mxu0 0.0
  %2349 = vmatpush1.msra.mxu0 %v2199
  %2350 = vmatprep.subr.mxu0 0.0
  %2351 = vmatpush1.msra.mxu0 %v2200
  %2352 = vmatprep.subr.mxu0 0.0
  %2353 = vmatpush1.msra.mxu0 %v2201
  %2354 = vmatprep.subr.mxu0 0.0
  %2355 = vmatpush1.msra.mxu0 %v2202
  %2356 = vmatprep.subr.mxu0 0.0
  %2357 = vmatpush1.msra.mxu0 %v2203
  %2358 = vmatprep.subr.mxu0 0.0
  %2359 = vmatpush1.msra.mxu0 %v2204
  %2360 = vmatprep.subr.mxu0 0.0
  %2361 = vmatpush1.msra.mxu0 %v2205
  %2362 = vmatprep.subr.mxu0 0.0
  %2363 = vmatpush1.msra.mxu0 %v2206
  %2364 = vmatprep.subr.mxu0 0.0
  %2365 = vmatpush1.msra.mxu0 %v2207
  %2366 = vmatprep.subr.mxu0 0.0
  %2367 = vmatpush1.msra.mxu0 %v2208
  %2368 = vmatprep.subr.mxu0 0.0
  %2369 = vmatpush1.msra.mxu0 %v2209
  %2370 = vmatprep.subr.mxu0 0.0
  %2371 = vmatpush1.msra.mxu0 %v2210
  %2372 = vmatprep.subr.mxu0 0.0
  %2373 = vmatpush1.msra.mxu0 %v2211
  %2374 = vmatprep.subr.mxu0 0.0
  %2375 = vmatpush1.msra.mxu0 %v2212
  %2376 = vmatprep.subr.mxu0 0.0
  %2377 = vmatpush1.msra.mxu0 %v2213
  %2378 = vmatprep.subr.mxu0 0.0
  %2379 = vmatpush1.msra.mxu0 %v2214
  %2380 = vmatprep.subr.mxu0 0.0
  %2381 = vmatpush1.msra.mxu0 %v2215
  %2382 = vmatprep.subr.mxu0 0.0
  %2383 = vmatpush1.msra.mxu0 %v2216
  %2384 = vmatprep.subr.mxu0 0.0
  %2385 = vmatpush1.msra.mxu0 %v2217
  %2386 = vmatprep.subr.mxu0 0.0
  %2387 = vmatpush1.msra.mxu0 %v2218
  %2388 = vmatprep.mubr.f32.mxu0 %v2172
  %2389 = vmatmul.mubr.f32.gmra.mrb[0].mxu0 %v2171
  %v2390 = vpop.f32.mrb[0].mxu0
  %v2391 = vadd.f32 %v2322, %v2390
  %v2392 = vpop.f32.mrb[0].mxu0
  %2393 = vmatprep.mubr.f32.mxu0 %v2180
  %2394 = vmatmul.mubr.f32.gmra.mrb[0].mxu0 %v2179
  %v2395 = vpop.f32.mrb[0].mxu0
  %v2396 = vadd.f32 %v2323, %v2395
  %v2397 = vpop.f32.mrb[0].mxu0
  %2398 = vdwg.mxu0
  %2399 = vmatprep.subr.mxu0 0.0
  %2400 = vmatpush1.msra.mxu0 %v2219
  %2401 = vmatprep.subr.mxu0 0.0
  %2402 = vmatpush1.msra.mxu0 %v2220
  %2403 = vmatprep.subr.mxu0 0.0
  %2404 = vmatpush1.msra.mxu0 %v2221
  %2405 = vmatprep.subr.mxu0 0.0
  %2406 = vmatpush1.msra.mxu0 %v2222
  %2407 = vmatprep.subr.mxu0 0.0
  %2408 = vmatpush1.msra.mxu0 %v2223
  %2409 = vmatprep.subr.mxu0 0.0
  %2410 = vmatpush1.msra.mxu0 %v2224
  %2411 = vmatprep.subr.mxu0 0.0
  %2412 = vmatpush1.msra.mxu0 %v2225
  %2413 = vmatprep.subr.mxu0 0.0
  %2414 = vmatpush1.msra.mxu0 %v2226
  %2415 = vmatprep.subr.mxu0 0.0
  %2416 = vmatpush1.msra.mxu0 %v2227
  %2417 = vmatprep.subr.mxu0 0.0
  %2418 = vmatpush1.msra.mxu0 %v2228
  %2419 = vmatprep.subr.mxu0 0.0
  %2420 = vmatpush1.msra.mxu0 %v2229
  %2421 = vmatprep.subr.mxu0 0.0
  %2422 = vmatpush1.msra.mxu0 %v2230
  %2423 = vmatprep.subr.mxu0 0.0
  %2424 = vmatpush1.msra.mxu0 %v2231
  %2425 = vmatprep.subr.mxu0 0.0
  %2426 = vmatpush1.msra.mxu0 %v2232
  %2427 = vmatprep.subr.mxu0 0.0
  %2428 = vmatpush1.msra.mxu0 %v2233
  %2429 = vmatprep.subr.mxu0 0.0
  %2430 = vmatpush1.msra.mxu0 %v2234
  %2431 = vmatprep.subr.mxu0 0.0
  %2432 = vmatpush1.msra.mxu0 %v2235
  %2433 = vmatprep.subr.mxu0 0.0
  %2434 = vmatpush1.msra.mxu0 %v2236
  %2435 = vmatprep.subr.mxu0 0.0
  %2436 = vmatpush1.msra.mxu0 %v2237
  %2437 = vmatprep.subr.mxu0 0.0
  %2438 = vmatpush1.msra.mxu0 %v2238
  %2439 = vmatprep.subr.mxu0 0.0
  %2440 = vmatpush1.msra.mxu0 %v2239
  %2441 = vmatprep.subr.mxu0 0.0
  %2442 = vmatpush1.msra.mxu0 %v2240
  %2443 = vmatprep.subr.mxu0 0.0
  %2444 = vmatpush1.msra.mxu0 %v2241
  %2445 = vmatprep.subr.mxu0 0.0
  %2446 = vmatpush1.msra.mxu0 %v2242
  %2447 = vmatprep.subr.mxu0 0.0
  %2448 = vmatpush1.msra.mxu0 %v2243
  %2449 = vmatprep.subr.mxu0 0.0
  %2450 = vmatpush1.msra.mxu0 %v2244
  %2451 = vmatprep.subr.mxu0 0.0
  %2452 = vmatpush1.msra.mxu0 %v2245
  %2453 = vmatprep.subr.mxu0 0.0
  %2454 = vmatpush1.msra.mxu0 %v2246
  %2455 = vmatprep.subr.mxu0 0.0
  %2456 = vmatpush1.msra.mxu0 %v2247
  %2457 = vmatprep.subr.mxu0 0.0
  %2458 = vmatpush1.msra.mxu0 %v2248
  %2459 = vmatprep.subr.mxu0 0.0
  %2460 = vmatpush1.msra.mxu0 %v2249
  %2461 = vmatprep.subr.mxu0 0.0
  %2462 = vmatpush1.msra.mxu0 %v2250
  %2463 = vmatprep.mubr.f32.mxu0 %v2174
  %2464 = vmatmul.mubr.f32.gmra.mrb[0].mxu0 %v2173
  %v2465 = vpop.f32.mrb[0].mxu0
  %v2466 = vadd.f32 %v2391, %v2465
  %v2467 = vpop.f32.mrb[0].mxu0
  %2468 = vmatprep.mubr.f32.mxu0 %v2182
  %2469 = vmatmul.mubr.f32.gmra.mrb[0].mxu0 %v2181
  %v2470 = vpop.f32.mrb[0].mxu0
  %v2471 = vadd.f32 %v2396, %v2470
  %v2472 = vpop.f32.mrb[0].mxu0
  %2473 = vdwg.mxu0
  %2474 = vmatprep.subr.mxu0 0.0
  %2475 = vmatpush1.msra.mxu0 %v2251
  %2476 = vmatprep.subr.mxu0 0.0
  %2477 = vmatpush1.msra.mxu0 %v2252
  %2478 = vmatprep.subr.mxu0 0.0
  %2479 = vmatpush1.msra.mxu0 %v2253
  %2480 = vmatprep.subr.mxu0 0.0
  %2481 = vmatpush1.msra.mxu0 %v2254
  %2482 = vmatprep.subr.mxu0 0.0
  %2483 = vmatpush1.msra.mxu0 %v2255
  %2484 = vmatprep.subr.mxu0 0.0
  %2485 = vmatpush1.msra.mxu0 %v2256
  %2486 = vmatprep.subr.mxu0 0.0
  %2487 = vmatpush1.msra.mxu0 %v2257
  %2488 = vmatprep.subr.mxu0 0.0
  %2489 = vmatpush1.msra.mxu0 %v2258
  %2490 = vmatprep.subr.mxu0 0.0
  %2491 = vmatpush1.msra.mxu0 %v2259
  %2492 = vmatprep.subr.mxu0 0.0
  %2493 = vmatpush1.msra.mxu0 %v2260
  %2494 = vmatprep.subr.mxu0 0.0
  %2495 = vmatpush1.msra.mxu0 %v2261
  %2496 = vmatprep.subr.mxu0 0.0
  %2497 = vmatpush1.msra.mxu0 %v2262
  %2498 = vmatprep.subr.mxu0 0.0
  %2499 = vmatpush1.msra.mxu0 %v2263
  %2500 = vmatprep.subr.mxu0 0.0
  %2501 = vmatpush1.msra.mxu0 %v2264
  %2502 = vmatprep.subr.mxu0 0.0
  %2503 = vmatpush1.msra.mxu0 %v2265
  %2504 = vmatprep.subr.mxu0 0.0
  %2505 = vmatpush1.msra.mxu0 %v2266
  %2506 = vmatprep.subr.mxu0 0.0
  %2507 = vmatpush1.msra.mxu0 %v2267
  %2508 = vmatprep.subr.mxu0 0.0
  %2509 = vmatpush1.msra.mxu0 %v2268
  %2510 = vmatprep.subr.mxu0 0.0
  %2511 = vmatpush1.msra.mxu0 %v2269
  %2512 = vmatprep.subr.mxu0 0.0
  %2513 = vmatpush1.msra.mxu0 %v2270
  %2514 = vmatprep.subr.mxu0 0.0
  %2515 = vmatpush1.msra.mxu0 %v2271
  %2516 = vmatprep.subr.mxu0 0.0
  %2517 = vmatpush1.msra.mxu0 %v2272
  %2518 = vmatprep.subr.mxu0 0.0
  %2519 = vmatpush1.msra.mxu0 %v2273
  %2520 = vmatprep.subr.mxu0 0.0
  %2521 = vmatpush1.msra.mxu0 %v2274
  %2522 = vmatprep.subr.mxu0 0.0
  %2523 = vmatpush1.msra.mxu0 %v2275
  %2524 = vmatprep.subr.mxu0 0.0
  %2525 = vmatpush1.msra.mxu0 %v2276
  %2526 = vmatprep.subr.mxu0 0.0
  %2527 = vmatpush1.msra.mxu0 %v2277
  %2528 = vmatprep.subr.mxu0 0.0
  %2529 = vmatpush1.msra.mxu0 %v2278
  %2530 = vmatprep.subr.mxu0 0.0
  %2531 = vmatpush1.msra.mxu0 %v2279
  %2532 = vmatprep.subr.mxu0 0.0
  %2533 = vmatpush1.msra.mxu0 %v2280
  %2534 = vmatprep.subr.mxu0 0.0
  %2535 = vmatpush1.msra.mxu0 %v2281
  %2536 = vmatprep.subr.mxu0 0.0
  %2537 = vmatpush1.msra.mxu0 %v2282
  %2538 = vmatprep.mubr.f32.mxu0 %v2176
  %2539 = vmatmul.mubr.f32.gmra.mrb[0].mxu0 %v2175
  %v2540 = vpop.f32.mrb[0].mxu0
  %v2541 = vadd.f32 %v2466, %v2540
  %v2542 = vpop.f32.mrb[0].mxu0
  %2543 = vmatprep.mubr.f32.mxu0 %v2184
  %2544 = vmatmul.mubr.f32.gmra.mrb[0].mxu0 %v2183
  %v2545 = vpop.f32.mrb[0].mxu0
  %v2546 = vadd.f32 %v2471, %v2545
  %v2547 = vpop.f32.mrb[0].mxu0
  %2548 = vdwg.mxu0
  %2549 = vmatprep.subr.mxu0 0.0
  %2550 = vmatpush1.msra.mxu0 %v2283
  %2551 = vmatprep.subr.mxu0 0.0
  %2552 = vmatpush1.msra.mxu0 %v2284
  %2553 = vmatprep.subr.mxu0 0.0
  %2554 = vmatpush1.msra.mxu0 %v2285
  %2555 = vmatprep.subr.mxu0 0.0
  %2556 = vmatpush1.msra.mxu0 %v2286
  %2557 = vmatprep.subr.mxu0 0.0
  %2558 = vmatpush1.msra.mxu0 %v2287
  %2559 = vmatprep.subr.mxu0 0.0
  %2560 = vmatpush1.msra.mxu0 %v2288
  %2561 = vmatprep.subr.mxu0 0.0
  %2562 = vmatpush1.msra.mxu0 %v2289
  %2563 = vmatprep.subr.mxu0 0.0
  %2564 = vmatpush1.msra.mxu0 %v2290
  %2565 = vmatprep.subr.mxu0 0.0
  %2566 = vmatpush1.msra.mxu0 %v2291
  %2567 = vmatprep.subr.mxu0 0.0
  %2568 = vmatpush1.msra.mxu0 %v2292
  %2569 = vmatprep.subr.mxu0 0.0
  %2570 = vmatpush1.msra.mxu0 %v2293
  %2571 = vmatprep.subr.mxu0 0.0
  %2572 = vmatpush1.msra.mxu0 %v2294
  %2573 = vmatprep.subr.mxu0 0.0
  %2574 = vmatpush1.msra.mxu0 %v2295
  %2575 = vmatprep.subr.mxu0 0.0
  %2576 = vmatpush1.msra.mxu0 %v2296
  %2577 = vmatprep.subr.mxu0 0.0
  %2578 = vmatpush1.msra.mxu0 %v2297
  %2579 = vmatprep.subr.mxu0 0.0
  %2580 = vmatpush1.msra.mxu0 %v2298
  %2581 = vmatprep.subr.mxu0 0.0
  %2582 = vmatpush1.msra.mxu0 %v2299
  %2583 = vmatprep.subr.mxu0 0.0
  %2584 = vmatpush1.msra.mxu0 %v2300
  %2585 = vmatprep.subr.mxu0 0.0
  %2586 = vmatpush1.msra.mxu0 %v2301
  %2587 = vmatprep.subr.mxu0 0.0
  %2588 = vmatpush1.msra.mxu0 %v2302
  %2589 = vmatprep.subr.mxu0 0.0
  %2590 = vmatpush1.msra.mxu0 %v2303
  %2591 = vmatprep.subr.mxu0 0.0
  %2592 = vmatpush1.msra.mxu0 %v2304
  %2593 = vmatprep.subr.mxu0 0.0
  %2594 = vmatpush1.msra.mxu0 %v2305
  %2595 = vmatprep.subr.mxu0 0.0
  %2596 = vmatpush1.msra.mxu0 %v2306
  %2597 = vmatprep.subr.mxu0 0.0
  %2598 = vmatpush1.msra.mxu0 %v2307
  %2599 = vmatprep.subr.mxu0 0.0
  %2600 = vmatpush1.msra.mxu0 %v2308
  %2601 = vmatprep.subr.mxu0 0.0
  %2602 = vmatpush1.msra.mxu0 %v2309
  %2603 = vmatprep.subr.mxu0 0.0
  %2604 = vmatpush1.msra.mxu0 %v2310
  %2605 = vmatprep.subr.mxu0 0.0
  %2606 = vmatpush1.msra.mxu0 %v2311
  %2607 = vmatprep.subr.mxu0 0.0
  %2608 = vmatpush1.msra.mxu0 %v2312
  %2609 = vmatprep.subr.mxu0 0.0
  %2610 = vmatpush1.msra.mxu0 %v2313
  %2611 = vmatprep.subr.mxu0 0.0
  %2612 = vmatpush1.msra.mxu0 %v2314
  %2613 = vmatprep.mubr.f32.mxu0 %v2178
  %2614 = vmatmul.mubr.f32.gmra.mrb[0].mxu0 %v2177
  %v2615 = vpop.f32.mrb[0].mxu0
  %v2616 = vadd.f32 %v2541, %v2615
  %v2617 = vpop.f32.mrb[0].mxu0
  %2618 = vmatprep.mubr.f32.mxu0 %v2186
  %2619 = vmatmul.mubr.f32.gmra.mrb[0].mxu0 %v2185
  %v2620 = vpop.f32.mrb[0].mxu0
  %v2621 = vadd.f32 %v2546, %v2620
  %v2622 = vpop.f32.mrb[0].mxu0
  %2623 = vdwg.mxu0
  %2624 = vrot.lane.b32.xlu0 %v147, 64
  %v2625 = vpop.permute.xlu0 %2624
  %2626 = vrot.lane.b32.xlu0 %v148, 64
  %v2627 = vpop.permute.xlu0 %2626
  %v2630 = vmul.f32 %v2616, %v2625
  %v2631 = vmul.f32 %v2621, %v2627
  %v2632 = vld [vmem:[%s9] sm:$0xff]
  %v2633 = vld [vmem:[%s9 + $0x8] sm:$0xff]
  %v2634 = vld [vmem:[%s9 + $0x10] sm:$0xff]
  %v2635 = vld [vmem:[%s9 + $0x18] sm:$0xff]
  %v2636 = vld [vmem:[%s9 + $0x20] sm:$0xff]
  %v2637 = vld [vmem:[%s9 + $0x28] sm:$0xff]
  %v2638 = vld [vmem:[%s9 + $0x30] sm:$0xff]
  %v2639 = vld [vmem:[%s9 + $0x38] sm:$0xff]
  %v2641 = vsel %vm285, %v2630, 0
  %v2644 = vsel %vm285, %v2631, 0
  %2646 = vmatprep.subr.mxu0 0.0
  %2647 = vmatpush1.msra.mxu0 %v2632
  %2648 = vmatprep.subr.mxu0 0.0
  %2649 = vmatpush1.msra.mxu0 %v2633
  %2650 = vmatprep.subr.mxu0 0.0
  %2651 = vmatpush1.msra.mxu0 %v2634
  %2652 = vmatprep.subr.mxu0 0.0
  %2653 = vmatpush1.msra.mxu0 %v2635
  %2654 = vmatprep.subr.mxu0 0.0
  %2655 = vmatpush1.msra.mxu0 %v2636
  %2656 = vmatprep.subr.mxu0 0.0
  %2657 = vmatpush1.msra.mxu0 %v2637
  %2658 = vmatprep.subr.mxu0 0.0
  %2659 = vmatpush1.msra.mxu0 %v2638
  %2660 = vmatprep.subr.mxu0 0.0
  %2661 = vmatpush1.msra.mxu0 %v2639
  %2662 = vmatprep.subr.mxu0 0.0
  %2663 = vmatpush1.msra.mxu0 0.0
  %2664 = vmatprep.subr.mxu0 0.0
  %2665 = vmatpush1.msra.mxu0 0.0
  %2666 = vmatprep.subr.mxu0 0.0
  %2667 = vmatpush1.msra.mxu0 0.0
  %2668 = vmatprep.subr.mxu0 0.0
  %2669 = vmatpush1.msra.mxu0 0.0
  %2670 = vmatprep.subr.mxu0 0.0
  %2671 = vmatpush1.msra.mxu0 0.0
  %2672 = vmatprep.subr.mxu0 0.0
  %2673 = vmatpush1.msra.mxu0 0.0
  %2674 = vmatprep.subr.mxu0 0.0
  %2675 = vmatpush1.msra.mxu0 0.0
  %2676 = vmatprep.subr.mxu0 0.0
  %2677 = vmatpush1.msra.mxu0 0.0
  %2678 = vmatprep.subr.mxu0 0.0
  %2679 = vmatpush1.msra.mxu0 0.0
  %2680 = vmatprep.subr.mxu0 0.0
  %2681 = vmatpush1.msra.mxu0 0.0
  %2682 = vmatprep.subr.mxu0 0.0
  %2683 = vmatpush1.msra.mxu0 0.0
  %2684 = vmatprep.subr.mxu0 0.0
  %2685 = vmatpush1.msra.mxu0 0.0
  %2686 = vmatprep.subr.mxu0 0.0
  %2687 = vmatpush1.msra.mxu0 0.0
  %2688 = vmatprep.subr.mxu0 0.0
  %2689 = vmatpush1.msra.mxu0 0.0
  %2690 = vmatprep.subr.mxu0 0.0
  %2691 = vmatpush1.msra.mxu0 0.0
  %2692 = vmatprep.subr.mxu0 0.0
  %2693 = vmatpush1.msra.mxu0 0.0
  %2694 = vmatprep.subr.mxu0 0.0
  %2695 = vmatpush1.msra.mxu0 0.0
  %2696 = vmatprep.subr.mxu0 0.0
  %2697 = vmatpush1.msra.mxu0 0.0
  %2698 = vmatprep.subr.mxu0 0.0
  %2699 = vmatpush1.msra.mxu0 0.0
  %2700 = vmatprep.subr.mxu0 0.0
  %2701 = vmatpush1.msra.mxu0 0.0
  %2702 = vmatprep.subr.mxu0 0.0
  %2703 = vmatpush1.msra.mxu0 0.0
  %2704 = vmatprep.subr.mxu0 0.0
  %2705 = vmatpush1.msra.mxu0 0.0
  %2706 = vmatprep.subr.mxu0 0.0
  %2707 = vmatpush1.msra.mxu0 0.0
  %2708 = vmatprep.subr.mxu0 0.0
  %2709 = vmatpush1.msra.mxu0 0.0
  %2710 = vmatprep.mubr.f32.mxu0 0.0
  %2711 = vmatmul.mubr.f32.gmra.mrb[0].mxu0 %v2641
  %v2712 = vpop.f32.mrb[0].mxu0
  %v2713 = vadd.f32 0.0, %v2712
  %v2714 = vpop.f32.mrb[0].mxu0
  %2715 = vmatprep.mubr.f32.mxu0 0.0
  %2716 = vmatmul.mubr.f32.gmra.mrb[0].mxu0 %v2644
  %v2717 = vpop.f32.mrb[0].mxu0
  %v2718 = vadd.f32 0.0, %v2717
  %v2719 = vpop.f32.mrb[0].mxu0
  %2720 = vdwg.mxu0
  %2721 = vst [vmem:[%s10] sm:$0xff] %v2713
  %2722 = vst [vmem:[%s10 + $0x8] sm:$0xff] %v2718
  // Predicated region
  $region42: #{mamba_block.1} parent=0 // pred_check
    _
  $region43: #{mamba_block.1} parent=0 // pred_check_branch
    %2724 = sbr.rel (0) target = $region45
  $region44: #{mamba_block.1} parent=0 // pred_region
    _
  $region45: #{mamba_block.1} parent=0 // pred_fallthru
    _
  // Predicated region
  $region46: #{mamba_block.1} parent=0 // pred_check
    _
  $region47: #{mamba_block.1} parent=0 // pred_check_branch
    %2726 = sbr.rel (0) target = $region49
  $region48: #{mamba_block.1} parent=0 // pred_region
    _
  $region49: #{mamba_block.1} parent=0 // pred_fallthru
    _

</llo_original>
